<compile_context>
chip_gen: v6e
topology: v6e:2x2x1
jax: 0.10.0
libtpu: 0.0.40
codegen_flags: <defaults>
</compile_context>

<pallas_src>
import math

import jax
import jax.numpy as jnp
from jax import lax
from jax.experimental import pallas as pl
from jax.experimental.pallas import tpu as pltpu

# Single-buffering marker for grid-constant weight blocks (falls back cleanly
# if this JAX version does not support it).
_BUFFERED = getattr(pl, "Buffered", None)


# ------------------------------- small helpers -------------------------------

def _vmem_budget_bytes():
    """Chip-aware scoped-VMEM budget: ~80% of physical VMEM, capped at 112 MiB.

    v7x (64 MiB/TC) -> ~51 MiB; v5e/v6e (128 MiB) -> ~102 MiB."""
    cap = 128 * 1024 * 1024
    try:
        info = pltpu.get_tpu_info()
        cap = int(getattr(info, "vmem_capacity_bytes", cap))
    except Exception:
        pass
    return max(min(int(0.8 * cap), 112 * 1024 * 1024), 16 * 1024 * 1024)


def _pick_tile(total, max_tile, align):
    """Largest tile <= max_tile (multiple of `align`) dividing `total`,
    or `total` itself when it is small / nothing divides."""
    if total <= max_tile:
        return total
    t = (max_tile // align) * align
    while t >= align:
        if total % t == 0:
            return t
        t -= align
    return total


# --------------------------- transformer layer kernel ------------------------

def _make_layer_kernel(TQ, S, E, H):
    d = E // H
    scale = 1.0 / math.sqrt(d)
    eps_ln = 1e-5
    f32, bf16 = jnp.float32, jnp.bfloat16

    def layernorm(x, w, b):
        mu = jnp.mean(x, axis=-1, keepdims=True)
        var = jnp.mean(jnp.square(x - mu), axis=-1, keepdims=True)
        return (x - mu) * lax.rsqrt(var + eps_ln) * w + b

    def kernel(emb_ref, kv_ref,
               wq_ref, wk_ref, wv_ref, bq_ref, bk_ref, bv_ref,
               wo_ref, bo_ref, ln1w_ref, ln1b_ref,
               ff1w_ref, ff1b_ref, ff2w_ref, ff2b_ref,
               ln2w_ref, ln2b_ref,
               out_ref, ent_ref, k_scr, v_scr):
        # K/V depend only on the batch index: project them once per batch
        # element (t == 0) into persistent head-major bf16 VMEM scratch.
        # The t grid axis is marked "arbitrary", so this gate is megacore-safe.
        @pl.when(pl.program_id(1) == 0)
        def _project_kv():
            kvb = kv_ref[0]                                          # (S, E) bf16
            k = jnp.dot(kvb, wk_ref[...], preferred_element_type=f32) + bk_ref[...]
            v = jnp.dot(kvb, wv_ref[...], preferred_element_type=f32) + bv_ref[...]
            for h in range(H):
                k_scr[h] = k[:, h * d:(h + 1) * d].astype(bf16)
                v_scr[h] = v[:, h * d:(h + 1) * d].astype(bf16)

        x = emb_ref[0]                                               # (TQ, E) f32
        xb = x.astype(bf16)
        q = jnp.dot(xb, wq_ref[...], preferred_element_type=f32) + bq_ref[...]

        o_parts, ent_parts = [], []
        for h in range(H):
            qh = q[:, h * d:(h + 1) * d].astype(bf16)                # (TQ, d)
            s = jnp.einsum("qd,kd->qk", qh, k_scr[h],
                           preferred_element_type=f32) * scale      # (TQ, S)
            m = jnp.max(s, axis=-1, keepdims=True)
            e = jnp.exp(s - m)
            l = jnp.sum(e, axis=-1, keepdims=True)
            inv_l = 1.0 / l          # exact: entropy drives the memory top-k
            # entropy of softmax(s): log(l) - sum(e*(s-m))/l  (no per-elem log)
            ent_parts.append(
                jnp.log(l) - jnp.sum(e * (s - m), axis=-1, keepdims=True) * inv_l)
            o_h = jnp.dot(e.astype(bf16), v_scr[h],
                          preferred_element_type=f32) * inv_l       # (TQ, d)
            o_parts.append(o_h.astype(bf16))

        ent_ref[0] = jnp.concatenate(ent_parts, axis=-1)             # (TQ, H)

        # Head merge + output projection: single full-K (TQ,E)@(E,E) matmul.
        o = jnp.concatenate(o_parts, axis=-1)                        # (TQ, E) bf16
        attn_out = jnp.dot(o, wo_ref[...], preferred_element_type=f32) + bo_ref[...]

        x2 = layernorm(x + attn_out, ln1w_ref[...], ln1b_ref[...])
        h1 = jnp.maximum(
            jnp.dot(x2.astype(bf16), ff1w_ref[...], preferred_element_type=f32)
            + ff1b_ref[...], 0.0)                                    # (TQ, 4E)
        ff = jnp.dot(h1.astype(bf16), ff2w_ref[...],
                     preferred_element_type=f32) + ff2b_ref[...]     # (TQ, E)
        out_ref[0] = layernorm(x2 + ff, ln2w_ref[...], ln2b_ref[...]).astype(out_ref.dtype)

    return kernel


def transformer_layer_pallas(emb, kv, kp, num_heads, *, tq=None):
    """emb: (B,T,E) f32, kv: (B,S,E) f32, kp: prepared params.
    Returns (layer output (B,T,E) bf16, per-head entropy (B,T,H) f32)."""
    B, T, E = emb.shape
    S = kv.shape[1]
    H = num_heads
    d = E // H

    budget = _vmem_budget_bytes()
    if tq is None:
        tq = _pick_tile(T, 512 if budget > (80 << 20) else 256, 16)
    assert T % tq == 0
    nt = T // tq

    kvb = kv.astype(jnp.bfloat16)  # matmul operand only -> stream it in bf16

    weight_names = ["wq_t", "wk_t", "wv_t", "bq", "bk", "bv",
                    "wo_t", "bo", "ln1_w", "ln1_b",
                    "ff1_w_t", "ff1_b", "ff2_w_t", "ff2_b", "ln2_w", "ln2_b"]
    weights = [kp[n] for n in weight_names]
    w_bytes = sum(int(math.prod(w.shape)) * w.dtype.itemsize for w in weights)

    kernel = _make_layer_kernel(tq, S, E, H)

    out_shape = (jax.ShapeDtypeStruct((B, T, E), jnp.bfloat16),
                 jax.ShapeDtypeStruct((B, T, H), jnp.float32))

    flops = B * (20 * T * E * E + 4 * S * E * E + 4 * T * S * E)
    trans = B * H * T * (S + 1)
    bytes_accessed = (B * T * E * 4 + B * S * E * 2 + w_bytes
                      + B * T * E * 2 + B * T * H * 4)

    tile_bytes = 2 * (tq * E * 4 + S * E * 2 + tq * E * 2 + tq * H * 4)
    scr_bytes = 2 * H * S * max(d, 128) * 2

    def _const_spec(arr, single_buffer):
        nd = arr.ndim
        idx = lambda b, t: (0,) * nd
        if single_buffer and _BUFFERED is not None:
            # Grid-constant weights: single-buffer (no overlap benefit from a
            # second buffer; halves their VMEM footprint -> key on v7x).
            return pl.BlockSpec(arr.shape, idx, pipeline_mode=_BUFFERED(1))
        return pl.BlockSpec(arr.shape, idx)

    def _run(single_buffer):
        in_specs = (
            [pl.BlockSpec((1, tq, E), lambda b, t: (b, t, 0)),   # queries / residual
             pl.BlockSpec((1, S, E), lambda b, t: (b, 0, 0))]    # keys/values source
            + [_const_spec(w, single_buffer) for w in weights])
        est = (1 if single_buffer else 2) * w_bytes + tile_bytes + scr_bytes
        vmem_limit = int(min(max(2 * est, 32 * 1024 * 1024), budget))
        return pl.pallas_call(
            kernel,
            out_shape=out_shape,
            grid_spec=pltpu.PrefetchScalarGridSpec(
                num_scalar_prefetch=0,
                grid=(B, nt),
                in_specs=in_specs,
                out_specs=[pl.BlockSpec((1, tq, E), lambda b, t: (b, t, 0)),
                           pl.BlockSpec((1, tq, H), lambda b, t: (b, t, 0))],
                scratch_shapes=[pltpu.VMEM((H, S, d), jnp.bfloat16),
                                pltpu.VMEM((H, S, d), jnp.bfloat16)]),
            compiler_params=pltpu.CompilerParams(
                dimension_semantics=("parallel", "arbitrary"),
                vmem_limit_bytes=vmem_limit),
            cost_estimate=pl.CostEstimate(
                flops=int(flops), transcendentals=int(trans),
                bytes_accessed=int(bytes_accessed)),
        )(emb, kvb, *weights)

    if _BUFFERED is not None:
        try:
            return _run(True)
        except Exception:
            pass  # portability fallback: default double-buffered weights
    return _run(False)


# ------------------------------ vocab projection -----------------------------

def _vocab_kernel(rows_ref, w_ref, b_ref, out_ref):
    out_ref[...] = (jnp.dot(rows_ref[...], w_ref[...],
                            preferred_element_type=jnp.float32) + b_ref[...])


def vocab_projection_pallas(out_l, kp, *, tr=None, tv=None):
    """out_l: (B,T,E) bf16 layer output.  Returns logits (B,T,V) f32.

    Grid is (vocab-tiles, row-tiles) with the vocab axis OUTER, so each (E,tv)
    weight tile is DMA'd once and reused across all B*T rows."""
    B, T, E = out_l.shape
    V = kp["out_w_t"].shape[1]
    R = B * T
    rows = out_l.reshape(R, E)

    budget = _vmem_budget_bytes()
    if tr is None:
        tr = _pick_tile(R, 512 if budget > (80 << 20) else 256, 16)
    if tv is None:
        tv = _pick_tile(V, 2048 if budget > (80 << 20) else 1024, 128)
    assert R % tr == 0 and V % tv == 0
    nr, nv = R // tr, V // tv

    est = 2 * (tr * E * 2 + E * tv * 2 + tv * 4 + tr * tv * 4)
    vmem_limit = int(min(max(2 * est, 32 * 1024 * 1024), budget))

    # TODO(synk): logits kept in f32 to match nn.Linear output; emit bf16 on
    # v5e if downstream tolerates it (halves the (B,T,V) writeback).
    logits = pl.pallas_call(
        _vocab_kernel,
        out_shape=jax.ShapeDtypeStruct((R, V), jnp.float32),
        grid_spec=pltpu.PrefetchScalarGridSpec(
            num_scalar_prefetch=0,
            grid=(nv, nr),
            in_specs=[pl.BlockSpec((tr, E), lambda v, r: (r, 0)),
                      pl.BlockSpec((E, tv), lambda v, r: (0, v)),
                      pl.BlockSpec((1, tv), lambda v, r: (0, v))],
            out_specs=pl.BlockSpec((tr, tv), lambda v, r: (r, v))),
        compiler_params=pltpu.CompilerParams(
            dimension_semantics=("parallel", "parallel"),
            vmem_limit_bytes=vmem_limit),
        cost_estimate=pl.CostEstimate(
            flops=int(2 * R * E * V),
            transcendentals=0,
            bytes_accessed=int(nv * R * E * 2 + E * V * 2 + V * 4 + R * V * 4)),
    )(rows, kp["out_w_t"], kp["out_b"])
    return logits.reshape(B, T, V)


# --------------------------- host-side parameter prep ------------------------

def prepare_kernel_params(params):
    """Pre-transpose weights to (in, out) layout and cast matmul operands to
    bf16 on the host, so the kernel never transposes a VMEM-resident matrix."""
    E = params["embed"].shape[1]
    bf16, f32 = jnp.bfloat16, jnp.float32
    ipw = params["in_proj_w"]                       # (3E, E)
    ipb = params["in_proj_b"].reshape(-1)           # (3E,)
    return {
        "wq_t": ipw[0:E].T.astype(bf16),            # (E, E)
        "wk_t": ipw[E:2 * E].T.astype(bf16),
        "wv_t": ipw[2 * E:3 * E].T.astype(bf16),
        "bq": ipb[0:E].reshape(1, E).astype(f32),
        "bk": ipb[E:2 * E].reshape(1, E).astype(f32),
        "bv": ipb[2 * E:3 * E].reshape(1, E).astype(f32),
        "wo_t": params["out_proj_w"].T.astype(bf16),  # (E, E)
        "bo": params["out_proj_b"].reshape(1, E).astype(f32),
        "ln1_w": params["ln1_w"].reshape(1, E).astype(f32),
        "ln1_b": params["ln1_b"].reshape(1, E).astype(f32),
        "ff1_w_t": params["ff1_w"].T.astype(bf16),  # (E, 4E)
        "ff1_b": params["ff1_b"].reshape(1, 4 * E).astype(f32),
        "ff2_w_t": params["ff2_w"].T.astype(bf16),  # (4E, E)
        "ff2_b": params["ff2_b"].reshape(1, E).astype(f32),
        "ln2_w": params["ln2_w"].reshape(1, E).astype(f32),
        "ln2_b": params["ln2_b"].reshape(1, E).astype(f32),
        "out_w_t": params["out_w"].T.astype(bf16),  # (E, V)
        "out_b": params["out_b"].reshape(1, -1).astype(f32),
    }


def init_params(key, vocab_size, embed_dim):
    E = embed_dim
    ks = jax.random.split(key, 12)

    def nrm(k, shape, scale=0.02):
        return (scale * jax.random.normal(k, shape)).astype(jnp.float32)

    return {
        "embed": nrm(ks[0], (vocab_size, E), 1.0),
        "in_proj_w": nrm(ks[1], (3 * E, E)),
        "in_proj_b": nrm(ks[2], (3 * E,), 0.05),
        "out_proj_w": nrm(ks[3], (E, E)),
        "out_proj_b": nrm(ks[4], (E,), 0.05),
        "ln1_w": jnp.ones((E,), jnp.float32),
        "ln1_b": jnp.zeros((E,), jnp.float32),
        "ff1_w": nrm(ks[5], (4 * E, E)),
        "ff1_b": nrm(ks[6], (4 * E,), 0.05),
        "ff2_w": nrm(ks[7], (E, 4 * E)),
        "ff2_b": nrm(ks[8], (E,), 0.05),
        "ln2_w": jnp.ones((E,), jnp.float32),
        "ln2_b": jnp.zeros((E,), jnp.float32),
        "out_w": nrm(ks[9], (vocab_size, E)),
        "out_b": nrm(ks[10], (vocab_size,), 0.05),
    }


# ------------------------------- model forward --------------------------------

def improved_transformer_xl_forward(tokens, mem_x, mem_ent, params, num_heads,
                                    mem_size, *, tq=None, tv=None):
    """Mirrors ImprovedTransformerXLModel.forward.

    tokens: (B,T) int32; mem_x: None or (M,E) f32; mem_ent: None or (M,) f32.
    Returns (logits (B,T,V) f32, mem_x_new, mem_ent_new, ratio)."""
    eps = 1e-10
    B, T = tokens.shape
    E = params["embed"].shape[1]

    # TODO(synk): embedding gather / memory concat / top-k compression are
    # data-dependent glue with no useful Pallas equivalent; kept in plain JAX.
    emb = jnp.take(params["embed"], tokens, axis=0)               # (B, T, E)
    if mem_x is None:
        kv = emb                                                  # k = v = x
    else:
        mem_b = jnp.broadcast_to(mem_x[None, :, :], (B, mem_x.shape[0], E))
        kv = jnp.concatenate([mem_b, emb], axis=1)                # (B, M+T, E)

    kp = prepare_kernel_params(params)                            # host-side, cacheable
    out_l, ent = transformer_layer_pallas(emb, kv, kp, num_heads, tq=tq)
    logits = vocab_projection_pallas(out_l, kp, tv=tv)

    # Memory update (matches the PyTorch reference: batch element 0 only).
    ent_tok = jnp.max(ent[0], axis=-1)                            # (T,) max over heads
    x_det = emb[0]                                                # (T, E)
    if mem_x is None:
        mem_x_new, mem_ent_new = x_det, ent_tok
    else:
        mem_x_new = jnp.concatenate([mem_x, x_det], axis=0)
        mem_ent_new = jnp.concatenate([mem_ent, ent_tok], axis=0)

    if mem_x_new.shape[0] > mem_size:
        total_ent = jnp.sum(mem_ent_new) + eps
        top_vals, top_idx = jax.lax.top_k(mem_ent_new, mem_size)
        ratio = jnp.sum(top_vals) / total_ent
        mem_x_new = mem_x_new[top_idx]
        mem_ent_new = top_vals
    else:
        ratio = jnp.float32(1.0)

    return logits, mem_x_new, mem_ent_new, ratio


# --------------------------- pure-JAX f32 reference --------------------------

def reference_forward(tokens, mem_x, params, num_heads):
    emb = jnp.take(params["embed"], tokens, axis=0)
    B, T, E = emb.shape
    H = num_heads
    d = E // H
    if mem_x is None:
        kv = emb
    else:
        kv = jnp.concatenate(
            [jnp.broadcast_to(mem_x[None], (B,) + mem_x.shape), emb], axis=1)
    S = kv.shape[1]
    ipw, ipb = params["in_proj_w"], params["in_proj_b"]
    q = emb @ ipw[0:E].T + ipb[0:E]
    k = kv @ ipw[E:2 * E].T + ipb[E:2 * E]
    v = kv @ ipw[2 * E:].T + ipb[2 * E:]
    qh = q.reshape(B, T, H, d).transpose(0, 2, 1, 3)
    kh = k.reshape(B, S, H, d).transpose(0, 2, 1, 3)
    vh = v.reshape(B, S, H, d).transpose(0, 2, 1, 3)
    s = jnp.einsum("bhtd,bhsd->bhts", qh, kh) / math.sqrt(d)
    p = jax.nn.softmax(s, axis=-1)
    ent_h = -jnp.sum(p * jnp.log(p + 1e-10), axis=-1)             # (B, H, T)
    o = jnp.einsum("bhts,bhsd->bhtd", p, vh).transpose(0, 2, 1, 3).reshape(B, T, E)
    attn_out = o @ params["out_proj_w"].T + params["out_proj_b"]

    def ln(x, w, b):
        mu = jnp.mean(x, axis=-1, keepdims=True)
        var = jnp.mean((x - mu) ** 2, axis=-1, keepdims=True)
        return (x - mu) * lax.rsqrt(var + 1e-5) * w + b

    x2 = ln(emb + attn_out, params["ln1_w"], params["ln1_b"])
    h1 = jax.nn.relu(x2 @ params["ff1_w"].T + params["ff1_b"])
    ff = h1 @ params["ff2_w"].T + params["ff2_b"]
    out = ln(x2 + ff, params["ln2_w"], params["ln2_b"])
    logits = out @ params["out_w"].T + params["out_b"]
    return logits, ent_h


# ----------------------------------- main ------------------------------------

if __name__ == "__main__":
    vocab_size = 512     # multiple of 128 -> lane-dense vocab projection
    embed_dim = 128      # multiple of 128 -> lane-dense activations
    num_heads = 4        # head dim 32
    mem_size = 24
    B, T, M = 2, 16, 16

    key = jax.random.PRNGKey(0)
    k_params, k_tok, k_mem, k_ment = jax.random.split(key, 4)

    params = init_params(k_params, vocab_size, embed_dim)
    tokens = jax.random.randint(k_tok, (B, T), 0, vocab_size, dtype=jnp.int32)
    mem_x = (0.5 * jax.random.normal(k_mem, (M, embed_dim))).astype(jnp.float32)
    mem_ent = jnp.abs(jax.random.normal(k_ment, (M,))).astype(jnp.float32)

    logits, mem_x_new, mem_ent_new, ratio = improved_transformer_xl_forward(
        tokens, mem_x, mem_ent, params, num_heads, mem_size)
    jax.block_until_ready((logits, mem_x_new, mem_ent_new, ratio))

    assert logits.shape == (B, T, vocab_size)
    assert mem_x_new.shape == (mem_size, embed_dim)
    assert mem_ent_new.shape == (mem_size,)

    # Validate against a pure-JAX f32 reference (loose tol: kernel matmuls are
    # bf16 with f32 accumulation).
    ref_logits, ref_ent = reference_forward(tokens, mem_x, params, num_heads)
    err = float(jnp.max(jnp.abs(logits - ref_logits)))
    assert err < 5e-2, f"logits mismatch vs reference: max abs err = {err}"

    # Validate the algebraic entropy path (it drives the memory top-k).
    emb_chk = jnp.take(params["embed"], tokens, axis=0)
    kv_chk = jnp.concatenate(
        [jnp.broadcast_to(mem_x[None], (B,) + mem_x.shape), emb_chk], axis=1)
    _, ent_bth = transformer_layer_pallas(
        emb_chk, kv_chk, prepare_kernel_params(params), num_heads)
    ent_err = float(jnp.max(jnp.abs(jnp.transpose(ent_bth, (0, 2, 1)) - ref_ent)))
    assert ent_err < 2e-2, f"entropy mismatch vs reference: max abs err = {ent_err}"

    print("KERNEL_OK")
</pallas_src>

<mosaic_0001>
module attributes {stable_mosaic.version = 11 : i64} {
  func.func @kernel(%arg0: i32, %arg1: i32, %arg2: memref<1x16x128xf32, #tpu.memory_space<vmem>>, %arg3: memref<1x32x128xbf16, #tpu.memory_space<vmem>>, %arg4: memref<128x128xbf16, #tpu.memory_space<vmem>>, %arg5: memref<128x128xbf16, #tpu.memory_space<vmem>>, %arg6: memref<128x128xbf16, #tpu.memory_space<vmem>>, %arg7: memref<1x128xf32, #tpu.memory_space<vmem>>, %arg8: memref<1x128xf32, #tpu.memory_space<vmem>>, %arg9: memref<1x128xf32, #tpu.memory_space<vmem>>, %arg10: memref<128x128xbf16, #tpu.memory_space<vmem>>, %arg11: memref<1x128xf32, #tpu.memory_space<vmem>>, %arg12: memref<1x128xf32, #tpu.memory_space<vmem>>, %arg13: memref<1x128xf32, #tpu.memory_space<vmem>>, %arg14: memref<128x512xbf16, #tpu.memory_space<vmem>>, %arg15: memref<1x512xf32, #tpu.memory_space<vmem>>, %arg16: memref<512x128xbf16, #tpu.memory_space<vmem>>, %arg17: memref<1x128xf32, #tpu.memory_space<vmem>>, %arg18: memref<1x128xf32, #tpu.memory_space<vmem>>, %arg19: memref<1x128xf32, #tpu.memory_space<vmem>>, %arg20: memref<1x16x128xbf16, #tpu.memory_space<vmem>>, %arg21: memref<1x16x4xf32, #tpu.memory_space<vmem>>, %arg22: memref<4x32x32xbf16, #tpu.memory_space<vmem>>, %arg23: memref<4x32x32xbf16, #tpu.memory_space<vmem>>) attributes {dimension_semantics = [#tpu.dimension_semantics<parallel>, #tpu.dimension_semantics<arbitrary>], iteration_bounds = array<i64: 2, 1>, scalar_prefetch = 0 : i64, scratch_operands = 2 : i64, tpu.core_type = #tpu.core_type<tc>, window_params = [{transform_indices = @transform_0, window_bounds = array<i64: 1, 16, 128>}, {transform_indices = @transform_1, window_bounds = array<i64: 1, 32, 128>}, {pipeline_mode = #tpu.pipeline_mode<synchronous>, transform_indices = @transform_2, window_bounds = array<i64: 128, 128>}, {pipeline_mode = #tpu.pipeline_mode<synchronous>, transform_indices = @transform_3, window_bounds = array<i64: 128, 128>}, {pipeline_mode = #tpu.pipeline_mode<synchronous>, transform_indices = @transform_4, window_bounds = array<i64: 128, 128>}, {pipeline_mode = #tpu.pipeline_mode<synchronous>, transform_indices = @transform_5, window_bounds = array<i64: 1, 128>}, {pipeline_mode = #tpu.pipeline_mode<synchronous>, transform_indices = @transform_6, window_bounds = array<i64: 1, 128>}, {pipeline_mode = #tpu.pipeline_mode<synchronous>, transform_indices = @transform_7, window_bounds = array<i64: 1, 128>}, {pipeline_mode = #tpu.pipeline_mode<synchronous>, transform_indices = @transform_8, window_bounds = array<i64: 128, 128>}, {pipeline_mode = #tpu.pipeline_mode<synchronous>, transform_indices = @transform_9, window_bounds = array<i64: 1, 128>}, {pipeline_mode = #tpu.pipeline_mode<synchronous>, transform_indices = @transform_10, window_bounds = array<i64: 1, 128>}, {pipeline_mode = #tpu.pipeline_mode<synchronous>, transform_indices = @transform_11, window_bounds = array<i64: 1, 128>}, {pipeline_mode = #tpu.pipeline_mode<synchronous>, transform_indices = @transform_12, window_bounds = array<i64: 128, 512>}, {pipeline_mode = #tpu.pipeline_mode<synchronous>, transform_indices = @transform_13, window_bounds = array<i64: 1, 512>}, {pipeline_mode = #tpu.pipeline_mode<synchronous>, transform_indices = @transform_14, window_bounds = array<i64: 512, 128>}, {pipeline_mode = #tpu.pipeline_mode<synchronous>, transform_indices = @transform_15, window_bounds = array<i64: 1, 128>}, {pipeline_mode = #tpu.pipeline_mode<synchronous>, transform_indices = @transform_16, window_bounds = array<i64: 1, 128>}, {pipeline_mode = #tpu.pipeline_mode<synchronous>, transform_indices = @transform_17, window_bounds = array<i64: 1, 128>}, {transform_indices = @transform_18, window_bounds = array<i64: 1, 16, 128>}, {transform_indices = @transform_19, window_bounds = array<i64: 1, 16, 4>}]} {
    %c0_i32 = arith.constant 0 : i32
    %0 = arith.cmpi eq, %arg1, %c0_i32 : i32
    %1 = arith.extui %0 : i1 to i32
    %c0_i32_0 = arith.constant 0 : i32
    %2 = arith.cmpi ne, %1, %c0_i32_0 : i32
    scf.if %2 {
      %c0_96 = arith.constant 0 : index
      %c0_97 = arith.constant 0 : index
      %c0_98 = arith.constant 0 : index
      %213 = vector.load %arg3[%c0_96, %c0_97, %c0_98] : memref<1x32x128xbf16, #tpu.memory_space<vmem>>, vector<1x32x128xbf16>
      %214 = vector.shape_cast %213 : vector<1x32x128xbf16> to vector<32x128xbf16>
      %c0_99 = arith.constant 0 : index
      %c0_100 = arith.constant 0 : index
      %215 = vector.load %arg5[%c0_99, %c0_100] : memref<128x128xbf16, #tpu.memory_space<vmem>>, vector<128x128xbf16>
      %cst_101 = arith.constant dense<0.000000e+00> : vector<32x128xf32>
      %216 = tpu.matmul %214, %215, %cst_101 {dimension_numbers = #tpu.dot_dimension_numbers<[1], [0], [0], [1], [0, 0, 1, 1], [], []>} : vector<32x128xbf16>, vector<128x128xbf16>, vector<32x128xf32> -> vector<32x128xf32>
      %c0_102 = arith.constant 0 : index
      %c0_103 = arith.constant 0 : index
      %217 = vector.load %arg8[%c0_102, %c0_103] : memref<1x128xf32, #tpu.memory_space<vmem>>, vector<1x128xf32>
      %218 = vector.broadcast %217 : vector<1x128xf32> to vector<32x128xf32>
      %219 = arith.addf %216, %218 : vector<32x128xf32>
      %c0_104 = arith.constant 0 : index
      %c0_105 = arith.constant 0 : index
      %220 = vector.load %arg6[%c0_104, %c0_105] : memref<128x128xbf16, #tpu.memory_space<vmem>>, vector<128x128xbf16>
      %cst_106 = arith.constant dense<0.000000e+00> : vector<32x128xf32>
      %221 = tpu.matmul %214, %220, %cst_106 {dimension_numbers = #tpu.dot_dimension_numbers<[1], [0], [0], [1], [0, 0, 1, 1], [], []>} : vector<32x128xbf16>, vector<128x128xbf16>, vector<32x128xf32> -> vector<32x128xf32>
      %c0_107 = arith.constant 0 : index
      %c0_108 = arith.constant 0 : index
      %222 = vector.load %arg9[%c0_107, %c0_108] : memref<1x128xf32, #tpu.memory_space<vmem>>, vector<1x128xf32>
      %223 = vector.broadcast %222 : vector<1x128xf32> to vector<32x128xf32>
      %224 = arith.addf %221, %223 : vector<32x128xf32>
      %225 = vector.extract_strided_slice %219 {offsets = [0, 0], sizes = [32, 32], strides = [1, 1]} : vector<32x128xf32> to vector<32x32xf32>
      %226 = arith.truncf %225 : vector<32x32xf32> to vector<32x32xbf16>
      %c0_109 = arith.constant 0 : index
      %c0_110 = arith.constant 0 : index
      %c0_111 = arith.constant 0 : index
      %227 = vector.load %arg22[%c0_109, %c0_110, %c0_111] : memref<4x32x32xbf16, #tpu.memory_space<vmem>>, vector<1x32x32xbf16>
      %228 = vector.shape_cast %227 : vector<1x32x32xbf16> to vector<32x32xbf16>
      %229 = vector.shape_cast %226 : vector<32x32xbf16> to vector<1x32x32xbf16>
      tpu.vector_store %arg22[%c0_109, %c0_110, %c0_111], %229 {strides = array<i32>} : memref<4x32x32xbf16, #tpu.memory_space<vmem>>, vector<1x32x32xbf16>,
      %230 = vector.extract_strided_slice %224 {offsets = [0, 0], sizes = [32, 32], strides = [1, 1]} : vector<32x128xf32> to vector<32x32xf32>
      %231 = arith.truncf %230 : vector<32x32xf32> to vector<32x32xbf16>
      %c0_112 = arith.constant 0 : index
      %c0_113 = arith.constant 0 : index
      %c0_114 = arith.constant 0 : index
      %232 = vector.load %arg23[%c0_112, %c0_113, %c0_114] : memref<4x32x32xbf16, #tpu.memory_space<vmem>>, vector<1x32x32xbf16>
      %233 = vector.shape_cast %232 : vector<1x32x32xbf16> to vector<32x32xbf16>
      %234 = vector.shape_cast %231 : vector<32x32xbf16> to vector<1x32x32xbf16>
      tpu.vector_store %arg23[%c0_112, %c0_113, %c0_114], %234 {strides = array<i32>} : memref<4x32x32xbf16, #tpu.memory_space<vmem>>, vector<1x32x32xbf16>,
      %235 = vector.extract_strided_slice %219 {offsets = [0, 32], sizes = [32, 32], strides = [1, 1]} : vector<32x128xf32> to vector<32x32xf32>
      %236 = arith.truncf %235 : vector<32x32xf32> to vector<32x32xbf16>
      %c1_115 = arith.constant 1 : index
      %c0_116 = arith.constant 0 : index
      %c0_117 = arith.constant 0 : index
      %237 = vector.load %arg22[%c1_115, %c0_116, %c0_117] : memref<4x32x32xbf16, #tpu.memory_space<vmem>>, vector<1x32x32xbf16>
      %238 = vector.shape_cast %237 : vector<1x32x32xbf16> to vector<32x32xbf16>
      %239 = vector.shape_cast %236 : vector<32x32xbf16> to vector<1x32x32xbf16>
      tpu.vector_store %arg22[%c1_115, %c0_116, %c0_117], %239 {strides = array<i32>} : memref<4x32x32xbf16, #tpu.memory_space<vmem>>, vector<1x32x32xbf16>,
      %240 = vector.extract_strided_slice %224 {offsets = [0, 32], sizes = [32, 32], strides = [1, 1]} : vector<32x128xf32> to vector<32x32xf32>
      %241 = arith.truncf %240 : vector<32x32xf32> to vector<32x32xbf16>
      %c1_118 = arith.constant 1 : index
      %c0_119 = arith.constant 0 : index
      %c0_120 = arith.constant 0 : index
      %242 = vector.load %arg23[%c1_118, %c0_119, %c0_120] : memref<4x32x32xbf16, #tpu.memory_space<vmem>>, vector<1x32x32xbf16>
      %243 = vector.shape_cast %242 : vector<1x32x32xbf16> to vector<32x32xbf16>
      %244 = vector.shape_cast %241 : vector<32x32xbf16> to vector<1x32x32xbf16>
      tpu.vector_store %arg23[%c1_118, %c0_119, %c0_120], %244 {strides = array<i32>} : memref<4x32x32xbf16, #tpu.memory_space<vmem>>, vector<1x32x32xbf16>,
      %245 = vector.extract_strided_slice %219 {offsets = [0, 64], sizes = [32, 32], strides = [1, 1]} : vector<32x128xf32> to vector<32x32xf32>
      %246 = arith.truncf %245 : vector<32x32xf32> to vector<32x32xbf16>
      %c2_121 = arith.constant 2 : index
      %c0_122 = arith.constant 0 : index
      %c0_123 = arith.constant 0 : index
      %247 = vector.load %arg22[%c2_121, %c0_122, %c0_123] : memref<4x32x32xbf16, #tpu.memory_space<vmem>>, vector<1x32x32xbf16>
      %248 = vector.shape_cast %247 : vector<1x32x32xbf16> to vector<32x32xbf16>
      %249 = vector.shape_cast %246 : vector<32x32xbf16> to vector<1x32x32xbf16>
      tpu.vector_store %arg22[%c2_121, %c0_122, %c0_123], %249 {strides = array<i32>} : memref<4x32x32xbf16, #tpu.memory_space<vmem>>, vector<1x32x32xbf16>,
      %250 = vector.extract_strided_slice %224 {offsets = [0, 64], sizes = [32, 32], strides = [1, 1]} : vector<32x128xf32> to vector<32x32xf32>
      %251 = arith.truncf %250 : vector<32x32xf32> to vector<32x32xbf16>
      %c2_124 = arith.constant 2 : index
      %c0_125 = arith.constant 0 : index
      %c0_126 = arith.constant 0 : index
      %252 = vector.load %arg23[%c2_124, %c0_125, %c0_126] : memref<4x32x32xbf16, #tpu.memory_space<vmem>>, vector<1x32x32xbf16>
      %253 = vector.shape_cast %252 : vector<1x32x32xbf16> to vector<32x32xbf16>
      %254 = vector.shape_cast %251 : vector<32x32xbf16> to vector<1x32x32xbf16>
      tpu.vector_store %arg23[%c2_124, %c0_125, %c0_126], %254 {strides = array<i32>} : memref<4x32x32xbf16, #tpu.memory_space<vmem>>, vector<1x32x32xbf16>,
      %255 = vector.extract_strided_slice %219 {offsets = [0, 96], sizes = [32, 32], strides = [1, 1]} : vector<32x128xf32> to vector<32x32xf32>
      %256 = arith.truncf %255 : vector<32x32xf32> to vector<32x32xbf16>
      %c3_127 = arith.constant 3 : index
      %c0_128 = arith.constant 0 : index
      %c0_129 = arith.constant 0 : index
      %257 = vector.load %arg22[%c3_127, %c0_128, %c0_129] : memref<4x32x32xbf16, #tpu.memory_space<vmem>>, vector<1x32x32xbf16>
      %258 = vector.shape_cast %257 : vector<1x32x32xbf16> to vector<32x32xbf16>
      %259 = vector.shape_cast %256 : vector<32x32xbf16> to vector<1x32x32xbf16>
      tpu.vector_store %arg22[%c3_127, %c0_128, %c0_129], %259 {strides = array<i32>} : memref<4x32x32xbf16, #tpu.memory_space<vmem>>, vector<1x32x32xbf16>,
      %260 = vector.extract_strided_slice %224 {offsets = [0, 96], sizes = [32, 32], strides = [1, 1]} : vector<32x128xf32> to vector<32x32xf32>
      %261 = arith.truncf %260 : vector<32x32xf32> to vector<32x32xbf16>
      %c3_130 = arith.constant 3 : index
      %c0_131 = arith.constant 0 : index
      %c0_132 = arith.constant 0 : index
      %262 = vector.load %arg23[%c3_130, %c0_131, %c0_132] : memref<4x32x32xbf16, #tpu.memory_space<vmem>>, vector<1x32x32xbf16>
      %263 = vector.shape_cast %262 : vector<1x32x32xbf16> to vector<32x32xbf16>
      %264 = vector.shape_cast %261 : vector<32x32xbf16> to vector<1x32x32xbf16>
      tpu.vector_store %arg23[%c3_130, %c0_131, %c0_132], %264 {strides = array<i32>} : memref<4x32x32xbf16, #tpu.memory_space<vmem>>, vector<1x32x32xbf16>,
    } else {
    }
    %c0 = arith.constant 0 : index
    %c0_1 = arith.constant 0 : index
    %c0_2 = arith.constant 0 : index
    %3 = vector.load %arg2[%c0, %c0_1, %c0_2] : memref<1x16x128xf32, #tpu.memory_space<vmem>>, vector<1x16x128xf32>
    %4 = vector.shape_cast %3 : vector<1x16x128xf32> to vector<16x128xf32>
    %5 = arith.truncf %4 : vector<16x128xf32> to vector<16x128xbf16>
    %c0_3 = arith.constant 0 : index
    %c0_4 = arith.constant 0 : index
    %6 = vector.load %arg4[%c0_3, %c0_4] : memref<128x128xbf16, #tpu.memory_space<vmem>>, vector<128x128xbf16>
    %cst = arith.constant dense<0.000000e+00> : vector<16x128xf32>
    %7 = tpu.matmul %5, %6, %cst {dimension_numbers = #tpu.dot_dimension_numbers<[1], [0], [0], [1], [0, 0, 1, 1], [], []>} : vector<16x128xbf16>, vector<128x128xbf16>, vector<16x128xf32> -> vector<16x128xf32>
    %c0_5 = arith.constant 0 : index
    %c0_6 = arith.constant 0 : index
    %8 = vector.load %arg7[%c0_5, %c0_6] : memref<1x128xf32, #tpu.memory_space<vmem>>, vector<1x128xf32>
    %9 = vector.broadcast %8 : vector<1x128xf32> to vector<16x128xf32>
    %10 = arith.addf %7, %9 : vector<16x128xf32>
    %11 = vector.extract_strided_slice %10 {offsets = [0, 0], sizes = [16, 32], strides = [1, 1]} : vector<16x128xf32> to vector<16x32xf32>
    %12 = arith.truncf %11 : vector<16x32xf32> to vector<16x32xbf16>
    %c0_7 = arith.constant 0 : index
    %c0_8 = arith.constant 0 : index
    %c0_9 = arith.constant 0 : index
    %13 = vector.load %arg22[%c0_7, %c0_8, %c0_9] : memref<4x32x32xbf16, #tpu.memory_space<vmem>>, vector<1x32x32xbf16>
    %14 = vector.shape_cast %13 : vector<1x32x32xbf16> to vector<32x32xbf16>
    "tpu.trace_start"() <{level = 10 : i32, message = "qd,kd->qk"}> : () -> ()
    %cst_10 = arith.constant dense<0.000000e+00> : vector<16x32xf32>
    %15 = tpu.matmul %12, %14, %cst_10 {dimension_numbers = #tpu.dot_dimension_numbers<[1], [1], [0], [0], [0, 0, 1, 0], [], []>} : vector<16x32xbf16>, vector<32x32xbf16>, vector<16x32xf32> -> vector<16x32xf32>
    "tpu.trace_stop"() : () -> ()
    %cst_11 = arith.constant 0.176776692 : f32
    %16 = vector.broadcast %cst_11 : f32 to vector<16x32xf32>
    %17 = arith.mulf %15, %16 : vector<16x32xf32>
    %cst_12 = arith.constant dense<0xFF800000> : vector<16xf32>
    %18 = vector.multi_reduction <maximumf>, %17, %cst_12 [1] : vector<16x32xf32> to vector<16xf32>
    %19 = vector.shape_cast %18 : vector<16xf32> to vector<16x1xf32>
    %20 = vector.broadcast %19 : vector<16x1xf32> to vector<16x32xf32>
    %21 = arith.subf %17, %20 : vector<16x32xf32>
    %22 = math.exp %21 : vector<16x32xf32>
    %cst_13 = arith.constant dense<0.000000e+00> : vector<16xf32>
    %23 = vector.multi_reduction <add>, %22, %cst_13 [1] : vector<16x32xf32> to vector<16xf32>
    %24 = vector.shape_cast %23 : vector<16xf32> to vector<16x1xf32>
    %cst_14 = arith.constant 1.000000e+00 : f32
    %25 = vector.broadcast %cst_14 : f32 to vector<16x1xf32>
    %26 = arith.divf %25, %24 : vector<16x1xf32>
    %27 = math.log %24 : vector<16x1xf32>
    %28 = vector.broadcast %19 : vector<16x1xf32> to vector<16x32xf32>
    %29 = arith.subf %17, %28 : vector<16x32xf32>
    %30 = arith.mulf %22, %29 : vector<16x32xf32>
    %cst_15 = arith.constant dense<0.000000e+00> : vector<16xf32>
    %31 = vector.multi_reduction <add>, %30, %cst_15 [1] : vector<16x32xf32> to vector<16xf32>
    %32 = vector.shape_cast %31 : vector<16xf32> to vector<16x1xf32>
    %33 = arith.mulf %32, %26 : vector<16x1xf32>
    %34 = arith.subf %27, %33 : vector<16x1xf32>
    %35 = arith.truncf %22 : vector<16x32xf32> to vector<16x32xbf16>
    %c0_16 = arith.constant 0 : index
    %c0_17 = arith.constant 0 : index
    %c0_18 = arith.constant 0 : index
    %36 = vector.load %arg23[%c0_16, %c0_17, %c0_18] : memref<4x32x32xbf16, #tpu.memory_space<vmem>>, vector<1x32x32xbf16>
    %37 = vector.shape_cast %36 : vector<1x32x32xbf16> to vector<32x32xbf16>
    %cst_19 = arith.constant dense<0.000000e+00> : vector<16x32xf32>
    %38 = tpu.matmul %35, %37, %cst_19 {dimension_numbers = #tpu.dot_dimension_numbers<[1], [0], [0], [1], [0, 0, 1, 1], [], []>} : vector<16x32xbf16>, vector<32x32xbf16>, vector<16x32xf32> -> vector<16x32xf32>
    %39 = vector.broadcast %26 : vector<16x1xf32> to vector<16x32xf32>
    %40 = arith.mulf %38, %39 : vector<16x32xf32>
    %41 = arith.truncf %40 : vector<16x32xf32> to vector<16x32xbf16>
    %42 = vector.extract_strided_slice %10 {offsets = [0, 32], sizes = [16, 32], strides = [1, 1]} : vector<16x128xf32> to vector<16x32xf32>
    %43 = arith.truncf %42 : vector<16x32xf32> to vector<16x32xbf16>
    %c1 = arith.constant 1 : index
    %c0_20 = arith.constant 0 : index
    %c0_21 = arith.constant 0 : index
    %44 = vector.load %arg22[%c1, %c0_20, %c0_21] : memref<4x32x32xbf16, #tpu.memory_space<vmem>>, vector<1x32x32xbf16>
    %45 = vector.shape_cast %44 : vector<1x32x32xbf16> to vector<32x32xbf16>
    "tpu.trace_start"() <{level = 10 : i32, message = "qd,kd->qk"}> : () -> ()
    %cst_22 = arith.constant dense<0.000000e+00> : vector<16x32xf32>
    %46 = tpu.matmul %43, %45, %cst_22 {dimension_numbers = #tpu.dot_dimension_numbers<[1], [1], [0], [0], [0, 0, 1, 0], [], []>} : vector<16x32xbf16>, vector<32x32xbf16>, vector<16x32xf32> -> vector<16x32xf32>
    "tpu.trace_stop"() : () -> ()
    %cst_23 = arith.constant 0.176776692 : f32
    %47 = vector.broadcast %cst_23 : f32 to vector<16x32xf32>
    %48 = arith.mulf %46, %47 : vector<16x32xf32>
    %cst_24 = arith.constant dense<0xFF800000> : vector<16xf32>
    %49 = vector.multi_reduction <maximumf>, %48, %cst_24 [1] : vector<16x32xf32> to vector<16xf32>
    %50 = vector.shape_cast %49 : vector<16xf32> to vector<16x1xf32>
    %51 = vector.broadcast %50 : vector<16x1xf32> to vector<16x32xf32>
    %52 = arith.subf %48, %51 : vector<16x32xf32>
    %53 = math.exp %52 : vector<16x32xf32>
    %cst_25 = arith.constant dense<0.000000e+00> : vector<16xf32>
    %54 = vector.multi_reduction <add>, %53, %cst_25 [1] : vector<16x32xf32> to vector<16xf32>
    %55 = vector.shape_cast %54 : vector<16xf32> to vector<16x1xf32>
    %cst_26 = arith.constant 1.000000e+00 : f32
    %56 = vector.broadcast %cst_26 : f32 to vector<16x1xf32>
    %57 = arith.divf %56, %55 : vector<16x1xf32>
    %58 = math.log %55 : vector<16x1xf32>
    %59 = vector.broadcast %50 : vector<16x1xf32> to vector<16x32xf32>
    %60 = arith.subf %48, %59 : vector<16x32xf32>
    %61 = arith.mulf %53, %60 : vector<16x32xf32>
    %cst_27 = arith.constant dense<0.000000e+00> : vector<16xf32>
    %62 = vector.multi_reduction <add>, %61, %cst_27 [1] : vector<16x32xf32> to vector<16xf32>
    %63 = vector.shape_cast %62 : vector<16xf32> to vector<16x1xf32>
    %64 = arith.mulf %63, %57 : vector<16x1xf32>
    %65 = arith.subf %58, %64 : vector<16x1xf32>
    %66 = arith.truncf %53 : vector<16x32xf32> to vector<16x32xbf16>
    %c1_28 = arith.constant 1 : index
    %c0_29 = arith.constant 0 : index
    %c0_30 = arith.constant 0 : index
    %67 = vector.load %arg23[%c1_28, %c0_29, %c0_30] : memref<4x32x32xbf16, #tpu.memory_space<vmem>>, vector<1x32x32xbf16>
    %68 = vector.shape_cast %67 : vector<1x32x32xbf16> to vector<32x32xbf16>
    %cst_31 = arith.constant dense<0.000000e+00> : vector<16x32xf32>
    %69 = tpu.matmul %66, %68, %cst_31 {dimension_numbers = #tpu.dot_dimension_numbers<[1], [0], [0], [1], [0, 0, 1, 1], [], []>} : vector<16x32xbf16>, vector<32x32xbf16>, vector<16x32xf32> -> vector<16x32xf32>
    %70 = vector.broadcast %57 : vector<16x1xf32> to vector<16x32xf32>
    %71 = arith.mulf %69, %70 : vector<16x32xf32>
    %72 = arith.truncf %71 : vector<16x32xf32> to vector<16x32xbf16>
    %73 = vector.extract_strided_slice %10 {offsets = [0, 64], sizes = [16, 32], strides = [1, 1]} : vector<16x128xf32> to vector<16x32xf32>
    %74 = arith.truncf %73 : vector<16x32xf32> to vector<16x32xbf16>
    %c2 = arith.constant 2 : index
    %c0_32 = arith.constant 0 : index
    %c0_33 = arith.constant 0 : index
    %75 = vector.load %arg22[%c2, %c0_32, %c0_33] : memref<4x32x32xbf16, #tpu.memory_space<vmem>>, vector<1x32x32xbf16>
    %76 = vector.shape_cast %75 : vector<1x32x32xbf16> to vector<32x32xbf16>
    "tpu.trace_start"() <{level = 10 : i32, message = "qd,kd->qk"}> : () -> ()
    %cst_34 = arith.constant dense<0.000000e+00> : vector<16x32xf32>
    %77 = tpu.matmul %74, %76, %cst_34 {dimension_numbers = #tpu.dot_dimension_numbers<[1], [1], [0], [0], [0, 0, 1, 0], [], []>} : vector<16x32xbf16>, vector<32x32xbf16>, vector<16x32xf32> -> vector<16x32xf32>
    "tpu.trace_stop"() : () -> ()
    %cst_35 = arith.constant 0.176776692 : f32
    %78 = vector.broadcast %cst_35 : f32 to vector<16x32xf32>
    %79 = arith.mulf %77, %78 : vector<16x32xf32>
    %cst_36 = arith.constant dense<0xFF800000> : vector<16xf32>
    %80 = vector.multi_reduction <maximumf>, %79, %cst_36 [1] : vector<16x32xf32> to vector<16xf32>
    %81 = vector.shape_cast %80 : vector<16xf32> to vector<16x1xf32>
    %82 = vector.broadcast %81 : vector<16x1xf32> to vector<16x32xf32>
    %83 = arith.subf %79, %82 : vector<16x32xf32>
    %84 = math.exp %83 : vector<16x32xf32>
    %cst_37 = arith.constant dense<0.000000e+00> : vector<16xf32>
    %85 = vector.multi_reduction <add>, %84, %cst_37 [1] : vector<16x32xf32> to vector<16xf32>
    %86 = vector.shape_cast %85 : vector<16xf32> to vector<16x1xf32>
    %cst_38 = arith.constant 1.000000e+00 : f32
    %87 = vector.broadcast %cst_38 : f32 to vector<16x1xf32>
    %88 = arith.divf %87, %86 : vector<16x1xf32>
    %89 = math.log %86 : vector<16x1xf32>
    %90 = vector.broadcast %81 : vector<16x1xf32> to vector<16x32xf32>
    %91 = arith.subf %79, %90 : vector<16x32xf32>
    %92 = arith.mulf %84, %91 : vector<16x32xf32>
    %cst_39 = arith.constant dense<0.000000e+00> : vector<16xf32>
    %93 = vector.multi_reduction <add>, %92, %cst_39 [1] : vector<16x32xf32> to vector<16xf32>
    %94 = vector.shape_cast %93 : vector<16xf32> to vector<16x1xf32>
    %95 = arith.mulf %94, %88 : vector<16x1xf32>
    %96 = arith.subf %89, %95 : vector<16x1xf32>
    %97 = arith.truncf %84 : vector<16x32xf32> to vector<16x32xbf16>
    %c2_40 = arith.constant 2 : index
    %c0_41 = arith.constant 0 : index
    %c0_42 = arith.constant 0 : index
    %98 = vector.load %arg23[%c2_40, %c0_41, %c0_42] : memref<4x32x32xbf16, #tpu.memory_space<vmem>>, vector<1x32x32xbf16>
    %99 = vector.shape_cast %98 : vector<1x32x32xbf16> to vector<32x32xbf16>
    %cst_43 = arith.constant dense<0.000000e+00> : vector<16x32xf32>
    %100 = tpu.matmul %97, %99, %cst_43 {dimension_numbers = #tpu.dot_dimension_numbers<[1], [0], [0], [1], [0, 0, 1, 1], [], []>} : vector<16x32xbf16>, vector<32x32xbf16>, vector<16x32xf32> -> vector<16x32xf32>
    %101 = vector.broadcast %88 : vector<16x1xf32> to vector<16x32xf32>
    %102 = arith.mulf %100, %101 : vector<16x32xf32>
    %103 = arith.truncf %102 : vector<16x32xf32> to vector<16x32xbf16>
    %104 = vector.extract_strided_slice %10 {offsets = [0, 96], sizes = [16, 32], strides = [1, 1]} : vector<16x128xf32> to vector<16x32xf32>
    %105 = arith.truncf %104 : vector<16x32xf32> to vector<16x32xbf16>
    %c3 = arith.constant 3 : index
    %c0_44 = arith.constant 0 : index
    %c0_45 = arith.constant 0 : index
    %106 = vector.load %arg22[%c3, %c0_44, %c0_45] : memref<4x32x32xbf16, #tpu.memory_space<vmem>>, vector<1x32x32xbf16>
    %107 = vector.shape_cast %106 : vector<1x32x32xbf16> to vector<32x32xbf16>
    "tpu.trace_start"() <{level = 10 : i32, message = "qd,kd->qk"}> : () -> ()
    %cst_46 = arith.constant dense<0.000000e+00> : vector<16x32xf32>
    %108 = tpu.matmul %105, %107, %cst_46 {dimension_numbers = #tpu.dot_dimension_numbers<[1], [1], [0], [0], [0, 0, 1, 0], [], []>} : vector<16x32xbf16>, vector<32x32xbf16>, vector<16x32xf32> -> vector<16x32xf32>
    "tpu.trace_stop"() : () -> ()
    %cst_47 = arith.constant 0.176776692 : f32
    %109 = vector.broadcast %cst_47 : f32 to vector<16x32xf32>
    %110 = arith.mulf %108, %109 : vector<16x32xf32>
    %cst_48 = arith.constant dense<0xFF800000> : vector<16xf32>
    %111 = vector.multi_reduction <maximumf>, %110, %cst_48 [1] : vector<16x32xf32> to vector<16xf32>
    %112 = vector.shape_cast %111 : vector<16xf32> to vector<16x1xf32>
    %113 = vector.broadcast %112 : vector<16x1xf32> to vector<16x32xf32>
    %114 = arith.subf %110, %113 : vector<16x32xf32>
    %115 = math.exp %114 : vector<16x32xf32>
    %cst_49 = arith.constant dense<0.000000e+00> : vector<16xf32>
    %116 = vector.multi_reduction <add>, %115, %cst_49 [1] : vector<16x32xf32> to vector<16xf32>
    %117 = vector.shape_cast %116 : vector<16xf32> to vector<16x1xf32>
    %cst_50 = arith.constant 1.000000e+00 : f32
    %118 = vector.broadcast %cst_50 : f32 to vector<16x1xf32>
    %119 = arith.divf %118, %117 : vector<16x1xf32>
    %120 = math.log %117 : vector<16x1xf32>
    %121 = vector.broadcast %112 : vector<16x1xf32> to vector<16x32xf32>
    %122 = arith.subf %110, %121 : vector<16x32xf32>
    %123 = arith.mulf %115, %122 : vector<16x32xf32>
    %cst_51 = arith.constant dense<0.000000e+00> : vector<16xf32>
    %124 = vector.multi_reduction <add>, %123, %cst_51 [1] : vector<16x32xf32> to vector<16xf32>
    %125 = vector.shape_cast %124 : vector<16xf32> to vector<16x1xf32>
    %126 = arith.mulf %125, %119 : vector<16x1xf32>
    %127 = arith.subf %120, %126 : vector<16x1xf32>
    %128 = arith.truncf %115 : vector<16x32xf32> to vector<16x32xbf16>
    %c3_52 = arith.constant 3 : index
    %c0_53 = arith.constant 0 : index
    %c0_54 = arith.constant 0 : index
    %129 = vector.load %arg23[%c3_52, %c0_53, %c0_54] : memref<4x32x32xbf16, #tpu.memory_space<vmem>>, vector<1x32x32xbf16>
    %130 = vector.shape_cast %129 : vector<1x32x32xbf16> to vector<32x32xbf16>
    %cst_55 = arith.constant dense<0.000000e+00> : vector<16x32xf32>
    %131 = tpu.matmul %128, %130, %cst_55 {dimension_numbers = #tpu.dot_dimension_numbers<[1], [0], [0], [1], [0, 0, 1, 1], [], []>} : vector<16x32xbf16>, vector<32x32xbf16>, vector<16x32xf32> -> vector<16x32xf32>
    %132 = vector.broadcast %119 : vector<16x1xf32> to vector<16x32xf32>
    %133 = arith.mulf %131, %132 : vector<16x32xf32>
    %134 = arith.truncf %133 : vector<16x32xf32> to vector<16x32xbf16>
    %135 = tpu.concatenate %34, %65, %96, %127 in 1 : vector<16x1xf32>, vector<16x1xf32>, vector<16x1xf32>, vector<16x1xf32> -> vector<16x4xf32>
    %c0_56 = arith.constant 0 : index
    %c0_57 = arith.constant 0 : index
    %c0_58 = arith.constant 0 : index
    %136 = vector.load %arg21[%c0_56, %c0_57, %c0_58] : memref<1x16x4xf32, #tpu.memory_space<vmem>>, vector<1x16x4xf32>
    %137 = vector.shape_cast %136 : vector<1x16x4xf32> to vector<16x4xf32>
    %138 = vector.shape_cast %135 : vector<16x4xf32> to vector<1x16x4xf32>
    tpu.vector_store %arg21[%c0_56, %c0_57, %c0_58], %138 {strides = array<i32>} : memref<1x16x4xf32, #tpu.memory_space<vmem>>, vector<1x16x4xf32>,
    %139 = tpu.concatenate %41, %72, %103, %134 in 1 : vector<16x32xbf16>, vector<16x32xbf16>, vector<16x32xbf16>, vector<16x32xbf16> -> vector<16x128xbf16>
    %c0_59 = arith.constant 0 : index
    %c0_60 = arith.constant 0 : index
    %140 = vector.load %arg10[%c0_59, %c0_60] : memref<128x128xbf16, #tpu.memory_space<vmem>>, vector<128x128xbf16>
    %cst_61 = arith.constant dense<0.000000e+00> : vector<16x128xf32>
    %141 = tpu.matmul %139, %140, %cst_61 {dimension_numbers = #tpu.dot_dimension_numbers<[1], [0], [0], [1], [0, 0, 1, 1], [], []>} : vector<16x128xbf16>, vector<128x128xbf16>, vector<16x128xf32> -> vector<16x128xf32>
    %c0_62 = arith.constant 0 : index
    %c0_63 = arith.constant 0 : index
    %142 = vector.load %arg11[%c0_62, %c0_63] : memref<1x128xf32, #tpu.memory_space<vmem>>, vector<1x128xf32>
    %143 = vector.broadcast %142 : vector<1x128xf32> to vector<16x128xf32>
    %144 = arith.addf %141, %143 : vector<16x128xf32>
    %145 = arith.addf %4, %144 : vector<16x128xf32>
    %c0_64 = arith.constant 0 : index
    %c0_65 = arith.constant 0 : index
    %146 = vector.load %arg12[%c0_64, %c0_65] : memref<1x128xf32, #tpu.memory_space<vmem>>, vector<1x128xf32>
    %c0_66 = arith.constant 0 : index
    %c0_67 = arith.constant 0 : index
    %147 = vector.load %arg13[%c0_66, %c0_67] : memref<1x128xf32, #tpu.memory_space<vmem>>, vector<1x128xf32>
    %cst_68 = arith.constant dense<0.000000e+00> : vector<16xf32>
    %148 = vector.multi_reduction <add>, %145, %cst_68 [1] : vector<16x128xf32> to vector<16xf32>
    %149 = vector.shape_cast %148 : vector<16xf32> to vector<16x1xf32>
    %cst_69 = arith.constant 1.280000e+02 : f32
    %150 = vector.broadcast %cst_69 : f32 to vector<16x1xf32>
    %151 = arith.divf %149, %150 : vector<16x1xf32>
    %152 = vector.broadcast %151 : vector<16x1xf32> to vector<16x128xf32>
    %153 = arith.subf %145, %152 : vector<16x128xf32>
    %154 = arith.mulf %153, %153 : vector<16x128xf32>
    %cst_70 = arith.constant dense<0.000000e+00> : vector<16xf32>
    %155 = vector.multi_reduction <add>, %154, %cst_70 [1] : vector<16x128xf32> to vector<16xf32>
    %156 = vector.shape_cast %155 : vector<16xf32> to vector<16x1xf32>
    %cst_71 = arith.constant 1.280000e+02 : f32
    %157 = vector.broadcast %cst_71 : f32 to vector<16x1xf32>
    %158 = arith.divf %156, %157 : vector<16x1xf32>
    %159 = vector.broadcast %151 : vector<16x1xf32> to vector<16x128xf32>
    %160 = arith.subf %145, %159 : vector<16x128xf32>
    %cst_72 = arith.constant 9.99999974E-6 : f32
    %161 = vector.broadcast %cst_72 : f32 to vector<16x1xf32>
    %162 = arith.addf %158, %161 : vector<16x1xf32>
    %163 = math.rsqrt %162 : vector<16x1xf32>
    %164 = vector.broadcast %163 : vector<16x1xf32> to vector<16x128xf32>
    %165 = arith.mulf %160, %164 : vector<16x128xf32>
    %166 = vector.broadcast %146 : vector<1x128xf32> to vector<16x128xf32>
    %167 = arith.mulf %165, %166 : vector<16x128xf32>
    %168 = vector.broadcast %147 : vector<1x128xf32> to vector<16x128xf32>
    %169 = arith.addf %167, %168 : vector<16x128xf32>
    %170 = arith.truncf %169 : vector<16x128xf32> to vector<16x128xbf16>
    %c0_73 = arith.constant 0 : index
    %c0_74 = arith.constant 0 : index
    %171 = vector.load %arg14[%c0_73, %c0_74] : memref<128x512xbf16, #tpu.memory_space<vmem>>, vector<128x512xbf16>
    %cst_75 = arith.constant dense<0.000000e+00> : vector<16x512xf32>
    %172 = tpu.matmul %170, %171, %cst_75 {dimension_numbers = #tpu.dot_dimension_numbers<[1], [0], [0], [1], [0, 0, 1, 1], [], []>} : vector<16x128xbf16>, vector<128x512xbf16>, vector<16x512xf32> -> vector<16x512xf32>
    %c0_76 = arith.constant 0 : index
    %c0_77 = arith.constant 0 : index
    %173 = vector.load %arg15[%c0_76, %c0_77] : memref<1x512xf32, #tpu.memory_space<vmem>>, vector<1x512xf32>
    %174 = vector.broadcast %173 : vector<1x512xf32> to vector<16x512xf32>
    %175 = arith.addf %172, %174 : vector<16x512xf32>
    %cst_78 = arith.constant 0.000000e+00 : f32
    %176 = vector.broadcast %cst_78 : f32 to vector<16x512xf32>
    %177 = arith.maximumf %175, %176 : vector<16x512xf32>
    %178 = arith.truncf %177 : vector<16x512xf32> to vector<16x512xbf16>
    %c0_79 = arith.constant 0 : index
    %c0_80 = arith.constant 0 : index
    %179 = vector.load %arg16[%c0_79, %c0_80] : memref<512x128xbf16, #tpu.memory_space<vmem>>, vector<512x128xbf16>
    %cst_81 = arith.constant dense<0.000000e+00> : vector<16x128xf32>
    %180 = tpu.matmul %178, %179, %cst_81 {dimension_numbers = #tpu.dot_dimension_numbers<[1], [0], [0], [1], [0, 0, 1, 1], [], []>} : vector<16x512xbf16>, vector<512x128xbf16>, vector<16x128xf32> -> vector<16x128xf32>
    %c0_82 = arith.constant 0 : index
    %c0_83 = arith.constant 0 : index
    %181 = vector.load %arg17[%c0_82, %c0_83] : memref<1x128xf32, #tpu.memory_space<vmem>>, vector<1x128xf32>
    %182 = vector.broadcast %181 : vector<1x128xf32> to vector<16x128xf32>
    %183 = arith.addf %180, %182 : vector<16x128xf32>
    %184 = arith.addf %169, %183 : vector<16x128xf32>
    %c0_84 = arith.constant 0 : index
    %c0_85 = arith.constant 0 : index
    %185 = vector.load %arg18[%c0_84, %c0_85] : memref<1x128xf32, #tpu.memory_space<vmem>>, vector<1x128xf32>
    %c0_86 = arith.constant 0 : index
    %c0_87 = arith.constant 0 : index
    %186 = vector.load %arg19[%c0_86, %c0_87] : memref<1x128xf32, #tpu.memory_space<vmem>>, vector<1x128xf32>
    %cst_88 = arith.constant dense<0.000000e+00> : vector<16xf32>
    %187 = vector.multi_reduction <add>, %184, %cst_88 [1] : vector<16x128xf32> to vector<16xf32>
    %188 = vector.shape_cast %187 : vector<16xf32> to vector<16x1xf32>
    %cst_89 = arith.constant 1.280000e+02 : f32
    %189 = vector.broadcast %cst_89 : f32 to vector<16x1xf32>
    %190 = arith.divf %188, %189 : vector<16x1xf32>
    %191 = vector.broadcast %190 : vector<16x1xf32> to vector<16x128xf32>
    %192 = arith.subf %184, %191 : vector<16x128xf32>
    %193 = arith.mulf %192, %192 : vector<16x128xf32>
    %cst_90 = arith.constant dense<0.000000e+00> : vector<16xf32>
    %194 = vector.multi_reduction <add>, %193, %cst_90 [1] : vector<16x128xf32> to vector<16xf32>
    %195 = vector.shape_cast %194 : vector<16xf32> to vector<16x1xf32>
    %cst_91 = arith.constant 1.280000e+02 : f32
    %196 = vector.broadcast %cst_91 : f32 to vector<16x1xf32>
    %197 = arith.divf %195, %196 : vector<16x1xf32>
    %198 = vector.broadcast %190 : vector<16x1xf32> to vector<16x128xf32>
    %199 = arith.subf %184, %198 : vector<16x128xf32>
    %cst_92 = arith.constant 9.99999974E-6 : f32
    %200 = vector.broadcast %cst_92 : f32 to vector<16x1xf32>
    %201 = arith.addf %197, %200 : vector<16x1xf32>
    %202 = math.rsqrt %201 : vector<16x1xf32>
    %203 = vector.broadcast %202 : vector<16x1xf32> to vector<16x128xf32>
    %204 = arith.mulf %199, %203 : vector<16x128xf32>
    %205 = vector.broadcast %185 : vector<1x128xf32> to vector<16x128xf32>
    %206 = arith.mulf %204, %205 : vector<16x128xf32>
    %207 = vector.broadcast %186 : vector<1x128xf32> to vector<16x128xf32>
    %208 = arith.addf %206, %207 : vector<16x128xf32>
    %209 = arith.truncf %208 : vector<16x128xf32> to vector<16x128xbf16>
    %c0_93 = arith.constant 0 : index
    %c0_94 = arith.constant 0 : index
    %c0_95 = arith.constant 0 : index
    %210 = vector.load %arg20[%c0_93, %c0_94, %c0_95] : memref<1x16x128xbf16, #tpu.memory_space<vmem>>, vector<1x16x128xbf16>
    %211 = vector.shape_cast %210 : vector<1x16x128xbf16> to vector<16x128xbf16>
    %212 = vector.shape_cast %209 : vector<16x128xbf16> to vector<1x16x128xbf16>
    tpu.vector_store %arg20[%c0_93, %c0_94, %c0_95], %212 {strides = array<i32>} : memref<1x16x128xbf16, #tpu.memory_space<vmem>>, vector<1x16x128xbf16>,
    return
  }
  func.func @transform_0(%arg0: i32, %arg1: i32) -> (i32, i32, i32) {
    %c0_i32 = arith.constant 0 : i32
    %c0_i32_0 = arith.constant 0 : i32
    return %arg0, %arg1, %c0_i32 : i32, i32, i32
  }
  func.func @transform_1(%arg0: i32, %arg1: i32) -> (i32, i32, i32) {
    %c0_i32 = arith.constant 0 : i32
    %c0_i32_0 = arith.constant 0 : i32
    %c0_i32_1 = arith.constant 0 : i32
    return %arg0, %c0_i32, %c0_i32_0 : i32, i32, i32
  }
  func.func @transform_2(%arg0: i32, %arg1: i32) -> (i32, i32) {
    %c0_i32 = arith.constant 0 : i32
    %c0_i32_0 = arith.constant 0 : i32
    %c0_i32_1 = arith.constant 0 : i32
    return %c0_i32, %c0_i32_0 : i32, i32
  }
  func.func @transform_3(%arg0: i32, %arg1: i32) -> (i32, i32) {
    %c0_i32 = arith.constant 0 : i32
    %c0_i32_0 = arith.constant 0 : i32
    %c0_i32_1 = arith.constant 0 : i32
    return %c0_i32, %c0_i32_0 : i32, i32
  }
  func.func @transform_4(%arg0: i32, %arg1: i32) -> (i32, i32) {
    %c0_i32 = arith.constant 0 : i32
    %c0_i32_0 = arith.constant 0 : i32
    %c0_i32_1 = arith.constant 0 : i32
    return %c0_i32, %c0_i32_0 : i32, i32
  }
  func.func @transform_5(%arg0: i32, %arg1: i32) -> (i32, i32) {
    %c0_i32 = arith.constant 0 : i32
    %c0_i32_0 = arith.constant 0 : i32
    %c0_i32_1 = arith.constant 0 : i32
    return %c0_i32, %c0_i32_0 : i32, i32
  }
  func.func @transform_6(%arg0: i32, %arg1: i32) -> (i32, i32) {
    %c0_i32 = arith.constant 0 : i32
    %c0_i32_0 = arith.constant 0 : i32
    %c0_i32_1 = arith.constant 0 : i32
    return %c0_i32, %c0_i32_0 : i32, i32
  }
  func.func @transform_7(%arg0: i32, %arg1: i32) -> (i32, i32) {
    %c0_i32 = arith.constant 0 : i32
    %c0_i32_0 = arith.constant 0 : i32
    %c0_i32_1 = arith.constant 0 : i32
    return %c0_i32, %c0_i32_0 : i32, i32
  }
  func.func @transform_8(%arg0: i32, %arg1: i32) -> (i32, i32) {
    %c0_i32 = arith.constant 0 : i32
    %c0_i32_0 = arith.constant 0 : i32
    %c0_i32_1 = arith.constant 0 : i32
    return %c0_i32, %c0_i32_0 : i32, i32
  }
  func.func @transform_9(%arg0: i32, %arg1: i32) -> (i32, i32) {
    %c0_i32 = arith.constant 0 : i32
    %c0_i32_0 = arith.constant 0 : i32
    %c0_i32_1 = arith.constant 0 : i32
    return %c0_i32, %c0_i32_0 : i32, i32
  }
  func.func @transform_10(%arg0: i32, %arg1: i32) -> (i32, i32) {
    %c0_i32 = arith.constant 0 : i32
    %c0_i32_0 = arith.constant 0 : i32
    %c0_i32_1 = arith.constant 0 : i32
    return %c0_i32, %c0_i32_0 : i32, i32
  }
  func.func @transform_11(%arg0: i32, %arg1: i32) -> (i32, i32) {
    %c0_i32 = arith.constant 0 : i32
    %c0_i32_0 = arith.constant 0 : i32
    %c0_i32_1 = arith.constant 0 : i32
    return %c0_i32, %c0_i32_0 : i32, i32
  }
  func.func @transform_12(%arg0: i32, %arg1: i32) -> (i32, i32) {
    %c0_i32 = arith.constant 0 : i32
    %c0_i32_0 = arith.constant 0 : i32
    %c0_i32_1 = arith.constant 0 : i32
    return %c0_i32, %c0_i32_0 : i32, i32
  }
  func.func @transform_13(%arg0: i32, %arg1: i32) -> (i32, i32) {
    %c0_i32 = arith.constant 0 : i32
    %c0_i32_0 = arith.constant 0 : i32
    %c0_i32_1 = arith.constant 0 : i32
    return %c0_i32, %c0_i32_0 : i32, i32
  }
  func.func @transform_14(%arg0: i32, %arg1: i32) -> (i32, i32) {
    %c0_i32 = arith.constant 0 : i32
    %c0_i32_0 = arith.constant 0 : i32
    %c0_i32_1 = arith.constant 0 : i32
    return %c0_i32, %c0_i32_0 : i32, i32
  }
  func.func @transform_15(%arg0: i32, %arg1: i32) -> (i32, i32) {
    %c0_i32 = arith.constant 0 : i32
    %c0_i32_0 = arith.constant 0 : i32
    %c0_i32_1 = arith.constant 0 : i32
    return %c0_i32, %c0_i32_0 : i32, i32
  }
  func.func @transform_16(%arg0: i32, %arg1: i32) -> (i32, i32) {
    %c0_i32 = arith.constant 0 : i32
    %c0_i32_0 = arith.constant 0 : i32
    %c0_i32_1 = arith.constant 0 : i32
    return %c0_i32, %c0_i32_0 : i32, i32
  }
  func.func @transform_17(%arg0: i32, %arg1: i32) -> (i32, i32) {
    %c0_i32 = arith.constant 0 : i32
    %c0_i32_0 = arith.constant 0 : i32
    %c0_i32_1 = arith.constant 0 : i32
    return %c0_i32, %c0_i32_0 : i32, i32
  }
  func.func @transform_18(%arg0: i32, %arg1: i32) -> (i32, i32, i32) {
    %c0_i32 = arith.constant 0 : i32
    %c0_i32_0 = arith.constant 0 : i32
    return %arg0, %arg1, %c0_i32 : i32, i32, i32
  }
  func.func @transform_19(%arg0: i32, %arg1: i32) -> (i32, i32, i32) {
    %c0_i32 = arith.constant 0 : i32
    %c0_i32_0 = arith.constant 0 : i32
    return %arg0, %arg1, %c0_i32 : i32, i32, i32
  }
}

module attributes {stable_mosaic.version = 11 : i64} {
  func.func @kernel(%arg0: i32, %arg1: i32, %arg2: memref<1x16x128xf32, #tpu.memory_space<vmem>>, %arg3: memref<1x32x128xbf16, #tpu.memory_space<vmem>>, %arg4: memref<128x128xbf16, #tpu.memory_space<vmem>>, %arg5: memref<128x128xbf16, #tpu.memory_space<vmem>>, %arg6: memref<128x128xbf16, #tpu.memory_space<vmem>>, %arg7: memref<1x128xf32, #tpu.memory_space<vmem>>, %arg8: memref<1x128xf32, #tpu.memory_space<vmem>>, %arg9: memref<1x128xf32, #tpu.memory_space<vmem>>, %arg10: memref<128x128xbf16, #tpu.memory_space<vmem>>, %arg11: memref<1x128xf32, #tpu.memory_space<vmem>>, %arg12: memref<1x128xf32, #tpu.memory_space<vmem>>, %arg13: memref<1x128xf32, #tpu.memory_space<vmem>>, %arg14: memref<128x512xbf16, #tpu.memory_space<vmem>>, %arg15: memref<1x512xf32, #tpu.memory_space<vmem>>, %arg16: memref<512x128xbf16, #tpu.memory_space<vmem>>, %arg17: memref<1x128xf32, #tpu.memory_space<vmem>>, %arg18: memref<1x128xf32, #tpu.memory_space<vmem>>, %arg19: memref<1x128xf32, #tpu.memory_space<vmem>>, %arg20: memref<1x16x128xbf16, #tpu.memory_space<vmem>>, %arg21: memref<1x16x4xf32, #tpu.memory_space<vmem>>, %arg22: memref<4x32x32xbf16, #tpu.memory_space<vmem>>, %arg23: memref<4x32x32xbf16, #tpu.memory_space<vmem>>) attributes {dimension_semantics = [#tpu.dimension_semantics<parallel>, #tpu.dimension_semantics<arbitrary>], iteration_bounds = array<i64: 2, 1>, scalar_prefetch = 0 : i64, scratch_operands = 2 : i64, tpu.core_type = #tpu.core_type<tc>, window_params = [{transform_indices = @transform_0, window_bounds = array<i64: 1, 16, 128>}, {transform_indices = @transform_1, window_bounds = array<i64: 1, 32, 128>}, {pipeline_mode = #tpu.pipeline_mode<synchronous>, transform_indices = @transform_2, window_bounds = array<i64: 128, 128>}, {pipeline_mode = #tpu.pipeline_mode<synchronous>, transform_indices = @transform_3, window_bounds = array<i64: 128, 128>}, {pipeline_mode = #tpu.pipeline_mode<synchronous>, transform_indices = @transform_4, window_bounds = array<i64: 128, 128>}, {pipeline_mode = #tpu.pipeline_mode<synchronous>, transform_indices = @transform_5, window_bounds = array<i64: 1, 128>}, {pipeline_mode = #tpu.pipeline_mode<synchronous>, transform_indices = @transform_6, window_bounds = array<i64: 1, 128>}, {pipeline_mode = #tpu.pipeline_mode<synchronous>, transform_indices = @transform_7, window_bounds = array<i64: 1, 128>}, {pipeline_mode = #tpu.pipeline_mode<synchronous>, transform_indices = @transform_8, window_bounds = array<i64: 128, 128>}, {pipeline_mode = #tpu.pipeline_mode<synchronous>, transform_indices = @transform_9, window_bounds = array<i64: 1, 128>}, {pipeline_mode = #tpu.pipeline_mode<synchronous>, transform_indices = @transform_10, window_bounds = array<i64: 1, 128>}, {pipeline_mode = #tpu.pipeline_mode<synchronous>, transform_indices = @transform_11, window_bounds = array<i64: 1, 128>}, {pipeline_mode = #tpu.pipeline_mode<synchronous>, transform_indices = @transform_12, window_bounds = array<i64: 128, 512>}, {pipeline_mode = #tpu.pipeline_mode<synchronous>, transform_indices = @transform_13, window_bounds = array<i64: 1, 512>}, {pipeline_mode = #tpu.pipeline_mode<synchronous>, transform_indices = @transform_14, window_bounds = array<i64: 512, 128>}, {pipeline_mode = #tpu.pipeline_mode<synchronous>, transform_indices = @transform_15, window_bounds = array<i64: 1, 128>}, {pipeline_mode = #tpu.pipeline_mode<synchronous>, transform_indices = @transform_16, window_bounds = array<i64: 1, 128>}, {pipeline_mode = #tpu.pipeline_mode<synchronous>, transform_indices = @transform_17, window_bounds = array<i64: 1, 128>}, {transform_indices = @transform_18, window_bounds = array<i64: 1, 16, 128>}, {transform_indices = @transform_19, window_bounds = array<i64: 1, 16, 4>}]} {
    %c0_i32 = arith.constant 0 : i32
    %0 = arith.cmpi eq, %arg1, %c0_i32 : i32
    %1 = arith.extui %0 : i1 to i32
    %c0_i32_0 = arith.constant 0 : i32
    %2 = arith.cmpi ne, %1, %c0_i32_0 : i32
    scf.if %2 {
      %c0_96 = arith.constant 0 : index
      %c0_97 = arith.constant 0 : index
      %c0_98 = arith.constant 0 : index
      %213 = vector.load %arg3[%c0_96, %c0_97, %c0_98] : memref<1x32x128xbf16, #tpu.memory_space<vmem>>, vector<1x32x128xbf16>
      %214 = vector.shape_cast %213 : vector<1x32x128xbf16> to vector<32x128xbf16>
      %c0_99 = arith.constant 0 : index
      %c0_100 = arith.constant 0 : index
      %215 = vector.load %arg5[%c0_99, %c0_100] : memref<128x128xbf16, #tpu.memory_space<vmem>>, vector<128x128xbf16>
      %cst_101 = arith.constant dense<0.000000e+00> : vector<32x128xf32>
      %216 = tpu.matmul %214, %215, %cst_101 {dimension_numbers = #tpu.dot_dimension_numbers<[1], [0], [0], [1], [0, 0, 1, 1], [], []>} : vector<32x128xbf16>, vector<128x128xbf16>, vector<32x128xf32> -> vector<32x128xf32>
      %c0_102 = arith.constant 0 : index
      %c0_103 = arith.constant 0 : index
      %217 = vector.load %arg8[%c0_102, %c0_103] : memref<1x128xf32, #tpu.memory_space<vmem>>, vector<1x128xf32>
      %218 = vector.broadcast %217 : vector<1x128xf32> to vector<32x128xf32>
      %219 = arith.addf %216, %218 : vector<32x128xf32>
      %c0_104 = arith.constant 0 : index
      %c0_105 = arith.constant 0 : index
      %220 = vector.load %arg6[%c0_104, %c0_105] : memref<128x128xbf16, #tpu.memory_space<vmem>>, vector<128x128xbf16>
      %cst_106 = arith.constant dense<0.000000e+00> : vector<32x128xf32>
      %221 = tpu.matmul %214, %220, %cst_106 {dimension_numbers = #tpu.dot_dimension_numbers<[1], [0], [0], [1], [0, 0, 1, 1], [], []>} : vector<32x128xbf16>, vector<128x128xbf16>, vector<32x128xf32> -> vector<32x128xf32>
      %c0_107 = arith.constant 0 : index
      %c0_108 = arith.constant 0 : index
      %222 = vector.load %arg9[%c0_107, %c0_108] : memref<1x128xf32, #tpu.memory_space<vmem>>, vector<1x128xf32>
      %223 = vector.broadcast %222 : vector<1x128xf32> to vector<32x128xf32>
      %224 = arith.addf %221, %223 : vector<32x128xf32>
      %225 = vector.extract_strided_slice %219 {offsets = [0, 0], sizes = [32, 32], strides = [1, 1]} : vector<32x128xf32> to vector<32x32xf32>
      %226 = arith.truncf %225 : vector<32x32xf32> to vector<32x32xbf16>
      %c0_109 = arith.constant 0 : index
      %c0_110 = arith.constant 0 : index
      %c0_111 = arith.constant 0 : index
      %227 = vector.load %arg22[%c0_109, %c0_110, %c0_111] : memref<4x32x32xbf16, #tpu.memory_space<vmem>>, vector<1x32x32xbf16>
      %228 = vector.shape_cast %227 : vector<1x32x32xbf16> to vector<32x32xbf16>
      %229 = vector.shape_cast %226 : vector<32x32xbf16> to vector<1x32x32xbf16>
      tpu.vector_store %arg22[%c0_109, %c0_110, %c0_111], %229 {strides = array<i32>} : memref<4x32x32xbf16, #tpu.memory_space<vmem>>, vector<1x32x32xbf16>,
      %230 = vector.extract_strided_slice %224 {offsets = [0, 0], sizes = [32, 32], strides = [1, 1]} : vector<32x128xf32> to vector<32x32xf32>
      %231 = arith.truncf %230 : vector<32x32xf32> to vector<32x32xbf16>
      %c0_112 = arith.constant 0 : index
      %c0_113 = arith.constant 0 : index
      %c0_114 = arith.constant 0 : index
      %232 = vector.load %arg23[%c0_112, %c0_113, %c0_114] : memref<4x32x32xbf16, #tpu.memory_space<vmem>>, vector<1x32x32xbf16>
      %233 = vector.shape_cast %232 : vector<1x32x32xbf16> to vector<32x32xbf16>
      %234 = vector.shape_cast %231 : vector<32x32xbf16> to vector<1x32x32xbf16>
      tpu.vector_store %arg23[%c0_112, %c0_113, %c0_114], %234 {strides = array<i32>} : memref<4x32x32xbf16, #tpu.memory_space<vmem>>, vector<1x32x32xbf16>,
      %235 = vector.extract_strided_slice %219 {offsets = [0, 32], sizes = [32, 32], strides = [1, 1]} : vector<32x128xf32> to vector<32x32xf32>
      %236 = arith.truncf %235 : vector<32x32xf32> to vector<32x32xbf16>
      %c1_115 = arith.constant 1 : index
      %c0_116 = arith.constant 0 : index
      %c0_117 = arith.constant 0 : index
      %237 = vector.load %arg22[%c1_115, %c0_116, %c0_117] : memref<4x32x32xbf16, #tpu.memory_space<vmem>>, vector<1x32x32xbf16>
      %238 = vector.shape_cast %237 : vector<1x32x32xbf16> to vector<32x32xbf16>
      %239 = vector.shape_cast %236 : vector<32x32xbf16> to vector<1x32x32xbf16>
      tpu.vector_store %arg22[%c1_115, %c0_116, %c0_117], %239 {strides = array<i32>} : memref<4x32x32xbf16, #tpu.memory_space<vmem>>, vector<1x32x32xbf16>,
      %240 = vector.extract_strided_slice %224 {offsets = [0, 32], sizes = [32, 32], strides = [1, 1]} : vector<32x128xf32> to vector<32x32xf32>
      %241 = arith.truncf %240 : vector<32x32xf32> to vector<32x32xbf16>
      %c1_118 = arith.constant 1 : index
      %c0_119 = arith.constant 0 : index
      %c0_120 = arith.constant 0 : index
      %242 = vector.load %arg23[%c1_118, %c0_119, %c0_120] : memref<4x32x32xbf16, #tpu.memory_space<vmem>>, vector<1x32x32xbf16>
      %243 = vector.shape_cast %242 : vector<1x32x32xbf16> to vector<32x32xbf16>
      %244 = vector.shape_cast %241 : vector<32x32xbf16> to vector<1x32x32xbf16>
      tpu.vector_store %arg23[%c1_118, %c0_119, %c0_120], %244 {strides = array<i32>} : memref<4x32x32xbf16, #tpu.memory_space<vmem>>, vector<1x32x32xbf16>,
      %245 = vector.extract_strided_slice %219 {offsets = [0, 64], sizes = [32, 32], strides = [1, 1]} : vector<32x128xf32> to vector<32x32xf32>
      %246 = arith.truncf %245 : vector<32x32xf32> to vector<32x32xbf16>
      %c2_121 = arith.constant 2 : index
      %c0_122 = arith.constant 0 : index
      %c0_123 = arith.constant 0 : index
      %247 = vector.load %arg22[%c2_121, %c0_122, %c0_123] : memref<4x32x32xbf16, #tpu.memory_space<vmem>>, vector<1x32x32xbf16>
      %248 = vector.shape_cast %247 : vector<1x32x32xbf16> to vector<32x32xbf16>
      %249 = vector.shape_cast %246 : vector<32x32xbf16> to vector<1x32x32xbf16>
      tpu.vector_store %arg22[%c2_121, %c0_122, %c0_123], %249 {strides = array<i32>} : memref<4x32x32xbf16, #tpu.memory_space<vmem>>, vector<1x32x32xbf16>,
      %250 = vector.extract_strided_slice %224 {offsets = [0, 64], sizes = [32, 32], strides = [1, 1]} : vector<32x128xf32> to vector<32x32xf32>
      %251 = arith.truncf %250 : vector<32x32xf32> to vector<32x32xbf16>
      %c2_124 = arith.constant 2 : index
      %c0_125 = arith.constant 0 : index
      %c0_126 = arith.constant 0 : index
      %252 = vector.load %arg23[%c2_124, %c0_125, %c0_126] : memref<4x32x32xbf16, #tpu.memory_space<vmem>>, vector<1x32x32xbf16>
      %253 = vector.shape_cast %252 : vector<1x32x32xbf16> to vector<32x32xbf16>
      %254 = vector.shape_cast %251 : vector<32x32xbf16> to vector<1x32x32xbf16>
      tpu.vector_store %arg23[%c2_124, %c0_125, %c0_126], %254 {strides = array<i32>} : memref<4x32x32xbf16, #tpu.memory_space<vmem>>, vector<1x32x32xbf16>,
      %255 = vector.extract_strided_slice %219 {offsets = [0, 96], sizes = [32, 32], strides = [1, 1]} : vector<32x128xf32> to vector<32x32xf32>
      %256 = arith.truncf %255 : vector<32x32xf32> to vector<32x32xbf16>
      %c3_127 = arith.constant 3 : index
      %c0_128 = arith.constant 0 : index
      %c0_129 = arith.constant 0 : index
      %257 = vector.load %arg22[%c3_127, %c0_128, %c0_129] : memref<4x32x32xbf16, #tpu.memory_space<vmem>>, vector<1x32x32xbf16>
      %258 = vector.shape_cast %257 : vector<1x32x32xbf16> to vector<32x32xbf16>
      %259 = vector.shape_cast %256 : vector<32x32xbf16> to vector<1x32x32xbf16>
      tpu.vector_store %arg22[%c3_127, %c0_128, %c0_129], %259 {strides = array<i32>} : memref<4x32x32xbf16, #tpu.memory_space<vmem>>, vector<1x32x32xbf16>,
      %260 = vector.extract_strided_slice %224 {offsets = [0, 96], sizes = [32, 32], strides = [1, 1]} : vector<32x128xf32> to vector<32x32xf32>
      %261 = arith.truncf %260 : vector<32x32xf32> to vector<32x32xbf16>
      %c3_130 = arith.constant 3 : index
      %c0_131 = arith.constant 0 : index
      %c0_132 = arith.constant 0 : index
      %262 = vector.load %arg23[%c3_130, %c0_131, %c0_132] : memref<4x32x32xbf16, #tpu.memory_space<vmem>>, vector<1x32x32xbf16>
      %263 = vector.shape_cast %262 : vector<1x32x32xbf16> to vector<32x32xbf16>
      %264 = vector.shape_cast %261 : vector<32x32xbf16> to vector<1x32x32xbf16>
      tpu.vector_store %arg23[%c3_130, %c0_131, %c0_132], %264 {strides = array<i32>} : memref<4x32x32xbf16, #tpu.memory_space<vmem>>, vector<1x32x32xbf16>,
    } else {
    }
    %c0 = arith.constant 0 : index
    %c0_1 = arith.constant 0 : index
    %c0_2 = arith.constant 0 : index
    %3 = vector.load %arg2[%c0, %c0_1, %c0_2] : memref<1x16x128xf32, #tpu.memory_space<vmem>>, vector<1x16x128xf32>
    %4 = vector.shape_cast %3 : vector<1x16x128xf32> to vector<16x128xf32>
    %5 = arith.truncf %4 : vector<16x128xf32> to vector<16x128xbf16>
    %c0_3 = arith.constant 0 : index
    %c0_4 = arith.constant 0 : index
    %6 = vector.load %arg4[%c0_3, %c0_4] : memref<128x128xbf16, #tpu.memory_space<vmem>>, vector<128x128xbf16>
    %cst = arith.constant dense<0.000000e+00> : vector<16x128xf32>
    %7 = tpu.matmul %5, %6, %cst {dimension_numbers = #tpu.dot_dimension_numbers<[1], [0], [0], [1], [0, 0, 1, 1], [], []>} : vector<16x128xbf16>, vector<128x128xbf16>, vector<16x128xf32> -> vector<16x128xf32>
    %c0_5 = arith.constant 0 : index
    %c0_6 = arith.constant 0 : index
    %8 = vector.load %arg7[%c0_5, %c0_6] : memref<1x128xf32, #tpu.memory_space<vmem>>, vector<1x128xf32>
    %9 = vector.broadcast %8 : vector<1x128xf32> to vector<16x128xf32>
    %10 = arith.addf %7, %9 : vector<16x128xf32>
    %11 = vector.extract_strided_slice %10 {offsets = [0, 0], sizes = [16, 32], strides = [1, 1]} : vector<16x128xf32> to vector<16x32xf32>
    %12 = arith.truncf %11 : vector<16x32xf32> to vector<16x32xbf16>
    %c0_7 = arith.constant 0 : index
    %c0_8 = arith.constant 0 : index
    %c0_9 = arith.constant 0 : index
    %13 = vector.load %arg22[%c0_7, %c0_8, %c0_9] : memref<4x32x32xbf16, #tpu.memory_space<vmem>>, vector<1x32x32xbf16>
    %14 = vector.shape_cast %13 : vector<1x32x32xbf16> to vector<32x32xbf16>
    "tpu.trace_start"() <{level = 10 : i32, message = "qd,kd->qk"}> : () -> ()
    %cst_10 = arith.constant dense<0.000000e+00> : vector<16x32xf32>
    %15 = tpu.matmul %12, %14, %cst_10 {dimension_numbers = #tpu.dot_dimension_numbers<[1], [1], [0], [0], [0, 0, 1, 0], [], []>} : vector<16x32xbf16>, vector<32x32xbf16>, vector<16x32xf32> -> vector<16x32xf32>
    "tpu.trace_stop"() : () -> ()
    %cst_11 = arith.constant 0.176776692 : f32
    %16 = vector.broadcast %cst_11 : f32 to vector<16x32xf32>
    %17 = arith.mulf %15, %16 : vector<16x32xf32>
    %cst_12 = arith.constant dense<0xFF800000> : vector<16xf32>
    %18 = vector.multi_reduction <maximumf>, %17, %cst_12 [1] : vector<16x32xf32> to vector<16xf32>
    %19 = vector.shape_cast %18 : vector<16xf32> to vector<16x1xf32>
    %20 = vector.broadcast %19 : vector<16x1xf32> to vector<16x32xf32>
    %21 = arith.subf %17, %20 : vector<16x32xf32>
    %22 = math.exp %21 : vector<16x32xf32>
    %cst_13 = arith.constant dense<0.000000e+00> : vector<16xf32>
    %23 = vector.multi_reduction <add>, %22, %cst_13 [1] : vector<16x32xf32> to vector<16xf32>
    %24 = vector.shape_cast %23 : vector<16xf32> to vector<16x1xf32>
    %cst_14 = arith.constant 1.000000e+00 : f32
    %25 = vector.broadcast %cst_14 : f32 to vector<16x1xf32>
    %26 = arith.divf %25, %24 : vector<16x1xf32>
    %27 = math.log %24 : vector<16x1xf32>
    %28 = vector.broadcast %19 : vector<16x1xf32> to vector<16x32xf32>
    %29 = arith.subf %17, %28 : vector<16x32xf32>
    %30 = arith.mulf %22, %29 : vector<16x32xf32>
    %cst_15 = arith.constant dense<0.000000e+00> : vector<16xf32>
    %31 = vector.multi_reduction <add>, %30, %cst_15 [1] : vector<16x32xf32> to vector<16xf32>
    %32 = vector.shape_cast %31 : vector<16xf32> to vector<16x1xf32>
    %33 = arith.mulf %32, %26 : vector<16x1xf32>
    %34 = arith.subf %27, %33 : vector<16x1xf32>
    %35 = arith.truncf %22 : vector<16x32xf32> to vector<16x32xbf16>
    %c0_16 = arith.constant 0 : index
    %c0_17 = arith.constant 0 : index
    %c0_18 = arith.constant 0 : index
    %36 = vector.load %arg23[%c0_16, %c0_17, %c0_18] : memref<4x32x32xbf16, #tpu.memory_space<vmem>>, vector<1x32x32xbf16>
    %37 = vector.shape_cast %36 : vector<1x32x32xbf16> to vector<32x32xbf16>
    %cst_19 = arith.constant dense<0.000000e+00> : vector<16x32xf32>
    %38 = tpu.matmul %35, %37, %cst_19 {dimension_numbers = #tpu.dot_dimension_numbers<[1], [0], [0], [1], [0, 0, 1, 1], [], []>} : vector<16x32xbf16>, vector<32x32xbf16>, vector<16x32xf32> -> vector<16x32xf32>
    %39 = vector.broadcast %26 : vector<16x1xf32> to vector<16x32xf32>
    %40 = arith.mulf %38, %39 : vector<16x32xf32>
    %41 = arith.truncf %40 : vector<16x32xf32> to vector<16x32xbf16>
    %42 = vector.extract_strided_slice %10 {offsets = [0, 32], sizes = [16, 32], strides = [1, 1]} : vector<16x128xf32> to vector<16x32xf32>
    %43 = arith.truncf %42 : vector<16x32xf32> to vector<16x32xbf16>
    %c1 = arith.constant 1 : index
    %c0_20 = arith.constant 0 : index
    %c0_21 = arith.constant 0 : index
    %44 = vector.load %arg22[%c1, %c0_20, %c0_21] : memref<4x32x32xbf16, #tpu.memory_space<vmem>>, vector<1x32x32xbf16>
    %45 = vector.shape_cast %44 : vector<1x32x32xbf16> to vector<32x32xbf16>
    "tpu.trace_start"() <{level = 10 : i32, message = "qd,kd->qk"}> : () -> ()
    %cst_22 = arith.constant dense<0.000000e+00> : vector<16x32xf32>
    %46 = tpu.matmul %43, %45, %cst_22 {dimension_numbers = #tpu.dot_dimension_numbers<[1], [1], [0], [0], [0, 0, 1, 0], [], []>} : vector<16x32xbf16>, vector<32x32xbf16>, vector<16x32xf32> -> vector<16x32xf32>
    "tpu.trace_stop"() : () -> ()
    %cst_23 = arith.constant 0.176776692 : f32
    %47 = vector.broadcast %cst_23 : f32 to vector<16x32xf32>
    %48 = arith.mulf %46, %47 : vector<16x32xf32>
    %cst_24 = arith.constant dense<0xFF800000> : vector<16xf32>
    %49 = vector.multi_reduction <maximumf>, %48, %cst_24 [1] : vector<16x32xf32> to vector<16xf32>
    %50 = vector.shape_cast %49 : vector<16xf32> to vector<16x1xf32>
    %51 = vector.broadcast %50 : vector<16x1xf32> to vector<16x32xf32>
    %52 = arith.subf %48, %51 : vector<16x32xf32>
    %53 = math.exp %52 : vector<16x32xf32>
    %cst_25 = arith.constant dense<0.000000e+00> : vector<16xf32>
    %54 = vector.multi_reduction <add>, %53, %cst_25 [1] : vector<16x32xf32> to vector<16xf32>
    %55 = vector.shape_cast %54 : vector<16xf32> to vector<16x1xf32>
    %cst_26 = arith.constant 1.000000e+00 : f32
    %56 = vector.broadcast %cst_26 : f32 to vector<16x1xf32>
    %57 = arith.divf %56, %55 : vector<16x1xf32>
    %58 = math.log %55 : vector<16x1xf32>
    %59 = vector.broadcast %50 : vector<16x1xf32> to vector<16x32xf32>
    %60 = arith.subf %48, %59 : vector<16x32xf32>
    %61 = arith.mulf %53, %60 : vector<16x32xf32>
    %cst_27 = arith.constant dense<0.000000e+00> : vector<16xf32>
    %62 = vector.multi_reduction <add>, %61, %cst_27 [1] : vector<16x32xf32> to vector<16xf32>
    %63 = vector.shape_cast %62 : vector<16xf32> to vector<16x1xf32>
    %64 = arith.mulf %63, %57 : vector<16x1xf32>
    %65 = arith.subf %58, %64 : vector<16x1xf32>
    %66 = arith.truncf %53 : vector<16x32xf32> to vector<16x32xbf16>
    %c1_28 = arith.constant 1 : index
    %c0_29 = arith.constant 0 : index
    %c0_30 = arith.constant 0 : index
    %67 = vector.load %arg23[%c1_28, %c0_29, %c0_30] : memref<4x32x32xbf16, #tpu.memory_space<vmem>>, vector<1x32x32xbf16>
    %68 = vector.shape_cast %67 : vector<1x32x32xbf16> to vector<32x32xbf16>
    %cst_31 = arith.constant dense<0.000000e+00> : vector<16x32xf32>
    %69 = tpu.matmul %66, %68, %cst_31 {dimension_numbers = #tpu.dot_dimension_numbers<[1], [0], [0], [1], [0, 0, 1, 1], [], []>} : vector<16x32xbf16>, vector<32x32xbf16>, vector<16x32xf32> -> vector<16x32xf32>
    %70 = vector.broadcast %57 : vector<16x1xf32> to vector<16x32xf32>
    %71 = arith.mulf %69, %70 : vector<16x32xf32>
    %72 = arith.truncf %71 : vector<16x32xf32> to vector<16x32xbf16>
    %73 = vector.extract_strided_slice %10 {offsets = [0, 64], sizes = [16, 32], strides = [1, 1]} : vector<16x128xf32> to vector<16x32xf32>
    %74 = arith.truncf %73 : vector<16x32xf32> to vector<16x32xbf16>
    %c2 = arith.constant 2 : index
    %c0_32 = arith.constant 0 : index
    %c0_33 = arith.constant 0 : index
    %75 = vector.load %arg22[%c2, %c0_32, %c0_33] : memref<4x32x32xbf16, #tpu.memory_space<vmem>>, vector<1x32x32xbf16>
    %76 = vector.shape_cast %75 : vector<1x32x32xbf16> to vector<32x32xbf16>
    "tpu.trace_start"() <{level = 10 : i32, message = "qd,kd->qk"}> : () -> ()
    %cst_34 = arith.constant dense<0.000000e+00> : vector<16x32xf32>
    %77 = tpu.matmul %74, %76, %cst_34 {dimension_numbers = #tpu.dot_dimension_numbers<[1], [1], [0], [0], [0, 0, 1, 0], [], []>} : vector<16x32xbf16>, vector<32x32xbf16>, vector<16x32xf32> -> vector<16x32xf32>
    "tpu.trace_stop"() : () -> ()
    %cst_35 = arith.constant 0.176776692 : f32
    %78 = vector.broadcast %cst_35 : f32 to vector<16x32xf32>
    %79 = arith.mulf %77, %78 : vector<16x32xf32>
    %cst_36 = arith.constant dense<0xFF800000> : vector<16xf32>
    %80 = vector.multi_reduction <maximumf>, %79, %cst_36 [1] : vector<16x32xf32> to vector<16xf32>
    %81 = vector.shape_cast %80 : vector<16xf32> to vector<16x1xf32>
    %82 = vector.broadcast %81 : vector<16x1xf32> to vector<16x32xf32>
    %83 = arith.subf %79, %82 : vector<16x32xf32>
    %84 = math.exp %83 : vector<16x32xf32>
    %cst_37 = arith.constant dense<0.000000e+00> : vector<16xf32>
    %85 = vector.multi_reduction <add>, %84, %cst_37 [1] : vector<16x32xf32> to vector<16xf32>
    %86 = vector.shape_cast %85 : vector<16xf32> to vector<16x1xf32>
    %cst_38 = arith.constant 1.000000e+00 : f32
    %87 = vector.broadcast %cst_38 : f32 to vector<16x1xf32>
    %88 = arith.divf %87, %86 : vector<16x1xf32>
    %89 = math.log %86 : vector<16x1xf32>
    %90 = vector.broadcast %81 : vector<16x1xf32> to vector<16x32xf32>
    %91 = arith.subf %79, %90 : vector<16x32xf32>
    %92 = arith.mulf %84, %91 : vector<16x32xf32>
    %cst_39 = arith.constant dense<0.000000e+00> : vector<16xf32>
    %93 = vector.multi_reduction <add>, %92, %cst_39 [1] : vector<16x32xf32> to vector<16xf32>
    %94 = vector.shape_cast %93 : vector<16xf32> to vector<16x1xf32>
    %95 = arith.mulf %94, %88 : vector<16x1xf32>
    %96 = arith.subf %89, %95 : vector<16x1xf32>
    %97 = arith.truncf %84 : vector<16x32xf32> to vector<16x32xbf16>
    %c2_40 = arith.constant 2 : index
    %c0_41 = arith.constant 0 : index
    %c0_42 = arith.constant 0 : index
    %98 = vector.load %arg23[%c2_40, %c0_41, %c0_42] : memref<4x32x32xbf16, #tpu.memory_space<vmem>>, vector<1x32x32xbf16>
    %99 = vector.shape_cast %98 : vector<1x32x32xbf16> to vector<32x32xbf16>
    %cst_43 = arith.constant dense<0.000000e+00> : vector<16x32xf32>
    %100 = tpu.matmul %97, %99, %cst_43 {dimension_numbers = #tpu.dot_dimension_numbers<[1], [0], [0], [1], [0, 0, 1, 1], [], []>} : vector<16x32xbf16>, vector<32x32xbf16>, vector<16x32xf32> -> vector<16x32xf32>
    %101 = vector.broadcast %88 : vector<16x1xf32> to vector<16x32xf32>
    %102 = arith.mulf %100, %101 : vector<16x32xf32>
    %103 = arith.truncf %102 : vector<16x32xf32> to vector<16x32xbf16>
    %104 = vector.extract_strided_slice %10 {offsets = [0, 96], sizes = [16, 32], strides = [1, 1]} : vector<16x128xf32> to vector<16x32xf32>
    %105 = arith.truncf %104 : vector<16x32xf32> to vector<16x32xbf16>
    %c3 = arith.constant 3 : index
    %c0_44 = arith.constant 0 : index
    %c0_45 = arith.constant 0 : index
    %106 = vector.load %arg22[%c3, %c0_44, %c0_45] : memref<4x32x32xbf16, #tpu.memory_space<vmem>>, vector<1x32x32xbf16>
    %107 = vector.shape_cast %106 : vector<1x32x32xbf16> to vector<32x32xbf16>
    "tpu.trace_start"() <{level = 10 : i32, message = "qd,kd->qk"}> : () -> ()
    %cst_46 = arith.constant dense<0.000000e+00> : vector<16x32xf32>
    %108 = tpu.matmul %105, %107, %cst_46 {dimension_numbers = #tpu.dot_dimension_numbers<[1], [1], [0], [0], [0, 0, 1, 0], [], []>} : vector<16x32xbf16>, vector<32x32xbf16>, vector<16x32xf32> -> vector<16x32xf32>
    "tpu.trace_stop"() : () -> ()
    %cst_47 = arith.constant 0.176776692 : f32
    %109 = vector.broadcast %cst_47 : f32 to vector<16x32xf32>
    %110 = arith.mulf %108, %109 : vector<16x32xf32>
    %cst_48 = arith.constant dense<0xFF800000> : vector<16xf32>
    %111 = vector.multi_reduction <maximumf>, %110, %cst_48 [1] : vector<16x32xf32> to vector<16xf32>
    %112 = vector.shape_cast %111 : vector<16xf32> to vector<16x1xf32>
    %113 = vector.broadcast %112 : vector<16x1xf32> to vector<16x32xf32>
    %114 = arith.subf %110, %113 : vector<16x32xf32>
    %115 = math.exp %114 : vector<16x32xf32>
    %cst_49 = arith.constant dense<0.000000e+00> : vector<16xf32>
    %116 = vector.multi_reduction <add>, %115, %cst_49 [1] : vector<16x32xf32> to vector<16xf32>
    %117 = vector.shape_cast %116 : vector<16xf32> to vector<16x1xf32>
    %cst_50 = arith.constant 1.000000e+00 : f32
    %118 = vector.broadcast %cst_50 : f32 to vector<16x1xf32>
    %119 = arith.divf %118, %117 : vector<16x1xf32>
    %120 = math.log %117 : vector<16x1xf32>
    %121 = vector.broadcast %112 : vector<16x1xf32> to vector<16x32xf32>
    %122 = arith.subf %110, %121 : vector<16x32xf32>
    %123 = arith.mulf %115, %122 : vector<16x32xf32>
    %cst_51 = arith.constant dense<0.000000e+00> : vector<16xf32>
    %124 = vector.multi_reduction <add>, %123, %cst_51 [1] : vector<16x32xf32> to vector<16xf32>
    %125 = vector.shape_cast %124 : vector<16xf32> to vector<16x1xf32>
    %126 = arith.mulf %125, %119 : vector<16x1xf32>
    %127 = arith.subf %120, %126 : vector<16x1xf32>
    %128 = arith.truncf %115 : vector<16x32xf32> to vector<16x32xbf16>
    %c3_52 = arith.constant 3 : index
    %c0_53 = arith.constant 0 : index
    %c0_54 = arith.constant 0 : index
    %129 = vector.load %arg23[%c3_52, %c0_53, %c0_54] : memref<4x32x32xbf16, #tpu.memory_space<vmem>>, vector<1x32x32xbf16>
    %130 = vector.shape_cast %129 : vector<1x32x32xbf16> to vector<32x32xbf16>
    %cst_55 = arith.constant dense<0.000000e+00> : vector<16x32xf32>
    %131 = tpu.matmul %128, %130, %cst_55 {dimension_numbers = #tpu.dot_dimension_numbers<[1], [0], [0], [1], [0, 0, 1, 1], [], []>} : vector<16x32xbf16>, vector<32x32xbf16>, vector<16x32xf32> -> vector<16x32xf32>
    %132 = vector.broadcast %119 : vector<16x1xf32> to vector<16x32xf32>
    %133 = arith.mulf %131, %132 : vector<16x32xf32>
    %134 = arith.truncf %133 : vector<16x32xf32> to vector<16x32xbf16>
    %135 = tpu.concatenate %34, %65, %96, %127 in 1 : vector<16x1xf32>, vector<16x1xf32>, vector<16x1xf32>, vector<16x1xf32> -> vector<16x4xf32>
    %c0_56 = arith.constant 0 : index
    %c0_57 = arith.constant 0 : index
    %c0_58 = arith.constant 0 : index
    %136 = vector.load %arg21[%c0_56, %c0_57, %c0_58] : memref<1x16x4xf32, #tpu.memory_space<vmem>>, vector<1x16x4xf32>
    %137 = vector.shape_cast %136 : vector<1x16x4xf32> to vector<16x4xf32>
    %138 = vector.shape_cast %135 : vector<16x4xf32> to vector<1x16x4xf32>
    tpu.vector_store %arg21[%c0_56, %c0_57, %c0_58], %138 {strides = array<i32>} : memref<1x16x4xf32, #tpu.memory_space<vmem>>, vector<1x16x4xf32>,
    %139 = tpu.concatenate %41, %72, %103, %134 in 1 : vector<16x32xbf16>, vector<16x32xbf16>, vector<16x32xbf16>, vector<16x32xbf16> -> vector<16x128xbf16>
    %c0_59 = arith.constant 0 : index
    %c0_60 = arith.constant 0 : index
    %140 = vector.load %arg10[%c0_59, %c0_60] : memref<128x128xbf16, #tpu.memory_space<vmem>>, vector<128x128xbf16>
    %cst_61 = arith.constant dense<0.000000e+00> : vector<16x128xf32>
    %141 = tpu.matmul %139, %140, %cst_61 {dimension_numbers = #tpu.dot_dimension_numbers<[1], [0], [0], [1], [0, 0, 1, 1], [], []>} : vector<16x128xbf16>, vector<128x128xbf16>, vector<16x128xf32> -> vector<16x128xf32>
    %c0_62 = arith.constant 0 : index
    %c0_63 = arith.constant 0 : index
    %142 = vector.load %arg11[%c0_62, %c0_63] : memref<1x128xf32, #tpu.memory_space<vmem>>, vector<1x128xf32>
    %143 = vector.broadcast %142 : vector<1x128xf32> to vector<16x128xf32>
    %144 = arith.addf %141, %143 : vector<16x128xf32>
    %145 = arith.addf %4, %144 : vector<16x128xf32>
    %c0_64 = arith.constant 0 : index
    %c0_65 = arith.constant 0 : index
    %146 = vector.load %arg12[%c0_64, %c0_65] : memref<1x128xf32, #tpu.memory_space<vmem>>, vector<1x128xf32>
    %c0_66 = arith.constant 0 : index
    %c0_67 = arith.constant 0 : index
    %147 = vector.load %arg13[%c0_66, %c0_67] : memref<1x128xf32, #tpu.memory_space<vmem>>, vector<1x128xf32>
    %cst_68 = arith.constant dense<0.000000e+00> : vector<16xf32>
    %148 = vector.multi_reduction <add>, %145, %cst_68 [1] : vector<16x128xf32> to vector<16xf32>
    %149 = vector.shape_cast %148 : vector<16xf32> to vector<16x1xf32>
    %cst_69 = arith.constant 1.280000e+02 : f32
    %150 = vector.broadcast %cst_69 : f32 to vector<16x1xf32>
    %151 = arith.divf %149, %150 : vector<16x1xf32>
    %152 = vector.broadcast %151 : vector<16x1xf32> to vector<16x128xf32>
    %153 = arith.subf %145, %152 : vector<16x128xf32>
    %154 = arith.mulf %153, %153 : vector<16x128xf32>
    %cst_70 = arith.constant dense<0.000000e+00> : vector<16xf32>
    %155 = vector.multi_reduction <add>, %154, %cst_70 [1] : vector<16x128xf32> to vector<16xf32>
    %156 = vector.shape_cast %155 : vector<16xf32> to vector<16x1xf32>
    %cst_71 = arith.constant 1.280000e+02 : f32
    %157 = vector.broadcast %cst_71 : f32 to vector<16x1xf32>
    %158 = arith.divf %156, %157 : vector<16x1xf32>
    %159 = vector.broadcast %151 : vector<16x1xf32> to vector<16x128xf32>
    %160 = arith.subf %145, %159 : vector<16x128xf32>
    %cst_72 = arith.constant 9.99999974E-6 : f32
    %161 = vector.broadcast %cst_72 : f32 to vector<16x1xf32>
    %162 = arith.addf %158, %161 : vector<16x1xf32>
    %163 = math.rsqrt %162 : vector<16x1xf32>
    %164 = vector.broadcast %163 : vector<16x1xf32> to vector<16x128xf32>
    %165 = arith.mulf %160, %164 : vector<16x128xf32>
    %166 = vector.broadcast %146 : vector<1x128xf32> to vector<16x128xf32>
    %167 = arith.mulf %165, %166 : vector<16x128xf32>
    %168 = vector.broadcast %147 : vector<1x128xf32> to vector<16x128xf32>
    %169 = arith.addf %167, %168 : vector<16x128xf32>
    %170 = arith.truncf %169 : vector<16x128xf32> to vector<16x128xbf16>
    %c0_73 = arith.constant 0 : index
    %c0_74 = arith.constant 0 : index
    %171 = vector.load %arg14[%c0_73, %c0_74] : memref<128x512xbf16, #tpu.memory_space<vmem>>, vector<128x512xbf16>
    %cst_75 = arith.constant dense<0.000000e+00> : vector<16x512xf32>
    %172 = tpu.matmul %170, %171, %cst_75 {dimension_numbers = #tpu.dot_dimension_numbers<[1], [0], [0], [1], [0, 0, 1, 1], [], []>} : vector<16x128xbf16>, vector<128x512xbf16>, vector<16x512xf32> -> vector<16x512xf32>
    %c0_76 = arith.constant 0 : index
    %c0_77 = arith.constant 0 : index
    %173 = vector.load %arg15[%c0_76, %c0_77] : memref<1x512xf32, #tpu.memory_space<vmem>>, vector<1x512xf32>
    %174 = vector.broadcast %173 : vector<1x512xf32> to vector<16x512xf32>
    %175 = arith.addf %172, %174 : vector<16x512xf32>
    %cst_78 = arith.constant 0.000000e+00 : f32
    %176 = vector.broadcast %cst_78 : f32 to vector<16x512xf32>
    %177 = arith.maximumf %175, %176 : vector<16x512xf32>
    %178 = arith.truncf %177 : vector<16x512xf32> to vector<16x512xbf16>
    %c0_79 = arith.constant 0 : index
    %c0_80 = arith.constant 0 : index
    %179 = vector.load %arg16[%c0_79, %c0_80] : memref<512x128xbf16, #tpu.memory_space<vmem>>, vector<512x128xbf16>
    %cst_81 = arith.constant dense<0.000000e+00> : vector<16x128xf32>
    %180 = tpu.matmul %178, %179, %cst_81 {dimension_numbers = #tpu.dot_dimension_numbers<[1], [0], [0], [1], [0, 0, 1, 1], [], []>} : vector<16x512xbf16>, vector<512x128xbf16>, vector<16x128xf32> -> vector<16x128xf32>
    %c0_82 = arith.constant 0 : index
    %c0_83 = arith.constant 0 : index
    %181 = vector.load %arg17[%c0_82, %c0_83] : memref<1x128xf32, #tpu.memory_space<vmem>>, vector<1x128xf32>
    %182 = vector.broadcast %181 : vector<1x128xf32> to vector<16x128xf32>
    %183 = arith.addf %180, %182 : vector<16x128xf32>
    %184 = arith.addf %169, %183 : vector<16x128xf32>
    %c0_84 = arith.constant 0 : index
    %c0_85 = arith.constant 0 : index
    %185 = vector.load %arg18[%c0_84, %c0_85] : memref<1x128xf32, #tpu.memory_space<vmem>>, vector<1x128xf32>
    %c0_86 = arith.constant 0 : index
    %c0_87 = arith.constant 0 : index
    %186 = vector.load %arg19[%c0_86, %c0_87] : memref<1x128xf32, #tpu.memory_space<vmem>>, vector<1x128xf32>
    %cst_88 = arith.constant dense<0.000000e+00> : vector<16xf32>
    %187 = vector.multi_reduction <add>, %184, %cst_88 [1] : vector<16x128xf32> to vector<16xf32>
    %188 = vector.shape_cast %187 : vector<16xf32> to vector<16x1xf32>
    %cst_89 = arith.constant 1.280000e+02 : f32
    %189 = vector.broadcast %cst_89 : f32 to vector<16x1xf32>
    %190 = arith.divf %188, %189 : vector<16x1xf32>
    %191 = vector.broadcast %190 : vector<16x1xf32> to vector<16x128xf32>
    %192 = arith.subf %184, %191 : vector<16x128xf32>
    %193 = arith.mulf %192, %192 : vector<16x128xf32>
    %cst_90 = arith.constant dense<0.000000e+00> : vector<16xf32>
    %194 = vector.multi_reduction <add>, %193, %cst_90 [1] : vector<16x128xf32> to vector<16xf32>
    %195 = vector.shape_cast %194 : vector<16xf32> to vector<16x1xf32>
    %cst_91 = arith.constant 1.280000e+02 : f32
    %196 = vector.broadcast %cst_91 : f32 to vector<16x1xf32>
    %197 = arith.divf %195, %196 : vector<16x1xf32>
    %198 = vector.broadcast %190 : vector<16x1xf32> to vector<16x128xf32>
    %199 = arith.subf %184, %198 : vector<16x128xf32>
    %cst_92 = arith.constant 9.99999974E-6 : f32
    %200 = vector.broadcast %cst_92 : f32 to vector<16x1xf32>
    %201 = arith.addf %197, %200 : vector<16x1xf32>
    %202 = math.rsqrt %201 : vector<16x1xf32>
    %203 = vector.broadcast %202 : vector<16x1xf32> to vector<16x128xf32>
    %204 = arith.mulf %199, %203 : vector<16x128xf32>
    %205 = vector.broadcast %185 : vector<1x128xf32> to vector<16x128xf32>
    %206 = arith.mulf %204, %205 : vector<16x128xf32>
    %207 = vector.broadcast %186 : vector<1x128xf32> to vector<16x128xf32>
    %208 = arith.addf %206, %207 : vector<16x128xf32>
    %209 = arith.truncf %208 : vector<16x128xf32> to vector<16x128xbf16>
    %c0_93 = arith.constant 0 : index
    %c0_94 = arith.constant 0 : index
    %c0_95 = arith.constant 0 : index
    %210 = vector.load %arg20[%c0_93, %c0_94, %c0_95] : memref<1x16x128xbf16, #tpu.memory_space<vmem>>, vector<1x16x128xbf16>
    %211 = vector.shape_cast %210 : vector<1x16x128xbf16> to vector<16x128xbf16>
    %212 = vector.shape_cast %209 : vector<16x128xbf16> to vector<1x16x128xbf16>
    tpu.vector_store %arg20[%c0_93, %c0_94, %c0_95], %212 {strides = array<i32>} : memref<1x16x128xbf16, #tpu.memory_space<vmem>>, vector<1x16x128xbf16>,
    return
  }
  func.func @transform_0(%arg0: i32, %arg1: i32) -> (i32, i32, i32) {
    %c0_i32 = arith.constant 0 : i32
    %c0_i32_0 = arith.constant 0 : i32
    return %arg0, %arg1, %c0_i32 : i32, i32, i32
  }
  func.func @transform_1(%arg0: i32, %arg1: i32) -> (i32, i32, i32) {
    %c0_i32 = arith.constant 0 : i32
    %c0_i32_0 = arith.constant 0 : i32
    %c0_i32_1 = arith.constant 0 : i32
    return %arg0, %c0_i32, %c0_i32_0 : i32, i32, i32
  }
  func.func @transform_2(%arg0: i32, %arg1: i32) -> (i32, i32) {
    %c0_i32 = arith.constant 0 : i32
    %c0_i32_0 = arith.constant 0 : i32
    %c0_i32_1 = arith.constant 0 : i32
    return %c0_i32, %c0_i32_0 : i32, i32
  }
  func.func @transform_3(%arg0: i32, %arg1: i32) -> (i32, i32) {
    %c0_i32 = arith.constant 0 : i32
    %c0_i32_0 = arith.constant 0 : i32
    %c0_i32_1 = arith.constant 0 : i32
    return %c0_i32, %c0_i32_0 : i32, i32
  }
  func.func @transform_4(%arg0: i32, %arg1: i32) -> (i32, i32) {
    %c0_i32 = arith.constant 0 : i32
    %c0_i32_0 = arith.constant 0 : i32
    %c0_i32_1 = arith.constant 0 : i32
    return %c0_i32, %c0_i32_0 : i32, i32
  }
  func.func @transform_5(%arg0: i32, %arg1: i32) -> (i32, i32) {
    %c0_i32 = arith.constant 0 : i32
    %c0_i32_0 = arith.constant 0 : i32
    %c0_i32_1 = arith.constant 0 : i32
    return %c0_i32, %c0_i32_0 : i32, i32
  }
  func.func @transform_6(%arg0: i32, %arg1: i32) -> (i32, i32) {
    %c0_i32 = arith.constant 0 : i32
    %c0_i32_0 = arith.constant 0 : i32
    %c0_i32_1 = arith.constant 0 : i32
    return %c0_i32, %c0_i32_0 : i32, i32
  }
  func.func @transform_7(%arg0: i32, %arg1: i32) -> (i32, i32) {
    %c0_i32 = arith.constant 0 : i32
    %c0_i32_0 = arith.constant 0 : i32
    %c0_i32_1 = arith.constant 0 : i32
    return %c0_i32, %c0_i32_0 : i32, i32
  }
  func.func @transform_8(%arg0: i32, %arg1: i32) -> (i32, i32) {
    %c0_i32 = arith.constant 0 : i32
    %c0_i32_0 = arith.constant 0 : i32
    %c0_i32_1 = arith.constant 0 : i32
    return %c0_i32, %c0_i32_0 : i32, i32
  }
  func.func @transform_9(%arg0: i32, %arg1: i32) -> (i32, i32) {
    %c0_i32 = arith.constant 0 : i32
    %c0_i32_0 = arith.constant 0 : i32
    %c0_i32_1 = arith.constant 0 : i32
    return %c0_i32, %c0_i32_0 : i32, i32
  }
  func.func @transform_10(%arg0: i32, %arg1: i32) -> (i32, i32) {
    %c0_i32 = arith.constant 0 : i32
    %c0_i32_0 = arith.constant 0 : i32
    %c0_i32_1 = arith.constant 0 : i32
    return %c0_i32, %c0_i32_0 : i32, i32
  }
  func.func @transform_11(%arg0: i32, %arg1: i32) -> (i32, i32) {
    %c0_i32 = arith.constant 0 : i32
    %c0_i32_0 = arith.constant 0 : i32
    %c0_i32_1 = arith.constant 0 : i32
    return %c0_i32, %c0_i32_0 : i32, i32
  }
  func.func @transform_12(%arg0: i32, %arg1: i32) -> (i32, i32) {
    %c0_i32 = arith.constant 0 : i32
    %c0_i32_0 = arith.constant 0 : i32
    %c0_i32_1 = arith.constant 0 : i32
    return %c0_i32, %c0_i32_0 : i32, i32
  }
  func.func @transform_13(%arg0: i32, %arg1: i32) -> (i32, i32) {
    %c0_i32 = arith.constant 0 : i32
    %c0_i32_0 = arith.constant 0 : i32
    %c0_i32_1 = arith.constant 0 : i32
    return %c0_i32, %c0_i32_0 : i32, i32
  }
  func.func @transform_14(%arg0: i32, %arg1: i32) -> (i32, i32) {
    %c0_i32 = arith.constant 0 : i32
    %c0_i32_0 = arith.constant 0 : i32
    %c0_i32_1 = arith.constant 0 : i32
    return %c0_i32, %c0_i32_0 : i32, i32
  }
  func.func @transform_15(%arg0: i32, %arg1: i32) -> (i32, i32) {
    %c0_i32 = arith.constant 0 : i32
    %c0_i32_0 = arith.constant 0 : i32
    %c0_i32_1 = arith.constant 0 : i32
    return %c0_i32, %c0_i32_0 : i32, i32
  }
  func.func @transform_16(%arg0: i32, %arg1: i32) -> (i32, i32) {
    %c0_i32 = arith.constant 0 : i32
    %c0_i32_0 = arith.constant 0 : i32
    %c0_i32_1 = arith.constant 0 : i32
    return %c0_i32, %c0_i32_0 : i32, i32
  }
  func.func @transform_17(%arg0: i32, %arg1: i32) -> (i32, i32) {
    %c0_i32 = arith.constant 0 : i32
    %c0_i32_0 = arith.constant 0 : i32
    %c0_i32_1 = arith.constant 0 : i32
    return %c0_i32, %c0_i32_0 : i32, i32
  }
  func.func @transform_18(%arg0: i32, %arg1: i32) -> (i32, i32, i32) {
    %c0_i32 = arith.constant 0 : i32
    %c0_i32_0 = arith.constant 0 : i32
    return %arg0, %arg1, %c0_i32 : i32, i32, i32
  }
  func.func @transform_19(%arg0: i32, %arg1: i32) -> (i32, i32, i32) {
    %c0_i32 = arith.constant 0 : i32
    %c0_i32_0 = arith.constant 0 : i32
    return %arg0, %arg1, %c0_i32 : i32, i32, i32
  }
}

</mosaic_0001>

<llo_original>
// kernel: tpu_custom_call.1
$region0: #{tpu_custom_call.1}
  #allocation0 [shape = 'u32[]', space=smem, size = 0x4, offset = 0x4, fixed_abs, tag = 'smem constant byte address 0x4 - core index']
  #allocation1 [shape = 'u32[144,128]{1,0:T(1,128)}', space=vmem, size = 0x12000, scoped, tag = 'internal scratch']
  #allocation2 [shape = 'bf16[4,32,32]{2,1,0:T(8,128)(2,1)}', space=vmem, size = 0x8000, scoped, tag = 'scratch operand']
  #allocation3 [shape = 'bf16[4,32,32]{2,1,0:T(8,128)(2,1)}', space=vmem, size = 0x8000, scoped, tag = 'scratch operand']
  %s0 = inlined_call_operand.hbm [shape: f32[2,16,128], index: 0, kind: input, shape index: {}]
  %s1 = inlined_call_operand.hbm [shape: bf16[2,32,128], index: 1, kind: input, shape index: {}]
  %s2 = inlined_call_operand.hbm [shape: bf16[128,128], index: 2, kind: input, shape index: {}]
  %s3 = inlined_call_operand.hbm [shape: bf16[128,128], index: 3, kind: input, shape index: {}]
  %s4 = inlined_call_operand.hbm [shape: bf16[128,128], index: 4, kind: input, shape index: {}]
  %s5 = inlined_call_operand.vmem [shape: f32[1,128], index: 5, kind: input, shape index: {}]
  %s6 = inlined_call_operand.vmem [shape: f32[1,128], index: 6, kind: input, shape index: {}]
  %s7 = inlined_call_operand.vmem [shape: f32[1,128], index: 7, kind: input, shape index: {}]
  %s8 = inlined_call_operand.hbm [shape: bf16[128,128], index: 8, kind: input, shape index: {}]
  %s9 = inlined_call_operand.vmem [shape: f32[1,128], index: 9, kind: input, shape index: {}]
  %s10 = inlined_call_operand.vmem [shape: f32[1,128], index: 10, kind: input, shape index: {}]
  %s11 = inlined_call_operand.vmem [shape: f32[1,128], index: 11, kind: input, shape index: {}]
  %s12 = inlined_call_operand.hbm [shape: bf16[128,512], index: 12, kind: input, shape index: {}]
  %s13 = inlined_call_operand.vmem [shape: f32[1,512], index: 13, kind: input, shape index: {}]
  %s14 = inlined_call_operand.hbm [shape: bf16[512,128], index: 14, kind: input, shape index: {}]
  %s15 = inlined_call_operand.vmem [shape: f32[1,128], index: 15, kind: input, shape index: {}]
  %s16 = inlined_call_operand.vmem [shape: f32[1,128], index: 16, kind: input, shape index: {}]
  %s17 = inlined_call_operand.vmem [shape: f32[1,128], index: 17, kind: input, shape index: {}]
  %s18 = inlined_call_operand.hbm [shape: bf16[2,16,128], index: 18, kind: output, shape index: {0}]
  %s19 = inlined_call_operand.vmem [shape: f32[2,16,4], index: 19, kind: output, shape index: {1}]
  %20 = xla_tuple %s18, %s19
  %s21 = sld [smem:[#allocation0]]
  $region149: #{tpu_custom_call.1} parent=0
    _
  %s23 = ssub.s32 1, %s21
  %s24 = scalar_select 0, %s23, %s21
  $region1: #{tpu_custom_call.1} parent=0
    #allocation4 [shape = 'u8[16384]{0}', space=vmem, size = 0x4000, scoped, tag = 'input window, operand 0']
    #allocation5 [shape = 's32[2]{0}', space=sflag, size = 0x8, scoped, tag = 'scoped memory for tpu_custom_call.1']
    #allocation6 [shape = 's32[2]{0}', space=sflag, size = 0x8, scoped, tag = 'scoped memory for tpu_custom_call.1']
    #allocation7 [shape = 'u8[16384]{0}', space=vmem, size = 0x4000, scoped, tag = 'input window, operand 1']
    #allocation8 [shape = 's32[2]{0}', space=sflag, size = 0x8, scoped, tag = 'scoped memory for tpu_custom_call.1']
    #allocation9 [shape = 'u8[32768]{0}', space=vmem, size = 0x8000, scoped, tag = 'input window, operand 2, single buffered']
    #allocation10 [shape = 'u8[32768]{0}', space=vmem, size = 0x8000, scoped, tag = 'input window, operand 3, single buffered']
    #allocation11 [shape = 's32[1]{0}', space=sflag, size = 0x4, scoped, tag = 'scoped memory for tpu_custom_call.1']
    #allocation12 [shape = 'u8[32768]{0}', space=vmem, size = 0x8000, scoped, tag = 'input window, operand 4, single buffered']
    #allocation13 [shape = 'u8[32768]{0}', space=vmem, size = 0x8000, scoped, tag = 'input window, operand 8, single buffered']
    #allocation14 [shape = 's32[1]{0}', space=sflag, size = 0x4, scoped, tag = 'scoped memory for tpu_custom_call.1']
    #allocation15 [shape = 'u8[131072]{0}', space=vmem, size = 0x20000, scoped, tag = 'input window, operand 12, single buffered']
    #allocation16 [shape = 'u8[131072]{0}', space=vmem, size = 0x20000, scoped, tag = 'input window, operand 14, single buffered']
    #allocation17 [shape = 's32[1]{0}', space=sflag, size = 0x4, scoped, tag = 'scoped memory for tpu_custom_call.1']
    #allocation18 [shape = 'u8[8192]{0}', space=vmem, size = 0x2000, scoped, tag = 'output window, operand 0']
    %25 = vsyncpa [#allocation5], 0
    %s26 = scalar_lea.sflag [#allocation5], 1
    %27 = vsyncpa %s26, 0
    %28 = vsyncpa [#allocation8], 0
    %s29 = scalar_lea.sflag [#allocation8], 1
    %30 = vsyncpa %s29, 0
    %31 = vsyncpa [#allocation11], 0
    %32 = vsyncpa [#allocation14], 0
    %33 = vsyncpa [#allocation17], 0
    %34 = vsyncpa [#allocation6], 0
    %s35 = scalar_lea.sflag [#allocation6], 1
    %36 = vsyncpa %s35, 0
    loop: start=0, step=1, limit=4
    $region2: #{tpu_custom_call.1} parent=1 // loop_pre_header
      _
    $region3: #{tpu_custom_call.1} parent=1 // loop_header
      %s38 = sphi 0, %s42
      %p39 = scmp.ge.s32.totalorder %s38, 4
      %s45 = sphi 0, %s57
      %s46 = sphi 0, %s53
      %s47 = sphi 0, %s45
      %s48 = sphi 0, %s46
      %s49 = sphi 0, %s47
      %s50 = sphi 0, %s48
      %s62 = sphi 0, %s64
      %s65 = sphi 0, %s62
      %s66 = sphi 0, %s65
      %s82 = sphi 0, %s66
      %s88 = sphi 0, %s90
      %s91 = sphi 0, %s88
      %s92 = sphi 0, %s91
      %s108 = sphi 0, %s92
      %s112 = sphi 0, %s112
      %s114 = sphi 0, %s112
      %s115 = sphi 0, %s114
      %s129 = sphi 0, %s115
      %s133 = sphi 0, %s133
      %s135 = sphi 0, %s133
      %s136 = sphi 0, %s135
      %s150 = sphi 0, %s136
      %s154 = sphi 0, %s154
      %s156 = sphi 0, %s154
      %s157 = sphi 0, %s156
      %s171 = sphi 0, %s157
      %s175 = sphi 0, %s175
      %s177 = sphi 0, %s175
      %s178 = sphi 0, %s177
      %s192 = sphi 0, %s178
      %s196 = sphi 0, %s196
      %s198 = sphi 0, %s196
      %s199 = sphi 0, %s198
      %s213 = sphi 0, %s199
      %s217 = sphi 0, %s217
      %s219 = sphi 0, %s217
      %s220 = sphi 0, %s219
      %s234 = sphi 0, %s220
      %s238 = sphi 0, %s238
      %s240 = sphi 0, %s238
      %s241 = sphi 0, %s240
      %s255 = sphi 0, %s241
      %s259 = sphi 0, %s259
      %s261 = sphi 0, %s259
      %s262 = sphi 0, %s261
      %s276 = sphi 0, %s262
      %s280 = sphi 0, %s280
      %s282 = sphi 0, %s280
      %s283 = sphi 0, %s282
      %s297 = sphi 0, %s283
      %s301 = sphi 0, %s301
      %s303 = sphi 0, %s301
      %s304 = sphi 0, %s303
      %s318 = sphi 0, %s304
      %s322 = sphi 0, %s322
      %s324 = sphi 0, %s322
      %s325 = sphi 0, %s324
      %s339 = sphi 0, %s325
      %s343 = sphi 0, %s343
      %s345 = sphi 0, %s343
      %s346 = sphi 0, %s345
      %s360 = sphi 0, %s346
      %s364 = sphi 0, %s364
      %s366 = sphi 0, %s364
      %s367 = sphi 0, %s366
      %s381 = sphi 0, %s367
      %s385 = sphi 0, %s385
      %s387 = sphi 0, %s385
      %s388 = sphi 0, %s387
      %s402 = sphi 0, %s388
      %s406 = sphi 0, %s406
      %s408 = sphi 0, %s406
      %s409 = sphi 0, %s408
      %s423 = sphi 0, %s409
      %s427 = sphi 0, %s427
      %s429 = sphi 0, %s427
      %s430 = sphi 0, %s429
      %s444 = sphi 0, %s430
      %s452 = sphi 0, %s454
      %s455 = sphi 0, %s452
      %s456 = sphi 0, %s455
      %s472 = sphi 0, %s456
      %s480 = sphi 0, %s482
      %s483 = sphi 0, %s480
      %s484 = sphi 0, %s483
      %s500 = sphi 0, %s484
    $region4: #{tpu_custom_call.1} parent=1 // loop_header_branch
      %41 = sbr.rel (%p39) target = $region8
    $region5: #{tpu_custom_call.1} parent=1 // loop_body
      %s43 = ssub.s32 %s38, 1
      %s44 = ssub.s32 %s38, 2
      %s51 = sadd.s32 1, %s46
      %p52 = scmp.ge.s32.totalorder %s51, 1
      %s53 = scalar_select %p52, 0, %s51
      %s54 = sadd.s32 1, %s45
      %s55 = scalar_select %p52, %s54, %s45
      %p56 = scmp.ge.s32.totalorder %s55, 2
      %s57 = scalar_select %p56, 0, %s55
      %s58 = ssub.s32 %s45, %s57
      %s59 = ssub.s32 %s46, %s53
      %s60 = sor.u32 %s58, %s59
      %p61 = scmp.eq.s32.totalorder %s60, 0
      %s63 = sadd.s32 %s62, 1
      %s64 = scalar_select %p61, %s62, %s63
      %p67 = pneg %p61
      %p68 = scmp.eq.s32.totalorder %s38, 1
      %p69 = por %p67, %p68
      %p70 = scmp.ne.s32.totalorder %s62, %s65
      %p71 = scmp.eq.s32.totalorder %s38, 0
      %p72 = por %p70, %p71
      %p73 = scmp.ne.s32.totalorder %s62, %s65
      %p74 = scmp.eq.s32.totalorder %s43, 1
      %p75 = por %p73, %p74
      %p76 = scmp.ne.s32.totalorder %s65, %s66
      %p77 = scmp.eq.s32.totalorder %s43, 0
      %p78 = por %p76, %p77
      %p79 = scmp.ne.s32.totalorder %s65, %s66
      %p80 = scmp.eq.s32.totalorder %s44, 1
      %p81 = por %p79, %p80
      %p83 = scmp.ne.s32.totalorder %s66, %s82
      %p84 = scmp.eq.s32.totalorder %s44, 0
      %p85 = por %p83, %p84
      %s86 = ssub.s32 %s45, %s57
      %p87 = scmp.eq.s32.totalorder %s86, 0
      %s89 = sadd.s32 %s88, 1
      %s90 = scalar_select %p87, %s88, %s89
      %p93 = pneg %p87
      %p94 = scmp.eq.s32.totalorder %s38, 1
      %p95 = por %p93, %p94
      %p96 = scmp.ne.s32.totalorder %s88, %s91
      %p97 = scmp.eq.s32.totalorder %s38, 0
      %p98 = por %p96, %p97
      %p99 = scmp.ne.s32.totalorder %s88, %s91
      %p100 = scmp.eq.s32.totalorder %s43, 1
      %p101 = por %p99, %p100
      %p102 = scmp.ne.s32.totalorder %s91, %s92
      %p103 = scmp.eq.s32.totalorder %s43, 0
      %p104 = por %p102, %p103
      %p105 = scmp.ne.s32.totalorder %s91, %s92
      %p106 = scmp.eq.s32.totalorder %s44, 1
      %p107 = por %p105, %p106
      %p109 = scmp.ne.s32.totalorder %s92, %s108
      %p110 = scmp.eq.s32.totalorder %s44, 0
      %p111 = por %p109, %p110
      %s113 = sadd.s32 %s112, 1
      %p116 = scmp.eq.s32.totalorder %s38, 1
      %p117 = scmp.ne.s32.totalorder %s112, %s114
      %p118 = scmp.eq.s32.totalorder %s38, 0
      %p119 = por %p117, %p118
      %p120 = scmp.ne.s32.totalorder %s112, %s114
      %p121 = scmp.eq.s32.totalorder %s43, 1
      %p122 = por %p120, %p121
      %p123 = scmp.ne.s32.totalorder %s114, %s115
      %p124 = scmp.eq.s32.totalorder %s43, 0
      %p125 = por %p123, %p124
      %p126 = scmp.ne.s32.totalorder %s114, %s115
      %p127 = scmp.eq.s32.totalorder %s44, 1
      %p128 = por %p126, %p127
      %p130 = scmp.ne.s32.totalorder %s115, %s129
      %p131 = scmp.eq.s32.totalorder %s44, 0
      %p132 = por %p130, %p131
      %s134 = sadd.s32 %s133, 1
      %p137 = scmp.eq.s32.totalorder %s38, 1
      %p138 = scmp.ne.s32.totalorder %s133, %s135
      %p139 = scmp.eq.s32.totalorder %s38, 0
      %p140 = por %p138, %p139
      %p141 = scmp.ne.s32.totalorder %s133, %s135
      %p142 = scmp.eq.s32.totalorder %s43, 1
      %p143 = por %p141, %p142
      %p144 = scmp.ne.s32.totalorder %s135, %s136
      %p145 = scmp.eq.s32.totalorder %s43, 0
      %p146 = por %p144, %p145
      %p147 = scmp.ne.s32.totalorder %s135, %s136
      %p148 = scmp.eq.s32.totalorder %s44, 1
      %p149 = por %p147, %p148
      %p151 = scmp.ne.s32.totalorder %s136, %s150
      %p152 = scmp.eq.s32.totalorder %s44, 0
      %p153 = por %p151, %p152
      %s155 = sadd.s32 %s154, 1
      %p158 = scmp.eq.s32.totalorder %s38, 1
      %p159 = scmp.ne.s32.totalorder %s154, %s156
      %p160 = scmp.eq.s32.totalorder %s38, 0
      %p161 = por %p159, %p160
      %p162 = scmp.ne.s32.totalorder %s154, %s156
      %p163 = scmp.eq.s32.totalorder %s43, 1
      %p164 = por %p162, %p163
      %p165 = scmp.ne.s32.totalorder %s156, %s157
      %p166 = scmp.eq.s32.totalorder %s43, 0
      %p167 = por %p165, %p166
      %p168 = scmp.ne.s32.totalorder %s156, %s157
      %p169 = scmp.eq.s32.totalorder %s44, 1
      %p170 = por %p168, %p169
      %p172 = scmp.ne.s32.totalorder %s157, %s171
      %p173 = scmp.eq.s32.totalorder %s44, 0
      %p174 = por %p172, %p173
      %s176 = sadd.s32 %s175, 1
      %p179 = scmp.eq.s32.totalorder %s38, 1
      %p180 = scmp.ne.s32.totalorder %s175, %s177
      %p181 = scmp.eq.s32.totalorder %s38, 0
      %p182 = por %p180, %p181
      %p183 = scmp.ne.s32.totalorder %s175, %s177
      %p184 = scmp.eq.s32.totalorder %s43, 1
      %p185 = por %p183, %p184
      %p186 = scmp.ne.s32.totalorder %s177, %s178
      %p187 = scmp.eq.s32.totalorder %s43, 0
      %p188 = por %p186, %p187
      %p189 = scmp.ne.s32.totalorder %s177, %s178
      %p190 = scmp.eq.s32.totalorder %s44, 1
      %p191 = por %p189, %p190
      %p193 = scmp.ne.s32.totalorder %s178, %s192
      %p194 = scmp.eq.s32.totalorder %s44, 0
      %p195 = por %p193, %p194
      %s197 = sadd.s32 %s196, 1
      %p200 = scmp.eq.s32.totalorder %s38, 1
      %p201 = scmp.ne.s32.totalorder %s196, %s198
      %p202 = scmp.eq.s32.totalorder %s38, 0
      %p203 = por %p201, %p202
      %p204 = scmp.ne.s32.totalorder %s196, %s198
      %p205 = scmp.eq.s32.totalorder %s43, 1
      %p206 = por %p204, %p205
      %p207 = scmp.ne.s32.totalorder %s198, %s199
      %p208 = scmp.eq.s32.totalorder %s43, 0
      %p209 = por %p207, %p208
      %p210 = scmp.ne.s32.totalorder %s198, %s199
      %p211 = scmp.eq.s32.totalorder %s44, 1
      %p212 = por %p210, %p211
      %p214 = scmp.ne.s32.totalorder %s199, %s213
      %p215 = scmp.eq.s32.totalorder %s44, 0
      %p216 = por %p214, %p215
      %s218 = sadd.s32 %s217, 1
      %p221 = scmp.eq.s32.totalorder %s38, 1
      %p222 = scmp.ne.s32.totalorder %s217, %s219
      %p223 = scmp.eq.s32.totalorder %s38, 0
      %p224 = por %p222, %p223
      %p225 = scmp.ne.s32.totalorder %s217, %s219
      %p226 = scmp.eq.s32.totalorder %s43, 1
      %p227 = por %p225, %p226
      %p228 = scmp.ne.s32.totalorder %s219, %s220
      %p229 = scmp.eq.s32.totalorder %s43, 0
      %p230 = por %p228, %p229
      %p231 = scmp.ne.s32.totalorder %s219, %s220
      %p232 = scmp.eq.s32.totalorder %s44, 1
      %p233 = por %p231, %p232
      %p235 = scmp.ne.s32.totalorder %s220, %s234
      %p236 = scmp.eq.s32.totalorder %s44, 0
      %p237 = por %p235, %p236
      %s239 = sadd.s32 %s238, 1
      %p242 = scmp.eq.s32.totalorder %s38, 1
      %p243 = scmp.ne.s32.totalorder %s238, %s240
      %p244 = scmp.eq.s32.totalorder %s38, 0
      %p245 = por %p243, %p244
      %p246 = scmp.ne.s32.totalorder %s238, %s240
      %p247 = scmp.eq.s32.totalorder %s43, 1
      %p248 = por %p246, %p247
      %p249 = scmp.ne.s32.totalorder %s240, %s241
      %p250 = scmp.eq.s32.totalorder %s43, 0
      %p251 = por %p249, %p250
      %p252 = scmp.ne.s32.totalorder %s240, %s241
      %p253 = scmp.eq.s32.totalorder %s44, 1
      %p254 = por %p252, %p253
      %p256 = scmp.ne.s32.totalorder %s241, %s255
      %p257 = scmp.eq.s32.totalorder %s44, 0
      %p258 = por %p256, %p257
      %s260 = sadd.s32 %s259, 1
      %p263 = scmp.eq.s32.totalorder %s38, 1
      %p264 = scmp.ne.s32.totalorder %s259, %s261
      %p265 = scmp.eq.s32.totalorder %s38, 0
      %p266 = por %p264, %p265
      %p267 = scmp.ne.s32.totalorder %s259, %s261
      %p268 = scmp.eq.s32.totalorder %s43, 1
      %p269 = por %p267, %p268
      %p270 = scmp.ne.s32.totalorder %s261, %s262
      %p271 = scmp.eq.s32.totalorder %s43, 0
      %p272 = por %p270, %p271
      %p273 = scmp.ne.s32.totalorder %s261, %s262
      %p274 = scmp.eq.s32.totalorder %s44, 1
      %p275 = por %p273, %p274
      %p277 = scmp.ne.s32.totalorder %s262, %s276
      %p278 = scmp.eq.s32.totalorder %s44, 0
      %p279 = por %p277, %p278
      %s281 = sadd.s32 %s280, 1
      %p284 = scmp.eq.s32.totalorder %s38, 1
      %p285 = scmp.ne.s32.totalorder %s280, %s282
      %p286 = scmp.eq.s32.totalorder %s38, 0
      %p287 = por %p285, %p286
      %p288 = scmp.ne.s32.totalorder %s280, %s282
      %p289 = scmp.eq.s32.totalorder %s43, 1
      %p290 = por %p288, %p289
      %p291 = scmp.ne.s32.totalorder %s282, %s283
      %p292 = scmp.eq.s32.totalorder %s43, 0
      %p293 = por %p291, %p292
      %p294 = scmp.ne.s32.totalorder %s282, %s283
      %p295 = scmp.eq.s32.totalorder %s44, 1
      %p296 = por %p294, %p295
      %p298 = scmp.ne.s32.totalorder %s283, %s297
      %p299 = scmp.eq.s32.totalorder %s44, 0
      %p300 = por %p298, %p299
      %s302 = sadd.s32 %s301, 1
      %p305 = scmp.eq.s32.totalorder %s38, 1
      %p306 = scmp.ne.s32.totalorder %s301, %s303
      %p307 = scmp.eq.s32.totalorder %s38, 0
      %p308 = por %p306, %p307
      %p309 = scmp.ne.s32.totalorder %s301, %s303
      %p310 = scmp.eq.s32.totalorder %s43, 1
      %p311 = por %p309, %p310
      %p312 = scmp.ne.s32.totalorder %s303, %s304
      %p313 = scmp.eq.s32.totalorder %s43, 0
      %p314 = por %p312, %p313
      %p315 = scmp.ne.s32.totalorder %s303, %s304
      %p316 = scmp.eq.s32.totalorder %s44, 1
      %p317 = por %p315, %p316
      %p319 = scmp.ne.s32.totalorder %s304, %s318
      %p320 = scmp.eq.s32.totalorder %s44, 0
      %p321 = por %p319, %p320
      %s323 = sadd.s32 %s322, 1
      %p326 = scmp.eq.s32.totalorder %s38, 1
      %p327 = scmp.ne.s32.totalorder %s322, %s324
      %p328 = scmp.eq.s32.totalorder %s38, 0
      %p329 = por %p327, %p328
      %p330 = scmp.ne.s32.totalorder %s322, %s324
      %p331 = scmp.eq.s32.totalorder %s43, 1
      %p332 = por %p330, %p331
      %p333 = scmp.ne.s32.totalorder %s324, %s325
      %p334 = scmp.eq.s32.totalorder %s43, 0
      %p335 = por %p333, %p334
      %p336 = scmp.ne.s32.totalorder %s324, %s325
      %p337 = scmp.eq.s32.totalorder %s44, 1
      %p338 = por %p336, %p337
      %p340 = scmp.ne.s32.totalorder %s325, %s339
      %p341 = scmp.eq.s32.totalorder %s44, 0
      %p342 = por %p340, %p341
      %s344 = sadd.s32 %s343, 1
      %p347 = scmp.eq.s32.totalorder %s38, 1
      %p348 = scmp.ne.s32.totalorder %s343, %s345
      %p349 = scmp.eq.s32.totalorder %s38, 0
      %p350 = por %p348, %p349
      %p351 = scmp.ne.s32.totalorder %s343, %s345
      %p352 = scmp.eq.s32.totalorder %s43, 1
      %p353 = por %p351, %p352
      %p354 = scmp.ne.s32.totalorder %s345, %s346
      %p355 = scmp.eq.s32.totalorder %s43, 0
      %p356 = por %p354, %p355
      %p357 = scmp.ne.s32.totalorder %s345, %s346
      %p358 = scmp.eq.s32.totalorder %s44, 1
      %p359 = por %p357, %p358
      %p361 = scmp.ne.s32.totalorder %s346, %s360
      %p362 = scmp.eq.s32.totalorder %s44, 0
      %p363 = por %p361, %p362
      %s365 = sadd.s32 %s364, 1
      %p368 = scmp.eq.s32.totalorder %s38, 1
      %p369 = scmp.ne.s32.totalorder %s364, %s366
      %p370 = scmp.eq.s32.totalorder %s38, 0
      %p371 = por %p369, %p370
      %p372 = scmp.ne.s32.totalorder %s364, %s366
      %p373 = scmp.eq.s32.totalorder %s43, 1
      %p374 = por %p372, %p373
      %p375 = scmp.ne.s32.totalorder %s366, %s367
      %p376 = scmp.eq.s32.totalorder %s43, 0
      %p377 = por %p375, %p376
      %p378 = scmp.ne.s32.totalorder %s366, %s367
      %p379 = scmp.eq.s32.totalorder %s44, 1
      %p380 = por %p378, %p379
      %p382 = scmp.ne.s32.totalorder %s367, %s381
      %p383 = scmp.eq.s32.totalorder %s44, 0
      %p384 = por %p382, %p383
      %s386 = sadd.s32 %s385, 1
      %p389 = scmp.eq.s32.totalorder %s38, 1
      %p390 = scmp.ne.s32.totalorder %s385, %s387
      %p391 = scmp.eq.s32.totalorder %s38, 0
      %p392 = por %p390, %p391
      %p393 = scmp.ne.s32.totalorder %s385, %s387
      %p394 = scmp.eq.s32.totalorder %s43, 1
      %p395 = por %p393, %p394
      %p396 = scmp.ne.s32.totalorder %s387, %s388
      %p397 = scmp.eq.s32.totalorder %s43, 0
      %p398 = por %p396, %p397
      %p399 = scmp.ne.s32.totalorder %s387, %s388
      %p400 = scmp.eq.s32.totalorder %s44, 1
      %p401 = por %p399, %p400
      %p403 = scmp.ne.s32.totalorder %s388, %s402
      %p404 = scmp.eq.s32.totalorder %s44, 0
      %p405 = por %p403, %p404
      %s407 = sadd.s32 %s406, 1
      %p410 = scmp.eq.s32.totalorder %s38, 1
      %p411 = scmp.ne.s32.totalorder %s406, %s408
      %p412 = scmp.eq.s32.totalorder %s38, 0
      %p413 = por %p411, %p412
      %p414 = scmp.ne.s32.totalorder %s406, %s408
      %p415 = scmp.eq.s32.totalorder %s43, 1
      %p416 = por %p414, %p415
      %p417 = scmp.ne.s32.totalorder %s408, %s409
      %p418 = scmp.eq.s32.totalorder %s43, 0
      %p419 = por %p417, %p418
      %p420 = scmp.ne.s32.totalorder %s408, %s409
      %p421 = scmp.eq.s32.totalorder %s44, 1
      %p422 = por %p420, %p421
      %p424 = scmp.ne.s32.totalorder %s409, %s423
      %p425 = scmp.eq.s32.totalorder %s44, 0
      %p426 = por %p424, %p425
      %s428 = sadd.s32 %s427, 1
      %p431 = scmp.eq.s32.totalorder %s38, 1
      %p432 = scmp.ne.s32.totalorder %s427, %s429
      %p433 = scmp.eq.s32.totalorder %s38, 0
      %p434 = por %p432, %p433
      %p435 = scmp.ne.s32.totalorder %s427, %s429
      %p436 = scmp.eq.s32.totalorder %s43, 1
      %p437 = por %p435, %p436
      %p438 = scmp.ne.s32.totalorder %s429, %s430
      %p439 = scmp.eq.s32.totalorder %s43, 0
      %p440 = por %p438, %p439
      %p441 = scmp.ne.s32.totalorder %s429, %s430
      %p442 = scmp.eq.s32.totalorder %s44, 1
      %p443 = por %p441, %p442
      %p445 = scmp.ne.s32.totalorder %s430, %s444
      %p446 = scmp.eq.s32.totalorder %s44, 0
      %p447 = por %p445, %p446
      %s448 = ssub.s32 %s45, %s57
      %s449 = ssub.s32 %s46, %s53
      %s450 = sor.u32 %s448, %s449
      %p451 = scmp.eq.s32.totalorder %s450, 0
      %s453 = sadd.s32 %s452, 1
      %s454 = scalar_select %p451, %s452, %s453
      %p457 = pneg %p451
      %p458 = scmp.eq.s32.totalorder %s38, 1
      %p459 = por %p457, %p458
      %p460 = scmp.ne.s32.totalorder %s452, %s455
      %p461 = scmp.eq.s32.totalorder %s38, 0
      %p462 = por %p460, %p461
      %p463 = scmp.ne.s32.totalorder %s452, %s455
      %p464 = scmp.eq.s32.totalorder %s43, 1
      %p465 = por %p463, %p464
      %p466 = scmp.ne.s32.totalorder %s455, %s456
      %p467 = scmp.eq.s32.totalorder %s43, 0
      %p468 = por %p466, %p467
      %p469 = scmp.ne.s32.totalorder %s455, %s456
      %p470 = scmp.eq.s32.totalorder %s44, 1
      %p471 = por %p469, %p470
      %p473 = scmp.ne.s32.totalorder %s456, %s472
      %p474 = scmp.eq.s32.totalorder %s44, 0
      %p475 = por %p473, %p474
      %s476 = ssub.s32 %s45, %s57
      %s477 = ssub.s32 %s46, %s53
      %s478 = sor.u32 %s476, %s477
      %p479 = scmp.eq.s32.totalorder %s478, 0
      %s481 = sadd.s32 %s480, 1
      %s482 = scalar_select %p479, %s480, %s481
      %p485 = pneg %p479
      %p486 = scmp.eq.s32.totalorder %s38, 1
      %p487 = por %p485, %p486
      %p488 = scmp.ne.s32.totalorder %s480, %s483
      %p489 = scmp.eq.s32.totalorder %s38, 0
      %p490 = por %p488, %p489
      %p491 = scmp.ne.s32.totalorder %s480, %s483
      %p492 = scmp.eq.s32.totalorder %s43, 1
      %p493 = por %p491, %p492
      %p494 = scmp.ne.s32.totalorder %s483, %s484
      %p495 = scmp.eq.s32.totalorder %s43, 0
      %p496 = por %p494, %p495
      %p497 = scmp.ne.s32.totalorder %s483, %s484
      %p498 = scmp.eq.s32.totalorder %s44, 1
      %p499 = por %p497, %p498
      %p501 = scmp.ne.s32.totalorder %s484, %s500
      %p502 = scmp.eq.s32.totalorder %s44, 0
      %p503 = por %p501, %p502
      %p504 = scmp.le.s32.totalorder 1, %s38
      %p505 = scmp.lt.s32.totalorder %s38, 3
      %p506 = pnand %p504, %p505
      %p507 = pneg %p506
      // Predicated region
      $region9: #{tpu_custom_call.1} parent=5 // pred_check
        _
      $region10: #{tpu_custom_call.1} parent=5 // pred_check_branch
        %509 = sbr.rel (%p506) target = $region12
      $region11: #{tpu_custom_call.1} parent=5 // pred_region
        %s510 = ssub.s32 %s38, 1
        // Predicated region
        $region13: #{tpu_custom_call.1} parent=11 // pred_check
          %p511 = pneg %p125
        $region14: #{tpu_custom_call.1} parent=11 // pred_check_branch
          %513 = sbr.rel (%p511) target = $region16
        $region15: #{tpu_custom_call.1} parent=11 // pred_region
          %s515 = ssub.s32 1024, 1024
          %516 = vsyncadd [#allocation8], %s515
          %s517 = sshll.u32 [#allocation9], 4
          %s518 = int_to_ptr.vmem [resolvable:$true] %s517
          %523 = dma.hbm_to_vmem [thread:$0]  %s2, 1024, %s518, [#allocation8], 64, 64, 4
        $region16: #{tpu_custom_call.1} parent=11 // pred_fallthru
          _
        // Predicated region
        $region17: #{tpu_custom_call.1} parent=11 // pred_check
          %p524 = pneg %p146
        $region18: #{tpu_custom_call.1} parent=11 // pred_check_branch
          %526 = sbr.rel (%p524) target = $region20
        $region19: #{tpu_custom_call.1} parent=11 // pred_region
          %s528 = ssub.s32 1024, 1024
          %529 = vsyncadd [#allocation11], %s528
          %s530 = sshll.u32 [#allocation10], 4
          %s531 = int_to_ptr.vmem [resolvable:$true] %s530
          %536 = dma.hbm_to_vmem [thread:$0]  %s3, 1024, %s531, [#allocation11], 64, 64, 4
        $region20: #{tpu_custom_call.1} parent=11 // pred_fallthru
          _
        // Predicated region
        $region21: #{tpu_custom_call.1} parent=11 // pred_check
          %p537 = pneg %p167
        $region22: #{tpu_custom_call.1} parent=11 // pred_check_branch
          %539 = sbr.rel (%p537) target = $region24
        $region23: #{tpu_custom_call.1} parent=11 // pred_region
          %s541 = ssub.s32 1024, 1024
          %542 = vsyncadd [#allocation11], %s541
          %s543 = sshll.u32 [#allocation12], 4
          %s544 = int_to_ptr.vmem [resolvable:$true] %s543
          %549 = dma.hbm_to_vmem [thread:$0]  %s4, 1024, %s544, [#allocation11], 64, 64, 4
        $region24: #{tpu_custom_call.1} parent=11 // pred_fallthru
          _
        // Predicated region
        $region25: #{tpu_custom_call.1} parent=11 // pred_check
          %p550 = pneg %p188
        $region26: #{tpu_custom_call.1} parent=11 // pred_check_branch
          %552 = sbr.rel (%p550) target = $region28
        $region27: #{tpu_custom_call.1} parent=11 // pred_region
          _
        $region28: #{tpu_custom_call.1} parent=11 // pred_fallthru
          _
        // Predicated region
        $region29: #{tpu_custom_call.1} parent=11 // pred_check
          %p553 = pneg %p209
        $region30: #{tpu_custom_call.1} parent=11 // pred_check_branch
          %555 = sbr.rel (%p553) target = $region32
        $region31: #{tpu_custom_call.1} parent=11 // pred_region
          _
        $region32: #{tpu_custom_call.1} parent=11 // pred_fallthru
          _
        // Predicated region
        $region33: #{tpu_custom_call.1} parent=11 // pred_check
          %p556 = pneg %p230
        $region34: #{tpu_custom_call.1} parent=11 // pred_check_branch
          %558 = sbr.rel (%p556) target = $region36
        $region35: #{tpu_custom_call.1} parent=11 // pred_region
          _
        $region36: #{tpu_custom_call.1} parent=11 // pred_fallthru
          _
        // Predicated region
        $region37: #{tpu_custom_call.1} parent=11 // pred_check
          %p559 = pneg %p251
        $region38: #{tpu_custom_call.1} parent=11 // pred_check_branch
          %561 = sbr.rel (%p559) target = $region40
        $region39: #{tpu_custom_call.1} parent=11 // pred_region
          %s563 = ssub.s32 1024, 1024
          %564 = vsyncadd [#allocation14], %s563
          %s565 = sshll.u32 [#allocation13], 4
          %s566 = int_to_ptr.vmem [resolvable:$true] %s565
          %571 = dma.hbm_to_vmem [thread:$0]  %s8, 1024, %s566, [#allocation14], 64, 64, 4
        $region40: #{tpu_custom_call.1} parent=11 // pred_fallthru
          _
        // Predicated region
        $region41: #{tpu_custom_call.1} parent=11 // pred_check
          %p572 = pneg %p272
        $region42: #{tpu_custom_call.1} parent=11 // pred_check_branch
          %574 = sbr.rel (%p572) target = $region44
        $region43: #{tpu_custom_call.1} parent=11 // pred_region
          _
        $region44: #{tpu_custom_call.1} parent=11 // pred_fallthru
          _
        // Predicated region
        $region45: #{tpu_custom_call.1} parent=11 // pred_check
          %p575 = pneg %p293
        $region46: #{tpu_custom_call.1} parent=11 // pred_check_branch
          %577 = sbr.rel (%p575) target = $region48
        $region47: #{tpu_custom_call.1} parent=11 // pred_region
          _
        $region48: #{tpu_custom_call.1} parent=11 // pred_fallthru
          _
        // Predicated region
        $region49: #{tpu_custom_call.1} parent=11 // pred_check
          %p578 = pneg %p314
        $region50: #{tpu_custom_call.1} parent=11 // pred_check_branch
          %580 = sbr.rel (%p578) target = $region52
        $region51: #{tpu_custom_call.1} parent=11 // pred_region
          _
        $region52: #{tpu_custom_call.1} parent=11 // pred_fallthru
          _
        // Predicated region
        $region53: #{tpu_custom_call.1} parent=11 // pred_check
          %p581 = pneg %p335
        $region54: #{tpu_custom_call.1} parent=11 // pred_check_branch
          %583 = sbr.rel (%p581) target = $region56
        $region55: #{tpu_custom_call.1} parent=11 // pred_region
          %s585 = ssub.s32 4096, 4096
          %586 = vsyncadd [#allocation14], %s585
          %s587 = sshll.u32 [#allocation15], 4
          %s588 = int_to_ptr.vmem [resolvable:$true] %s587
          %593 = dma.hbm_to_vmem [thread:$0]  %s12, 4096, %s588, [#allocation14], 256, 256, 16
        $region56: #{tpu_custom_call.1} parent=11 // pred_fallthru
          _
        // Predicated region
        $region57: #{tpu_custom_call.1} parent=11 // pred_check
          %p594 = pneg %p356
        $region58: #{tpu_custom_call.1} parent=11 // pred_check_branch
          %596 = sbr.rel (%p594) target = $region60
        $region59: #{tpu_custom_call.1} parent=11 // pred_region
          _
        $region60: #{tpu_custom_call.1} parent=11 // pred_fallthru
          _
        // Predicated region
        $region61: #{tpu_custom_call.1} parent=11 // pred_check
          %p597 = pneg %p377
        $region62: #{tpu_custom_call.1} parent=11 // pred_check_branch
          %599 = sbr.rel (%p597) target = $region64
        $region63: #{tpu_custom_call.1} parent=11 // pred_region
          %s601 = ssub.s32 4096, 4096
          %602 = vsyncadd [#allocation17], %s601
          %s603 = sshll.u32 [#allocation16], 4
          %s604 = int_to_ptr.vmem [resolvable:$true] %s603
          %609 = dma.hbm_to_vmem [thread:$0]  %s14, 4096, %s604, [#allocation17], 64, 64, 4
        $region64: #{tpu_custom_call.1} parent=11 // pred_fallthru
          _
        // Predicated region
        $region65: #{tpu_custom_call.1} parent=11 // pred_check
          %p610 = pneg %p398
        $region66: #{tpu_custom_call.1} parent=11 // pred_check_branch
          %612 = sbr.rel (%p610) target = $region68
        $region67: #{tpu_custom_call.1} parent=11 // pred_region
          _
        $region68: #{tpu_custom_call.1} parent=11 // pred_fallthru
          _
        // Predicated region
        $region69: #{tpu_custom_call.1} parent=11 // pred_check
          %p613 = pneg %p419
        $region70: #{tpu_custom_call.1} parent=11 // pred_check_branch
          %615 = sbr.rel (%p613) target = $region72
        $region71: #{tpu_custom_call.1} parent=11 // pred_region
          _
        $region72: #{tpu_custom_call.1} parent=11 // pred_fallthru
          _
        // Predicated region
        $region73: #{tpu_custom_call.1} parent=11 // pred_check
          %p616 = pneg %p440
        $region74: #{tpu_custom_call.1} parent=11 // pred_check_branch
          %618 = sbr.rel (%p616) target = $region76
        $region75: #{tpu_custom_call.1} parent=11 // pred_region
          _
        $region76: #{tpu_custom_call.1} parent=11 // pred_fallthru
          _
      $region12: #{tpu_custom_call.1} parent=5 // pred_fallthru
        _
      %p619 = scmp.lt.s32.totalorder %s38, 2
      // Predicated region
      $region77: #{tpu_custom_call.1} parent=5 // pred_check
        %p620 = pneg %p619
      $region78: #{tpu_custom_call.1} parent=5 // pred_check_branch
        %622 = sbr.rel (%p620) target = $region80
      $region79: #{tpu_custom_call.1} parent=5 // pred_region
        // Predicated region
        $region81: #{tpu_custom_call.1} parent=79 // pred_check
          %p623 = pneg %p72
        $region82: #{tpu_custom_call.1} parent=79 // pred_check_branch
          %625 = sbr.rel (%p623) target = $region84
        $region83: #{tpu_custom_call.1} parent=79 // pred_region
          %s626 = sand.u32 %s62, 1
          %s627 = scalar_lea.sflag [#allocation5], %s626
          %s628 = sand.u32 %s62, 1
          %s629 = smul.addr %s628, 16
          %s630 = scalar_lea.vmem [#allocation4], %s629
          %s631 = smul.u32 2, %s46
          %s633 = ssub.s32 256, 256
          %634 = vsyncadd %s627, %s633
          %s635 = smul.addr %s45, 2
          %s636 = sadd.s32 %s631, %s635
          %s637 = smul.addr %s636, 128
          %s638 = scalar_lea.hbm %s0, %s637
          %s639 = sshll.u32 %s630, 4
          %s640 = int_to_ptr.vmem [resolvable:$true] %s639
          %645 = dma.hbm_to_vmem [thread:$0]  %s638, 256, %s640, %s627, 128, 128, 8
        $region84: #{tpu_custom_call.1} parent=79 // pred_fallthru
          _
        // Predicated region
        $region85: #{tpu_custom_call.1} parent=79 // pred_check
          %p646 = pneg %p98
        $region86: #{tpu_custom_call.1} parent=79 // pred_check_branch
          %648 = sbr.rel (%p646) target = $region88
        $region87: #{tpu_custom_call.1} parent=79 // pred_region
          %s649 = sand.u32 %s38, 1
          %s650 = scalar_lea.sflag [#allocation8], %s649
          %s651 = sand.u32 %s88, 1
          %s652 = smul.addr %s651, 16
          %s653 = scalar_lea.vmem [#allocation7], %s652
          %s655 = ssub.s32 256, 256
          %656 = vsyncadd %s650, %s655
          %s657 = smul.addr %s45, 4
          %s658 = smul.addr %s657, 64
          %s659 = scalar_lea.hbm %s1, %s658
          %s660 = sshll.u32 %s653, 4
          %s661 = int_to_ptr.vmem [resolvable:$true] %s660
          %666 = dma.hbm_to_vmem [thread:$0]  %s659, 256, %s661, %s650, 64, 64, 4
        $region88: #{tpu_custom_call.1} parent=79 // pred_fallthru
          _
      $region80: #{tpu_custom_call.1} parent=5 // pred_fallthru
        _
      %p667 = scmp.le.s32.totalorder 1, %s38
      %p668 = scmp.lt.s32.totalorder %s38, 3
      %p669 = pnand %p667, %p668
      %p670 = pneg %p669
      // Predicated region
      $region89: #{tpu_custom_call.1} parent=5 // pred_check
        _
      $region90: #{tpu_custom_call.1} parent=5 // pred_check_branch
        %672 = sbr.rel (%p669) target = $region92
      $region91: #{tpu_custom_call.1} parent=5 // pred_region
        %s673 = ssub.s32 %s38, 1
        %s674 = sand.u32 %s65, 1
        %s675 = scalar_lea.sflag [#allocation5], %s674
        %s676 = sand.u32 %s65, 1
        %s677 = smul.addr %s676, 16
        %s678 = scalar_lea.vmem [#allocation4], %s677
        // Predicated region
        $region93: #{tpu_custom_call.1} parent=91 // pred_check
          %p679 = pneg %p78
        $region94: #{tpu_custom_call.1} parent=91 // pred_check_branch
          %681 = sbr.rel (%p679) target = $region96
        $region95: #{tpu_custom_call.1} parent=91 // pred_region
          %682 = dma.done %s675, 256
        $region96: #{tpu_custom_call.1} parent=91 // pred_fallthru
          _
        %s683 = sand.u32 %s43, 1
        %s684 = scalar_lea.sflag [#allocation8], %s683
        %s685 = sand.u32 %s91, 1
        %s686 = smul.addr %s685, 16
        %s687 = scalar_lea.vmem [#allocation7], %s686
        // Predicated region
        $region97: #{tpu_custom_call.1} parent=91 // pred_check
          %p688 = pneg %p104
        $region98: #{tpu_custom_call.1} parent=91 // pred_check_branch
          %690 = sbr.rel (%p688) target = $region100
        $region99: #{tpu_custom_call.1} parent=91 // pred_region
          %691 = dma.done %s684, 256
        $region100: #{tpu_custom_call.1} parent=91 // pred_fallthru
          _
        // Predicated region
        $region101: #{tpu_custom_call.1} parent=91 // pred_check
          %p692 = pneg %p125
        $region102: #{tpu_custom_call.1} parent=91 // pred_check_branch
          %694 = sbr.rel (%p692) target = $region104
        $region103: #{tpu_custom_call.1} parent=91 // pred_region
          %695 = dma.done [#allocation8], 1024
        $region104: #{tpu_custom_call.1} parent=91 // pred_fallthru
          _
        // Predicated region
        $region105: #{tpu_custom_call.1} parent=91 // pred_check
          %p696 = pneg %p146
        $region106: #{tpu_custom_call.1} parent=91 // pred_check_branch
          %698 = sbr.rel (%p696) target = $region108
        $region107: #{tpu_custom_call.1} parent=91 // pred_region
          %699 = dma.done [#allocation11], 1024
        $region108: #{tpu_custom_call.1} parent=91 // pred_fallthru
          _
        // Predicated region
        $region109: #{tpu_custom_call.1} parent=91 // pred_check
          %p700 = pneg %p167
        $region110: #{tpu_custom_call.1} parent=91 // pred_check_branch
          %702 = sbr.rel (%p700) target = $region112
        $region111: #{tpu_custom_call.1} parent=91 // pred_region
          %703 = dma.done [#allocation11], 1024
        $region112: #{tpu_custom_call.1} parent=91 // pred_fallthru
          _
        // Predicated region
        $region113: #{tpu_custom_call.1} parent=91 // pred_check
          %p704 = pneg %p251
        $region114: #{tpu_custom_call.1} parent=91 // pred_check_branch
          %706 = sbr.rel (%p704) target = $region116
        $region115: #{tpu_custom_call.1} parent=91 // pred_region
          %707 = dma.done [#allocation14], 1024
        $region116: #{tpu_custom_call.1} parent=91 // pred_fallthru
          _
        // Predicated region
        $region117: #{tpu_custom_call.1} parent=91 // pred_check
          %p708 = pneg %p335
        $region118: #{tpu_custom_call.1} parent=91 // pred_check_branch
          %710 = sbr.rel (%p708) target = $region120
        $region119: #{tpu_custom_call.1} parent=91 // pred_region
          %711 = dma.done [#allocation14], 4096
        $region120: #{tpu_custom_call.1} parent=91 // pred_fallthru
          _
        // Predicated region
        $region121: #{tpu_custom_call.1} parent=91 // pred_check
          %p712 = pneg %p377
        $region122: #{tpu_custom_call.1} parent=91 // pred_check_branch
          %714 = sbr.rel (%p712) target = $region124
        $region123: #{tpu_custom_call.1} parent=91 // pred_region
          %715 = dma.done [#allocation17], 4096
        $region124: #{tpu_custom_call.1} parent=91 // pred_fallthru
          _
        %s716 = sand.u32 %s65, 1
        %s717 = scalar_lea.sflag [#allocation5], %s716
        %s718 = sand.u32 %s65, 1
        %s719 = smul.addr %s718, 16
        %s720 = scalar_lea.vmem [#allocation4], %s719
        %p721 = pneg %p78
        %p722 = pneg %p75
        %s723 = sand.u32 %s43, 1
        %s724 = scalar_lea.sflag [#allocation8], %s723
        %s725 = sand.u32 %s91, 1
        %s726 = smul.addr %s725, 16
        %s727 = scalar_lea.vmem [#allocation7], %s726
        %p728 = pneg %p104
        %p729 = pneg %p101
        %p730 = pneg %p125
        %p731 = pneg %p122
        %p732 = pneg %p146
        %p733 = pneg %p143
        %p734 = pneg %p167
        %p735 = pneg %p164
        %p736 = pneg %p188
        %p737 = pneg %p185
        %p738 = pneg %p209
        %p739 = pneg %p206
        %p740 = pneg %p230
        %p741 = pneg %p227
        %p742 = pneg %p251
        %p743 = pneg %p248
        %p744 = pneg %p272
        %p745 = pneg %p269
        %p746 = pneg %p293
        %p747 = pneg %p290
        %p748 = pneg %p314
        %p749 = pneg %p311
        %p750 = pneg %p335
        %p751 = pneg %p332
        %p752 = pneg %p356
        %p753 = pneg %p353
        %p754 = pneg %p377
        %p755 = pneg %p374
        %p756 = pneg %p398
        %p757 = pneg %p395
        %p758 = pneg %p419
        %p759 = pneg %p416
        %p760 = pneg %p440
        %p761 = pneg %p437
        %p762 = pneg %p468
        %p763 = pneg %p465
        %s764 = sand.u32 %s455, 1
        %s765 = scalar_lea.sflag [#allocation6], %s764
        %s766 = sand.u32 %s455, 1
        %s767 = smul.addr %s766, 8
        %s768 = scalar_lea.vmem [#allocation18], %s767
        %p769 = pneg %p496
        %p770 = pneg %p493
        %s771 = smul.u32 2, %s48
        %p772 = scmp.lt.s32.totalorder %s47, 1
        %s773 = scalar_select %p772, %s47, 1
        %p774 = scmp.lt.s32.totalorder %s771, 1
        %s775 = scalar_select %p774, %s771, 1
        %s776 = smul.addr %s773, 2
        %s777 = sadd.s32 %s775, %s776
        %s778 = smul.addr %s777, 8
        %s779 = scalar_lea.vmem %s19, %s778
        %s780 = smul.u32 2, %s48
        %s781 = smul.u32 2, %s48
        %s782 = smul.u32 2, %s48
        %p783 = scmp.lt.s32.totalorder %s47, 1
        %s784 = scalar_select %p783, %s47, 1
        %p785 = scmp.lt.s32.totalorder %s782, 1
        %s786 = scalar_select %p785, %s782, 1
        %s787 = smul.addr %s784, 2
        %s788 = sadd.s32 %s786, %s787
        %s789 = smul.addr %s788, 8
        %s790 = scalar_lea.vmem %s19, %s789
        %s791 = smul.u32 2, %s48
        %p793 = scmp.eq.s32.totalorder %s48, 0
        // Predicated region
        $region125: #{tpu_custom_call.1} parent=91 // pred_check
          %p794 = pneg %p793
        $region126: #{tpu_custom_call.1} parent=91 // pred_check_branch
          %796 = sbr.rel (%p794) target = $region128
        $region127: #{tpu_custom_call.1} parent=91 // pred_region
          %v797 = vld [vmem:[%s687] sm:$0xf]
          %v798 = vld [vmem:[%s687 + $0x4] sm:$0xf]
          %v799 = vld [vmem:[%s687 + $0x8] sm:$0xf]
          %v800 = vld [vmem:[%s687 + $0xc] sm:$0xf]
          %v801 = vld [vmem:[#allocation10] sm:$0xf]
          %v802 = vld [vmem:[#allocation10 + $0x4] sm:$0xf]
          %v803 = vld [vmem:[#allocation10 + $0x8] sm:$0xf]
          %v804 = vld [vmem:[#allocation10 + $0xc] sm:$0xf]
          %v805 = vld [vmem:[#allocation10 + $0x10] sm:$0xf]
          %v806 = vld [vmem:[#allocation10 + $0x14] sm:$0xf]
          %v807 = vld [vmem:[#allocation10 + $0x18] sm:$0xf]
          %v808 = vld [vmem:[#allocation10 + $0x1c] sm:$0xf]
          %v809 = vld [vmem:[#allocation10 + $0x20] sm:$0xf]
          %v810 = vld [vmem:[#allocation10 + $0x24] sm:$0xf]
          %v811 = vld [vmem:[#allocation10 + $0x28] sm:$0xf]
          %v812 = vld [vmem:[#allocation10 + $0x2c] sm:$0xf]
          %v813 = vld [vmem:[#allocation10 + $0x30] sm:$0xf]
          %v814 = vld [vmem:[#allocation10 + $0x34] sm:$0xf]
          %v815 = vld [vmem:[#allocation10 + $0x38] sm:$0xf]
          %v816 = vld [vmem:[#allocation10 + $0x3c] sm:$0xf]
          %v817 = vld [vmem:[%s6] sm:$0x1]
          %v819 = vlaneseq
          %v820 = vshrl.u32 %v819, 7
          %v821 = vsub.s32 0, %v820
          %v822 = vrot.slane %v817, %v821
          %v828 = vunpack.c.l.b16 %v797
          %v829 = vunpack.c.l.b16 %v798
          %v830 = vunpack.c.l.b16 %v799
          %v831 = vunpack.c.l.b16 %v800
          %v832 = vpack.c.b16 %v829, %v828
          %v833 = vpack.c.b16 %v831, %v830
          %v852 = vunpack.c.l.b16 %v801
          %v853 = vunpack.c.l.b16 %v802
          %v854 = vunpack.c.l.b16 %v803
          %v855 = vunpack.c.l.b16 %v804
          %v856 = vunpack.c.l.b16 %v805
          %v857 = vunpack.c.l.b16 %v806
          %v858 = vunpack.c.l.b16 %v807
          %v859 = vunpack.c.l.b16 %v808
          %v860 = vunpack.c.l.b16 %v809
          %v861 = vunpack.c.l.b16 %v810
          %v862 = vunpack.c.l.b16 %v811
          %v863 = vunpack.c.l.b16 %v812
          %v864 = vunpack.c.l.b16 %v813
          %v865 = vunpack.c.l.b16 %v814
          %v866 = vunpack.c.l.b16 %v815
          %v867 = vunpack.c.l.b16 %v816
          %v868 = vpack.c.b16 %v853, %v852
          %v869 = vpack.c.b16 %v855, %v854
          %v870 = vpack.c.b16 %v857, %v856
          %v871 = vpack.c.b16 %v859, %v858
          %v872 = vpack.c.b16 %v861, %v860
          %v873 = vpack.c.b16 %v863, %v862
          %v874 = vpack.c.b16 %v865, %v864
          %v875 = vpack.c.b16 %v867, %v866
          %884 = vmatprep.subr.bf16.mxu0 0
          %885 = vmatpush1.bf16.msra.mxu0 %v875
          %886 = vmatprep.subr.bf16.mxu0 0
          %887 = vmatpush1.bf16.msra.mxu0 %v874
          %888 = vmatprep.subr.bf16.mxu0 0
          %889 = vmatpush1.bf16.msra.mxu0 %v873
          %890 = vmatprep.subr.bf16.mxu0 0
          %891 = vmatpush1.bf16.msra.mxu0 %v872
          %892 = vmatprep.subr.bf16.mxu0 0
          %893 = vmatpush1.bf16.msra.mxu0 %v871
          %894 = vmatprep.subr.bf16.mxu0 0
          %895 = vmatpush1.bf16.msra.mxu0 %v870
          %896 = vmatprep.subr.bf16.mxu0 0
          %897 = vmatpush1.bf16.msra.mxu0 %v869
          %898 = vmatprep.subr.bf16.mxu0 0
          %899 = vmatpush1.bf16.msra.mxu0 %v868
          %900 = vmatprep.subr.bf16.mxu0 0
          %901 = vmatpush2.bf16.msra.mxu0 0
          %902 = vmatprep.subr.bf16.mxu0 0
          %903 = vmatpush2.bf16.msra.mxu0 0
          %904 = vmatprep.subr.bf16.mxu0 0
          %905 = vmatpush2.bf16.msra.mxu0 0
          %906 = vmatprep.subr.bf16.mxu0 0
          %907 = vmatpush2.bf16.msra.mxu0 0
          %908 = vmatprep.subr.bf16.mxu0 0
          %909 = vmatpush2.bf16.msra.mxu0 0
          %910 = vmatprep.subr.bf16.mxu0 0
          %911 = vmatpush2.bf16.msra.mxu0 0
          %912 = vmatprep.subr.bf16.mxu0 0
          %913 = vmatpush2.bf16.msra.mxu0 0
          %914 = vmatprep.subr.bf16.mxu0 0
          %915 = vmatpush2.bf16.msra.mxu0 0
          %916 = vmatprep.mubr.bf16.mxu0 0
          %917 = vmatmul.mubr.bf16.gmra.mxu0 %v832
          %v918 = vpop.f32.mrf.mxu0
          %v919 = vadd.f32 %v822, %v918
          %v920 = vpop.f32.mrf.mxu0
          %v921 = vpop.f32.mrf.mxu0
          %v922 = vadd.f32 %v822, %v921
          %v923 = vpop.f32.mrf.mxu0
          %924 = vmatprep.mubr.bf16.mxu0 0
          %925 = vmatmul.mubr.bf16.gmra.mxu0 %v833
          %v926 = vpop.f32.mrf.mxu0
          %v927 = vadd.f32 %v822, %v926
          %v928 = vpop.f32.mrf.mxu0
          %v929 = vpop.f32.mrf.mxu0
          %v930 = vadd.f32 %v822, %v929
          %v931 = vpop.f32.mrf.mxu0
          %932 = vdwg.mxu0
          %v933 = vld [vmem:[#allocation12] sm:$0xf]
          %v934 = vld [vmem:[#allocation12 + $0x4] sm:$0xf]
          %v935 = vld [vmem:[#allocation12 + $0x8] sm:$0xf]
          %v936 = vld [vmem:[#allocation12 + $0xc] sm:$0xf]
          %v937 = vld [vmem:[#allocation12 + $0x10] sm:$0xf]
          %v938 = vld [vmem:[#allocation12 + $0x14] sm:$0xf]
          %v939 = vld [vmem:[#allocation12 + $0x18] sm:$0xf]
          %v940 = vld [vmem:[#allocation12 + $0x1c] sm:$0xf]
          %v941 = vld [vmem:[#allocation12 + $0x20] sm:$0xf]
          %v942 = vld [vmem:[#allocation12 + $0x24] sm:$0xf]
          %v943 = vld [vmem:[#allocation12 + $0x28] sm:$0xf]
          %v944 = vld [vmem:[#allocation12 + $0x2c] sm:$0xf]
          %v945 = vld [vmem:[#allocation12 + $0x30] sm:$0xf]
          %v946 = vld [vmem:[#allocation12 + $0x34] sm:$0xf]
          %v947 = vld [vmem:[#allocation12 + $0x38] sm:$0xf]
          %v948 = vld [vmem:[#allocation12 + $0x3c] sm:$0xf]
          %v949 = vld [vmem:[%s7] sm:$0x1]
          %v951 = vlaneseq
          %v952 = vshrl.u32 %v951, 7
          %v953 = vsub.s32 0, %v952
          %v954 = vrot.slane %v949, %v953
          %v972 = vunpack.c.l.b16 %v933
          %v973 = vunpack.c.l.b16 %v934
          %v974 = vunpack.c.l.b16 %v935
          %v975 = vunpack.c.l.b16 %v936
          %v976 = vunpack.c.l.b16 %v937
          %v977 = vunpack.c.l.b16 %v938
          %v978 = vunpack.c.l.b16 %v939
          %v979 = vunpack.c.l.b16 %v940
          %v980 = vunpack.c.l.b16 %v941
          %v981 = vunpack.c.l.b16 %v942
          %v982 = vunpack.c.l.b16 %v943
          %v983 = vunpack.c.l.b16 %v944
          %v984 = vunpack.c.l.b16 %v945
          %v985 = vunpack.c.l.b16 %v946
          %v986 = vunpack.c.l.b16 %v947
          %v987 = vunpack.c.l.b16 %v948
          %v988 = vpack.c.b16 %v973, %v972
          %v989 = vpack.c.b16 %v975, %v974
          %v990 = vpack.c.b16 %v977, %v976
          %v991 = vpack.c.b16 %v979, %v978
          %v992 = vpack.c.b16 %v981, %v980
          %v993 = vpack.c.b16 %v983, %v982
          %v994 = vpack.c.b16 %v985, %v984
          %v995 = vpack.c.b16 %v987, %v986
          %1004 = vmatprep.subr.bf16.mxu0 0
          %1005 = vmatpush1.bf16.msra.mxu0 %v995
          %1006 = vmatprep.subr.bf16.mxu0 0
          %1007 = vmatpush1.bf16.msra.mxu0 %v994
          %1008 = vmatprep.subr.bf16.mxu0 0
          %1009 = vmatpush1.bf16.msra.mxu0 %v993
          %1010 = vmatprep.subr.bf16.mxu0 0
          %1011 = vmatpush1.bf16.msra.mxu0 %v992
          %1012 = vmatprep.subr.bf16.mxu0 0
          %1013 = vmatpush1.bf16.msra.mxu0 %v991
          %1014 = vmatprep.subr.bf16.mxu0 0
          %1015 = vmatpush1.bf16.msra.mxu0 %v990
          %1016 = vmatprep.subr.bf16.mxu0 0
          %1017 = vmatpush1.bf16.msra.mxu0 %v989
          %1018 = vmatprep.subr.bf16.mxu0 0
          %1019 = vmatpush1.bf16.msra.mxu0 %v988
          %1020 = vmatprep.subr.bf16.mxu0 0
          %1021 = vmatpush2.bf16.msra.mxu0 0
          %1022 = vmatprep.subr.bf16.mxu0 0
          %1023 = vmatpush2.bf16.msra.mxu0 0
          %1024 = vmatprep.subr.bf16.mxu0 0
          %1025 = vmatpush2.bf16.msra.mxu0 0
          %1026 = vmatprep.subr.bf16.mxu0 0
          %1027 = vmatpush2.bf16.msra.mxu0 0
          %1028 = vmatprep.subr.bf16.mxu0 0
          %1029 = vmatpush2.bf16.msra.mxu0 0
          %1030 = vmatprep.subr.bf16.mxu0 0
          %1031 = vmatpush2.bf16.msra.mxu0 0
          %1032 = vmatprep.subr.bf16.mxu0 0
          %1033 = vmatpush2.bf16.msra.mxu0 0
          %1034 = vmatprep.subr.bf16.mxu0 0
          %1035 = vmatpush2.bf16.msra.mxu0 0
          %1036 = vmatprep.mubr.bf16.mxu0 0
          %1037 = vmatmul.mubr.bf16.gmra.mxu0 %v832
          %v1038 = vpop.f32.mrf.mxu0
          %v1039 = vadd.f32 %v954, %v1038
          %v1040 = vpop.f32.mrf.mxu0
          %v1041 = vpop.f32.mrf.mxu0
          %v1042 = vadd.f32 %v954, %v1041
          %v1043 = vpop.f32.mrf.mxu0
          %1044 = vmatprep.mubr.bf16.mxu0 0
          %1045 = vmatmul.mubr.bf16.gmra.mxu0 %v833
          %v1046 = vpop.f32.mrf.mxu0
          %v1047 = vadd.f32 %v954, %v1046
          %v1048 = vpop.f32.mrf.mxu0
          %v1049 = vpop.f32.mrf.mxu0
          %v1050 = vadd.f32 %v954, %v1049
          %v1051 = vpop.f32.mrf.mxu0
          %1052 = vdwg.mxu0
          %v1053 = vpack.c.bf16 %v922, %v919
          %v1054 = vpack.c.bf16 %v930, %v927
          %v1057 = vunpack.c.l.b16 %v1053
          %v1058 = vunpack.c.h.b16 %v1053
          %v1059 = vunpack.c.l.b16 %v1054
          %v1060 = vunpack.c.h.b16 %v1054
          %v1061 = vpack.c.b16 %v1057, %v1057
          %v1062 = vpack.c.b16 %v1058, %v1058
          %v1063 = vpack.c.b16 %v1059, %v1059
          %v1064 = vpack.c.b16 %v1060, %v1060
          %vm1069 = vcmask 257024
          %1070 = vst.msk [vmem:[#allocation2] sm:$0xf] %vm1069, %v1061
          %1071 = vst.msk [vmem:[#allocation2 + $0x4] sm:$0xf] %vm1069, %v1062
          %1072 = vst.msk [vmem:[#allocation2 + $0x8] sm:$0xf] %vm1069, %v1063
          %1073 = vst.msk [vmem:[#allocation2 + $0xc] sm:$0xf] %vm1069, %v1064
          %v1074 = vpack.c.bf16 %v1042, %v1039
          %v1075 = vpack.c.bf16 %v1050, %v1047
          %v1078 = vunpack.c.l.b16 %v1074
          %v1079 = vunpack.c.h.b16 %v1074
          %v1080 = vunpack.c.l.b16 %v1075
          %v1081 = vunpack.c.h.b16 %v1075
          %v1082 = vpack.c.b16 %v1078, %v1078
          %v1083 = vpack.c.b16 %v1079, %v1079
          %v1084 = vpack.c.b16 %v1080, %v1080
          %v1085 = vpack.c.b16 %v1081, %v1081
          %1090 = vst.msk [vmem:[#allocation3] sm:$0xf] %vm1069, %v1082
          %1091 = vst.msk [vmem:[#allocation3 + $0x4] sm:$0xf] %vm1069, %v1083
          %1092 = vst.msk [vmem:[#allocation3 + $0x8] sm:$0xf] %vm1069, %v1084
          %1093 = vst.msk [vmem:[#allocation3 + $0xc] sm:$0xf] %vm1069, %v1085
          %1094 = vrot.lane.b32.xlu0 %v1061, 96
          %v1095 = vpop.permute.xlu0 %1094
          %1096 = vrot.lane.b32.xlu0 %v1062, 96
          %v1097 = vpop.permute.xlu0 %1096
          %1098 = vrot.lane.b32.xlu0 %v1063, 96
          %v1099 = vpop.permute.xlu0 %1098
          %1100 = vrot.lane.b32.xlu0 %v1064, 96
          %v1101 = vpop.permute.xlu0 %1100
          %s1106 = scalar_lea.vmem [#allocation2], 16
          %1107 = vst.msk [vmem:[%s1106] sm:$0xf] %vm1069, %v1095
          %1108 = vst.msk [vmem:[%s1106 + $0x4] sm:$0xf] %vm1069, %v1097
          %1109 = vst.msk [vmem:[%s1106 + $0x8] sm:$0xf] %vm1069, %v1099
          %1110 = vst.msk [vmem:[%s1106 + $0xc] sm:$0xf] %vm1069, %v1101
          %1111 = vrot.lane.b32.xlu0 %v1082, 96
          %v1112 = vpop.permute.xlu0 %1111
          %1113 = vrot.lane.b32.xlu0 %v1083, 96
          %v1114 = vpop.permute.xlu0 %1113
          %1115 = vrot.lane.b32.xlu0 %v1084, 96
          %v1116 = vpop.permute.xlu0 %1115
          %1117 = vrot.lane.b32.xlu0 %v1085, 96
          %v1118 = vpop.permute.xlu0 %1117
          %s1123 = scalar_lea.vmem [#allocation3], 16
          %1124 = vst.msk [vmem:[%s1123] sm:$0xf] %vm1069, %v1112
          %1125 = vst.msk [vmem:[%s1123 + $0x4] sm:$0xf] %vm1069, %v1114
          %1126 = vst.msk [vmem:[%s1123 + $0x8] sm:$0xf] %vm1069, %v1116
          %1127 = vst.msk [vmem:[%s1123 + $0xc] sm:$0xf] %vm1069, %v1118
          %1128 = vrot.lane.b32.xlu0 %v1061, 64
          %v1129 = vpop.permute.xlu0 %1128
          %1130 = vrot.lane.b32.xlu0 %v1062, 64
          %v1131 = vpop.permute.xlu0 %1130
          %1132 = vrot.lane.b32.xlu0 %v1063, 64
          %v1133 = vpop.permute.xlu0 %1132
          %1134 = vrot.lane.b32.xlu0 %v1064, 64
          %v1135 = vpop.permute.xlu0 %1134
          %s1140 = scalar_lea.vmem [#allocation2], 32
          %1141 = vst.msk [vmem:[%s1140] sm:$0xf] %vm1069, %v1129
          %1142 = vst.msk [vmem:[%s1140 + $0x4] sm:$0xf] %vm1069, %v1131
          %1143 = vst.msk [vmem:[%s1140 + $0x8] sm:$0xf] %vm1069, %v1133
          %1144 = vst.msk [vmem:[%s1140 + $0xc] sm:$0xf] %vm1069, %v1135
          %1145 = vrot.lane.b32.xlu0 %v1082, 64
          %v1146 = vpop.permute.xlu0 %1145
          %1147 = vrot.lane.b32.xlu0 %v1083, 64
          %v1148 = vpop.permute.xlu0 %1147
          %1149 = vrot.lane.b32.xlu0 %v1084, 64
          %v1150 = vpop.permute.xlu0 %1149
          %1151 = vrot.lane.b32.xlu0 %v1085, 64
          %v1152 = vpop.permute.xlu0 %1151
          %s1157 = scalar_lea.vmem [#allocation3], 32
          %1158 = vst.msk [vmem:[%s1157] sm:$0xf] %vm1069, %v1146
          %1159 = vst.msk [vmem:[%s1157 + $0x4] sm:$0xf] %vm1069, %v1148
          %1160 = vst.msk [vmem:[%s1157 + $0x8] sm:$0xf] %vm1069, %v1150
          %1161 = vst.msk [vmem:[%s1157 + $0xc] sm:$0xf] %vm1069, %v1152
          %1162 = vrot.lane.b32.xlu0 %v1061, 32
          %v1163 = vpop.permute.xlu0 %1162
          %1164 = vrot.lane.b32.xlu0 %v1062, 32
          %v1165 = vpop.permute.xlu0 %1164
          %1166 = vrot.lane.b32.xlu0 %v1063, 32
          %v1167 = vpop.permute.xlu0 %1166
          %1168 = vrot.lane.b32.xlu0 %v1064, 32
          %v1169 = vpop.permute.xlu0 %1168
          %s1174 = scalar_lea.vmem [#allocation2], 48
          %1175 = vst.msk [vmem:[%s1174] sm:$0xf] %vm1069, %v1163
          %1176 = vst.msk [vmem:[%s1174 + $0x4] sm:$0xf] %vm1069, %v1165
          %1177 = vst.msk [vmem:[%s1174 + $0x8] sm:$0xf] %vm1069, %v1167
          %1178 = vst.msk [vmem:[%s1174 + $0xc] sm:$0xf] %vm1069, %v1169
          %1179 = vrot.lane.b32.xlu0 %v1082, 32
          %v1180 = vpop.permute.xlu0 %1179
          %1181 = vrot.lane.b32.xlu0 %v1083, 32
          %v1182 = vpop.permute.xlu0 %1181
          %1183 = vrot.lane.b32.xlu0 %v1084, 32
          %v1184 = vpop.permute.xlu0 %1183
          %1185 = vrot.lane.b32.xlu0 %v1085, 32
          %v1186 = vpop.permute.xlu0 %1185
          %s1191 = scalar_lea.vmem [#allocation3], 48
          %1192 = vst.msk [vmem:[%s1191] sm:$0xf] %vm1069, %v1180
          %1193 = vst.msk [vmem:[%s1191 + $0x4] sm:$0xf] %vm1069, %v1182
          %1194 = vst.msk [vmem:[%s1191 + $0x8] sm:$0xf] %vm1069, %v1184
          %1195 = vst.msk [vmem:[%s1191 + $0xc] sm:$0xf] %vm1069, %v1186
        $region128: #{tpu_custom_call.1} parent=91 // pred_fallthru
          _
        %v1196 = vld [vmem:[%s678] sm:$0xff]
        %v1197 = vld [vmem:[%s678 + $0x8] sm:$0xff]
        %v1198 = vpack.c.bf16 %v1197, %v1196
        %v1199 = vld [vmem:[#allocation9] sm:$0xf]
        %v1200 = vld [vmem:[#allocation9 + $0x4] sm:$0xf]
        %v1201 = vld [vmem:[#allocation9 + $0x8] sm:$0xf]
        %v1202 = vld [vmem:[#allocation9 + $0xc] sm:$0xf]
        %v1203 = vld [vmem:[#allocation9 + $0x10] sm:$0xf]
        %v1204 = vld [vmem:[#allocation9 + $0x14] sm:$0xf]
        %v1205 = vld [vmem:[#allocation9 + $0x18] sm:$0xf]
        %v1206 = vld [vmem:[#allocation9 + $0x1c] sm:$0xf]
        %v1207 = vld [vmem:[#allocation9 + $0x20] sm:$0xf]
        %v1208 = vld [vmem:[#allocation9 + $0x24] sm:$0xf]
        %v1209 = vld [vmem:[#allocation9 + $0x28] sm:$0xf]
        %v1210 = vld [vmem:[#allocation9 + $0x2c] sm:$0xf]
        %v1211 = vld [vmem:[#allocation9 + $0x30] sm:$0xf]
        %v1212 = vld [vmem:[#allocation9 + $0x34] sm:$0xf]
        %v1213 = vld [vmem:[#allocation9 + $0x38] sm:$0xf]
        %v1214 = vld [vmem:[#allocation9 + $0x3c] sm:$0xf]
        %v1215 = vld [vmem:[%s5] sm:$0x1]
        %v1217 = vlaneseq
        %v1218 = vshrl.u32 %v1217, 7
        %v1219 = vsub.s32 0, %v1218
        %v1220 = vrot.slane %v1215, %v1219
        %v1238 = vunpack.c.l.b16 %v1199
        %v1239 = vunpack.c.l.b16 %v1200
        %v1240 = vunpack.c.l.b16 %v1201
        %v1241 = vunpack.c.l.b16 %v1202
        %v1242 = vunpack.c.l.b16 %v1203
        %v1243 = vunpack.c.l.b16 %v1204
        %v1244 = vunpack.c.l.b16 %v1205
        %v1245 = vunpack.c.l.b16 %v1206
        %v1246 = vunpack.c.l.b16 %v1207
        %v1247 = vunpack.c.l.b16 %v1208
        %v1248 = vunpack.c.l.b16 %v1209
        %v1249 = vunpack.c.l.b16 %v1210
        %v1250 = vunpack.c.l.b16 %v1211
        %v1251 = vunpack.c.l.b16 %v1212
        %v1252 = vunpack.c.l.b16 %v1213
        %v1253 = vunpack.c.l.b16 %v1214
        %v1254 = vpack.c.b16 %v1239, %v1238
        %v1255 = vpack.c.b16 %v1241, %v1240
        %v1256 = vpack.c.b16 %v1243, %v1242
        %v1257 = vpack.c.b16 %v1245, %v1244
        %v1258 = vpack.c.b16 %v1247, %v1246
        %v1259 = vpack.c.b16 %v1249, %v1248
        %v1260 = vpack.c.b16 %v1251, %v1250
        %v1261 = vpack.c.b16 %v1253, %v1252
        %1270 = vmatprep.subr.bf16.mxu0 0
        %1271 = vmatpush1.bf16.msra.mxu0 %v1261
        %1272 = vmatprep.subr.bf16.mxu0 0
        %1273 = vmatpush1.bf16.msra.mxu0 %v1260
        %1274 = vmatprep.subr.bf16.mxu0 0
        %1275 = vmatpush1.bf16.msra.mxu0 %v1259
        %1276 = vmatprep.subr.bf16.mxu0 0
        %1277 = vmatpush1.bf16.msra.mxu0 %v1258
        %1278 = vmatprep.subr.bf16.mxu0 0
        %1279 = vmatpush1.bf16.msra.mxu0 %v1257
        %1280 = vmatprep.subr.bf16.mxu0 0
        %1281 = vmatpush1.bf16.msra.mxu0 %v1256
        %1282 = vmatprep.subr.bf16.mxu0 0
        %1283 = vmatpush1.bf16.msra.mxu0 %v1255
        %1284 = vmatprep.subr.bf16.mxu0 0
        %1285 = vmatpush1.bf16.msra.mxu0 %v1254
        %1286 = vmatprep.subr.bf16.mxu0 0
        %1287 = vmatpush2.bf16.msra.mxu0 0
        %1288 = vmatprep.subr.bf16.mxu0 0
        %1289 = vmatpush2.bf16.msra.mxu0 0
        %1290 = vmatprep.subr.bf16.mxu0 0
        %1291 = vmatpush2.bf16.msra.mxu0 0
        %1292 = vmatprep.subr.bf16.mxu0 0
        %1293 = vmatpush2.bf16.msra.mxu0 0
        %1294 = vmatprep.subr.bf16.mxu0 0
        %1295 = vmatpush2.bf16.msra.mxu0 0
        %1296 = vmatprep.subr.bf16.mxu0 0
        %1297 = vmatpush2.bf16.msra.mxu0 0
        %1298 = vmatprep.subr.bf16.mxu0 0
        %1299 = vmatpush2.bf16.msra.mxu0 0
        %1300 = vmatprep.subr.bf16.mxu0 0
        %1301 = vmatpush2.bf16.msra.mxu0 0
        %1302 = vmatprep.mubr.bf16.mxu0 0
        %1303 = vmatmul.mubr.bf16.gmra.mxu0 %v1198
        %v1304 = vpop.f32.mrf.mxu0
        %v1305 = vadd.f32 %v1220, %v1304
        %v1306 = vpop.f32.mrf.mxu0
        %v1307 = vpop.f32.mrf.mxu0
        %v1308 = vadd.f32 %v1220, %v1307
        %v1309 = vpop.f32.mrf.mxu0
        %1310 = vdwg.mxu0
        %v1311 = vpack.c.bf16 %v1308, %v1305
        %v1312 = vld [vmem:[#allocation2] sm:$0xf]
        %v1313 = vld [vmem:[#allocation2 + $0x4] sm:$0xf]
        %v1314 = vld [vmem:[#allocation2 + $0x8] sm:$0xf]
        %v1315 = vld [vmem:[#allocation2 + $0xc] sm:$0xf]
        %v1320 = vunpack.c.l.b16 %v1312
        %v1321 = vunpack.c.l.b16 %v1313
        %v1322 = vunpack.c.l.b16 %v1314
        %v1323 = vunpack.c.l.b16 %v1315
        %v1324 = vpack.c.b16 %v1321, %v1320
        %v1325 = vpack.c.b16 %v1323, %v1322
        %vm1326 = vcmask 261120
        %v1328 = vsel %vm1326, %v1311, 0
        %v1331 = vsel %vm1326, %v1324, 0
        %v1334 = vsel %vm1326, %v1325, 0
        %1336 = vmatprep.subr.bf16.mxu0 0
        %1337 = vmatpush1.bf16.xpose.msra.mxu0 0
        %1338 = vmatprep.subr.bf16.mxu0 0
        %1339 = vmatpush1.bf16.xpose.msra.mxu0 0
        %1340 = vmatprep.subr.bf16.mxu0 0
        %1341 = vmatpush1.bf16.xpose.msra.mxu0 0
        %1342 = vmatprep.subr.bf16.mxu0 0
        %1343 = vmatpush1.bf16.xpose.msra.mxu0 0
        %1344 = vmatprep.subr.bf16.mxu0 0
        %1345 = vmatpush1.bf16.xpose.msra.mxu0 0
        %1346 = vmatprep.subr.bf16.mxu0 0
        %1347 = vmatpush1.bf16.xpose.msra.mxu0 0
        %1348 = vmatprep.subr.bf16.mxu0 0
        %1349 = vmatpush1.bf16.xpose.msra.mxu0 %v1334
        %1350 = vmatprep.subr.bf16.mxu0 0
        %1351 = vmatpush1.bf16.xpose.msra.mxu0 %v1331
        %1352 = vmatprep.subr.bf16.mxu0 0
        %1353 = vmatpush2.bf16.xpose.msra.mxu0 0
        %1354 = vmatprep.subr.bf16.mxu0 0
        %1355 = vmatpush2.bf16.xpose.msra.mxu0 0
        %1356 = vmatprep.subr.bf16.mxu0 0
        %1357 = vmatpush2.bf16.xpose.msra.mxu0 0
        %1358 = vmatprep.subr.bf16.mxu0 0
        %1359 = vmatpush2.bf16.xpose.msra.mxu0 0
        %1360 = vmatprep.subr.bf16.mxu0 0
        %1361 = vmatpush2.bf16.xpose.msra.mxu0 0
        %1362 = vmatprep.subr.bf16.mxu0 0
        %1363 = vmatpush2.bf16.xpose.msra.mxu0 0
        %1364 = vmatprep.subr.bf16.mxu0 0
        %1365 = vmatpush2.bf16.xpose.msra.mxu0 0
        %1366 = vmatprep.subr.bf16.mxu0 0
        %1367 = vmatpush2.bf16.xpose.msra.mxu0 0
        %1368 = vmatprep.mubr.bf16.mxu0 0
        %1369 = vmatmul.mubr.bf16.gmra.mxu0 %v1328
        %v1370 = vpop.f32.mrf.mxu0
        %v1371 = vadd.f32 0.0, %v1370
        %v1372 = vpop.f32.mrf.mxu0
        %v1373 = vpop.f32.mrf.mxu0
        %v1374 = vadd.f32 0.0, %v1373
        %v1375 = vpop.f32.mrf.mxu0
        %1376 = vdwg.mxu0
        %v1377 = vmul.f32 %v1371, 0.17677669
        %v1378 = vmul.f32 %v1374, 0.17677669
        %v1379 = vsel %vm1326, %v1377, -inf
        %1380 = vmax.xlane.f32.xlu0 %v1379
        %v1381 = vpop.xlane.xlu0 %1380
        %v1382 = vsel %vm1326, %v1378, -inf
        %1383 = vmax.xlane.f32.xlu0 %v1382
        %v1384 = vpop.xlane.xlu0 %1383
        %v1385 = vsub.f32 %v1377, %v1381
        %v1386 = vsub.f32 %v1378, %v1384
        %v1387 = vmul.f32 %v1385, 1.442695
        %v1388 = vpow.pop %v1387
        %v1389 = vmul.f32 %v1386, 1.442695
        %v1390 = vpow.pop %v1389
        %v1391 = vsel %vm1326, %v1388, 0.0
        %1392 = vadd.xlane.f32.xlu0 %v1391
        %v1393 = vpop.xlane.xlu0 %1392
        %v1394 = vsel %vm1326, %v1390, 0.0
        %1395 = vadd.xlane.f32.xlu0 %v1394
        %v1396 = vpop.xlane.xlu0 %1395
        %v1397 = vrcp.pop %v1393
        %v1398 = vmul.f32 1.0, %v1397
        %v1399 = vrcp.pop %v1396
        %v1400 = vmul.f32 1.0, %v1399
        %v1401 = vlog2.pop %v1393
        %v1402 = vmul.f32 %v1401, 0.6931472
        %v1403 = vlog2.pop %v1396
        %v1404 = vmul.f32 %v1403, 0.6931472
        %v1405 = vmul.f32 %v1388, %v1385
        %v1406 = vmul.f32 %v1390, %v1386
        %v1407 = vsel %vm1326, %v1405, 0.0
        %1408 = vadd.xlane.f32.xlu0 %v1407
        %v1409 = vpop.xlane.xlu0 %1408
        %v1410 = vsel %vm1326, %v1406, 0.0
        %1411 = vadd.xlane.f32.xlu0 %v1410
        %v1412 = vpop.xlane.xlu0 %1411
        %v1413 = vmul.f32 %v1409, %v1398
        %v1414 = vmul.f32 %v1412, %v1400
        %v1415 = vsub.f32 %v1402, %v1413
        %v1416 = vsub.f32 %v1404, %v1414
        %v1417 = vpack.c.bf16 %v1390, %v1388
        %v1418 = vld [vmem:[#allocation3] sm:$0xf]
        %v1419 = vld [vmem:[#allocation3 + $0x4] sm:$0xf]
        %v1420 = vld [vmem:[#allocation3 + $0x8] sm:$0xf]
        %v1421 = vld [vmem:[#allocation3 + $0xc] sm:$0xf]
        %v1426 = vunpack.c.l.b16 %v1418
        %v1427 = vunpack.c.l.b16 %v1419
        %v1428 = vunpack.c.l.b16 %v1420
        %v1429 = vunpack.c.l.b16 %v1421
        %v1430 = vpack.c.b16 %v1427, %v1426
        %v1431 = vpack.c.b16 %v1429, %v1428
        %v1435 = vsel %vm1326, %v1417, 0
        %1437 = vmatprep.subr.bf16.mxu0 0
        %1438 = vmatpush1.bf16.msra.mxu0 0
        %1439 = vmatprep.subr.bf16.mxu0 0
        %1440 = vmatpush1.bf16.msra.mxu0 0
        %1441 = vmatprep.subr.bf16.mxu0 0
        %1442 = vmatpush1.bf16.msra.mxu0 0
        %1443 = vmatprep.subr.bf16.mxu0 0
        %1444 = vmatpush1.bf16.msra.mxu0 0
        %1445 = vmatprep.subr.bf16.mxu0 0
        %1446 = vmatpush1.bf16.msra.mxu0 0
        %1447 = vmatprep.subr.bf16.mxu0 0
        %1448 = vmatpush1.bf16.msra.mxu0 0
        %1449 = vmatprep.subr.bf16.mxu0 0
        %1450 = vmatpush1.bf16.msra.mxu0 %v1431
        %1451 = vmatprep.subr.bf16.mxu0 0
        %1452 = vmatpush1.bf16.msra.mxu0 %v1430
        %1453 = vmatprep.subr.bf16.mxu0 0
        %1454 = vmatpush2.bf16.msra.mxu0 0
        %1455 = vmatprep.subr.bf16.mxu0 0
        %1456 = vmatpush2.bf16.msra.mxu0 0
        %1457 = vmatprep.subr.bf16.mxu0 0
        %1458 = vmatpush2.bf16.msra.mxu0 0
        %1459 = vmatprep.subr.bf16.mxu0 0
        %1460 = vmatpush2.bf16.msra.mxu0 0
        %1461 = vmatprep.subr.bf16.mxu0 0
        %1462 = vmatpush2.bf16.msra.mxu0 0
        %1463 = vmatprep.subr.bf16.mxu0 0
        %1464 = vmatpush2.bf16.msra.mxu0 0
        %1465 = vmatprep.subr.bf16.mxu0 0
        %1466 = vmatpush2.bf16.msra.mxu0 0
        %1467 = vmatprep.subr.bf16.mxu0 0
        %1468 = vmatpush2.bf16.msra.mxu0 0
        %1469 = vmatprep.mubr.bf16.mxu0 0
        %1470 = vmatmul.mubr.bf16.gmra.mxu0 %v1435
        %v1471 = vpop.f32.mrf.mxu0
        %v1472 = vadd.f32 0.0, %v1471
        %v1473 = vpop.f32.mrf.mxu0
        %v1474 = vpop.f32.mrf.mxu0
        %v1475 = vadd.f32 0.0, %v1474
        %v1476 = vpop.f32.mrf.mxu0
        %1477 = vdwg.mxu0
        %v1478 = vmul.f32 %v1472, %v1398
        %v1479 = vmul.f32 %v1475, %v1400
        %v1480 = vpack.c.bf16 %v1479, %v1478
        %s1481 = scalar_lea.vmem [#allocation2], 16
        %v1482 = vld [vmem:[%s1481] sm:$0xf]
        %v1483 = vld [vmem:[%s1481 + $0x4] sm:$0xf]
        %v1484 = vld [vmem:[%s1481 + $0x8] sm:$0xf]
        %v1485 = vld [vmem:[%s1481 + $0xc] sm:$0xf]
        %1487 = vrot.lane.b32.xlu0 %v1311, 96
        %v1488 = vpop.permute.xlu0 %1487
        %v1493 = vunpack.c.l.b16 %v1482
        %v1494 = vunpack.c.l.b16 %v1483
        %v1495 = vunpack.c.l.b16 %v1484
        %v1496 = vunpack.c.l.b16 %v1485
        %v1497 = vpack.c.b16 %v1494, %v1493
        %v1498 = vpack.c.b16 %v1496, %v1495
        %v1500 = vsel %vm1326, %v1488, 0
        %v1503 = vsel %vm1326, %v1497, 0
        %v1506 = vsel %vm1326, %v1498, 0
        %1508 = vmatprep.subr.bf16.mxu0 0
        %1509 = vmatpush1.bf16.xpose.msra.mxu0 0
        %1510 = vmatprep.subr.bf16.mxu0 0
        %1511 = vmatpush1.bf16.xpose.msra.mxu0 0
        %1512 = vmatprep.subr.bf16.mxu0 0
        %1513 = vmatpush1.bf16.xpose.msra.mxu0 0
        %1514 = vmatprep.subr.bf16.mxu0 0
        %1515 = vmatpush1.bf16.xpose.msra.mxu0 0
        %1516 = vmatprep.subr.bf16.mxu0 0
        %1517 = vmatpush1.bf16.xpose.msra.mxu0 0
        %1518 = vmatprep.subr.bf16.mxu0 0
        %1519 = vmatpush1.bf16.xpose.msra.mxu0 0
        %1520 = vmatprep.subr.bf16.mxu0 0
        %1521 = vmatpush1.bf16.xpose.msra.mxu0 %v1506
        %1522 = vmatprep.subr.bf16.mxu0 0
        %1523 = vmatpush1.bf16.xpose.msra.mxu0 %v1503
        %1524 = vmatprep.subr.bf16.mxu0 0
        %1525 = vmatpush2.bf16.xpose.msra.mxu0 0
        %1526 = vmatprep.subr.bf16.mxu0 0
        %1527 = vmatpush2.bf16.xpose.msra.mxu0 0
        %1528 = vmatprep.subr.bf16.mxu0 0
        %1529 = vmatpush2.bf16.xpose.msra.mxu0 0
        %1530 = vmatprep.subr.bf16.mxu0 0
        %1531 = vmatpush2.bf16.xpose.msra.mxu0 0
        %1532 = vmatprep.subr.bf16.mxu0 0
        %1533 = vmatpush2.bf16.xpose.msra.mxu0 0
        %1534 = vmatprep.subr.bf16.mxu0 0
        %1535 = vmatpush2.bf16.xpose.msra.mxu0 0
        %1536 = vmatprep.subr.bf16.mxu0 0
        %1537 = vmatpush2.bf16.xpose.msra.mxu0 0
        %1538 = vmatprep.subr.bf16.mxu0 0
        %1539 = vmatpush2.bf16.xpose.msra.mxu0 0
        %1540 = vmatprep.mubr.bf16.mxu0 0
        %1541 = vmatmul.mubr.bf16.gmra.mxu0 %v1500
        %v1542 = vpop.f32.mrf.mxu0
        %v1543 = vadd.f32 0.0, %v1542
        %v1544 = vpop.f32.mrf.mxu0
        %v1545 = vpop.f32.mrf.mxu0
        %v1546 = vadd.f32 0.0, %v1545
        %v1547 = vpop.f32.mrf.mxu0
        %1548 = vdwg.mxu0
        %v1549 = vmul.f32 %v1543, 0.17677669
        %v1550 = vmul.f32 %v1546, 0.17677669
        %v1551 = vsel %vm1326, %v1549, -inf
        %1552 = vmax.xlane.f32.xlu0 %v1551
        %v1553 = vpop.xlane.xlu0 %1552
        %v1554 = vsel %vm1326, %v1550, -inf
        %1555 = vmax.xlane.f32.xlu0 %v1554
        %v1556 = vpop.xlane.xlu0 %1555
        %v1557 = vsub.f32 %v1549, %v1553
        %v1558 = vsub.f32 %v1550, %v1556
        %v1559 = vmul.f32 %v1557, 1.442695
        %v1560 = vpow.pop %v1559
        %v1561 = vmul.f32 %v1558, 1.442695
        %v1562 = vpow.pop %v1561
        %v1563 = vsel %vm1326, %v1560, 0.0
        %1564 = vadd.xlane.f32.xlu0 %v1563
        %v1565 = vpop.xlane.xlu0 %1564
        %v1566 = vsel %vm1326, %v1562, 0.0
        %1567 = vadd.xlane.f32.xlu0 %v1566
        %v1568 = vpop.xlane.xlu0 %1567
        %v1569 = vrcp.pop %v1565
        %v1570 = vmul.f32 1.0, %v1569
        %v1571 = vrcp.pop %v1568
        %v1572 = vmul.f32 1.0, %v1571
        %v1573 = vlog2.pop %v1565
        %v1574 = vmul.f32 %v1573, 0.6931472
        %v1575 = vlog2.pop %v1568
        %v1576 = vmul.f32 %v1575, 0.6931472
        %v1577 = vmul.f32 %v1560, %v1557
        %v1578 = vmul.f32 %v1562, %v1558
        %v1579 = vsel %vm1326, %v1577, 0.0
        %1580 = vadd.xlane.f32.xlu0 %v1579
        %v1581 = vpop.xlane.xlu0 %1580
        %v1582 = vsel %vm1326, %v1578, 0.0
        %1583 = vadd.xlane.f32.xlu0 %v1582
        %v1584 = vpop.xlane.xlu0 %1583
        %v1585 = vmul.f32 %v1581, %v1570
        %v1586 = vmul.f32 %v1584, %v1572
        %v1587 = vsub.f32 %v1574, %v1585
        %v1588 = vsub.f32 %v1576, %v1586
        %v1589 = vpack.c.bf16 %v1562, %v1560
        %s1590 = scalar_lea.vmem [#allocation3], 16
        %v1591 = vld [vmem:[%s1590] sm:$0xf]
        %v1592 = vld [vmem:[%s1590 + $0x4] sm:$0xf]
        %v1593 = vld [vmem:[%s1590 + $0x8] sm:$0xf]
        %v1594 = vld [vmem:[%s1590 + $0xc] sm:$0xf]
        %v1599 = vunpack.c.l.b16 %v1591
        %v1600 = vunpack.c.l.b16 %v1592
        %v1601 = vunpack.c.l.b16 %v1593
        %v1602 = vunpack.c.l.b16 %v1594
        %v1603 = vpack.c.b16 %v1600, %v1599
        %v1604 = vpack.c.b16 %v1602, %v1601
        %v1608 = vsel %vm1326, %v1589, 0
        %1610 = vmatprep.subr.bf16.mxu0 0
        %1611 = vmatpush1.bf16.msra.mxu0 0
        %1612 = vmatprep.subr.bf16.mxu0 0
        %1613 = vmatpush1.bf16.msra.mxu0 0
        %1614 = vmatprep.subr.bf16.mxu0 0
        %1615 = vmatpush1.bf16.msra.mxu0 0
        %1616 = vmatprep.subr.bf16.mxu0 0
        %1617 = vmatpush1.bf16.msra.mxu0 0
        %1618 = vmatprep.subr.bf16.mxu0 0
        %1619 = vmatpush1.bf16.msra.mxu0 0
        %1620 = vmatprep.subr.bf16.mxu0 0
        %1621 = vmatpush1.bf16.msra.mxu0 0
        %1622 = vmatprep.subr.bf16.mxu0 0
        %1623 = vmatpush1.bf16.msra.mxu0 %v1604
        %1624 = vmatprep.subr.bf16.mxu0 0
        %1625 = vmatpush1.bf16.msra.mxu0 %v1603
        %1626 = vmatprep.subr.bf16.mxu0 0
        %1627 = vmatpush2.bf16.msra.mxu0 0
        %1628 = vmatprep.subr.bf16.mxu0 0
        %1629 = vmatpush2.bf16.msra.mxu0 0
        %1630 = vmatprep.subr.bf16.mxu0 0
        %1631 = vmatpush2.bf16.msra.mxu0 0
        %1632 = vmatprep.subr.bf16.mxu0 0
        %1633 = vmatpush2.bf16.msra.mxu0 0
        %1634 = vmatprep.subr.bf16.mxu0 0
        %1635 = vmatpush2.bf16.msra.mxu0 0
        %1636 = vmatprep.subr.bf16.mxu0 0
        %1637 = vmatpush2.bf16.msra.mxu0 0
        %1638 = vmatprep.subr.bf16.mxu0 0
        %1639 = vmatpush2.bf16.msra.mxu0 0
        %1640 = vmatprep.subr.bf16.mxu0 0
        %1641 = vmatpush2.bf16.msra.mxu0 0
        %1642 = vmatprep.mubr.bf16.mxu0 0
        %1643 = vmatmul.mubr.bf16.gmra.mxu0 %v1608
        %v1644 = vpop.f32.mrf.mxu0
        %v1645 = vadd.f32 0.0, %v1644
        %v1646 = vpop.f32.mrf.mxu0
        %v1647 = vpop.f32.mrf.mxu0
        %v1648 = vadd.f32 0.0, %v1647
        %v1649 = vpop.f32.mrf.mxu0
        %1650 = vdwg.mxu0
        %v1651 = vmul.f32 %v1645, %v1570
        %v1652 = vmul.f32 %v1648, %v1572
        %v1653 = vpack.c.bf16 %v1652, %v1651
        %s1654 = scalar_lea.vmem [#allocation2], 32
        %v1655 = vld [vmem:[%s1654] sm:$0xf]
        %v1656 = vld [vmem:[%s1654 + $0x4] sm:$0xf]
        %v1657 = vld [vmem:[%s1654 + $0x8] sm:$0xf]
        %v1658 = vld [vmem:[%s1654 + $0xc] sm:$0xf]
        %1659 = vrot.lane.b32.xlu0 %v1311, 64
        %v1660 = vpop.permute.xlu0 %1659
        %v1665 = vunpack.c.l.b16 %v1655
        %v1666 = vunpack.c.l.b16 %v1656
        %v1667 = vunpack.c.l.b16 %v1657
        %v1668 = vunpack.c.l.b16 %v1658
        %v1669 = vpack.c.b16 %v1666, %v1665
        %v1670 = vpack.c.b16 %v1668, %v1667
        %v1672 = vsel %vm1326, %v1660, 0
        %v1675 = vsel %vm1326, %v1669, 0
        %v1678 = vsel %vm1326, %v1670, 0
        %1680 = vmatprep.subr.bf16.mxu0 0
        %1681 = vmatpush1.bf16.xpose.msra.mxu0 0
        %1682 = vmatprep.subr.bf16.mxu0 0
        %1683 = vmatpush1.bf16.xpose.msra.mxu0 0
        %1684 = vmatprep.subr.bf16.mxu0 0
        %1685 = vmatpush1.bf16.xpose.msra.mxu0 0
        %1686 = vmatprep.subr.bf16.mxu0 0
        %1687 = vmatpush1.bf16.xpose.msra.mxu0 0
        %1688 = vmatprep.subr.bf16.mxu0 0
        %1689 = vmatpush1.bf16.xpose.msra.mxu0 0
        %1690 = vmatprep.subr.bf16.mxu0 0
        %1691 = vmatpush1.bf16.xpose.msra.mxu0 0
        %1692 = vmatprep.subr.bf16.mxu0 0
        %1693 = vmatpush1.bf16.xpose.msra.mxu0 %v1678
        %1694 = vmatprep.subr.bf16.mxu0 0
        %1695 = vmatpush1.bf16.xpose.msra.mxu0 %v1675
        %1696 = vmatprep.subr.bf16.mxu0 0
        %1697 = vmatpush2.bf16.xpose.msra.mxu0 0
        %1698 = vmatprep.subr.bf16.mxu0 0
        %1699 = vmatpush2.bf16.xpose.msra.mxu0 0
        %1700 = vmatprep.subr.bf16.mxu0 0
        %1701 = vmatpush2.bf16.xpose.msra.mxu0 0
        %1702 = vmatprep.subr.bf16.mxu0 0
        %1703 = vmatpush2.bf16.xpose.msra.mxu0 0
        %1704 = vmatprep.subr.bf16.mxu0 0
        %1705 = vmatpush2.bf16.xpose.msra.mxu0 0
        %1706 = vmatprep.subr.bf16.mxu0 0
        %1707 = vmatpush2.bf16.xpose.msra.mxu0 0
        %1708 = vmatprep.subr.bf16.mxu0 0
        %1709 = vmatpush2.bf16.xpose.msra.mxu0 0
        %1710 = vmatprep.subr.bf16.mxu0 0
        %1711 = vmatpush2.bf16.xpose.msra.mxu0 0
        %1712 = vmatprep.mubr.bf16.mxu0 0
        %1713 = vmatmul.mubr.bf16.gmra.mxu0 %v1672
        %v1714 = vpop.f32.mrf.mxu0
        %v1715 = vadd.f32 0.0, %v1714
        %v1716 = vpop.f32.mrf.mxu0
        %v1717 = vpop.f32.mrf.mxu0
        %v1718 = vadd.f32 0.0, %v1717
        %v1719 = vpop.f32.mrf.mxu0
        %1720 = vdwg.mxu0
        %v1721 = vmul.f32 %v1715, 0.17677669
        %v1722 = vmul.f32 %v1718, 0.17677669
        %v1723 = vsel %vm1326, %v1721, -inf
        %1724 = vmax.xlane.f32.xlu0 %v1723
        %v1725 = vpop.xlane.xlu0 %1724
        %v1726 = vsel %vm1326, %v1722, -inf
        %1727 = vmax.xlane.f32.xlu0 %v1726
        %v1728 = vpop.xlane.xlu0 %1727
        %v1729 = vsub.f32 %v1721, %v1725
        %v1730 = vsub.f32 %v1722, %v1728
        %v1731 = vmul.f32 %v1729, 1.442695
        %v1732 = vpow.pop %v1731
        %v1733 = vmul.f32 %v1730, 1.442695
        %v1734 = vpow.pop %v1733
        %v1735 = vsel %vm1326, %v1732, 0.0
        %1736 = vadd.xlane.f32.xlu0 %v1735
        %v1737 = vpop.xlane.xlu0 %1736
        %v1738 = vsel %vm1326, %v1734, 0.0
        %1739 = vadd.xlane.f32.xlu0 %v1738
        %v1740 = vpop.xlane.xlu0 %1739
        %v1741 = vrcp.pop %v1737
        %v1742 = vmul.f32 1.0, %v1741
        %v1743 = vrcp.pop %v1740
        %v1744 = vmul.f32 1.0, %v1743
        %v1745 = vlog2.pop %v1737
        %v1746 = vmul.f32 %v1745, 0.6931472
        %v1747 = vlog2.pop %v1740
        %v1748 = vmul.f32 %v1747, 0.6931472
        %v1749 = vmul.f32 %v1732, %v1729
        %v1750 = vmul.f32 %v1734, %v1730
        %v1751 = vsel %vm1326, %v1749, 0.0
        %1752 = vadd.xlane.f32.xlu0 %v1751
        %v1753 = vpop.xlane.xlu0 %1752
        %v1754 = vsel %vm1326, %v1750, 0.0
        %1755 = vadd.xlane.f32.xlu0 %v1754
        %v1756 = vpop.xlane.xlu0 %1755
        %v1757 = vmul.f32 %v1753, %v1742
        %v1758 = vmul.f32 %v1756, %v1744
        %v1759 = vsub.f32 %v1746, %v1757
        %v1760 = vsub.f32 %v1748, %v1758
        %v1761 = vpack.c.bf16 %v1734, %v1732
        %s1762 = scalar_lea.vmem [#allocation3], 32
        %v1763 = vld [vmem:[%s1762] sm:$0xf]
        %v1764 = vld [vmem:[%s1762 + $0x4] sm:$0xf]
        %v1765 = vld [vmem:[%s1762 + $0x8] sm:$0xf]
        %v1766 = vld [vmem:[%s1762 + $0xc] sm:$0xf]
        %v1771 = vunpack.c.l.b16 %v1763
        %v1772 = vunpack.c.l.b16 %v1764
        %v1773 = vunpack.c.l.b16 %v1765
        %v1774 = vunpack.c.l.b16 %v1766
        %v1775 = vpack.c.b16 %v1772, %v1771
        %v1776 = vpack.c.b16 %v1774, %v1773
        %v1780 = vsel %vm1326, %v1761, 0
        %1782 = vmatprep.subr.bf16.mxu0 0
        %1783 = vmatpush1.bf16.msra.mxu0 0
        %1784 = vmatprep.subr.bf16.mxu0 0
        %1785 = vmatpush1.bf16.msra.mxu0 0
        %1786 = vmatprep.subr.bf16.mxu0 0
        %1787 = vmatpush1.bf16.msra.mxu0 0
        %1788 = vmatprep.subr.bf16.mxu0 0
        %1789 = vmatpush1.bf16.msra.mxu0 0
        %1790 = vmatprep.subr.bf16.mxu0 0
        %1791 = vmatpush1.bf16.msra.mxu0 0
        %1792 = vmatprep.subr.bf16.mxu0 0
        %1793 = vmatpush1.bf16.msra.mxu0 0
        %1794 = vmatprep.subr.bf16.mxu0 0
        %1795 = vmatpush1.bf16.msra.mxu0 %v1776
        %1796 = vmatprep.subr.bf16.mxu0 0
        %1797 = vmatpush1.bf16.msra.mxu0 %v1775
        %1798 = vmatprep.subr.bf16.mxu0 0
        %1799 = vmatpush2.bf16.msra.mxu0 0
        %1800 = vmatprep.subr.bf16.mxu0 0
        %1801 = vmatpush2.bf16.msra.mxu0 0
        %1802 = vmatprep.subr.bf16.mxu0 0
        %1803 = vmatpush2.bf16.msra.mxu0 0
        %1804 = vmatprep.subr.bf16.mxu0 0
        %1805 = vmatpush2.bf16.msra.mxu0 0
        %1806 = vmatprep.subr.bf16.mxu0 0
        %1807 = vmatpush2.bf16.msra.mxu0 0
        %1808 = vmatprep.subr.bf16.mxu0 0
        %1809 = vmatpush2.bf16.msra.mxu0 0
        %1810 = vmatprep.subr.bf16.mxu0 0
        %1811 = vmatpush2.bf16.msra.mxu0 0
        %1812 = vmatprep.subr.bf16.mxu0 0
        %1813 = vmatpush2.bf16.msra.mxu0 0
        %1814 = vmatprep.mubr.bf16.mxu0 0
        %1815 = vmatmul.mubr.bf16.gmra.mxu0 %v1780
        %v1816 = vpop.f32.mrf.mxu0
        %v1817 = vadd.f32 0.0, %v1816
        %v1818 = vpop.f32.mrf.mxu0
        %v1819 = vpop.f32.mrf.mxu0
        %v1820 = vadd.f32 0.0, %v1819
        %v1821 = vpop.f32.mrf.mxu0
        %1822 = vdwg.mxu0
        %v1823 = vmul.f32 %v1817, %v1742
        %v1824 = vmul.f32 %v1820, %v1744
        %v1825 = vpack.c.bf16 %v1824, %v1823
        %s1826 = scalar_lea.vmem [#allocation2], 48
        %v1827 = vld [vmem:[%s1826] sm:$0xf]
        %v1828 = vld [vmem:[%s1826 + $0x4] sm:$0xf]
        %v1829 = vld [vmem:[%s1826 + $0x8] sm:$0xf]
        %v1830 = vld [vmem:[%s1826 + $0xc] sm:$0xf]
        %1831 = vrot.lane.b32.xlu0 %v1311, 32
        %v1832 = vpop.permute.xlu0 %1831
        %v1837 = vunpack.c.l.b16 %v1827
        %v1838 = vunpack.c.l.b16 %v1828
        %v1839 = vunpack.c.l.b16 %v1829
        %v1840 = vunpack.c.l.b16 %v1830
        %v1841 = vpack.c.b16 %v1838, %v1837
        %v1842 = vpack.c.b16 %v1840, %v1839
        %v1844 = vsel %vm1326, %v1832, 0
        %v1847 = vsel %vm1326, %v1841, 0
        %v1850 = vsel %vm1326, %v1842, 0
        %1852 = vmatprep.subr.bf16.mxu0 0
        %1853 = vmatpush1.bf16.xpose.msra.mxu0 0
        %1854 = vmatprep.subr.bf16.mxu0 0
        %1855 = vmatpush1.bf16.xpose.msra.mxu0 0
        %1856 = vmatprep.subr.bf16.mxu0 0
        %1857 = vmatpush1.bf16.xpose.msra.mxu0 0
        %1858 = vmatprep.subr.bf16.mxu0 0
        %1859 = vmatpush1.bf16.xpose.msra.mxu0 0
        %1860 = vmatprep.subr.bf16.mxu0 0
        %1861 = vmatpush1.bf16.xpose.msra.mxu0 0
        %1862 = vmatprep.subr.bf16.mxu0 0
        %1863 = vmatpush1.bf16.xpose.msra.mxu0 0
        %1864 = vmatprep.subr.bf16.mxu0 0
        %1865 = vmatpush1.bf16.xpose.msra.mxu0 %v1850
        %1866 = vmatprep.subr.bf16.mxu0 0
        %1867 = vmatpush1.bf16.xpose.msra.mxu0 %v1847
        %1868 = vmatprep.subr.bf16.mxu0 0
        %1869 = vmatpush2.bf16.xpose.msra.mxu0 0
        %1870 = vmatprep.subr.bf16.mxu0 0
        %1871 = vmatpush2.bf16.xpose.msra.mxu0 0
        %1872 = vmatprep.subr.bf16.mxu0 0
        %1873 = vmatpush2.bf16.xpose.msra.mxu0 0
        %1874 = vmatprep.subr.bf16.mxu0 0
        %1875 = vmatpush2.bf16.xpose.msra.mxu0 0
        %1876 = vmatprep.subr.bf16.mxu0 0
        %1877 = vmatpush2.bf16.xpose.msra.mxu0 0
        %1878 = vmatprep.subr.bf16.mxu0 0
        %1879 = vmatpush2.bf16.xpose.msra.mxu0 0
        %1880 = vmatprep.subr.bf16.mxu0 0
        %1881 = vmatpush2.bf16.xpose.msra.mxu0 0
        %1882 = vmatprep.subr.bf16.mxu0 0
        %1883 = vmatpush2.bf16.xpose.msra.mxu0 0
        %1884 = vmatprep.mubr.bf16.mxu0 0
        %1885 = vmatmul.mubr.bf16.gmra.mxu0 %v1844
        %v1886 = vpop.f32.mrf.mxu0
        %v1887 = vadd.f32 0.0, %v1886
        %v1888 = vpop.f32.mrf.mxu0
        %v1889 = vpop.f32.mrf.mxu0
        %v1890 = vadd.f32 0.0, %v1889
        %v1891 = vpop.f32.mrf.mxu0
        %1892 = vdwg.mxu0
        %v1893 = vmul.f32 %v1887, 0.17677669
        %v1894 = vmul.f32 %v1890, 0.17677669
        %v1895 = vsel %vm1326, %v1893, -inf
        %1896 = vmax.xlane.f32.xlu0 %v1895
        %v1897 = vpop.xlane.xlu0 %1896
        %v1898 = vsel %vm1326, %v1894, -inf
        %1899 = vmax.xlane.f32.xlu0 %v1898
        %v1900 = vpop.xlane.xlu0 %1899
        %v1901 = vsub.f32 %v1893, %v1897
        %v1902 = vsub.f32 %v1894, %v1900
        %v1903 = vmul.f32 %v1901, 1.442695
        %v1904 = vpow.pop %v1903
        %v1905 = vmul.f32 %v1902, 1.442695
        %v1906 = vpow.pop %v1905
        %v1907 = vsel %vm1326, %v1904, 0.0
        %1908 = vadd.xlane.f32.xlu0 %v1907
        %v1909 = vpop.xlane.xlu0 %1908
        %v1910 = vsel %vm1326, %v1906, 0.0
        %1911 = vadd.xlane.f32.xlu0 %v1910
        %v1912 = vpop.xlane.xlu0 %1911
        %v1913 = vrcp.pop %v1909
        %v1914 = vmul.f32 1.0, %v1913
        %v1915 = vrcp.pop %v1912
        %v1916 = vmul.f32 1.0, %v1915
        %v1917 = vlog2.pop %v1909
        %v1918 = vmul.f32 %v1917, 0.6931472
        %v1919 = vlog2.pop %v1912
        %v1920 = vmul.f32 %v1919, 0.6931472
        %v1921 = vmul.f32 %v1904, %v1901
        %v1922 = vmul.f32 %v1906, %v1902
        %v1923 = vsel %vm1326, %v1921, 0.0
        %1924 = vadd.xlane.f32.xlu0 %v1923
        %v1925 = vpop.xlane.xlu0 %1924
        %v1926 = vsel %vm1326, %v1922, 0.0
        %1927 = vadd.xlane.f32.xlu0 %v1926
        %v1928 = vpop.xlane.xlu0 %1927
        %v1929 = vmul.f32 %v1925, %v1914
        %v1930 = vmul.f32 %v1928, %v1916
        %v1931 = vsub.f32 %v1918, %v1929
        %v1932 = vsub.f32 %v1920, %v1930
        %v1933 = vpack.c.bf16 %v1906, %v1904
        %s1934 = scalar_lea.vmem [#allocation3], 48
        %v1935 = vld [vmem:[%s1934] sm:$0xf]
        %v1936 = vld [vmem:[%s1934 + $0x4] sm:$0xf]
        %v1937 = vld [vmem:[%s1934 + $0x8] sm:$0xf]
        %v1938 = vld [vmem:[%s1934 + $0xc] sm:$0xf]
        %v1943 = vunpack.c.l.b16 %v1935
        %v1944 = vunpack.c.l.b16 %v1936
        %v1945 = vunpack.c.l.b16 %v1937
        %v1946 = vunpack.c.l.b16 %v1938
        %v1947 = vpack.c.b16 %v1944, %v1943
        %v1948 = vpack.c.b16 %v1946, %v1945
        %v1952 = vsel %vm1326, %v1933, 0
        %1954 = vmatprep.subr.bf16.mxu0 0
        %1955 = vmatpush1.bf16.msra.mxu0 0
        %1956 = vmatprep.subr.bf16.mxu0 0
        %1957 = vmatpush1.bf16.msra.mxu0 0
        %1958 = vmatprep.subr.bf16.mxu0 0
        %1959 = vmatpush1.bf16.msra.mxu0 0
        %1960 = vmatprep.subr.bf16.mxu0 0
        %1961 = vmatpush1.bf16.msra.mxu0 0
        %1962 = vmatprep.subr.bf16.mxu0 0
        %1963 = vmatpush1.bf16.msra.mxu0 0
        %1964 = vmatprep.subr.bf16.mxu0 0
        %1965 = vmatpush1.bf16.msra.mxu0 0
        %1966 = vmatprep.subr.bf16.mxu0 0
        %1967 = vmatpush1.bf16.msra.mxu0 %v1948
        %1968 = vmatprep.subr.bf16.mxu0 0
        %1969 = vmatpush1.bf16.msra.mxu0 %v1947
        %1970 = vmatprep.subr.bf16.mxu0 0
        %1971 = vmatpush2.bf16.msra.mxu0 0
        %1972 = vmatprep.subr.bf16.mxu0 0
        %1973 = vmatpush2.bf16.msra.mxu0 0
        %1974 = vmatprep.subr.bf16.mxu0 0
        %1975 = vmatpush2.bf16.msra.mxu0 0
        %1976 = vmatprep.subr.bf16.mxu0 0
        %1977 = vmatpush2.bf16.msra.mxu0 0
        %1978 = vmatprep.subr.bf16.mxu0 0
        %1979 = vmatpush2.bf16.msra.mxu0 0
        %1980 = vmatprep.subr.bf16.mxu0 0
        %1981 = vmatpush2.bf16.msra.mxu0 0
        %1982 = vmatprep.subr.bf16.mxu0 0
        %1983 = vmatpush2.bf16.msra.mxu0 0
        %1984 = vmatprep.subr.bf16.mxu0 0
        %1985 = vmatpush2.bf16.msra.mxu0 0
        %1986 = vmatprep.mubr.bf16.mxu0 0
        %1987 = vmatmul.mubr.bf16.gmra.mxu0 %v1952
        %v1988 = vpop.f32.mrf.mxu0
        %v1989 = vadd.f32 0.0, %v1988
        %v1990 = vpop.f32.mrf.mxu0
        %v1991 = vpop.f32.mrf.mxu0
        %v1992 = vadd.f32 0.0, %v1991
        %v1993 = vpop.f32.mrf.mxu0
        %1994 = vdwg.mxu0
        %v1995 = vmul.f32 %v1989, %v1914
        %v1996 = vmul.f32 %v1992, %v1916
        %v1997 = vpack.c.bf16 %v1996, %v1995
        %vm1998 = vcmask 7168
        %v1999 = vsel %vm1998, %v1415, %v1587
        %v2000 = vsel %vm1998, %v1416, %v1588
        %vm2001 = vcmask 15360
        %v2002 = vsel %vm2001, %v1999, %v1759
        %v2003 = vsel %vm2001, %v2000, %v1760
        %vm2004 = vcmask 23552
        %v2005 = vsel %vm2004, %v2002, %v1931
        %v2006 = vsel %vm2004, %v2003, %v1932
        %vm2007 = vcmask 31744
        %2008 = vst.msk [vmem:[%s790] sm:$0xff] %vm2007, %v2005
        %2009 = vst.msk [vmem:[%s790 + $0x8] sm:$0xff] %vm2007, %v2006
        %2011 = vrot.lane.b32.xlu0 %v1653, 32
        %v2012 = vpop.permute.xlu0 %2011
        %2014 = vrot.lane.b32.xlu0 %v1825, 64
        %v2015 = vpop.permute.xlu0 %2014
        %2017 = vrot.lane.b32.xlu0 %v1997, 96
        %v2018 = vpop.permute.xlu0 %2017
        %v2021 = vsel %vm1326, %v1480, %v2012
        %vm2022 = vcmask 523264
        %v2024 = vsel %vm2022, %v2021, %v2015
        %vm2025 = vcmask 785408
        %v2027 = vsel %vm2025, %v2024, %v2018
        %v2029 = vld [vmem:[#allocation13] sm:$0xf]
        %v2030 = vld [vmem:[#allocation13 + $0x4] sm:$0xf]
        %v2031 = vld [vmem:[#allocation13 + $0x8] sm:$0xf]
        %v2032 = vld [vmem:[#allocation13 + $0xc] sm:$0xf]
        %v2033 = vld [vmem:[#allocation13 + $0x10] sm:$0xf]
        %v2034 = vld [vmem:[#allocation13 + $0x14] sm:$0xf]
        %v2035 = vld [vmem:[#allocation13 + $0x18] sm:$0xf]
        %v2036 = vld [vmem:[#allocation13 + $0x1c] sm:$0xf]
        %v2037 = vld [vmem:[#allocation13 + $0x20] sm:$0xf]
        %v2038 = vld [vmem:[#allocation13 + $0x24] sm:$0xf]
        %v2039 = vld [vmem:[#allocation13 + $0x28] sm:$0xf]
        %v2040 = vld [vmem:[#allocation13 + $0x2c] sm:$0xf]
        %v2041 = vld [vmem:[#allocation13 + $0x30] sm:$0xf]
        %v2042 = vld [vmem:[#allocation13 + $0x34] sm:$0xf]
        %v2043 = vld [vmem:[#allocation13 + $0x38] sm:$0xf]
        %v2044 = vld [vmem:[#allocation13 + $0x3c] sm:$0xf]
        %v2045 = vld [vmem:[%s9] sm:$0x1]
        %v2047 = vlaneseq
        %v2048 = vshrl.u32 %v2047, 7
        %v2049 = vsub.s32 0, %v2048
        %v2050 = vrot.slane %v2045, %v2049
        %v2068 = vunpack.c.l.b16 %v2029
        %v2069 = vunpack.c.l.b16 %v2030
        %v2070 = vunpack.c.l.b16 %v2031
        %v2071 = vunpack.c.l.b16 %v2032
        %v2072 = vunpack.c.l.b16 %v2033
        %v2073 = vunpack.c.l.b16 %v2034
        %v2074 = vunpack.c.l.b16 %v2035
        %v2075 = vunpack.c.l.b16 %v2036
        %v2076 = vunpack.c.l.b16 %v2037
        %v2077 = vunpack.c.l.b16 %v2038
        %v2078 = vunpack.c.l.b16 %v2039
        %v2079 = vunpack.c.l.b16 %v2040
        %v2080 = vunpack.c.l.b16 %v2041
        %v2081 = vunpack.c.l.b16 %v2042
        %v2082 = vunpack.c.l.b16 %v2043
        %v2083 = vunpack.c.l.b16 %v2044
        %v2084 = vpack.c.b16 %v2069, %v2068
        %v2085 = vpack.c.b16 %v2071, %v2070
        %v2086 = vpack.c.b16 %v2073, %v2072
        %v2087 = vpack.c.b16 %v2075, %v2074
        %v2088 = vpack.c.b16 %v2077, %v2076
        %v2089 = vpack.c.b16 %v2079, %v2078
        %v2090 = vpack.c.b16 %v2081, %v2080
        %v2091 = vpack.c.b16 %v2083, %v2082
        %2100 = vmatprep.subr.bf16.mxu0 0
        %2101 = vmatpush1.bf16.msra.mxu0 %v2091
        %2102 = vmatprep.subr.bf16.mxu0 0
        %2103 = vmatpush1.bf16.msra.mxu0 %v2090
        %2104 = vmatprep.subr.bf16.mxu0 0
        %2105 = vmatpush1.bf16.msra.mxu0 %v2089
        %2106 = vmatprep.subr.bf16.mxu0 0
        %2107 = vmatpush1.bf16.msra.mxu0 %v2088
        %2108 = vmatprep.subr.bf16.mxu0 0
        %2109 = vmatpush1.bf16.msra.mxu0 %v2087
        %2110 = vmatprep.subr.bf16.mxu0 0
        %2111 = vmatpush1.bf16.msra.mxu0 %v2086
        %2112 = vmatprep.subr.bf16.mxu0 0
        %2113 = vmatpush1.bf16.msra.mxu0 %v2085
        %2114 = vmatprep.subr.bf16.mxu0 0
        %2115 = vmatpush1.bf16.msra.mxu0 %v2084
        %2116 = vmatprep.subr.bf16.mxu0 0
        %2117 = vmatpush2.bf16.msra.mxu0 0
        %2118 = vmatprep.subr.bf16.mxu0 0
        %2119 = vmatpush2.bf16.msra.mxu0 0
        %2120 = vmatprep.subr.bf16.mxu0 0
        %2121 = vmatpush2.bf16.msra.mxu0 0
        %2122 = vmatprep.subr.bf16.mxu0 0
        %2123 = vmatpush2.bf16.msra.mxu0 0
        %2124 = vmatprep.subr.bf16.mxu0 0
        %2125 = vmatpush2.bf16.msra.mxu0 0
        %2126 = vmatprep.subr.bf16.mxu0 0
        %2127 = vmatpush2.bf16.msra.mxu0 0
        %2128 = vmatprep.subr.bf16.mxu0 0
        %2129 = vmatpush2.bf16.msra.mxu0 0
        %2130 = vmatprep.subr.bf16.mxu0 0
        %2131 = vmatpush2.bf16.msra.mxu0 0
        %2132 = vmatprep.mubr.bf16.mxu0 0
        %2133 = vmatmul.mubr.bf16.gmra.mxu0 %v2027
        %v2134 = vpop.f32.mrf.mxu0
        %v2135 = vadd.f32 %v2050, %v2134
        %v2136 = vpop.f32.mrf.mxu0
        %v2137 = vpop.f32.mrf.mxu0
        %v2138 = vadd.f32 %v2050, %v2137
        %v2139 = vpop.f32.mrf.mxu0
        %2140 = vdwg.mxu0
        %v2141 = vadd.f32 %v1196, %v2135
        %v2142 = vadd.f32 %v1197, %v2138
        %v2143 = vld [vmem:[%s10] sm:$0x1]
        %v2144 = vld [vmem:[%s11] sm:$0x1]
        %2145 = vadd.xlane.f32.xlu0 %v2141
        %v2146 = vpop.xlane.xlu0 %2145
        %2147 = vadd.xlane.f32.xlu0 %v2142
        %v2148 = vpop.xlane.xlu0 %2147
        %v2149 = vrcp.pop 128.0
        %v2150 = vmul.f32 %v2146, %v2149
        %v2151 = vmul.f32 %v2148, %v2149
        %v2152 = vsub.f32 %v2141, %v2150
        %v2153 = vsub.f32 %v2142, %v2151
        %v2154 = vmul.f32 %v2152, %v2152
        %v2155 = vmul.f32 %v2153, %v2153
        %2156 = vadd.xlane.f32.xlu0 %v2154
        %v2157 = vpop.xlane.xlu0 %2156
        %2158 = vadd.xlane.f32.xlu0 %v2155
        %v2159 = vpop.xlane.xlu0 %2158
        %v2160 = vmul.f32 %v2157, %v2149
        %v2161 = vmul.f32 %v2159, %v2149
        %v2162 = vadd.f32 %v2160, 1e-05
        %v2163 = vadd.f32 %v2161, 1e-05
        %v2164 = vrsqrt.pop %v2162
        %v2165 = vrsqrt.pop %v2163
        %v2166 = vmul.f32 %v2152, %v2164
        %v2167 = vmul.f32 %v2153, %v2165
        %v2169 = vlaneseq
        %v2170 = vshrl.u32 %v2169, 7
        %v2171 = vsub.s32 0, %v2170
        %v2172 = vrot.slane %v2143, %v2171
        %v2174 = vmul.f32 %v2166, %v2172
        %v2175 = vmul.f32 %v2167, %v2172
        %v2177 = vlaneseq
        %v2178 = vshrl.u32 %v2177, 7
        %v2179 = vsub.s32 0, %v2178
        %v2180 = vrot.slane %v2144, %v2179
        %v2182 = vadd.f32 %v2174, %v2180
        %v2183 = vadd.f32 %v2175, %v2180
        %v2184 = vpack.c.bf16 %v2183, %v2182
        %v2185 = vld [vmem:[#allocation15] sm:$0xff]
        %v2186 = vld [vmem:[#allocation15 + $0x8] sm:$0xff]
        %v2187 = vld [vmem:[#allocation15 + $0x10] sm:$0xff]
        %v2188 = vld [vmem:[#allocation15 + $0x18] sm:$0xff]
        %v2189 = vld [vmem:[#allocation15 + $0x20] sm:$0xff]
        %v2190 = vld [vmem:[#allocation15 + $0x28] sm:$0xff]
        %v2191 = vld [vmem:[#allocation15 + $0x30] sm:$0xff]
        %v2192 = vld [vmem:[#allocation15 + $0x38] sm:$0xff]
        %v2193 = vld [vmem:[#allocation15 + $0x40] sm:$0xff]
        %v2194 = vld [vmem:[#allocation15 + $0x48] sm:$0xff]
        %v2195 = vld [vmem:[#allocation15 + $0x50] sm:$0xff]
        %v2196 = vld [vmem:[#allocation15 + $0x58] sm:$0xff]
        %v2197 = vld [vmem:[#allocation15 + $0x60] sm:$0xff]
        %v2198 = vld [vmem:[#allocation15 + $0x68] sm:$0xff]
        %v2199 = vld [vmem:[#allocation15 + $0x70] sm:$0xff]
        %v2200 = vld [vmem:[#allocation15 + $0x78] sm:$0xff]
        %v2201 = vld [vmem:[#allocation15 + $0x80] sm:$0xff]
        %v2202 = vld [vmem:[#allocation15 + $0x88] sm:$0xff]
        %v2203 = vld [vmem:[#allocation15 + $0x90] sm:$0xff]
        %v2204 = vld [vmem:[#allocation15 + $0x98] sm:$0xff]
        %v2205 = vld [vmem:[#allocation15 + $0xa0] sm:$0xff]
        %v2206 = vld [vmem:[#allocation15 + $0xa8] sm:$0xff]
        %v2207 = vld [vmem:[#allocation15 + $0xb0] sm:$0xff]
        %v2208 = vld [vmem:[#allocation15 + $0xb8] sm:$0xff]
        %v2209 = vld [vmem:[#allocation15 + $0xc0] sm:$0xff]
        %v2210 = vld [vmem:[#allocation15 + $0xc8] sm:$0xff]
        %v2211 = vld [vmem:[#allocation15 + $0xd0] sm:$0xff]
        %v2212 = vld [vmem:[#allocation15 + $0xd8] sm:$0xff]
        %v2213 = vld [vmem:[#allocation15 + $0xe0] sm:$0xff]
        %v2214 = vld [vmem:[#allocation15 + $0xe8] sm:$0xff]
        %v2215 = vld [vmem:[#allocation15 + $0xf0] sm:$0xff]
        %v2216 = vld [vmem:[#allocation15 + $0xf8] sm:$0xff]
        %v2217 = vld [vmem:[%s13] sm:$0xf]
        %v2219 = vlaneseq
        %v2220 = vshrl.u32 %v2219, 7
        %v2221 = vsub.s32 0, %v2220
        %v2222 = vrot.slane %v2217, %v2221
        %v2223 = vlaneseq
        %v2224 = vshrl.u32 %v2223, 7
        %v2225 = vsub.s32 1, %v2224
        %v2226 = vrot.slane %v2217, %v2225
        %v2227 = vlaneseq
        %v2228 = vshrl.u32 %v2227, 7
        %v2229 = vsub.s32 2, %v2228
        %v2230 = vrot.slane %v2217, %v2229
        %v2231 = vlaneseq
        %v2232 = vshrl.u32 %v2231, 7
        %v2233 = vsub.s32 3, %v2232
        %v2234 = vrot.slane %v2217, %v2233
        %v2271 = vunpack.c.l.b16 %v2185
        %v2272 = vunpack.c.h.b16 %v2185
        %v2273 = vunpack.c.l.b16 %v2186
        %v2274 = vunpack.c.h.b16 %v2186
        %v2275 = vunpack.c.l.b16 %v2187
        %v2276 = vunpack.c.h.b16 %v2187
        %v2277 = vunpack.c.l.b16 %v2188
        %v2278 = vunpack.c.h.b16 %v2188
        %v2279 = vunpack.c.l.b16 %v2189
        %v2280 = vunpack.c.h.b16 %v2189
        %v2281 = vunpack.c.l.b16 %v2190
        %v2282 = vunpack.c.h.b16 %v2190
        %v2283 = vunpack.c.l.b16 %v2191
        %v2284 = vunpack.c.h.b16 %v2191
        %v2285 = vunpack.c.l.b16 %v2192
        %v2286 = vunpack.c.h.b16 %v2192
        %v2287 = vunpack.c.l.b16 %v2193
        %v2288 = vunpack.c.h.b16 %v2193
        %v2289 = vunpack.c.l.b16 %v2194
        %v2290 = vunpack.c.h.b16 %v2194
        %v2291 = vunpack.c.l.b16 %v2195
        %v2292 = vunpack.c.h.b16 %v2195
        %v2293 = vunpack.c.l.b16 %v2196
        %v2294 = vunpack.c.h.b16 %v2196
        %v2295 = vunpack.c.l.b16 %v2197
        %v2296 = vunpack.c.h.b16 %v2197
        %v2297 = vunpack.c.l.b16 %v2198
        %v2298 = vunpack.c.h.b16 %v2198
        %v2299 = vunpack.c.l.b16 %v2199
        %v2300 = vunpack.c.h.b16 %v2199
        %v2301 = vunpack.c.l.b16 %v2200
        %v2302 = vunpack.c.h.b16 %v2200
        %v2303 = vunpack.c.l.b16 %v2201
        %v2304 = vunpack.c.h.b16 %v2201
        %v2305 = vunpack.c.l.b16 %v2202
        %v2306 = vunpack.c.h.b16 %v2202
        %v2307 = vunpack.c.l.b16 %v2203
        %v2308 = vunpack.c.h.b16 %v2203
        %v2309 = vunpack.c.l.b16 %v2204
        %v2310 = vunpack.c.h.b16 %v2204
        %v2311 = vunpack.c.l.b16 %v2205
        %v2312 = vunpack.c.h.b16 %v2205
        %v2313 = vunpack.c.l.b16 %v2206
        %v2314 = vunpack.c.h.b16 %v2206
        %v2315 = vunpack.c.l.b16 %v2207
        %v2316 = vunpack.c.h.b16 %v2207
        %v2317 = vunpack.c.l.b16 %v2208
        %v2318 = vunpack.c.h.b16 %v2208
        %v2319 = vunpack.c.l.b16 %v2209
        %v2320 = vunpack.c.h.b16 %v2209
        %v2321 = vunpack.c.l.b16 %v2210
        %v2322 = vunpack.c.h.b16 %v2210
        %v2323 = vunpack.c.l.b16 %v2211
        %v2324 = vunpack.c.h.b16 %v2211
        %v2325 = vunpack.c.l.b16 %v2212
        %v2326 = vunpack.c.h.b16 %v2212
        %v2327 = vunpack.c.l.b16 %v2213
        %v2328 = vunpack.c.h.b16 %v2213
        %v2329 = vunpack.c.l.b16 %v2214
        %v2330 = vunpack.c.h.b16 %v2214
        %v2331 = vunpack.c.l.b16 %v2215
        %v2332 = vunpack.c.h.b16 %v2215
        %v2333 = vunpack.c.l.b16 %v2216
        %v2334 = vunpack.c.h.b16 %v2216
        %v2335 = vpack.c.b16 %v2275, %v2271
        %v2336 = vpack.c.b16 %v2276, %v2272
        %v2337 = vpack.c.b16 %v2277, %v2273
        %v2338 = vpack.c.b16 %v2278, %v2274
        %v2339 = vpack.c.b16 %v2283, %v2279
        %v2340 = vpack.c.b16 %v2284, %v2280
        %v2341 = vpack.c.b16 %v2285, %v2281
        %v2342 = vpack.c.b16 %v2286, %v2282
        %v2343 = vpack.c.b16 %v2291, %v2287
        %v2344 = vpack.c.b16 %v2292, %v2288
        %v2345 = vpack.c.b16 %v2293, %v2289
        %v2346 = vpack.c.b16 %v2294, %v2290
        %v2347 = vpack.c.b16 %v2299, %v2295
        %v2348 = vpack.c.b16 %v2300, %v2296
        %v2349 = vpack.c.b16 %v2301, %v2297
        %v2350 = vpack.c.b16 %v2302, %v2298
        %v2351 = vpack.c.b16 %v2307, %v2303
        %v2352 = vpack.c.b16 %v2308, %v2304
        %v2353 = vpack.c.b16 %v2309, %v2305
        %v2354 = vpack.c.b16 %v2310, %v2306
        %v2355 = vpack.c.b16 %v2315, %v2311
        %v2356 = vpack.c.b16 %v2316, %v2312
        %v2357 = vpack.c.b16 %v2317, %v2313
        %v2358 = vpack.c.b16 %v2318, %v2314
        %v2359 = vpack.c.b16 %v2323, %v2319
        %v2360 = vpack.c.b16 %v2324, %v2320
        %v2361 = vpack.c.b16 %v2325, %v2321
        %v2362 = vpack.c.b16 %v2326, %v2322
        %v2363 = vpack.c.b16 %v2331, %v2327
        %v2364 = vpack.c.b16 %v2332, %v2328
        %v2365 = vpack.c.b16 %v2333, %v2329
        %v2366 = vpack.c.b16 %v2334, %v2330
        %2399 = vmatprep.subr.bf16.mxu0 %v2364
        %2400 = vmatpush1.bf16.msra.mxu0 %v2363
        %2401 = vmatprep.subr.bf16.mxu0 %v2360
        %2402 = vmatpush1.bf16.msra.mxu0 %v2359
        %2403 = vmatprep.subr.bf16.mxu0 %v2356
        %2404 = vmatpush1.bf16.msra.mxu0 %v2355
        %2405 = vmatprep.subr.bf16.mxu0 %v2352
        %2406 = vmatpush1.bf16.msra.mxu0 %v2351
        %2407 = vmatprep.subr.bf16.mxu0 %v2348
        %2408 = vmatpush1.bf16.msra.mxu0 %v2347
        %2409 = vmatprep.subr.bf16.mxu0 %v2344
        %2410 = vmatpush1.bf16.msra.mxu0 %v2343
        %2411 = vmatprep.subr.bf16.mxu0 %v2340
        %2412 = vmatpush1.bf16.msra.mxu0 %v2339
        %2413 = vmatprep.subr.bf16.mxu0 %v2336
        %2414 = vmatpush1.bf16.msra.mxu0 %v2335
        %2415 = vmatprep.subr.bf16.mxu0 0
        %2416 = vmatpush2.bf16.msra.mxu0 0
        %2417 = vmatprep.subr.bf16.mxu0 0
        %2418 = vmatpush2.bf16.msra.mxu0 0
        %2419 = vmatprep.subr.bf16.mxu0 0
        %2420 = vmatpush2.bf16.msra.mxu0 0
        %2421 = vmatprep.subr.bf16.mxu0 0
        %2422 = vmatpush2.bf16.msra.mxu0 0
        %2423 = vmatprep.subr.bf16.mxu0 0
        %2424 = vmatpush2.bf16.msra.mxu0 0
        %2425 = vmatprep.subr.bf16.mxu0 0
        %2426 = vmatpush2.bf16.msra.mxu0 0
        %2427 = vmatprep.subr.bf16.mxu0 0
        %2428 = vmatpush2.bf16.msra.mxu0 0
        %2429 = vmatprep.subr.bf16.mxu0 0
        %2430 = vmatpush2.bf16.msra.mxu0 0
        %2431 = vmatprep.mubr.bf16.mxu0 0
        %2432 = vmatmul.mubr.bf16.gmra.mxu0 %v2184
        %v2433 = vpop.f32.mrf.mxu0
        %v2434 = vadd.f32 %v2222, %v2433
        %v2435 = vpop.f32.mrf.mxu0
        %v2436 = vadd.f32 %v2226, %v2435
        %v2437 = vpop.f32.mrf.mxu0
        %v2438 = vadd.f32 %v2222, %v2437
        %v2439 = vpop.f32.mrf.mxu0
        %v2440 = vadd.f32 %v2226, %v2439
        %2441 = vdwg.mxu0
        %2442 = vmatprep.subr.bf16.mxu0 %v2366
        %2443 = vmatpush1.bf16.msra.mxu0 %v2365
        %2444 = vmatprep.subr.bf16.mxu0 %v2362
        %2445 = vmatpush1.bf16.msra.mxu0 %v2361
        %2446 = vmatprep.subr.bf16.mxu0 %v2358
        %2447 = vmatpush1.bf16.msra.mxu0 %v2357
        %2448 = vmatprep.subr.bf16.mxu0 %v2354
        %2449 = vmatpush1.bf16.msra.mxu0 %v2353
        %2450 = vmatprep.subr.bf16.mxu0 %v2350
        %2451 = vmatpush1.bf16.msra.mxu0 %v2349
        %2452 = vmatprep.subr.bf16.mxu0 %v2346
        %2453 = vmatpush1.bf16.msra.mxu0 %v2345
        %2454 = vmatprep.subr.bf16.mxu0 %v2342
        %2455 = vmatpush1.bf16.msra.mxu0 %v2341
        %2456 = vmatprep.subr.bf16.mxu0 %v2338
        %2457 = vmatpush1.bf16.msra.mxu0 %v2337
        %2458 = vmatprep.subr.bf16.mxu0 0
        %2459 = vmatpush2.bf16.msra.mxu0 0
        %2460 = vmatprep.subr.bf16.mxu0 0
        %2461 = vmatpush2.bf16.msra.mxu0 0
        %2462 = vmatprep.subr.bf16.mxu0 0
        %2463 = vmatpush2.bf16.msra.mxu0 0
        %2464 = vmatprep.subr.bf16.mxu0 0
        %2465 = vmatpush2.bf16.msra.mxu0 0
        %2466 = vmatprep.subr.bf16.mxu0 0
        %2467 = vmatpush2.bf16.msra.mxu0 0
        %2468 = vmatprep.subr.bf16.mxu0 0
        %2469 = vmatpush2.bf16.msra.mxu0 0
        %2470 = vmatprep.subr.bf16.mxu0 0
        %2471 = vmatpush2.bf16.msra.mxu0 0
        %2472 = vmatprep.subr.bf16.mxu0 0
        %2473 = vmatpush2.bf16.msra.mxu0 0
        %2474 = vmatprep.mubr.bf16.mxu0 0
        %2475 = vmatmul.mubr.bf16.gmra.mxu0 %v2184
        %v2476 = vpop.f32.mrf.mxu0
        %v2477 = vadd.f32 %v2230, %v2476
        %v2478 = vpop.f32.mrf.mxu0
        %v2479 = vadd.f32 %v2234, %v2478
        %v2480 = vpop.f32.mrf.mxu0
        %v2481 = vadd.f32 %v2230, %v2480
        %v2482 = vpop.f32.mrf.mxu0
        %v2483 = vadd.f32 %v2234, %v2482
        %2484 = vdwg.mxu0
        %v2485 = vmax.f32 %v2434, 0.0
        %v2486 = vmax.f32 %v2436, 0.0
        %v2487 = vmax.f32 %v2477, 0.0
        %v2488 = vmax.f32 %v2479, 0.0
        %v2489 = vmax.f32 %v2438, 0.0
        %v2490 = vmax.f32 %v2440, 0.0
        %v2491 = vmax.f32 %v2481, 0.0
        %v2492 = vmax.f32 %v2483, 0.0
        %v2493 = vpack.c.bf16 %v2489, %v2485
        %v2494 = vpack.c.bf16 %v2490, %v2486
        %v2495 = vpack.c.bf16 %v2491, %v2487
        %v2496 = vpack.c.bf16 %v2492, %v2488
        %v2497 = vld [vmem:[#allocation16] sm:$0xf]
        %v2498 = vld [vmem:[#allocation16 + $0x4] sm:$0xf]
        %v2499 = vld [vmem:[#allocation16 + $0x8] sm:$0xf]
        %v2500 = vld [vmem:[#allocation16 + $0xc] sm:$0xf]
        %v2501 = vld [vmem:[#allocation16 + $0x10] sm:$0xf]
        %v2502 = vld [vmem:[#allocation16 + $0x14] sm:$0xf]
        %v2503 = vld [vmem:[#allocation16 + $0x18] sm:$0xf]
        %v2504 = vld [vmem:[#allocation16 + $0x1c] sm:$0xf]
        %v2505 = vld [vmem:[#allocation16 + $0x20] sm:$0xf]
        %v2506 = vld [vmem:[#allocation16 + $0x24] sm:$0xf]
        %v2507 = vld [vmem:[#allocation16 + $0x28] sm:$0xf]
        %v2508 = vld [vmem:[#allocation16 + $0x2c] sm:$0xf]
        %v2509 = vld [vmem:[#allocation16 + $0x30] sm:$0xf]
        %v2510 = vld [vmem:[#allocation16 + $0x34] sm:$0xf]
        %v2511 = vld [vmem:[#allocation16 + $0x38] sm:$0xf]
        %v2512 = vld [vmem:[#allocation16 + $0x3c] sm:$0xf]
        %v2513 = vld [vmem:[#allocation16 + $0x40] sm:$0xf]
        %v2514 = vld [vmem:[#allocation16 + $0x44] sm:$0xf]
        %v2515 = vld [vmem:[#allocation16 + $0x48] sm:$0xf]
        %v2516 = vld [vmem:[#allocation16 + $0x4c] sm:$0xf]
        %v2517 = vld [vmem:[#allocation16 + $0x50] sm:$0xf]
        %v2518 = vld [vmem:[#allocation16 + $0x54] sm:$0xf]
        %v2519 = vld [vmem:[#allocation16 + $0x58] sm:$0xf]
        %v2520 = vld [vmem:[#allocation16 + $0x5c] sm:$0xf]
        %v2521 = vld [vmem:[#allocation16 + $0x60] sm:$0xf]
        %v2522 = vld [vmem:[#allocation16 + $0x64] sm:$0xf]
        %v2523 = vld [vmem:[#allocation16 + $0x68] sm:$0xf]
        %v2524 = vld [vmem:[#allocation16 + $0x6c] sm:$0xf]
        %v2525 = vld [vmem:[#allocation16 + $0x70] sm:$0xf]
        %v2526 = vld [vmem:[#allocation16 + $0x74] sm:$0xf]
        %v2527 = vld [vmem:[#allocation16 + $0x78] sm:$0xf]
        %v2528 = vld [vmem:[#allocation16 + $0x7c] sm:$0xf]
        %v2529 = vld [vmem:[#allocation16 + $0x80] sm:$0xf]
        %v2530 = vld [vmem:[#allocation16 + $0x84] sm:$0xf]
        %v2531 = vld [vmem:[#allocation16 + $0x88] sm:$0xf]
        %v2532 = vld [vmem:[#allocation16 + $0x8c] sm:$0xf]
        %v2533 = vld [vmem:[#allocation16 + $0x90] sm:$0xf]
        %v2534 = vld [vmem:[#allocation16 + $0x94] sm:$0xf]
        %v2535 = vld [vmem:[#allocation16 + $0x98] sm:$0xf]
        %v2536 = vld [vmem:[#allocation16 + $0x9c] sm:$0xf]
        %v2537 = vld [vmem:[#allocation16 + $0xa0] sm:$0xf]
        %v2538 = vld [vmem:[#allocation16 + $0xa4] sm:$0xf]
        %v2539 = vld [vmem:[#allocation16 + $0xa8] sm:$0xf]
        %v2540 = vld [vmem:[#allocation16 + $0xac] sm:$0xf]
        %v2541 = vld [vmem:[#allocation16 + $0xb0] sm:$0xf]
        %v2542 = vld [vmem:[#allocation16 + $0xb4] sm:$0xf]
        %v2543 = vld [vmem:[#allocation16 + $0xb8] sm:$0xf]
        %v2544 = vld [vmem:[#allocation16 + $0xbc] sm:$0xf]
        %v2545 = vld [vmem:[#allocation16 + $0xc0] sm:$0xf]
        %v2546 = vld [vmem:[#allocation16 + $0xc4] sm:$0xf]
        %v2547 = vld [vmem:[#allocation16 + $0xc8] sm:$0xf]
        %v2548 = vld [vmem:[#allocation16 + $0xcc] sm:$0xf]
        %v2549 = vld [vmem:[#allocation16 + $0xd0] sm:$0xf]
        %v2550 = vld [vmem:[#allocation16 + $0xd4] sm:$0xf]
        %v2551 = vld [vmem:[#allocation16 + $0xd8] sm:$0xf]
        %v2552 = vld [vmem:[#allocation16 + $0xdc] sm:$0xf]
        %v2553 = vld [vmem:[#allocation16 + $0xe0] sm:$0xf]
        %v2554 = vld [vmem:[#allocation16 + $0xe4] sm:$0xf]
        %v2555 = vld [vmem:[#allocation16 + $0xe8] sm:$0xf]
        %v2556 = vld [vmem:[#allocation16 + $0xec] sm:$0xf]
        %v2557 = vld [vmem:[#allocation16 + $0xf0] sm:$0xf]
        %v2558 = vld [vmem:[#allocation16 + $0xf4] sm:$0xf]
        %v2559 = vld [vmem:[#allocation16 + $0xf8] sm:$0xf]
        %v2560 = vld [vmem:[#allocation16 + $0xfc] sm:$0xf]
        %v2561 = vld [vmem:[%s15] sm:$0x1]
        %v2563 = vlaneseq
        %v2564 = vshrl.u32 %v2563, 7
        %v2565 = vsub.s32 0, %v2564
        %v2566 = vrot.slane %v2561, %v2565
        %v2632 = vunpack.c.l.b16 %v2497
        %v2633 = vunpack.c.l.b16 %v2498
        %v2634 = vunpack.c.l.b16 %v2499
        %v2635 = vunpack.c.l.b16 %v2500
        %v2636 = vunpack.c.l.b16 %v2501
        %v2637 = vunpack.c.l.b16 %v2502
        %v2638 = vunpack.c.l.b16 %v2503
        %v2639 = vunpack.c.l.b16 %v2504
        %v2640 = vunpack.c.l.b16 %v2505
        %v2641 = vunpack.c.l.b16 %v2506
        %v2642 = vunpack.c.l.b16 %v2507
        %v2643 = vunpack.c.l.b16 %v2508
        %v2644 = vunpack.c.l.b16 %v2509
        %v2645 = vunpack.c.l.b16 %v2510
        %v2646 = vunpack.c.l.b16 %v2511
        %v2647 = vunpack.c.l.b16 %v2512
        %v2648 = vunpack.c.l.b16 %v2513
        %v2649 = vunpack.c.l.b16 %v2514
        %v2650 = vunpack.c.l.b16 %v2515
        %v2651 = vunpack.c.l.b16 %v2516
        %v2652 = vunpack.c.l.b16 %v2517
        %v2653 = vunpack.c.l.b16 %v2518
        %v2654 = vunpack.c.l.b16 %v2519
        %v2655 = vunpack.c.l.b16 %v2520
        %v2656 = vunpack.c.l.b16 %v2521
        %v2657 = vunpack.c.l.b16 %v2522
        %v2658 = vunpack.c.l.b16 %v2523
        %v2659 = vunpack.c.l.b16 %v2524
        %v2660 = vunpack.c.l.b16 %v2525
        %v2661 = vunpack.c.l.b16 %v2526
        %v2662 = vunpack.c.l.b16 %v2527
        %v2663 = vunpack.c.l.b16 %v2528
        %v2664 = vunpack.c.l.b16 %v2529
        %v2665 = vunpack.c.l.b16 %v2530
        %v2666 = vunpack.c.l.b16 %v2531
        %v2667 = vunpack.c.l.b16 %v2532
        %v2668 = vunpack.c.l.b16 %v2533
        %v2669 = vunpack.c.l.b16 %v2534
        %v2670 = vunpack.c.l.b16 %v2535
        %v2671 = vunpack.c.l.b16 %v2536
        %v2672 = vunpack.c.l.b16 %v2537
        %v2673 = vunpack.c.l.b16 %v2538
        %v2674 = vunpack.c.l.b16 %v2539
        %v2675 = vunpack.c.l.b16 %v2540
        %v2676 = vunpack.c.l.b16 %v2541
        %v2677 = vunpack.c.l.b16 %v2542
        %v2678 = vunpack.c.l.b16 %v2543
        %v2679 = vunpack.c.l.b16 %v2544
        %v2680 = vunpack.c.l.b16 %v2545
        %v2681 = vunpack.c.l.b16 %v2546
        %v2682 = vunpack.c.l.b16 %v2547
        %v2683 = vunpack.c.l.b16 %v2548
        %v2684 = vunpack.c.l.b16 %v2549
        %v2685 = vunpack.c.l.b16 %v2550
        %v2686 = vunpack.c.l.b16 %v2551
        %v2687 = vunpack.c.l.b16 %v2552
        %v2688 = vunpack.c.l.b16 %v2553
        %v2689 = vunpack.c.l.b16 %v2554
        %v2690 = vunpack.c.l.b16 %v2555
        %v2691 = vunpack.c.l.b16 %v2556
        %v2692 = vunpack.c.l.b16 %v2557
        %v2693 = vunpack.c.l.b16 %v2558
        %v2694 = vunpack.c.l.b16 %v2559
        %v2695 = vunpack.c.l.b16 %v2560
        %v2696 = vpack.c.b16 %v2633, %v2632
        %v2697 = vpack.c.b16 %v2635, %v2634
        %v2698 = vpack.c.b16 %v2637, %v2636
        %v2699 = vpack.c.b16 %v2639, %v2638
        %v2700 = vpack.c.b16 %v2641, %v2640
        %v2701 = vpack.c.b16 %v2643, %v2642
        %v2702 = vpack.c.b16 %v2645, %v2644
        %v2703 = vpack.c.b16 %v2647, %v2646
        %v2704 = vpack.c.b16 %v2649, %v2648
        %v2705 = vpack.c.b16 %v2651, %v2650
        %v2706 = vpack.c.b16 %v2653, %v2652
        %v2707 = vpack.c.b16 %v2655, %v2654
        %v2708 = vpack.c.b16 %v2657, %v2656
        %v2709 = vpack.c.b16 %v2659, %v2658
        %v2710 = vpack.c.b16 %v2661, %v2660
        %v2711 = vpack.c.b16 %v2663, %v2662
        %v2712 = vpack.c.b16 %v2665, %v2664
        %v2713 = vpack.c.b16 %v2667, %v2666
        %v2714 = vpack.c.b16 %v2669, %v2668
        %v2715 = vpack.c.b16 %v2671, %v2670
        %v2716 = vpack.c.b16 %v2673, %v2672
        %v2717 = vpack.c.b16 %v2675, %v2674
        %v2718 = vpack.c.b16 %v2677, %v2676
        %v2719 = vpack.c.b16 %v2679, %v2678
        %v2720 = vpack.c.b16 %v2681, %v2680
        %v2721 = vpack.c.b16 %v2683, %v2682
        %v2722 = vpack.c.b16 %v2685, %v2684
        %v2723 = vpack.c.b16 %v2687, %v2686
        %v2724 = vpack.c.b16 %v2689, %v2688
        %v2725 = vpack.c.b16 %v2691, %v2690
        %v2726 = vpack.c.b16 %v2693, %v2692
        %v2727 = vpack.c.b16 %v2695, %v2694
        %2760 = vmatprep.subr.bf16.mxu0 0
        %2761 = vmatpush1.bf16.msra.mxu0 %v2703
        %2762 = vmatprep.subr.bf16.mxu0 0
        %2763 = vmatpush1.bf16.msra.mxu0 %v2702
        %2764 = vmatprep.subr.bf16.mxu0 0
        %2765 = vmatpush1.bf16.msra.mxu0 %v2701
        %2766 = vmatprep.subr.bf16.mxu0 0
        %2767 = vmatpush1.bf16.msra.mxu0 %v2700
        %2768 = vmatprep.subr.bf16.mxu0 0
        %2769 = vmatpush1.bf16.msra.mxu0 %v2699
        %2770 = vmatprep.subr.bf16.mxu0 0
        %2771 = vmatpush1.bf16.msra.mxu0 %v2698
        %2772 = vmatprep.subr.bf16.mxu0 0
        %2773 = vmatpush1.bf16.msra.mxu0 %v2697
        %2774 = vmatprep.subr.bf16.mxu0 0
        %2775 = vmatpush1.bf16.msra.mxu0 %v2696
        %2776 = vmatprep.subr.bf16.mxu0 0
        %2777 = vmatpush2.bf16.msra.mxu0 %v2711
        %2778 = vmatprep.subr.bf16.mxu0 0
        %2779 = vmatpush2.bf16.msra.mxu0 %v2710
        %2780 = vmatprep.subr.bf16.mxu0 0
        %2781 = vmatpush2.bf16.msra.mxu0 %v2709
        %2782 = vmatprep.subr.bf16.mxu0 0
        %2783 = vmatpush2.bf16.msra.mxu0 %v2708
        %2784 = vmatprep.subr.bf16.mxu0 0
        %2785 = vmatpush2.bf16.msra.mxu0 %v2707
        %2786 = vmatprep.subr.bf16.mxu0 0
        %2787 = vmatpush2.bf16.msra.mxu0 %v2706
        %2788 = vmatprep.subr.bf16.mxu0 0
        %2789 = vmatpush2.bf16.msra.mxu0 %v2705
        %2790 = vmatprep.subr.bf16.mxu0 0
        %2791 = vmatpush2.bf16.msra.mxu0 %v2704
        %2792 = vmatprep.mubr.bf16.mxu0 %v2494
        %2793 = vmatmul.mubr.bf16.gmra.mxu0 %v2493
        %v2794 = vpop.f32.mrf.mxu0
        %v2795 = vadd.f32 %v2566, %v2794
        %v2796 = vpop.f32.mrf.mxu0
        %v2797 = vpop.f32.mrf.mxu0
        %v2798 = vadd.f32 %v2566, %v2797
        %v2799 = vpop.f32.mrf.mxu0
        %2800 = vdwg.mxu0
        %2801 = vmatprep.subr.bf16.mxu0 0
        %2802 = vmatpush1.bf16.msra.mxu0 %v2719
        %2803 = vmatprep.subr.bf16.mxu0 0
        %2804 = vmatpush1.bf16.msra.mxu0 %v2718
        %2805 = vmatprep.subr.bf16.mxu0 0
        %2806 = vmatpush1.bf16.msra.mxu0 %v2717
        %2807 = vmatprep.subr.bf16.mxu0 0
        %2808 = vmatpush1.bf16.msra.mxu0 %v2716
        %2809 = vmatprep.subr.bf16.mxu0 0
        %2810 = vmatpush1.bf16.msra.mxu0 %v2715
        %2811 = vmatprep.subr.bf16.mxu0 0
        %2812 = vmatpush1.bf16.msra.mxu0 %v2714
        %2813 = vmatprep.subr.bf16.mxu0 0
        %2814 = vmatpush1.bf16.msra.mxu0 %v2713
        %2815 = vmatprep.subr.bf16.mxu0 0
        %2816 = vmatpush1.bf16.msra.mxu0 %v2712
        %2817 = vmatprep.subr.bf16.mxu0 0
        %2818 = vmatpush2.bf16.msra.mxu0 %v2727
        %2819 = vmatprep.subr.bf16.mxu0 0
        %2820 = vmatpush2.bf16.msra.mxu0 %v2726
        %2821 = vmatprep.subr.bf16.mxu0 0
        %2822 = vmatpush2.bf16.msra.mxu0 %v2725
        %2823 = vmatprep.subr.bf16.mxu0 0
        %2824 = vmatpush2.bf16.msra.mxu0 %v2724
        %2825 = vmatprep.subr.bf16.mxu0 0
        %2826 = vmatpush2.bf16.msra.mxu0 %v2723
        %2827 = vmatprep.subr.bf16.mxu0 0
        %2828 = vmatpush2.bf16.msra.mxu0 %v2722
        %2829 = vmatprep.subr.bf16.mxu0 0
        %2830 = vmatpush2.bf16.msra.mxu0 %v2721
        %2831 = vmatprep.subr.bf16.mxu0 0
        %2832 = vmatpush2.bf16.msra.mxu0 %v2720
        %2833 = vmatprep.mubr.bf16.mxu0 %v2496
        %2834 = vmatmul.mubr.bf16.gmra.mxu0 %v2495
        %v2835 = vpop.f32.mrf.mxu0
        %v2836 = vadd.f32 %v2795, %v2835
        %v2837 = vpop.f32.mrf.mxu0
        %v2838 = vpop.f32.mrf.mxu0
        %v2839 = vadd.f32 %v2798, %v2838
        %v2840 = vpop.f32.mrf.mxu0
        %2841 = vdwg.mxu0
        %v2842 = vadd.f32 %v2182, %v2836
        %v2843 = vadd.f32 %v2183, %v2839
        %v2844 = vld [vmem:[%s16] sm:$0x1]
        %v2845 = vld [vmem:[%s17] sm:$0x1]
        %2846 = vadd.xlane.f32.xlu0 %v2842
        %v2847 = vpop.xlane.xlu0 %2846
        %2848 = vadd.xlane.f32.xlu0 %v2843
        %v2849 = vpop.xlane.xlu0 %2848
        %v2850 = vmul.f32 %v2847, %v2149
        %v2851 = vmul.f32 %v2849, %v2149
        %v2852 = vsub.f32 %v2842, %v2850
        %v2853 = vsub.f32 %v2843, %v2851
        %v2854 = vmul.f32 %v2852, %v2852
        %v2855 = vmul.f32 %v2853, %v2853
        %2856 = vadd.xlane.f32.xlu0 %v2854
        %v2857 = vpop.xlane.xlu0 %2856
        %2858 = vadd.xlane.f32.xlu0 %v2855
        %v2859 = vpop.xlane.xlu0 %2858
        %v2860 = vmul.f32 %v2857, %v2149
        %v2861 = vmul.f32 %v2859, %v2149
        %v2862 = vadd.f32 %v2860, 1e-05
        %v2863 = vadd.f32 %v2861, 1e-05
        %v2864 = vrsqrt.pop %v2862
        %v2865 = vrsqrt.pop %v2863
        %v2866 = vmul.f32 %v2852, %v2864
        %v2867 = vmul.f32 %v2853, %v2865
        %v2869 = vlaneseq
        %v2870 = vshrl.u32 %v2869, 7
        %v2871 = vsub.s32 0, %v2870
        %v2872 = vrot.slane %v2844, %v2871
        %v2874 = vmul.f32 %v2866, %v2872
        %v2875 = vmul.f32 %v2867, %v2872
        %v2877 = vlaneseq
        %v2878 = vshrl.u32 %v2877, 7
        %v2879 = vsub.s32 0, %v2878
        %v2880 = vrot.slane %v2845, %v2879
        %v2882 = vadd.f32 %v2874, %v2880
        %v2883 = vadd.f32 %v2875, %v2880
        %v2884 = vpack.c.bf16 %v2883, %v2882
        %v2886 = vunpack.c.l.b16 %v2884
        %v2887 = vunpack.c.h.b16 %v2884
        %v2888 = vpack.c.b16 %v2886, %v2886
        %v2889 = vpack.c.b16 %v2887, %v2887
        %2892 = vst [vmem:[%s768] sm:$0xf] %v2888
        %2893 = vst [vmem:[%s768 + $0x4] sm:$0xf] %v2889
        %s2894 = sand.u32 %s455, 1
        %s2895 = scalar_lea.sflag [#allocation6], %s2894
        %s2896 = sand.u32 %s455, 1
        %s2897 = smul.addr %s2896, 8
        %s2898 = scalar_lea.vmem [#allocation18], %s2897
        %s2899 = smul.u32 2, %s48
        %p2900 = scmp.lt.s32.totalorder %s47, 1
        %s2901 = scalar_select %p2900, %s47, 1
        %p2902 = scmp.lt.s32.totalorder %s2899, 1
        %s2903 = scalar_select %p2902, %s2899, 1
        %s2904 = smul.addr %s2901, 2
        %s2905 = sadd.s32 %s2903, %s2904
        %s2906 = smul.addr %s2905, 8
        %s2907 = scalar_lea.vmem %s19, %s2906
        // Predicated region
        $region129: #{tpu_custom_call.1} parent=91 // pred_check
          %p2908 = pneg %p465
        $region130: #{tpu_custom_call.1} parent=91 // pred_check_branch
          %2910 = sbr.rel (%p2908) target = $region132
        $region131: #{tpu_custom_call.1} parent=91 // pred_region
          %s2911 = smul.u32 2, %s48
          %s2913 = ssub.s32 128, 128
          %2914 = vsyncadd %s2895, %s2913
          %s2915 = smul.addr %s47, 2
          %s2916 = sadd.s32 %s2911, %s2915
          %s2917 = smul.addr %s2916, 64
          %s2918 = scalar_lea.hbm %s18, %s2917
          %s2919 = sshll.u32 %s2898, 4
          %s2920 = int_to_ptr.vmem [resolvable:$true] %s2919
          %2925 = dma.vmem_to_hbm [thread:$0]  %s2920, 128, %s2918, %s2895, 64, 64, 4
        $region132: #{tpu_custom_call.1} parent=91 // pred_fallthru
          _
        // Predicated region
        $region133: #{tpu_custom_call.1} parent=91 // pred_check
          %p2926 = pneg %p493
        $region134: #{tpu_custom_call.1} parent=91 // pred_check_branch
          %2928 = sbr.rel (%p2926) target = $region136
        $region135: #{tpu_custom_call.1} parent=91 // pred_region
          %s2929 = smul.u32 2, %s48
        $region136: #{tpu_custom_call.1} parent=91 // pred_fallthru
          _
      $region92: #{tpu_custom_call.1} parent=5 // pred_fallthru
        _
      %p2930 = scmp.le.s32.totalorder 2, %s38
      // Predicated region
      $region137: #{tpu_custom_call.1} parent=5 // pred_check
        %p2931 = pneg %p2930
      $region138: #{tpu_custom_call.1} parent=5 // pred_check_branch
        %2933 = sbr.rel (%p2931) target = $region140
      $region139: #{tpu_custom_call.1} parent=5 // pred_region
        %s2934 = ssub.s32 %s38, 2
        // Predicated region
        $region141: #{tpu_custom_call.1} parent=139 // pred_check
          %p2935 = pneg %p471
        $region142: #{tpu_custom_call.1} parent=139 // pred_check_branch
          %2937 = sbr.rel (%p2935) target = $region144
        $region143: #{tpu_custom_call.1} parent=139 // pred_region
          %s2938 = sand.u32 %s456, 1
          %s2939 = scalar_lea.sflag [#allocation6], %s2938
          %s2940 = sand.u32 %s456, 1
          %s2941 = smul.addr %s2940, 8
          %s2942 = scalar_lea.vmem [#allocation18], %s2941
          %2943 = dma.done %s2939, 128
        $region144: #{tpu_custom_call.1} parent=139 // pred_fallthru
          _
        // Predicated region
        $region145: #{tpu_custom_call.1} parent=139 // pred_check
          %p2944 = pneg %p499
        $region146: #{tpu_custom_call.1} parent=139 // pred_check_branch
          %2946 = sbr.rel (%p2944) target = $region148
        $region147: #{tpu_custom_call.1} parent=139 // pred_region
          %s2947 = smul.u32 2, %s50
          %p2948 = scmp.lt.s32.totalorder %s49, 1
          %s2949 = scalar_select %p2948, %s49, 1
          %p2950 = scmp.lt.s32.totalorder %s2947, 1
          %s2951 = scalar_select %p2950, %s2947, 1
          %s2952 = smul.addr %s2949, 2
          %s2953 = sadd.s32 %s2951, %s2952
          %s2954 = smul.addr %s2953, 8
          %s2955 = scalar_lea.vmem %s19, %s2954
        $region148: #{tpu_custom_call.1} parent=139 // pred_fallthru
          _
      $region140: #{tpu_custom_call.1} parent=5 // pred_fallthru
        _
    $region6: #{tpu_custom_call.1} parent=1 // loop_footer
      %s42 = sadd.s32 1, %s38
    $region7: #{tpu_custom_call.1} parent=1 // loop_footer_branch
      %37 = sbr.rel target = $region3
    $region8: #{tpu_custom_call.1} parent=1 // loop_exit
      _
    %2956 = vsyncpa [#allocation5], 1
    %s2957 = scalar_lea.sflag [#allocation5], 1
    %2958 = vsyncpa %s2957, 1
    %2959 = vsyncpa [#allocation8], 1
    %s2960 = scalar_lea.sflag [#allocation8], 1
    %2961 = vsyncpa %s2960, 1
    %2962 = vsyncpa [#allocation11], 1
    %2963 = vsyncpa [#allocation14], 1
    %2964 = vsyncpa [#allocation17], 1
    %2965 = vsyncpa [#allocation6], 1
    %s2966 = scalar_lea.sflag [#allocation6], 1
    %2967 = vsyncpa %s2966, 1

// kernel: tpu_custom_call.1
$region0: #{tpu_custom_call.1}
  #allocation0 [shape = 'u32[]', space=smem, size = 0x4, offset = 0x4, fixed_abs, tag = 'smem constant byte address 0x4 - core index']
  #allocation1 [shape = 'u32[144,128]{1,0:T(1,128)}', space=vmem, size = 0x12000, scoped, tag = 'internal scratch']
  #allocation2 [shape = 'bf16[4,32,32]{2,1,0:T(8,128)(2,1)}', space=vmem, size = 0x8000, scoped, tag = 'scratch operand']
  #allocation3 [shape = 'bf16[4,32,32]{2,1,0:T(8,128)(2,1)}', space=vmem, size = 0x8000, scoped, tag = 'scratch operand']
  %s0 = inlined_call_operand.hbm [shape: f32[2,16,128], index: 0, kind: input, shape index: {}]
  %s1 = inlined_call_operand.hbm [shape: bf16[2,32,128], index: 1, kind: input, shape index: {}]
  %s2 = inlined_call_operand.hbm [shape: bf16[128,128], index: 2, kind: input, shape index: {}]
  %s3 = inlined_call_operand.hbm [shape: bf16[128,128], index: 3, kind: input, shape index: {}]
  %s4 = inlined_call_operand.hbm [shape: bf16[128,128], index: 4, kind: input, shape index: {}]
  %s5 = inlined_call_operand.vmem [shape: f32[1,128], index: 5, kind: input, shape index: {}]
  %s6 = inlined_call_operand.vmem [shape: f32[1,128], index: 6, kind: input, shape index: {}]
  %s7 = inlined_call_operand.vmem [shape: f32[1,128], index: 7, kind: input, shape index: {}]
  %s8 = inlined_call_operand.hbm [shape: bf16[128,128], index: 8, kind: input, shape index: {}]
  %s9 = inlined_call_operand.vmem [shape: f32[1,128], index: 9, kind: input, shape index: {}]
  %s10 = inlined_call_operand.vmem [shape: f32[1,128], index: 10, kind: input, shape index: {}]
  %s11 = inlined_call_operand.vmem [shape: f32[1,128], index: 11, kind: input, shape index: {}]
  %s12 = inlined_call_operand.hbm [shape: bf16[128,512], index: 12, kind: input, shape index: {}]
  %s13 = inlined_call_operand.vmem [shape: f32[1,512], index: 13, kind: input, shape index: {}]
  %s14 = inlined_call_operand.hbm [shape: bf16[512,128], index: 14, kind: input, shape index: {}]
  %s15 = inlined_call_operand.vmem [shape: f32[1,128], index: 15, kind: input, shape index: {}]
  %s16 = inlined_call_operand.vmem [shape: f32[1,128], index: 16, kind: input, shape index: {}]
  %s17 = inlined_call_operand.vmem [shape: f32[1,128], index: 17, kind: input, shape index: {}]
  %s18 = inlined_call_operand.hbm [shape: bf16[2,16,128], index: 18, kind: output, shape index: {0}]
  %s19 = inlined_call_operand.vmem [shape: f32[2,16,4], index: 19, kind: output, shape index: {1}]
  %20 = xla_tuple %s18, %s19
  %s21 = sld [smem:[#allocation0]]
  $region149: #{tpu_custom_call.1} parent=0
    _
  %s23 = ssub.s32 1, %s21
  %s24 = scalar_select 0, %s23, %s21
  $region1: #{tpu_custom_call.1} parent=0
    #allocation4 [shape = 'u8[16384]{0}', space=vmem, size = 0x4000, scoped, tag = 'input window, operand 0']
    #allocation5 [shape = 's32[2]{0}', space=sflag, size = 0x8, scoped, tag = 'scoped memory for tpu_custom_call.1']
    #allocation6 [shape = 's32[2]{0}', space=sflag, size = 0x8, scoped, tag = 'scoped memory for tpu_custom_call.1']
    #allocation7 [shape = 'u8[16384]{0}', space=vmem, size = 0x4000, scoped, tag = 'input window, operand 1']
    #allocation8 [shape = 's32[2]{0}', space=sflag, size = 0x8, scoped, tag = 'scoped memory for tpu_custom_call.1']
    #allocation9 [shape = 'u8[32768]{0}', space=vmem, size = 0x8000, scoped, tag = 'input window, operand 2, single buffered']
    #allocation10 [shape = 'u8[32768]{0}', space=vmem, size = 0x8000, scoped, tag = 'input window, operand 3, single buffered']
    #allocation11 [shape = 's32[1]{0}', space=sflag, size = 0x4, scoped, tag = 'scoped memory for tpu_custom_call.1']
    #allocation12 [shape = 'u8[32768]{0}', space=vmem, size = 0x8000, scoped, tag = 'input window, operand 4, single buffered']
    #allocation13 [shape = 'u8[32768]{0}', space=vmem, size = 0x8000, scoped, tag = 'input window, operand 8, single buffered']
    #allocation14 [shape = 's32[1]{0}', space=sflag, size = 0x4, scoped, tag = 'scoped memory for tpu_custom_call.1']
    #allocation15 [shape = 'u8[131072]{0}', space=vmem, size = 0x20000, scoped, tag = 'input window, operand 12, single buffered']
    #allocation16 [shape = 'u8[131072]{0}', space=vmem, size = 0x20000, scoped, tag = 'input window, operand 14, single buffered']
    #allocation17 [shape = 's32[1]{0}', space=sflag, size = 0x4, scoped, tag = 'scoped memory for tpu_custom_call.1']
    #allocation18 [shape = 'u8[8192]{0}', space=vmem, size = 0x2000, scoped, tag = 'output window, operand 0']
    %25 = vsyncpa [#allocation5], 0
    %s26 = scalar_lea.sflag [#allocation5], 1
    %27 = vsyncpa %s26, 0
    %28 = vsyncpa [#allocation8], 0
    %s29 = scalar_lea.sflag [#allocation8], 1
    %30 = vsyncpa %s29, 0
    %31 = vsyncpa [#allocation11], 0
    %32 = vsyncpa [#allocation14], 0
    %33 = vsyncpa [#allocation17], 0
    %34 = vsyncpa [#allocation6], 0
    %s35 = scalar_lea.sflag [#allocation6], 1
    %36 = vsyncpa %s35, 0
    loop: start=0, step=1, limit=4
    $region2: #{tpu_custom_call.1} parent=1 // loop_pre_header
      _
    $region3: #{tpu_custom_call.1} parent=1 // loop_header
      %s38 = sphi 0, %s42
      %p39 = scmp.ge.s32.totalorder %s38, 4
      %s45 = sphi 0, %s57
      %s46 = sphi 0, %s53
      %s47 = sphi 0, %s45
      %s48 = sphi 0, %s46
      %s49 = sphi 0, %s47
      %s50 = sphi 0, %s48
      %s62 = sphi 0, %s64
      %s65 = sphi 0, %s62
      %s66 = sphi 0, %s65
      %s82 = sphi 0, %s66
      %s88 = sphi 0, %s90
      %s91 = sphi 0, %s88
      %s92 = sphi 0, %s91
      %s108 = sphi 0, %s92
      %s112 = sphi 0, %s112
      %s114 = sphi 0, %s112
      %s115 = sphi 0, %s114
      %s129 = sphi 0, %s115
      %s133 = sphi 0, %s133
      %s135 = sphi 0, %s133
      %s136 = sphi 0, %s135
      %s150 = sphi 0, %s136
      %s154 = sphi 0, %s154
      %s156 = sphi 0, %s154
      %s157 = sphi 0, %s156
      %s171 = sphi 0, %s157
      %s175 = sphi 0, %s175
      %s177 = sphi 0, %s175
      %s178 = sphi 0, %s177
      %s192 = sphi 0, %s178
      %s196 = sphi 0, %s196
      %s198 = sphi 0, %s196
      %s199 = sphi 0, %s198
      %s213 = sphi 0, %s199
      %s217 = sphi 0, %s217
      %s219 = sphi 0, %s217
      %s220 = sphi 0, %s219
      %s234 = sphi 0, %s220
      %s238 = sphi 0, %s238
      %s240 = sphi 0, %s238
      %s241 = sphi 0, %s240
      %s255 = sphi 0, %s241
      %s259 = sphi 0, %s259
      %s261 = sphi 0, %s259
      %s262 = sphi 0, %s261
      %s276 = sphi 0, %s262
      %s280 = sphi 0, %s280
      %s282 = sphi 0, %s280
      %s283 = sphi 0, %s282
      %s297 = sphi 0, %s283
      %s301 = sphi 0, %s301
      %s303 = sphi 0, %s301
      %s304 = sphi 0, %s303
      %s318 = sphi 0, %s304
      %s322 = sphi 0, %s322
      %s324 = sphi 0, %s322
      %s325 = sphi 0, %s324
      %s339 = sphi 0, %s325
      %s343 = sphi 0, %s343
      %s345 = sphi 0, %s343
      %s346 = sphi 0, %s345
      %s360 = sphi 0, %s346
      %s364 = sphi 0, %s364
      %s366 = sphi 0, %s364
      %s367 = sphi 0, %s366
      %s381 = sphi 0, %s367
      %s385 = sphi 0, %s385
      %s387 = sphi 0, %s385
      %s388 = sphi 0, %s387
      %s402 = sphi 0, %s388
      %s406 = sphi 0, %s406
      %s408 = sphi 0, %s406
      %s409 = sphi 0, %s408
      %s423 = sphi 0, %s409
      %s427 = sphi 0, %s427
      %s429 = sphi 0, %s427
      %s430 = sphi 0, %s429
      %s444 = sphi 0, %s430
      %s452 = sphi 0, %s454
      %s455 = sphi 0, %s452
      %s456 = sphi 0, %s455
      %s472 = sphi 0, %s456
      %s480 = sphi 0, %s482
      %s483 = sphi 0, %s480
      %s484 = sphi 0, %s483
      %s500 = sphi 0, %s484
    $region4: #{tpu_custom_call.1} parent=1 // loop_header_branch
      %41 = sbr.rel (%p39) target = $region8
    $region5: #{tpu_custom_call.1} parent=1 // loop_body
      %s43 = ssub.s32 %s38, 1
      %s44 = ssub.s32 %s38, 2
      %s51 = sadd.s32 1, %s46
      %p52 = scmp.ge.s32.totalorder %s51, 1
      %s53 = scalar_select %p52, 0, %s51
      %s54 = sadd.s32 1, %s45
      %s55 = scalar_select %p52, %s54, %s45
      %p56 = scmp.ge.s32.totalorder %s55, 2
      %s57 = scalar_select %p56, 0, %s55
      %s58 = ssub.s32 %s45, %s57
      %s59 = ssub.s32 %s46, %s53
      %s60 = sor.u32 %s58, %s59
      %p61 = scmp.eq.s32.totalorder %s60, 0
      %s63 = sadd.s32 %s62, 1
      %s64 = scalar_select %p61, %s62, %s63
      %p67 = pneg %p61
      %p68 = scmp.eq.s32.totalorder %s38, 1
      %p69 = por %p67, %p68
      %p70 = scmp.ne.s32.totalorder %s62, %s65
      %p71 = scmp.eq.s32.totalorder %s38, 0
      %p72 = por %p70, %p71
      %p73 = scmp.ne.s32.totalorder %s62, %s65
      %p74 = scmp.eq.s32.totalorder %s43, 1
      %p75 = por %p73, %p74
      %p76 = scmp.ne.s32.totalorder %s65, %s66
      %p77 = scmp.eq.s32.totalorder %s43, 0
      %p78 = por %p76, %p77
      %p79 = scmp.ne.s32.totalorder %s65, %s66
      %p80 = scmp.eq.s32.totalorder %s44, 1
      %p81 = por %p79, %p80
      %p83 = scmp.ne.s32.totalorder %s66, %s82
      %p84 = scmp.eq.s32.totalorder %s44, 0
      %p85 = por %p83, %p84
      %s86 = ssub.s32 %s45, %s57
      %p87 = scmp.eq.s32.totalorder %s86, 0
      %s89 = sadd.s32 %s88, 1
      %s90 = scalar_select %p87, %s88, %s89
      %p93 = pneg %p87
      %p94 = scmp.eq.s32.totalorder %s38, 1
      %p95 = por %p93, %p94
      %p96 = scmp.ne.s32.totalorder %s88, %s91
      %p97 = scmp.eq.s32.totalorder %s38, 0
      %p98 = por %p96, %p97
      %p99 = scmp.ne.s32.totalorder %s88, %s91
      %p100 = scmp.eq.s32.totalorder %s43, 1
      %p101 = por %p99, %p100
      %p102 = scmp.ne.s32.totalorder %s91, %s92
      %p103 = scmp.eq.s32.totalorder %s43, 0
      %p104 = por %p102, %p103
      %p105 = scmp.ne.s32.totalorder %s91, %s92
      %p106 = scmp.eq.s32.totalorder %s44, 1
      %p107 = por %p105, %p106
      %p109 = scmp.ne.s32.totalorder %s92, %s108
      %p110 = scmp.eq.s32.totalorder %s44, 0
      %p111 = por %p109, %p110
      %s113 = sadd.s32 %s112, 1
      %p116 = scmp.eq.s32.totalorder %s38, 1
      %p117 = scmp.ne.s32.totalorder %s112, %s114
      %p118 = scmp.eq.s32.totalorder %s38, 0
      %p119 = por %p117, %p118
      %p120 = scmp.ne.s32.totalorder %s112, %s114
      %p121 = scmp.eq.s32.totalorder %s43, 1
      %p122 = por %p120, %p121
      %p123 = scmp.ne.s32.totalorder %s114, %s115
      %p124 = scmp.eq.s32.totalorder %s43, 0
      %p125 = por %p123, %p124
      %p126 = scmp.ne.s32.totalorder %s114, %s115
      %p127 = scmp.eq.s32.totalorder %s44, 1
      %p128 = por %p126, %p127
      %p130 = scmp.ne.s32.totalorder %s115, %s129
      %p131 = scmp.eq.s32.totalorder %s44, 0
      %p132 = por %p130, %p131
      %s134 = sadd.s32 %s133, 1
      %p137 = scmp.eq.s32.totalorder %s38, 1
      %p138 = scmp.ne.s32.totalorder %s133, %s135
      %p139 = scmp.eq.s32.totalorder %s38, 0
      %p140 = por %p138, %p139
      %p141 = scmp.ne.s32.totalorder %s133, %s135
      %p142 = scmp.eq.s32.totalorder %s43, 1
      %p143 = por %p141, %p142
      %p144 = scmp.ne.s32.totalorder %s135, %s136
      %p145 = scmp.eq.s32.totalorder %s43, 0
      %p146 = por %p144, %p145
      %p147 = scmp.ne.s32.totalorder %s135, %s136
      %p148 = scmp.eq.s32.totalorder %s44, 1
      %p149 = por %p147, %p148
      %p151 = scmp.ne.s32.totalorder %s136, %s150
      %p152 = scmp.eq.s32.totalorder %s44, 0
      %p153 = por %p151, %p152
      %s155 = sadd.s32 %s154, 1
      %p158 = scmp.eq.s32.totalorder %s38, 1
      %p159 = scmp.ne.s32.totalorder %s154, %s156
      %p160 = scmp.eq.s32.totalorder %s38, 0
      %p161 = por %p159, %p160
      %p162 = scmp.ne.s32.totalorder %s154, %s156
      %p163 = scmp.eq.s32.totalorder %s43, 1
      %p164 = por %p162, %p163
      %p165 = scmp.ne.s32.totalorder %s156, %s157
      %p166 = scmp.eq.s32.totalorder %s43, 0
      %p167 = por %p165, %p166
      %p168 = scmp.ne.s32.totalorder %s156, %s157
      %p169 = scmp.eq.s32.totalorder %s44, 1
      %p170 = por %p168, %p169
      %p172 = scmp.ne.s32.totalorder %s157, %s171
      %p173 = scmp.eq.s32.totalorder %s44, 0
      %p174 = por %p172, %p173
      %s176 = sadd.s32 %s175, 1
      %p179 = scmp.eq.s32.totalorder %s38, 1
      %p180 = scmp.ne.s32.totalorder %s175, %s177
      %p181 = scmp.eq.s32.totalorder %s38, 0
      %p182 = por %p180, %p181
      %p183 = scmp.ne.s32.totalorder %s175, %s177
      %p184 = scmp.eq.s32.totalorder %s43, 1
      %p185 = por %p183, %p184
      %p186 = scmp.ne.s32.totalorder %s177, %s178
      %p187 = scmp.eq.s32.totalorder %s43, 0
      %p188 = por %p186, %p187
      %p189 = scmp.ne.s32.totalorder %s177, %s178
      %p190 = scmp.eq.s32.totalorder %s44, 1
      %p191 = por %p189, %p190
      %p193 = scmp.ne.s32.totalorder %s178, %s192
      %p194 = scmp.eq.s32.totalorder %s44, 0
      %p195 = por %p193, %p194
      %s197 = sadd.s32 %s196, 1
      %p200 = scmp.eq.s32.totalorder %s38, 1
      %p201 = scmp.ne.s32.totalorder %s196, %s198
      %p202 = scmp.eq.s32.totalorder %s38, 0
      %p203 = por %p201, %p202
      %p204 = scmp.ne.s32.totalorder %s196, %s198
      %p205 = scmp.eq.s32.totalorder %s43, 1
      %p206 = por %p204, %p205
      %p207 = scmp.ne.s32.totalorder %s198, %s199
      %p208 = scmp.eq.s32.totalorder %s43, 0
      %p209 = por %p207, %p208
      %p210 = scmp.ne.s32.totalorder %s198, %s199
      %p211 = scmp.eq.s32.totalorder %s44, 1
      %p212 = por %p210, %p211
      %p214 = scmp.ne.s32.totalorder %s199, %s213
      %p215 = scmp.eq.s32.totalorder %s44, 0
      %p216 = por %p214, %p215
      %s218 = sadd.s32 %s217, 1
      %p221 = scmp.eq.s32.totalorder %s38, 1
      %p222 = scmp.ne.s32.totalorder %s217, %s219
      %p223 = scmp.eq.s32.totalorder %s38, 0
      %p224 = por %p222, %p223
      %p225 = scmp.ne.s32.totalorder %s217, %s219
      %p226 = scmp.eq.s32.totalorder %s43, 1
      %p227 = por %p225, %p226
      %p228 = scmp.ne.s32.totalorder %s219, %s220
      %p229 = scmp.eq.s32.totalorder %s43, 0
      %p230 = por %p228, %p229
      %p231 = scmp.ne.s32.totalorder %s219, %s220
      %p232 = scmp.eq.s32.totalorder %s44, 1
      %p233 = por %p231, %p232
      %p235 = scmp.ne.s32.totalorder %s220, %s234
      %p236 = scmp.eq.s32.totalorder %s44, 0
      %p237 = por %p235, %p236
      %s239 = sadd.s32 %s238, 1
      %p242 = scmp.eq.s32.totalorder %s38, 1
      %p243 = scmp.ne.s32.totalorder %s238, %s240
      %p244 = scmp.eq.s32.totalorder %s38, 0
      %p245 = por %p243, %p244
      %p246 = scmp.ne.s32.totalorder %s238, %s240
      %p247 = scmp.eq.s32.totalorder %s43, 1
      %p248 = por %p246, %p247
      %p249 = scmp.ne.s32.totalorder %s240, %s241
      %p250 = scmp.eq.s32.totalorder %s43, 0
      %p251 = por %p249, %p250
      %p252 = scmp.ne.s32.totalorder %s240, %s241
      %p253 = scmp.eq.s32.totalorder %s44, 1
      %p254 = por %p252, %p253
      %p256 = scmp.ne.s32.totalorder %s241, %s255
      %p257 = scmp.eq.s32.totalorder %s44, 0
      %p258 = por %p256, %p257
      %s260 = sadd.s32 %s259, 1
      %p263 = scmp.eq.s32.totalorder %s38, 1
      %p264 = scmp.ne.s32.totalorder %s259, %s261
      %p265 = scmp.eq.s32.totalorder %s38, 0
      %p266 = por %p264, %p265
      %p267 = scmp.ne.s32.totalorder %s259, %s261
      %p268 = scmp.eq.s32.totalorder %s43, 1
      %p269 = por %p267, %p268
      %p270 = scmp.ne.s32.totalorder %s261, %s262
      %p271 = scmp.eq.s32.totalorder %s43, 0
      %p272 = por %p270, %p271
      %p273 = scmp.ne.s32.totalorder %s261, %s262
      %p274 = scmp.eq.s32.totalorder %s44, 1
      %p275 = por %p273, %p274
      %p277 = scmp.ne.s32.totalorder %s262, %s276
      %p278 = scmp.eq.s32.totalorder %s44, 0
      %p279 = por %p277, %p278
      %s281 = sadd.s32 %s280, 1
      %p284 = scmp.eq.s32.totalorder %s38, 1
      %p285 = scmp.ne.s32.totalorder %s280, %s282
      %p286 = scmp.eq.s32.totalorder %s38, 0
      %p287 = por %p285, %p286
      %p288 = scmp.ne.s32.totalorder %s280, %s282
      %p289 = scmp.eq.s32.totalorder %s43, 1
      %p290 = por %p288, %p289
      %p291 = scmp.ne.s32.totalorder %s282, %s283
      %p292 = scmp.eq.s32.totalorder %s43, 0
      %p293 = por %p291, %p292
      %p294 = scmp.ne.s32.totalorder %s282, %s283
      %p295 = scmp.eq.s32.totalorder %s44, 1
      %p296 = por %p294, %p295
      %p298 = scmp.ne.s32.totalorder %s283, %s297
      %p299 = scmp.eq.s32.totalorder %s44, 0
      %p300 = por %p298, %p299
      %s302 = sadd.s32 %s301, 1
      %p305 = scmp.eq.s32.totalorder %s38, 1
      %p306 = scmp.ne.s32.totalorder %s301, %s303
      %p307 = scmp.eq.s32.totalorder %s38, 0
      %p308 = por %p306, %p307
      %p309 = scmp.ne.s32.totalorder %s301, %s303
      %p310 = scmp.eq.s32.totalorder %s43, 1
      %p311 = por %p309, %p310
      %p312 = scmp.ne.s32.totalorder %s303, %s304
      %p313 = scmp.eq.s32.totalorder %s43, 0
      %p314 = por %p312, %p313
      %p315 = scmp.ne.s32.totalorder %s303, %s304
      %p316 = scmp.eq.s32.totalorder %s44, 1
      %p317 = por %p315, %p316
      %p319 = scmp.ne.s32.totalorder %s304, %s318
      %p320 = scmp.eq.s32.totalorder %s44, 0
      %p321 = por %p319, %p320
      %s323 = sadd.s32 %s322, 1
      %p326 = scmp.eq.s32.totalorder %s38, 1
      %p327 = scmp.ne.s32.totalorder %s322, %s324
      %p328 = scmp.eq.s32.totalorder %s38, 0
      %p329 = por %p327, %p328
      %p330 = scmp.ne.s32.totalorder %s322, %s324
      %p331 = scmp.eq.s32.totalorder %s43, 1
      %p332 = por %p330, %p331
      %p333 = scmp.ne.s32.totalorder %s324, %s325
      %p334 = scmp.eq.s32.totalorder %s43, 0
      %p335 = por %p333, %p334
      %p336 = scmp.ne.s32.totalorder %s324, %s325
      %p337 = scmp.eq.s32.totalorder %s44, 1
      %p338 = por %p336, %p337
      %p340 = scmp.ne.s32.totalorder %s325, %s339
      %p341 = scmp.eq.s32.totalorder %s44, 0
      %p342 = por %p340, %p341
      %s344 = sadd.s32 %s343, 1
      %p347 = scmp.eq.s32.totalorder %s38, 1
      %p348 = scmp.ne.s32.totalorder %s343, %s345
      %p349 = scmp.eq.s32.totalorder %s38, 0
      %p350 = por %p348, %p349
      %p351 = scmp.ne.s32.totalorder %s343, %s345
      %p352 = scmp.eq.s32.totalorder %s43, 1
      %p353 = por %p351, %p352
      %p354 = scmp.ne.s32.totalorder %s345, %s346
      %p355 = scmp.eq.s32.totalorder %s43, 0
      %p356 = por %p354, %p355
      %p357 = scmp.ne.s32.totalorder %s345, %s346
      %p358 = scmp.eq.s32.totalorder %s44, 1
      %p359 = por %p357, %p358
      %p361 = scmp.ne.s32.totalorder %s346, %s360
      %p362 = scmp.eq.s32.totalorder %s44, 0
      %p363 = por %p361, %p362
      %s365 = sadd.s32 %s364, 1
      %p368 = scmp.eq.s32.totalorder %s38, 1
      %p369 = scmp.ne.s32.totalorder %s364, %s366
      %p370 = scmp.eq.s32.totalorder %s38, 0
      %p371 = por %p369, %p370
      %p372 = scmp.ne.s32.totalorder %s364, %s366
      %p373 = scmp.eq.s32.totalorder %s43, 1
      %p374 = por %p372, %p373
      %p375 = scmp.ne.s32.totalorder %s366, %s367
      %p376 = scmp.eq.s32.totalorder %s43, 0
      %p377 = por %p375, %p376
      %p378 = scmp.ne.s32.totalorder %s366, %s367
      %p379 = scmp.eq.s32.totalorder %s44, 1
      %p380 = por %p378, %p379
      %p382 = scmp.ne.s32.totalorder %s367, %s381
      %p383 = scmp.eq.s32.totalorder %s44, 0
      %p384 = por %p382, %p383
      %s386 = sadd.s32 %s385, 1
      %p389 = scmp.eq.s32.totalorder %s38, 1
      %p390 = scmp.ne.s32.totalorder %s385, %s387
      %p391 = scmp.eq.s32.totalorder %s38, 0
      %p392 = por %p390, %p391
      %p393 = scmp.ne.s32.totalorder %s385, %s387
      %p394 = scmp.eq.s32.totalorder %s43, 1
      %p395 = por %p393, %p394
      %p396 = scmp.ne.s32.totalorder %s387, %s388
      %p397 = scmp.eq.s32.totalorder %s43, 0
      %p398 = por %p396, %p397
      %p399 = scmp.ne.s32.totalorder %s387, %s388
      %p400 = scmp.eq.s32.totalorder %s44, 1
      %p401 = por %p399, %p400
      %p403 = scmp.ne.s32.totalorder %s388, %s402
      %p404 = scmp.eq.s32.totalorder %s44, 0
      %p405 = por %p403, %p404
      %s407 = sadd.s32 %s406, 1
      %p410 = scmp.eq.s32.totalorder %s38, 1
      %p411 = scmp.ne.s32.totalorder %s406, %s408
      %p412 = scmp.eq.s32.totalorder %s38, 0
      %p413 = por %p411, %p412
      %p414 = scmp.ne.s32.totalorder %s406, %s408
      %p415 = scmp.eq.s32.totalorder %s43, 1
      %p416 = por %p414, %p415
      %p417 = scmp.ne.s32.totalorder %s408, %s409
      %p418 = scmp.eq.s32.totalorder %s43, 0
      %p419 = por %p417, %p418
      %p420 = scmp.ne.s32.totalorder %s408, %s409
      %p421 = scmp.eq.s32.totalorder %s44, 1
      %p422 = por %p420, %p421
      %p424 = scmp.ne.s32.totalorder %s409, %s423
      %p425 = scmp.eq.s32.totalorder %s44, 0
      %p426 = por %p424, %p425
      %s428 = sadd.s32 %s427, 1
      %p431 = scmp.eq.s32.totalorder %s38, 1
      %p432 = scmp.ne.s32.totalorder %s427, %s429
      %p433 = scmp.eq.s32.totalorder %s38, 0
      %p434 = por %p432, %p433
      %p435 = scmp.ne.s32.totalorder %s427, %s429
      %p436 = scmp.eq.s32.totalorder %s43, 1
      %p437 = por %p435, %p436
      %p438 = scmp.ne.s32.totalorder %s429, %s430
      %p439 = scmp.eq.s32.totalorder %s43, 0
      %p440 = por %p438, %p439
      %p441 = scmp.ne.s32.totalorder %s429, %s430
      %p442 = scmp.eq.s32.totalorder %s44, 1
      %p443 = por %p441, %p442
      %p445 = scmp.ne.s32.totalorder %s430, %s444
      %p446 = scmp.eq.s32.totalorder %s44, 0
      %p447 = por %p445, %p446
      %s448 = ssub.s32 %s45, %s57
      %s449 = ssub.s32 %s46, %s53
      %s450 = sor.u32 %s448, %s449
      %p451 = scmp.eq.s32.totalorder %s450, 0
      %s453 = sadd.s32 %s452, 1
      %s454 = scalar_select %p451, %s452, %s453
      %p457 = pneg %p451
      %p458 = scmp.eq.s32.totalorder %s38, 1
      %p459 = por %p457, %p458
      %p460 = scmp.ne.s32.totalorder %s452, %s455
      %p461 = scmp.eq.s32.totalorder %s38, 0
      %p462 = por %p460, %p461
      %p463 = scmp.ne.s32.totalorder %s452, %s455
      %p464 = scmp.eq.s32.totalorder %s43, 1
      %p465 = por %p463, %p464
      %p466 = scmp.ne.s32.totalorder %s455, %s456
      %p467 = scmp.eq.s32.totalorder %s43, 0
      %p468 = por %p466, %p467
      %p469 = scmp.ne.s32.totalorder %s455, %s456
      %p470 = scmp.eq.s32.totalorder %s44, 1
      %p471 = por %p469, %p470
      %p473 = scmp.ne.s32.totalorder %s456, %s472
      %p474 = scmp.eq.s32.totalorder %s44, 0
      %p475 = por %p473, %p474
      %s476 = ssub.s32 %s45, %s57
      %s477 = ssub.s32 %s46, %s53
      %s478 = sor.u32 %s476, %s477
      %p479 = scmp.eq.s32.totalorder %s478, 0
      %s481 = sadd.s32 %s480, 1
      %s482 = scalar_select %p479, %s480, %s481
      %p485 = pneg %p479
      %p486 = scmp.eq.s32.totalorder %s38, 1
      %p487 = por %p485, %p486
      %p488 = scmp.ne.s32.totalorder %s480, %s483
      %p489 = scmp.eq.s32.totalorder %s38, 0
      %p490 = por %p488, %p489
      %p491 = scmp.ne.s32.totalorder %s480, %s483
      %p492 = scmp.eq.s32.totalorder %s43, 1
      %p493 = por %p491, %p492
      %p494 = scmp.ne.s32.totalorder %s483, %s484
      %p495 = scmp.eq.s32.totalorder %s43, 0
      %p496 = por %p494, %p495
      %p497 = scmp.ne.s32.totalorder %s483, %s484
      %p498 = scmp.eq.s32.totalorder %s44, 1
      %p499 = por %p497, %p498
      %p501 = scmp.ne.s32.totalorder %s484, %s500
      %p502 = scmp.eq.s32.totalorder %s44, 0
      %p503 = por %p501, %p502
      %p504 = scmp.le.s32.totalorder 1, %s38
      %p505 = scmp.lt.s32.totalorder %s38, 3
      %p506 = pnand %p504, %p505
      %p507 = pneg %p506
      // Predicated region
      $region9: #{tpu_custom_call.1} parent=5 // pred_check
        _
      $region10: #{tpu_custom_call.1} parent=5 // pred_check_branch
        %509 = sbr.rel (%p506) target = $region12
      $region11: #{tpu_custom_call.1} parent=5 // pred_region
        %s510 = ssub.s32 %s38, 1
        // Predicated region
        $region13: #{tpu_custom_call.1} parent=11 // pred_check
          %p511 = pneg %p125
        $region14: #{tpu_custom_call.1} parent=11 // pred_check_branch
          %513 = sbr.rel (%p511) target = $region16
        $region15: #{tpu_custom_call.1} parent=11 // pred_region
          %s515 = ssub.s32 1024, 1024
          %516 = vsyncadd [#allocation8], %s515
          %s517 = sshll.u32 [#allocation9], 4
          %s518 = int_to_ptr.vmem [resolvable:$true] %s517
          %523 = dma.hbm_to_vmem [thread:$0]  %s2, 1024, %s518, [#allocation8], 64, 64, 4
        $region16: #{tpu_custom_call.1} parent=11 // pred_fallthru
          _
        // Predicated region
        $region17: #{tpu_custom_call.1} parent=11 // pred_check
          %p524 = pneg %p146
        $region18: #{tpu_custom_call.1} parent=11 // pred_check_branch
          %526 = sbr.rel (%p524) target = $region20
        $region19: #{tpu_custom_call.1} parent=11 // pred_region
          %s528 = ssub.s32 1024, 1024
          %529 = vsyncadd [#allocation11], %s528
          %s530 = sshll.u32 [#allocation10], 4
          %s531 = int_to_ptr.vmem [resolvable:$true] %s530
          %536 = dma.hbm_to_vmem [thread:$0]  %s3, 1024, %s531, [#allocation11], 64, 64, 4
        $region20: #{tpu_custom_call.1} parent=11 // pred_fallthru
          _
        // Predicated region
        $region21: #{tpu_custom_call.1} parent=11 // pred_check
          %p537 = pneg %p167
        $region22: #{tpu_custom_call.1} parent=11 // pred_check_branch
          %539 = sbr.rel (%p537) target = $region24
        $region23: #{tpu_custom_call.1} parent=11 // pred_region
          %s541 = ssub.s32 1024, 1024
          %542 = vsyncadd [#allocation11], %s541
          %s543 = sshll.u32 [#allocation12], 4
          %s544 = int_to_ptr.vmem [resolvable:$true] %s543
          %549 = dma.hbm_to_vmem [thread:$0]  %s4, 1024, %s544, [#allocation11], 64, 64, 4
        $region24: #{tpu_custom_call.1} parent=11 // pred_fallthru
          _
        // Predicated region
        $region25: #{tpu_custom_call.1} parent=11 // pred_check
          %p550 = pneg %p188
        $region26: #{tpu_custom_call.1} parent=11 // pred_check_branch
          %552 = sbr.rel (%p550) target = $region28
        $region27: #{tpu_custom_call.1} parent=11 // pred_region
          _
        $region28: #{tpu_custom_call.1} parent=11 // pred_fallthru
          _
        // Predicated region
        $region29: #{tpu_custom_call.1} parent=11 // pred_check
          %p553 = pneg %p209
        $region30: #{tpu_custom_call.1} parent=11 // pred_check_branch
          %555 = sbr.rel (%p553) target = $region32
        $region31: #{tpu_custom_call.1} parent=11 // pred_region
          _
        $region32: #{tpu_custom_call.1} parent=11 // pred_fallthru
          _
        // Predicated region
        $region33: #{tpu_custom_call.1} parent=11 // pred_check
          %p556 = pneg %p230
        $region34: #{tpu_custom_call.1} parent=11 // pred_check_branch
          %558 = sbr.rel (%p556) target = $region36
        $region35: #{tpu_custom_call.1} parent=11 // pred_region
          _
        $region36: #{tpu_custom_call.1} parent=11 // pred_fallthru
          _
        // Predicated region
        $region37: #{tpu_custom_call.1} parent=11 // pred_check
          %p559 = pneg %p251
        $region38: #{tpu_custom_call.1} parent=11 // pred_check_branch
          %561 = sbr.rel (%p559) target = $region40
        $region39: #{tpu_custom_call.1} parent=11 // pred_region
          %s563 = ssub.s32 1024, 1024
          %564 = vsyncadd [#allocation14], %s563
          %s565 = sshll.u32 [#allocation13], 4
          %s566 = int_to_ptr.vmem [resolvable:$true] %s565
          %571 = dma.hbm_to_vmem [thread:$0]  %s8, 1024, %s566, [#allocation14], 64, 64, 4
        $region40: #{tpu_custom_call.1} parent=11 // pred_fallthru
          _
        // Predicated region
        $region41: #{tpu_custom_call.1} parent=11 // pred_check
          %p572 = pneg %p272
        $region42: #{tpu_custom_call.1} parent=11 // pred_check_branch
          %574 = sbr.rel (%p572) target = $region44
        $region43: #{tpu_custom_call.1} parent=11 // pred_region
          _
        $region44: #{tpu_custom_call.1} parent=11 // pred_fallthru
          _
        // Predicated region
        $region45: #{tpu_custom_call.1} parent=11 // pred_check
          %p575 = pneg %p293
        $region46: #{tpu_custom_call.1} parent=11 // pred_check_branch
          %577 = sbr.rel (%p575) target = $region48
        $region47: #{tpu_custom_call.1} parent=11 // pred_region
          _
        $region48: #{tpu_custom_call.1} parent=11 // pred_fallthru
          _
        // Predicated region
        $region49: #{tpu_custom_call.1} parent=11 // pred_check
          %p578 = pneg %p314
        $region50: #{tpu_custom_call.1} parent=11 // pred_check_branch
          %580 = sbr.rel (%p578) target = $region52
        $region51: #{tpu_custom_call.1} parent=11 // pred_region
          _
        $region52: #{tpu_custom_call.1} parent=11 // pred_fallthru
          _
        // Predicated region
        $region53: #{tpu_custom_call.1} parent=11 // pred_check
          %p581 = pneg %p335
        $region54: #{tpu_custom_call.1} parent=11 // pred_check_branch
          %583 = sbr.rel (%p581) target = $region56
        $region55: #{tpu_custom_call.1} parent=11 // pred_region
          %s585 = ssub.s32 4096, 4096
          %586 = vsyncadd [#allocation14], %s585
          %s587 = sshll.u32 [#allocation15], 4
          %s588 = int_to_ptr.vmem [resolvable:$true] %s587
          %593 = dma.hbm_to_vmem [thread:$0]  %s12, 4096, %s588, [#allocation14], 256, 256, 16
        $region56: #{tpu_custom_call.1} parent=11 // pred_fallthru
          _
        // Predicated region
        $region57: #{tpu_custom_call.1} parent=11 // pred_check
          %p594 = pneg %p356
        $region58: #{tpu_custom_call.1} parent=11 // pred_check_branch
          %596 = sbr.rel (%p594) target = $region60
        $region59: #{tpu_custom_call.1} parent=11 // pred_region
          _
        $region60: #{tpu_custom_call.1} parent=11 // pred_fallthru
          _
        // Predicated region
        $region61: #{tpu_custom_call.1} parent=11 // pred_check
          %p597 = pneg %p377
        $region62: #{tpu_custom_call.1} parent=11 // pred_check_branch
          %599 = sbr.rel (%p597) target = $region64
        $region63: #{tpu_custom_call.1} parent=11 // pred_region
          %s601 = ssub.s32 4096, 4096
          %602 = vsyncadd [#allocation17], %s601
          %s603 = sshll.u32 [#allocation16], 4
          %s604 = int_to_ptr.vmem [resolvable:$true] %s603
          %609 = dma.hbm_to_vmem [thread:$0]  %s14, 4096, %s604, [#allocation17], 64, 64, 4
        $region64: #{tpu_custom_call.1} parent=11 // pred_fallthru
          _
        // Predicated region
        $region65: #{tpu_custom_call.1} parent=11 // pred_check
          %p610 = pneg %p398
        $region66: #{tpu_custom_call.1} parent=11 // pred_check_branch
          %612 = sbr.rel (%p610) target = $region68
        $region67: #{tpu_custom_call.1} parent=11 // pred_region
          _
        $region68: #{tpu_custom_call.1} parent=11 // pred_fallthru
          _
        // Predicated region
        $region69: #{tpu_custom_call.1} parent=11 // pred_check
          %p613 = pneg %p419
        $region70: #{tpu_custom_call.1} parent=11 // pred_check_branch
          %615 = sbr.rel (%p613) target = $region72
        $region71: #{tpu_custom_call.1} parent=11 // pred_region
          _
        $region72: #{tpu_custom_call.1} parent=11 // pred_fallthru
          _
        // Predicated region
        $region73: #{tpu_custom_call.1} parent=11 // pred_check
          %p616 = pneg %p440
        $region74: #{tpu_custom_call.1} parent=11 // pred_check_branch
          %618 = sbr.rel (%p616) target = $region76
        $region75: #{tpu_custom_call.1} parent=11 // pred_region
          _
        $region76: #{tpu_custom_call.1} parent=11 // pred_fallthru
          _
      $region12: #{tpu_custom_call.1} parent=5 // pred_fallthru
        _
      %p619 = scmp.lt.s32.totalorder %s38, 2
      // Predicated region
      $region77: #{tpu_custom_call.1} parent=5 // pred_check
        %p620 = pneg %p619
      $region78: #{tpu_custom_call.1} parent=5 // pred_check_branch
        %622 = sbr.rel (%p620) target = $region80
      $region79: #{tpu_custom_call.1} parent=5 // pred_region
        // Predicated region
        $region81: #{tpu_custom_call.1} parent=79 // pred_check
          %p623 = pneg %p72
        $region82: #{tpu_custom_call.1} parent=79 // pred_check_branch
          %625 = sbr.rel (%p623) target = $region84
        $region83: #{tpu_custom_call.1} parent=79 // pred_region
          %s626 = sand.u32 %s62, 1
          %s627 = scalar_lea.sflag [#allocation5], %s626
          %s628 = sand.u32 %s62, 1
          %s629 = smul.addr %s628, 16
          %s630 = scalar_lea.vmem [#allocation4], %s629
          %s631 = smul.u32 2, %s46
          %s633 = ssub.s32 256, 256
          %634 = vsyncadd %s627, %s633
          %s635 = smul.addr %s45, 2
          %s636 = sadd.s32 %s631, %s635
          %s637 = smul.addr %s636, 128
          %s638 = scalar_lea.hbm %s0, %s637
          %s639 = sshll.u32 %s630, 4
          %s640 = int_to_ptr.vmem [resolvable:$true] %s639
          %645 = dma.hbm_to_vmem [thread:$0]  %s638, 256, %s640, %s627, 128, 128, 8
        $region84: #{tpu_custom_call.1} parent=79 // pred_fallthru
          _
        // Predicated region
        $region85: #{tpu_custom_call.1} parent=79 // pred_check
          %p646 = pneg %p98
        $region86: #{tpu_custom_call.1} parent=79 // pred_check_branch
          %648 = sbr.rel (%p646) target = $region88
        $region87: #{tpu_custom_call.1} parent=79 // pred_region
          %s649 = sand.u32 %s38, 1
          %s650 = scalar_lea.sflag [#allocation8], %s649
          %s651 = sand.u32 %s88, 1
          %s652 = smul.addr %s651, 16
          %s653 = scalar_lea.vmem [#allocation7], %s652
          %s655 = ssub.s32 256, 256
          %656 = vsyncadd %s650, %s655
          %s657 = smul.addr %s45, 4
          %s658 = smul.addr %s657, 64
          %s659 = scalar_lea.hbm %s1, %s658
          %s660 = sshll.u32 %s653, 4
          %s661 = int_to_ptr.vmem [resolvable:$true] %s660
          %666 = dma.hbm_to_vmem [thread:$0]  %s659, 256, %s661, %s650, 64, 64, 4
        $region88: #{tpu_custom_call.1} parent=79 // pred_fallthru
          _
      $region80: #{tpu_custom_call.1} parent=5 // pred_fallthru
        _
      %p667 = scmp.le.s32.totalorder 1, %s38
      %p668 = scmp.lt.s32.totalorder %s38, 3
      %p669 = pnand %p667, %p668
      %p670 = pneg %p669
      // Predicated region
      $region89: #{tpu_custom_call.1} parent=5 // pred_check
        _
      $region90: #{tpu_custom_call.1} parent=5 // pred_check_branch
        %672 = sbr.rel (%p669) target = $region92
      $region91: #{tpu_custom_call.1} parent=5 // pred_region
        %s673 = ssub.s32 %s38, 1
        %s674 = sand.u32 %s65, 1
        %s675 = scalar_lea.sflag [#allocation5], %s674
        %s676 = sand.u32 %s65, 1
        %s677 = smul.addr %s676, 16
        %s678 = scalar_lea.vmem [#allocation4], %s677
        // Predicated region
        $region93: #{tpu_custom_call.1} parent=91 // pred_check
          %p679 = pneg %p78
        $region94: #{tpu_custom_call.1} parent=91 // pred_check_branch
          %681 = sbr.rel (%p679) target = $region96
        $region95: #{tpu_custom_call.1} parent=91 // pred_region
          %682 = dma.done %s675, 256
        $region96: #{tpu_custom_call.1} parent=91 // pred_fallthru
          _
        %s683 = sand.u32 %s43, 1
        %s684 = scalar_lea.sflag [#allocation8], %s683
        %s685 = sand.u32 %s91, 1
        %s686 = smul.addr %s685, 16
        %s687 = scalar_lea.vmem [#allocation7], %s686
        // Predicated region
        $region97: #{tpu_custom_call.1} parent=91 // pred_check
          %p688 = pneg %p104
        $region98: #{tpu_custom_call.1} parent=91 // pred_check_branch
          %690 = sbr.rel (%p688) target = $region100
        $region99: #{tpu_custom_call.1} parent=91 // pred_region
          %691 = dma.done %s684, 256
        $region100: #{tpu_custom_call.1} parent=91 // pred_fallthru
          _
        // Predicated region
        $region101: #{tpu_custom_call.1} parent=91 // pred_check
          %p692 = pneg %p125
        $region102: #{tpu_custom_call.1} parent=91 // pred_check_branch
          %694 = sbr.rel (%p692) target = $region104
        $region103: #{tpu_custom_call.1} parent=91 // pred_region
          %695 = dma.done [#allocation8], 1024
        $region104: #{tpu_custom_call.1} parent=91 // pred_fallthru
          _
        // Predicated region
        $region105: #{tpu_custom_call.1} parent=91 // pred_check
          %p696 = pneg %p146
        $region106: #{tpu_custom_call.1} parent=91 // pred_check_branch
          %698 = sbr.rel (%p696) target = $region108
        $region107: #{tpu_custom_call.1} parent=91 // pred_region
          %699 = dma.done [#allocation11], 1024
        $region108: #{tpu_custom_call.1} parent=91 // pred_fallthru
          _
        // Predicated region
        $region109: #{tpu_custom_call.1} parent=91 // pred_check
          %p700 = pneg %p167
        $region110: #{tpu_custom_call.1} parent=91 // pred_check_branch
          %702 = sbr.rel (%p700) target = $region112
        $region111: #{tpu_custom_call.1} parent=91 // pred_region
          %703 = dma.done [#allocation11], 1024
        $region112: #{tpu_custom_call.1} parent=91 // pred_fallthru
          _
        // Predicated region
        $region113: #{tpu_custom_call.1} parent=91 // pred_check
          %p704 = pneg %p251
        $region114: #{tpu_custom_call.1} parent=91 // pred_check_branch
          %706 = sbr.rel (%p704) target = $region116
        $region115: #{tpu_custom_call.1} parent=91 // pred_region
          %707 = dma.done [#allocation14], 1024
        $region116: #{tpu_custom_call.1} parent=91 // pred_fallthru
          _
        // Predicated region
        $region117: #{tpu_custom_call.1} parent=91 // pred_check
          %p708 = pneg %p335
        $region118: #{tpu_custom_call.1} parent=91 // pred_check_branch
          %710 = sbr.rel (%p708) target = $region120
        $region119: #{tpu_custom_call.1} parent=91 // pred_region
          %711 = dma.done [#allocation14], 4096
        $region120: #{tpu_custom_call.1} parent=91 // pred_fallthru
          _
        // Predicated region
        $region121: #{tpu_custom_call.1} parent=91 // pred_check
          %p712 = pneg %p377
        $region122: #{tpu_custom_call.1} parent=91 // pred_check_branch
          %714 = sbr.rel (%p712) target = $region124
        $region123: #{tpu_custom_call.1} parent=91 // pred_region
          %715 = dma.done [#allocation17], 4096
        $region124: #{tpu_custom_call.1} parent=91 // pred_fallthru
          _
        %s716 = sand.u32 %s65, 1
        %s717 = scalar_lea.sflag [#allocation5], %s716
        %s718 = sand.u32 %s65, 1
        %s719 = smul.addr %s718, 16
        %s720 = scalar_lea.vmem [#allocation4], %s719
        %p721 = pneg %p78
        %p722 = pneg %p75
        %s723 = sand.u32 %s43, 1
        %s724 = scalar_lea.sflag [#allocation8], %s723
        %s725 = sand.u32 %s91, 1
        %s726 = smul.addr %s725, 16
        %s727 = scalar_lea.vmem [#allocation7], %s726
        %p728 = pneg %p104
        %p729 = pneg %p101
        %p730 = pneg %p125
        %p731 = pneg %p122
        %p732 = pneg %p146
        %p733 = pneg %p143
        %p734 = pneg %p167
        %p735 = pneg %p164
        %p736 = pneg %p188
        %p737 = pneg %p185
        %p738 = pneg %p209
        %p739 = pneg %p206
        %p740 = pneg %p230
        %p741 = pneg %p227
        %p742 = pneg %p251
        %p743 = pneg %p248
        %p744 = pneg %p272
        %p745 = pneg %p269
        %p746 = pneg %p293
        %p747 = pneg %p290
        %p748 = pneg %p314
        %p749 = pneg %p311
        %p750 = pneg %p335
        %p751 = pneg %p332
        %p752 = pneg %p356
        %p753 = pneg %p353
        %p754 = pneg %p377
        %p755 = pneg %p374
        %p756 = pneg %p398
        %p757 = pneg %p395
        %p758 = pneg %p419
        %p759 = pneg %p416
        %p760 = pneg %p440
        %p761 = pneg %p437
        %p762 = pneg %p468
        %p763 = pneg %p465
        %s764 = sand.u32 %s455, 1
        %s765 = scalar_lea.sflag [#allocation6], %s764
        %s766 = sand.u32 %s455, 1
        %s767 = smul.addr %s766, 8
        %s768 = scalar_lea.vmem [#allocation18], %s767
        %p769 = pneg %p496
        %p770 = pneg %p493
        %s771 = smul.u32 2, %s48
        %p772 = scmp.lt.s32.totalorder %s47, 1
        %s773 = scalar_select %p772, %s47, 1
        %p774 = scmp.lt.s32.totalorder %s771, 1
        %s775 = scalar_select %p774, %s771, 1
        %s776 = smul.addr %s773, 2
        %s777 = sadd.s32 %s775, %s776
        %s778 = smul.addr %s777, 8
        %s779 = scalar_lea.vmem %s19, %s778
        %s780 = smul.u32 2, %s48
        %s781 = smul.u32 2, %s48
        %s782 = smul.u32 2, %s48
        %p783 = scmp.lt.s32.totalorder %s47, 1
        %s784 = scalar_select %p783, %s47, 1
        %p785 = scmp.lt.s32.totalorder %s782, 1
        %s786 = scalar_select %p785, %s782, 1
        %s787 = smul.addr %s784, 2
        %s788 = sadd.s32 %s786, %s787
        %s789 = smul.addr %s788, 8
        %s790 = scalar_lea.vmem %s19, %s789
        %s791 = smul.u32 2, %s48
        %p793 = scmp.eq.s32.totalorder %s48, 0
        // Predicated region
        $region125: #{tpu_custom_call.1} parent=91 // pred_check
          %p794 = pneg %p793
        $region126: #{tpu_custom_call.1} parent=91 // pred_check_branch
          %796 = sbr.rel (%p794) target = $region128
        $region127: #{tpu_custom_call.1} parent=91 // pred_region
          %v797 = vld [vmem:[%s687] sm:$0xf]
          %v798 = vld [vmem:[%s687 + $0x4] sm:$0xf]
          %v799 = vld [vmem:[%s687 + $0x8] sm:$0xf]
          %v800 = vld [vmem:[%s687 + $0xc] sm:$0xf]
          %v801 = vld [vmem:[#allocation10] sm:$0xf]
          %v802 = vld [vmem:[#allocation10 + $0x4] sm:$0xf]
          %v803 = vld [vmem:[#allocation10 + $0x8] sm:$0xf]
          %v804 = vld [vmem:[#allocation10 + $0xc] sm:$0xf]
          %v805 = vld [vmem:[#allocation10 + $0x10] sm:$0xf]
          %v806 = vld [vmem:[#allocation10 + $0x14] sm:$0xf]
          %v807 = vld [vmem:[#allocation10 + $0x18] sm:$0xf]
          %v808 = vld [vmem:[#allocation10 + $0x1c] sm:$0xf]
          %v809 = vld [vmem:[#allocation10 + $0x20] sm:$0xf]
          %v810 = vld [vmem:[#allocation10 + $0x24] sm:$0xf]
          %v811 = vld [vmem:[#allocation10 + $0x28] sm:$0xf]
          %v812 = vld [vmem:[#allocation10 + $0x2c] sm:$0xf]
          %v813 = vld [vmem:[#allocation10 + $0x30] sm:$0xf]
          %v814 = vld [vmem:[#allocation10 + $0x34] sm:$0xf]
          %v815 = vld [vmem:[#allocation10 + $0x38] sm:$0xf]
          %v816 = vld [vmem:[#allocation10 + $0x3c] sm:$0xf]
          %v817 = vld [vmem:[%s6] sm:$0x1]
          %v819 = vlaneseq
          %v820 = vshrl.u32 %v819, 7
          %v821 = vsub.s32 0, %v820
          %v822 = vrot.slane %v817, %v821
          %v828 = vunpack.c.l.b16 %v797
          %v829 = vunpack.c.l.b16 %v798
          %v830 = vunpack.c.l.b16 %v799
          %v831 = vunpack.c.l.b16 %v800
          %v832 = vpack.c.b16 %v829, %v828
          %v833 = vpack.c.b16 %v831, %v830
          %v852 = vunpack.c.l.b16 %v801
          %v853 = vunpack.c.l.b16 %v802
          %v854 = vunpack.c.l.b16 %v803
          %v855 = vunpack.c.l.b16 %v804
          %v856 = vunpack.c.l.b16 %v805
          %v857 = vunpack.c.l.b16 %v806
          %v858 = vunpack.c.l.b16 %v807
          %v859 = vunpack.c.l.b16 %v808
          %v860 = vunpack.c.l.b16 %v809
          %v861 = vunpack.c.l.b16 %v810
          %v862 = vunpack.c.l.b16 %v811
          %v863 = vunpack.c.l.b16 %v812
          %v864 = vunpack.c.l.b16 %v813
          %v865 = vunpack.c.l.b16 %v814
          %v866 = vunpack.c.l.b16 %v815
          %v867 = vunpack.c.l.b16 %v816
          %v868 = vpack.c.b16 %v853, %v852
          %v869 = vpack.c.b16 %v855, %v854
          %v870 = vpack.c.b16 %v857, %v856
          %v871 = vpack.c.b16 %v859, %v858
          %v872 = vpack.c.b16 %v861, %v860
          %v873 = vpack.c.b16 %v863, %v862
          %v874 = vpack.c.b16 %v865, %v864
          %v875 = vpack.c.b16 %v867, %v866
          %884 = vmatprep.subr.bf16.mxu0 0
          %885 = vmatpush1.bf16.msra.mxu0 %v875
          %886 = vmatprep.subr.bf16.mxu0 0
          %887 = vmatpush1.bf16.msra.mxu0 %v874
          %888 = vmatprep.subr.bf16.mxu0 0
          %889 = vmatpush1.bf16.msra.mxu0 %v873
          %890 = vmatprep.subr.bf16.mxu0 0
          %891 = vmatpush1.bf16.msra.mxu0 %v872
          %892 = vmatprep.subr.bf16.mxu0 0
          %893 = vmatpush1.bf16.msra.mxu0 %v871
          %894 = vmatprep.subr.bf16.mxu0 0
          %895 = vmatpush1.bf16.msra.mxu0 %v870
          %896 = vmatprep.subr.bf16.mxu0 0
          %897 = vmatpush1.bf16.msra.mxu0 %v869
          %898 = vmatprep.subr.bf16.mxu0 0
          %899 = vmatpush1.bf16.msra.mxu0 %v868
          %900 = vmatprep.subr.bf16.mxu0 0
          %901 = vmatpush2.bf16.msra.mxu0 0
          %902 = vmatprep.subr.bf16.mxu0 0
          %903 = vmatpush2.bf16.msra.mxu0 0
          %904 = vmatprep.subr.bf16.mxu0 0
          %905 = vmatpush2.bf16.msra.mxu0 0
          %906 = vmatprep.subr.bf16.mxu0 0
          %907 = vmatpush2.bf16.msra.mxu0 0
          %908 = vmatprep.subr.bf16.mxu0 0
          %909 = vmatpush2.bf16.msra.mxu0 0
          %910 = vmatprep.subr.bf16.mxu0 0
          %911 = vmatpush2.bf16.msra.mxu0 0
          %912 = vmatprep.subr.bf16.mxu0 0
          %913 = vmatpush2.bf16.msra.mxu0 0
          %914 = vmatprep.subr.bf16.mxu0 0
          %915 = vmatpush2.bf16.msra.mxu0 0
          %916 = vmatprep.mubr.bf16.mxu0 0
          %917 = vmatmul.mubr.bf16.gmra.mxu0 %v832
          %v918 = vpop.f32.mrf.mxu0
          %v919 = vadd.f32 %v822, %v918
          %v920 = vpop.f32.mrf.mxu0
          %v921 = vpop.f32.mrf.mxu0
          %v922 = vadd.f32 %v822, %v921
          %v923 = vpop.f32.mrf.mxu0
          %924 = vmatprep.mubr.bf16.mxu0 0
          %925 = vmatmul.mubr.bf16.gmra.mxu0 %v833
          %v926 = vpop.f32.mrf.mxu0
          %v927 = vadd.f32 %v822, %v926
          %v928 = vpop.f32.mrf.mxu0
          %v929 = vpop.f32.mrf.mxu0
          %v930 = vadd.f32 %v822, %v929
          %v931 = vpop.f32.mrf.mxu0
          %932 = vdwg.mxu0
          %v933 = vld [vmem:[#allocation12] sm:$0xf]
          %v934 = vld [vmem:[#allocation12 + $0x4] sm:$0xf]
          %v935 = vld [vmem:[#allocation12 + $0x8] sm:$0xf]
          %v936 = vld [vmem:[#allocation12 + $0xc] sm:$0xf]
          %v937 = vld [vmem:[#allocation12 + $0x10] sm:$0xf]
          %v938 = vld [vmem:[#allocation12 + $0x14] sm:$0xf]
          %v939 = vld [vmem:[#allocation12 + $0x18] sm:$0xf]
          %v940 = vld [vmem:[#allocation12 + $0x1c] sm:$0xf]
          %v941 = vld [vmem:[#allocation12 + $0x20] sm:$0xf]
          %v942 = vld [vmem:[#allocation12 + $0x24] sm:$0xf]
          %v943 = vld [vmem:[#allocation12 + $0x28] sm:$0xf]
          %v944 = vld [vmem:[#allocation12 + $0x2c] sm:$0xf]
          %v945 = vld [vmem:[#allocation12 + $0x30] sm:$0xf]
          %v946 = vld [vmem:[#allocation12 + $0x34] sm:$0xf]
          %v947 = vld [vmem:[#allocation12 + $0x38] sm:$0xf]
          %v948 = vld [vmem:[#allocation12 + $0x3c] sm:$0xf]
          %v949 = vld [vmem:[%s7] sm:$0x1]
          %v951 = vlaneseq
          %v952 = vshrl.u32 %v951, 7
          %v953 = vsub.s32 0, %v952
          %v954 = vrot.slane %v949, %v953
          %v972 = vunpack.c.l.b16 %v933
          %v973 = vunpack.c.l.b16 %v934
          %v974 = vunpack.c.l.b16 %v935
          %v975 = vunpack.c.l.b16 %v936
          %v976 = vunpack.c.l.b16 %v937
          %v977 = vunpack.c.l.b16 %v938
          %v978 = vunpack.c.l.b16 %v939
          %v979 = vunpack.c.l.b16 %v940
          %v980 = vunpack.c.l.b16 %v941
          %v981 = vunpack.c.l.b16 %v942
          %v982 = vunpack.c.l.b16 %v943
          %v983 = vunpack.c.l.b16 %v944
          %v984 = vunpack.c.l.b16 %v945
          %v985 = vunpack.c.l.b16 %v946
          %v986 = vunpack.c.l.b16 %v947
          %v987 = vunpack.c.l.b16 %v948
          %v988 = vpack.c.b16 %v973, %v972
          %v989 = vpack.c.b16 %v975, %v974
          %v990 = vpack.c.b16 %v977, %v976
          %v991 = vpack.c.b16 %v979, %v978
          %v992 = vpack.c.b16 %v981, %v980
          %v993 = vpack.c.b16 %v983, %v982
          %v994 = vpack.c.b16 %v985, %v984
          %v995 = vpack.c.b16 %v987, %v986
          %1004 = vmatprep.subr.bf16.mxu0 0
          %1005 = vmatpush1.bf16.msra.mxu0 %v995
          %1006 = vmatprep.subr.bf16.mxu0 0
          %1007 = vmatpush1.bf16.msra.mxu0 %v994
          %1008 = vmatprep.subr.bf16.mxu0 0
          %1009 = vmatpush1.bf16.msra.mxu0 %v993
          %1010 = vmatprep.subr.bf16.mxu0 0
          %1011 = vmatpush1.bf16.msra.mxu0 %v992
          %1012 = vmatprep.subr.bf16.mxu0 0
          %1013 = vmatpush1.bf16.msra.mxu0 %v991
          %1014 = vmatprep.subr.bf16.mxu0 0
          %1015 = vmatpush1.bf16.msra.mxu0 %v990
          %1016 = vmatprep.subr.bf16.mxu0 0
          %1017 = vmatpush1.bf16.msra.mxu0 %v989
          %1018 = vmatprep.subr.bf16.mxu0 0
          %1019 = vmatpush1.bf16.msra.mxu0 %v988
          %1020 = vmatprep.subr.bf16.mxu0 0
          %1021 = vmatpush2.bf16.msra.mxu0 0
          %1022 = vmatprep.subr.bf16.mxu0 0
          %1023 = vmatpush2.bf16.msra.mxu0 0
          %1024 = vmatprep.subr.bf16.mxu0 0
          %1025 = vmatpush2.bf16.msra.mxu0 0
          %1026 = vmatprep.subr.bf16.mxu0 0
          %1027 = vmatpush2.bf16.msra.mxu0 0
          %1028 = vmatprep.subr.bf16.mxu0 0
          %1029 = vmatpush2.bf16.msra.mxu0 0
          %1030 = vmatprep.subr.bf16.mxu0 0
          %1031 = vmatpush2.bf16.msra.mxu0 0
          %1032 = vmatprep.subr.bf16.mxu0 0
          %1033 = vmatpush2.bf16.msra.mxu0 0
          %1034 = vmatprep.subr.bf16.mxu0 0
          %1035 = vmatpush2.bf16.msra.mxu0 0
          %1036 = vmatprep.mubr.bf16.mxu0 0
          %1037 = vmatmul.mubr.bf16.gmra.mxu0 %v832
          %v1038 = vpop.f32.mrf.mxu0
          %v1039 = vadd.f32 %v954, %v1038
          %v1040 = vpop.f32.mrf.mxu0
          %v1041 = vpop.f32.mrf.mxu0
          %v1042 = vadd.f32 %v954, %v1041
          %v1043 = vpop.f32.mrf.mxu0
          %1044 = vmatprep.mubr.bf16.mxu0 0
          %1045 = vmatmul.mubr.bf16.gmra.mxu0 %v833
          %v1046 = vpop.f32.mrf.mxu0
          %v1047 = vadd.f32 %v954, %v1046
          %v1048 = vpop.f32.mrf.mxu0
          %v1049 = vpop.f32.mrf.mxu0
          %v1050 = vadd.f32 %v954, %v1049
          %v1051 = vpop.f32.mrf.mxu0
          %1052 = vdwg.mxu0
          %v1053 = vpack.c.bf16 %v922, %v919
          %v1054 = vpack.c.bf16 %v930, %v927
          %v1057 = vunpack.c.l.b16 %v1053
          %v1058 = vunpack.c.h.b16 %v1053
          %v1059 = vunpack.c.l.b16 %v1054
          %v1060 = vunpack.c.h.b16 %v1054
          %v1061 = vpack.c.b16 %v1057, %v1057
          %v1062 = vpack.c.b16 %v1058, %v1058
          %v1063 = vpack.c.b16 %v1059, %v1059
          %v1064 = vpack.c.b16 %v1060, %v1060
          %vm1069 = vcmask 257024
          %1070 = vst.msk [vmem:[#allocation2] sm:$0xf] %vm1069, %v1061
          %1071 = vst.msk [vmem:[#allocation2 + $0x4] sm:$0xf] %vm1069, %v1062
          %1072 = vst.msk [vmem:[#allocation2 + $0x8] sm:$0xf] %vm1069, %v1063
          %1073 = vst.msk [vmem:[#allocation2 + $0xc] sm:$0xf] %vm1069, %v1064
          %v1074 = vpack.c.bf16 %v1042, %v1039
          %v1075 = vpack.c.bf16 %v1050, %v1047
          %v1078 = vunpack.c.l.b16 %v1074
          %v1079 = vunpack.c.h.b16 %v1074
          %v1080 = vunpack.c.l.b16 %v1075
          %v1081 = vunpack.c.h.b16 %v1075
          %v1082 = vpack.c.b16 %v1078, %v1078
          %v1083 = vpack.c.b16 %v1079, %v1079
          %v1084 = vpack.c.b16 %v1080, %v1080
          %v1085 = vpack.c.b16 %v1081, %v1081
          %1090 = vst.msk [vmem:[#allocation3] sm:$0xf] %vm1069, %v1082
          %1091 = vst.msk [vmem:[#allocation3 + $0x4] sm:$0xf] %vm1069, %v1083
          %1092 = vst.msk [vmem:[#allocation3 + $0x8] sm:$0xf] %vm1069, %v1084
          %1093 = vst.msk [vmem:[#allocation3 + $0xc] sm:$0xf] %vm1069, %v1085
          %1094 = vrot.lane.b32.xlu0 %v1061, 96
          %v1095 = vpop.permute.xlu0 %1094
          %1096 = vrot.lane.b32.xlu0 %v1062, 96
          %v1097 = vpop.permute.xlu0 %1096
          %1098 = vrot.lane.b32.xlu0 %v1063, 96
          %v1099 = vpop.permute.xlu0 %1098
          %1100 = vrot.lane.b32.xlu0 %v1064, 96
          %v1101 = vpop.permute.xlu0 %1100
          %s1106 = scalar_lea.vmem [#allocation2], 16
          %1107 = vst.msk [vmem:[%s1106] sm:$0xf] %vm1069, %v1095
          %1108 = vst.msk [vmem:[%s1106 + $0x4] sm:$0xf] %vm1069, %v1097
          %1109 = vst.msk [vmem:[%s1106 + $0x8] sm:$0xf] %vm1069, %v1099
          %1110 = vst.msk [vmem:[%s1106 + $0xc] sm:$0xf] %vm1069, %v1101
          %1111 = vrot.lane.b32.xlu0 %v1082, 96
          %v1112 = vpop.permute.xlu0 %1111
          %1113 = vrot.lane.b32.xlu0 %v1083, 96
          %v1114 = vpop.permute.xlu0 %1113
          %1115 = vrot.lane.b32.xlu0 %v1084, 96
          %v1116 = vpop.permute.xlu0 %1115
          %1117 = vrot.lane.b32.xlu0 %v1085, 96
          %v1118 = vpop.permute.xlu0 %1117
          %s1123 = scalar_lea.vmem [#allocation3], 16
          %1124 = vst.msk [vmem:[%s1123] sm:$0xf] %vm1069, %v1112
          %1125 = vst.msk [vmem:[%s1123 + $0x4] sm:$0xf] %vm1069, %v1114
          %1126 = vst.msk [vmem:[%s1123 + $0x8] sm:$0xf] %vm1069, %v1116
          %1127 = vst.msk [vmem:[%s1123 + $0xc] sm:$0xf] %vm1069, %v1118
          %1128 = vrot.lane.b32.xlu0 %v1061, 64
          %v1129 = vpop.permute.xlu0 %1128
          %1130 = vrot.lane.b32.xlu0 %v1062, 64
          %v1131 = vpop.permute.xlu0 %1130
          %1132 = vrot.lane.b32.xlu0 %v1063, 64
          %v1133 = vpop.permute.xlu0 %1132
          %1134 = vrot.lane.b32.xlu0 %v1064, 64
          %v1135 = vpop.permute.xlu0 %1134
          %s1140 = scalar_lea.vmem [#allocation2], 32
          %1141 = vst.msk [vmem:[%s1140] sm:$0xf] %vm1069, %v1129
          %1142 = vst.msk [vmem:[%s1140 + $0x4] sm:$0xf] %vm1069, %v1131
          %1143 = vst.msk [vmem:[%s1140 + $0x8] sm:$0xf] %vm1069, %v1133
          %1144 = vst.msk [vmem:[%s1140 + $0xc] sm:$0xf] %vm1069, %v1135
          %1145 = vrot.lane.b32.xlu0 %v1082, 64
          %v1146 = vpop.permute.xlu0 %1145
          %1147 = vrot.lane.b32.xlu0 %v1083, 64
          %v1148 = vpop.permute.xlu0 %1147
          %1149 = vrot.lane.b32.xlu0 %v1084, 64
          %v1150 = vpop.permute.xlu0 %1149
          %1151 = vrot.lane.b32.xlu0 %v1085, 64
          %v1152 = vpop.permute.xlu0 %1151
          %s1157 = scalar_lea.vmem [#allocation3], 32
          %1158 = vst.msk [vmem:[%s1157] sm:$0xf] %vm1069, %v1146
          %1159 = vst.msk [vmem:[%s1157 + $0x4] sm:$0xf] %vm1069, %v1148
          %1160 = vst.msk [vmem:[%s1157 + $0x8] sm:$0xf] %vm1069, %v1150
          %1161 = vst.msk [vmem:[%s1157 + $0xc] sm:$0xf] %vm1069, %v1152
          %1162 = vrot.lane.b32.xlu0 %v1061, 32
          %v1163 = vpop.permute.xlu0 %1162
          %1164 = vrot.lane.b32.xlu0 %v1062, 32
          %v1165 = vpop.permute.xlu0 %1164
          %1166 = vrot.lane.b32.xlu0 %v1063, 32
          %v1167 = vpop.permute.xlu0 %1166
          %1168 = vrot.lane.b32.xlu0 %v1064, 32
          %v1169 = vpop.permute.xlu0 %1168
          %s1174 = scalar_lea.vmem [#allocation2], 48
          %1175 = vst.msk [vmem:[%s1174] sm:$0xf] %vm1069, %v1163
          %1176 = vst.msk [vmem:[%s1174 + $0x4] sm:$0xf] %vm1069, %v1165
          %1177 = vst.msk [vmem:[%s1174 + $0x8] sm:$0xf] %vm1069, %v1167
          %1178 = vst.msk [vmem:[%s1174 + $0xc] sm:$0xf] %vm1069, %v1169
          %1179 = vrot.lane.b32.xlu0 %v1082, 32
          %v1180 = vpop.permute.xlu0 %1179
          %1181 = vrot.lane.b32.xlu0 %v1083, 32
          %v1182 = vpop.permute.xlu0 %1181
          %1183 = vrot.lane.b32.xlu0 %v1084, 32
          %v1184 = vpop.permute.xlu0 %1183
          %1185 = vrot.lane.b32.xlu0 %v1085, 32
          %v1186 = vpop.permute.xlu0 %1185
          %s1191 = scalar_lea.vmem [#allocation3], 48
          %1192 = vst.msk [vmem:[%s1191] sm:$0xf] %vm1069, %v1180
          %1193 = vst.msk [vmem:[%s1191 + $0x4] sm:$0xf] %vm1069, %v1182
          %1194 = vst.msk [vmem:[%s1191 + $0x8] sm:$0xf] %vm1069, %v1184
          %1195 = vst.msk [vmem:[%s1191 + $0xc] sm:$0xf] %vm1069, %v1186
        $region128: #{tpu_custom_call.1} parent=91 // pred_fallthru
          _
        %v1196 = vld [vmem:[%s678] sm:$0xff]
        %v1197 = vld [vmem:[%s678 + $0x8] sm:$0xff]
        %v1198 = vpack.c.bf16 %v1197, %v1196
        %v1199 = vld [vmem:[#allocation9] sm:$0xf]
        %v1200 = vld [vmem:[#allocation9 + $0x4] sm:$0xf]
        %v1201 = vld [vmem:[#allocation9 + $0x8] sm:$0xf]
        %v1202 = vld [vmem:[#allocation9 + $0xc] sm:$0xf]
        %v1203 = vld [vmem:[#allocation9 + $0x10] sm:$0xf]
        %v1204 = vld [vmem:[#allocation9 + $0x14] sm:$0xf]
        %v1205 = vld [vmem:[#allocation9 + $0x18] sm:$0xf]
        %v1206 = vld [vmem:[#allocation9 + $0x1c] sm:$0xf]
        %v1207 = vld [vmem:[#allocation9 + $0x20] sm:$0xf]
        %v1208 = vld [vmem:[#allocation9 + $0x24] sm:$0xf]
        %v1209 = vld [vmem:[#allocation9 + $0x28] sm:$0xf]
        %v1210 = vld [vmem:[#allocation9 + $0x2c] sm:$0xf]
        %v1211 = vld [vmem:[#allocation9 + $0x30] sm:$0xf]
        %v1212 = vld [vmem:[#allocation9 + $0x34] sm:$0xf]
        %v1213 = vld [vmem:[#allocation9 + $0x38] sm:$0xf]
        %v1214 = vld [vmem:[#allocation9 + $0x3c] sm:$0xf]
        %v1215 = vld [vmem:[%s5] sm:$0x1]
        %v1217 = vlaneseq
        %v1218 = vshrl.u32 %v1217, 7
        %v1219 = vsub.s32 0, %v1218
        %v1220 = vrot.slane %v1215, %v1219
        %v1238 = vunpack.c.l.b16 %v1199
        %v1239 = vunpack.c.l.b16 %v1200
        %v1240 = vunpack.c.l.b16 %v1201
        %v1241 = vunpack.c.l.b16 %v1202
        %v1242 = vunpack.c.l.b16 %v1203
        %v1243 = vunpack.c.l.b16 %v1204
        %v1244 = vunpack.c.l.b16 %v1205
        %v1245 = vunpack.c.l.b16 %v1206
        %v1246 = vunpack.c.l.b16 %v1207
        %v1247 = vunpack.c.l.b16 %v1208
        %v1248 = vunpack.c.l.b16 %v1209
        %v1249 = vunpack.c.l.b16 %v1210
        %v1250 = vunpack.c.l.b16 %v1211
        %v1251 = vunpack.c.l.b16 %v1212
        %v1252 = vunpack.c.l.b16 %v1213
        %v1253 = vunpack.c.l.b16 %v1214
        %v1254 = vpack.c.b16 %v1239, %v1238
        %v1255 = vpack.c.b16 %v1241, %v1240
        %v1256 = vpack.c.b16 %v1243, %v1242
        %v1257 = vpack.c.b16 %v1245, %v1244
        %v1258 = vpack.c.b16 %v1247, %v1246
        %v1259 = vpack.c.b16 %v1249, %v1248
        %v1260 = vpack.c.b16 %v1251, %v1250
        %v1261 = vpack.c.b16 %v1253, %v1252
        %1270 = vmatprep.subr.bf16.mxu0 0
        %1271 = vmatpush1.bf16.msra.mxu0 %v1261
        %1272 = vmatprep.subr.bf16.mxu0 0
        %1273 = vmatpush1.bf16.msra.mxu0 %v1260
        %1274 = vmatprep.subr.bf16.mxu0 0
        %1275 = vmatpush1.bf16.msra.mxu0 %v1259
        %1276 = vmatprep.subr.bf16.mxu0 0
        %1277 = vmatpush1.bf16.msra.mxu0 %v1258
        %1278 = vmatprep.subr.bf16.mxu0 0
        %1279 = vmatpush1.bf16.msra.mxu0 %v1257
        %1280 = vmatprep.subr.bf16.mxu0 0
        %1281 = vmatpush1.bf16.msra.mxu0 %v1256
        %1282 = vmatprep.subr.bf16.mxu0 0
        %1283 = vmatpush1.bf16.msra.mxu0 %v1255
        %1284 = vmatprep.subr.bf16.mxu0 0
        %1285 = vmatpush1.bf16.msra.mxu0 %v1254
        %1286 = vmatprep.subr.bf16.mxu0 0
        %1287 = vmatpush2.bf16.msra.mxu0 0
        %1288 = vmatprep.subr.bf16.mxu0 0
        %1289 = vmatpush2.bf16.msra.mxu0 0
        %1290 = vmatprep.subr.bf16.mxu0 0
        %1291 = vmatpush2.bf16.msra.mxu0 0
        %1292 = vmatprep.subr.bf16.mxu0 0
        %1293 = vmatpush2.bf16.msra.mxu0 0
        %1294 = vmatprep.subr.bf16.mxu0 0
        %1295 = vmatpush2.bf16.msra.mxu0 0
        %1296 = vmatprep.subr.bf16.mxu0 0
        %1297 = vmatpush2.bf16.msra.mxu0 0
        %1298 = vmatprep.subr.bf16.mxu0 0
        %1299 = vmatpush2.bf16.msra.mxu0 0
        %1300 = vmatprep.subr.bf16.mxu0 0
        %1301 = vmatpush2.bf16.msra.mxu0 0
        %1302 = vmatprep.mubr.bf16.mxu0 0
        %1303 = vmatmul.mubr.bf16.gmra.mxu0 %v1198
        %v1304 = vpop.f32.mrf.mxu0
        %v1305 = vadd.f32 %v1220, %v1304
        %v1306 = vpop.f32.mrf.mxu0
        %v1307 = vpop.f32.mrf.mxu0
        %v1308 = vadd.f32 %v1220, %v1307
        %v1309 = vpop.f32.mrf.mxu0
        %1310 = vdwg.mxu0
        %v1311 = vpack.c.bf16 %v1308, %v1305
        %v1312 = vld [vmem:[#allocation2] sm:$0xf]
        %v1313 = vld [vmem:[#allocation2 + $0x4] sm:$0xf]
        %v1314 = vld [vmem:[#allocation2 + $0x8] sm:$0xf]
        %v1315 = vld [vmem:[#allocation2 + $0xc] sm:$0xf]
        %v1320 = vunpack.c.l.b16 %v1312
        %v1321 = vunpack.c.l.b16 %v1313
        %v1322 = vunpack.c.l.b16 %v1314
        %v1323 = vunpack.c.l.b16 %v1315
        %v1324 = vpack.c.b16 %v1321, %v1320
        %v1325 = vpack.c.b16 %v1323, %v1322
        %vm1326 = vcmask 261120
        %v1328 = vsel %vm1326, %v1311, 0
        %v1331 = vsel %vm1326, %v1324, 0
        %v1334 = vsel %vm1326, %v1325, 0
        %1336 = vmatprep.subr.bf16.mxu0 0
        %1337 = vmatpush1.bf16.xpose.msra.mxu0 0
        %1338 = vmatprep.subr.bf16.mxu0 0
        %1339 = vmatpush1.bf16.xpose.msra.mxu0 0
        %1340 = vmatprep.subr.bf16.mxu0 0
        %1341 = vmatpush1.bf16.xpose.msra.mxu0 0
        %1342 = vmatprep.subr.bf16.mxu0 0
        %1343 = vmatpush1.bf16.xpose.msra.mxu0 0
        %1344 = vmatprep.subr.bf16.mxu0 0
        %1345 = vmatpush1.bf16.xpose.msra.mxu0 0
        %1346 = vmatprep.subr.bf16.mxu0 0
        %1347 = vmatpush1.bf16.xpose.msra.mxu0 0
        %1348 = vmatprep.subr.bf16.mxu0 0
        %1349 = vmatpush1.bf16.xpose.msra.mxu0 %v1334
        %1350 = vmatprep.subr.bf16.mxu0 0
        %1351 = vmatpush1.bf16.xpose.msra.mxu0 %v1331
        %1352 = vmatprep.subr.bf16.mxu0 0
        %1353 = vmatpush2.bf16.xpose.msra.mxu0 0
        %1354 = vmatprep.subr.bf16.mxu0 0
        %1355 = vmatpush2.bf16.xpose.msra.mxu0 0
        %1356 = vmatprep.subr.bf16.mxu0 0
        %1357 = vmatpush2.bf16.xpose.msra.mxu0 0
        %1358 = vmatprep.subr.bf16.mxu0 0
        %1359 = vmatpush2.bf16.xpose.msra.mxu0 0
        %1360 = vmatprep.subr.bf16.mxu0 0
        %1361 = vmatpush2.bf16.xpose.msra.mxu0 0
        %1362 = vmatprep.subr.bf16.mxu0 0
        %1363 = vmatpush2.bf16.xpose.msra.mxu0 0
        %1364 = vmatprep.subr.bf16.mxu0 0
        %1365 = vmatpush2.bf16.xpose.msra.mxu0 0
        %1366 = vmatprep.subr.bf16.mxu0 0
        %1367 = vmatpush2.bf16.xpose.msra.mxu0 0
        %1368 = vmatprep.mubr.bf16.mxu0 0
        %1369 = vmatmul.mubr.bf16.gmra.mxu0 %v1328
        %v1370 = vpop.f32.mrf.mxu0
        %v1371 = vadd.f32 0.0, %v1370
        %v1372 = vpop.f32.mrf.mxu0
        %v1373 = vpop.f32.mrf.mxu0
        %v1374 = vadd.f32 0.0, %v1373
        %v1375 = vpop.f32.mrf.mxu0
        %1376 = vdwg.mxu0
        %v1377 = vmul.f32 %v1371, 0.17677669
        %v1378 = vmul.f32 %v1374, 0.17677669
        %v1379 = vsel %vm1326, %v1377, -inf
        %1380 = vmax.xlane.f32.xlu0 %v1379
        %v1381 = vpop.xlane.xlu0 %1380
        %v1382 = vsel %vm1326, %v1378, -inf
        %1383 = vmax.xlane.f32.xlu0 %v1382
        %v1384 = vpop.xlane.xlu0 %1383
        %v1385 = vsub.f32 %v1377, %v1381
        %v1386 = vsub.f32 %v1378, %v1384
        %v1387 = vmul.f32 %v1385, 1.442695
        %v1388 = vpow.pop %v1387
        %v1389 = vmul.f32 %v1386, 1.442695
        %v1390 = vpow.pop %v1389
        %v1391 = vsel %vm1326, %v1388, 0.0
        %1392 = vadd.xlane.f32.xlu0 %v1391
        %v1393 = vpop.xlane.xlu0 %1392
        %v1394 = vsel %vm1326, %v1390, 0.0
        %1395 = vadd.xlane.f32.xlu0 %v1394
        %v1396 = vpop.xlane.xlu0 %1395
        %v1397 = vrcp.pop %v1393
        %v1398 = vmul.f32 1.0, %v1397
        %v1399 = vrcp.pop %v1396
        %v1400 = vmul.f32 1.0, %v1399
        %v1401 = vlog2.pop %v1393
        %v1402 = vmul.f32 %v1401, 0.6931472
        %v1403 = vlog2.pop %v1396
        %v1404 = vmul.f32 %v1403, 0.6931472
        %v1405 = vmul.f32 %v1388, %v1385
        %v1406 = vmul.f32 %v1390, %v1386
        %v1407 = vsel %vm1326, %v1405, 0.0
        %1408 = vadd.xlane.f32.xlu0 %v1407
        %v1409 = vpop.xlane.xlu0 %1408
        %v1410 = vsel %vm1326, %v1406, 0.0
        %1411 = vadd.xlane.f32.xlu0 %v1410
        %v1412 = vpop.xlane.xlu0 %1411
        %v1413 = vmul.f32 %v1409, %v1398
        %v1414 = vmul.f32 %v1412, %v1400
        %v1415 = vsub.f32 %v1402, %v1413
        %v1416 = vsub.f32 %v1404, %v1414
        %v1417 = vpack.c.bf16 %v1390, %v1388
        %v1418 = vld [vmem:[#allocation3] sm:$0xf]
        %v1419 = vld [vmem:[#allocation3 + $0x4] sm:$0xf]
        %v1420 = vld [vmem:[#allocation3 + $0x8] sm:$0xf]
        %v1421 = vld [vmem:[#allocation3 + $0xc] sm:$0xf]
        %v1426 = vunpack.c.l.b16 %v1418
        %v1427 = vunpack.c.l.b16 %v1419
        %v1428 = vunpack.c.l.b16 %v1420
        %v1429 = vunpack.c.l.b16 %v1421
        %v1430 = vpack.c.b16 %v1427, %v1426
        %v1431 = vpack.c.b16 %v1429, %v1428
        %v1435 = vsel %vm1326, %v1417, 0
        %1437 = vmatprep.subr.bf16.mxu0 0
        %1438 = vmatpush1.bf16.msra.mxu0 0
        %1439 = vmatprep.subr.bf16.mxu0 0
        %1440 = vmatpush1.bf16.msra.mxu0 0
        %1441 = vmatprep.subr.bf16.mxu0 0
        %1442 = vmatpush1.bf16.msra.mxu0 0
        %1443 = vmatprep.subr.bf16.mxu0 0
        %1444 = vmatpush1.bf16.msra.mxu0 0
        %1445 = vmatprep.subr.bf16.mxu0 0
        %1446 = vmatpush1.bf16.msra.mxu0 0
        %1447 = vmatprep.subr.bf16.mxu0 0
        %1448 = vmatpush1.bf16.msra.mxu0 0
        %1449 = vmatprep.subr.bf16.mxu0 0
        %1450 = vmatpush1.bf16.msra.mxu0 %v1431
        %1451 = vmatprep.subr.bf16.mxu0 0
        %1452 = vmatpush1.bf16.msra.mxu0 %v1430
        %1453 = vmatprep.subr.bf16.mxu0 0
        %1454 = vmatpush2.bf16.msra.mxu0 0
        %1455 = vmatprep.subr.bf16.mxu0 0
        %1456 = vmatpush2.bf16.msra.mxu0 0
        %1457 = vmatprep.subr.bf16.mxu0 0
        %1458 = vmatpush2.bf16.msra.mxu0 0
        %1459 = vmatprep.subr.bf16.mxu0 0
        %1460 = vmatpush2.bf16.msra.mxu0 0
        %1461 = vmatprep.subr.bf16.mxu0 0
        %1462 = vmatpush2.bf16.msra.mxu0 0
        %1463 = vmatprep.subr.bf16.mxu0 0
        %1464 = vmatpush2.bf16.msra.mxu0 0
        %1465 = vmatprep.subr.bf16.mxu0 0
        %1466 = vmatpush2.bf16.msra.mxu0 0
        %1467 = vmatprep.subr.bf16.mxu0 0
        %1468 = vmatpush2.bf16.msra.mxu0 0
        %1469 = vmatprep.mubr.bf16.mxu0 0
        %1470 = vmatmul.mubr.bf16.gmra.mxu0 %v1435
        %v1471 = vpop.f32.mrf.mxu0
        %v1472 = vadd.f32 0.0, %v1471
        %v1473 = vpop.f32.mrf.mxu0
        %v1474 = vpop.f32.mrf.mxu0
        %v1475 = vadd.f32 0.0, %v1474
        %v1476 = vpop.f32.mrf.mxu0
        %1477 = vdwg.mxu0
        %v1478 = vmul.f32 %v1472, %v1398
        %v1479 = vmul.f32 %v1475, %v1400
        %v1480 = vpack.c.bf16 %v1479, %v1478
        %s1481 = scalar_lea.vmem [#allocation2], 16
        %v1482 = vld [vmem:[%s1481] sm:$0xf]
        %v1483 = vld [vmem:[%s1481 + $0x4] sm:$0xf]
        %v1484 = vld [vmem:[%s1481 + $0x8] sm:$0xf]
        %v1485 = vld [vmem:[%s1481 + $0xc] sm:$0xf]
        %1487 = vrot.lane.b32.xlu0 %v1311, 96
        %v1488 = vpop.permute.xlu0 %1487
        %v1493 = vunpack.c.l.b16 %v1482
        %v1494 = vunpack.c.l.b16 %v1483
        %v1495 = vunpack.c.l.b16 %v1484
        %v1496 = vunpack.c.l.b16 %v1485
        %v1497 = vpack.c.b16 %v1494, %v1493
        %v1498 = vpack.c.b16 %v1496, %v1495
        %v1500 = vsel %vm1326, %v1488, 0
        %v1503 = vsel %vm1326, %v1497, 0
        %v1506 = vsel %vm1326, %v1498, 0
        %1508 = vmatprep.subr.bf16.mxu0 0
        %1509 = vmatpush1.bf16.xpose.msra.mxu0 0
        %1510 = vmatprep.subr.bf16.mxu0 0
        %1511 = vmatpush1.bf16.xpose.msra.mxu0 0
        %1512 = vmatprep.subr.bf16.mxu0 0
        %1513 = vmatpush1.bf16.xpose.msra.mxu0 0
        %1514 = vmatprep.subr.bf16.mxu0 0
        %1515 = vmatpush1.bf16.xpose.msra.mxu0 0
        %1516 = vmatprep.subr.bf16.mxu0 0
        %1517 = vmatpush1.bf16.xpose.msra.mxu0 0
        %1518 = vmatprep.subr.bf16.mxu0 0
        %1519 = vmatpush1.bf16.xpose.msra.mxu0 0
        %1520 = vmatprep.subr.bf16.mxu0 0
        %1521 = vmatpush1.bf16.xpose.msra.mxu0 %v1506
        %1522 = vmatprep.subr.bf16.mxu0 0
        %1523 = vmatpush1.bf16.xpose.msra.mxu0 %v1503
        %1524 = vmatprep.subr.bf16.mxu0 0
        %1525 = vmatpush2.bf16.xpose.msra.mxu0 0
        %1526 = vmatprep.subr.bf16.mxu0 0
        %1527 = vmatpush2.bf16.xpose.msra.mxu0 0
        %1528 = vmatprep.subr.bf16.mxu0 0
        %1529 = vmatpush2.bf16.xpose.msra.mxu0 0
        %1530 = vmatprep.subr.bf16.mxu0 0
        %1531 = vmatpush2.bf16.xpose.msra.mxu0 0
        %1532 = vmatprep.subr.bf16.mxu0 0
        %1533 = vmatpush2.bf16.xpose.msra.mxu0 0
        %1534 = vmatprep.subr.bf16.mxu0 0
        %1535 = vmatpush2.bf16.xpose.msra.mxu0 0
        %1536 = vmatprep.subr.bf16.mxu0 0
        %1537 = vmatpush2.bf16.xpose.msra.mxu0 0
        %1538 = vmatprep.subr.bf16.mxu0 0
        %1539 = vmatpush2.bf16.xpose.msra.mxu0 0
        %1540 = vmatprep.mubr.bf16.mxu0 0
        %1541 = vmatmul.mubr.bf16.gmra.mxu0 %v1500
        %v1542 = vpop.f32.mrf.mxu0
        %v1543 = vadd.f32 0.0, %v1542
        %v1544 = vpop.f32.mrf.mxu0
        %v1545 = vpop.f32.mrf.mxu0
        %v1546 = vadd.f32 0.0, %v1545
        %v1547 = vpop.f32.mrf.mxu0
        %1548 = vdwg.mxu0
        %v1549 = vmul.f32 %v1543, 0.17677669
        %v1550 = vmul.f32 %v1546, 0.17677669
        %v1551 = vsel %vm1326, %v1549, -inf
        %1552 = vmax.xlane.f32.xlu0 %v1551
        %v1553 = vpop.xlane.xlu0 %1552
        %v1554 = vsel %vm1326, %v1550, -inf
        %1555 = vmax.xlane.f32.xlu0 %v1554
        %v1556 = vpop.xlane.xlu0 %1555
        %v1557 = vsub.f32 %v1549, %v1553
        %v1558 = vsub.f32 %v1550, %v1556
        %v1559 = vmul.f32 %v1557, 1.442695
        %v1560 = vpow.pop %v1559
        %v1561 = vmul.f32 %v1558, 1.442695
        %v1562 = vpow.pop %v1561
        %v1563 = vsel %vm1326, %v1560, 0.0
        %1564 = vadd.xlane.f32.xlu0 %v1563
        %v1565 = vpop.xlane.xlu0 %1564
        %v1566 = vsel %vm1326, %v1562, 0.0
        %1567 = vadd.xlane.f32.xlu0 %v1566
        %v1568 = vpop.xlane.xlu0 %1567
        %v1569 = vrcp.pop %v1565
        %v1570 = vmul.f32 1.0, %v1569
        %v1571 = vrcp.pop %v1568
        %v1572 = vmul.f32 1.0, %v1571
        %v1573 = vlog2.pop %v1565
        %v1574 = vmul.f32 %v1573, 0.6931472
        %v1575 = vlog2.pop %v1568
        %v1576 = vmul.f32 %v1575, 0.6931472
        %v1577 = vmul.f32 %v1560, %v1557
        %v1578 = vmul.f32 %v1562, %v1558
        %v1579 = vsel %vm1326, %v1577, 0.0
        %1580 = vadd.xlane.f32.xlu0 %v1579
        %v1581 = vpop.xlane.xlu0 %1580
        %v1582 = vsel %vm1326, %v1578, 0.0
        %1583 = vadd.xlane.f32.xlu0 %v1582
        %v1584 = vpop.xlane.xlu0 %1583
        %v1585 = vmul.f32 %v1581, %v1570
        %v1586 = vmul.f32 %v1584, %v1572
        %v1587 = vsub.f32 %v1574, %v1585
        %v1588 = vsub.f32 %v1576, %v1586
        %v1589 = vpack.c.bf16 %v1562, %v1560
        %s1590 = scalar_lea.vmem [#allocation3], 16
        %v1591 = vld [vmem:[%s1590] sm:$0xf]
        %v1592 = vld [vmem:[%s1590 + $0x4] sm:$0xf]
        %v1593 = vld [vmem:[%s1590 + $0x8] sm:$0xf]
        %v1594 = vld [vmem:[%s1590 + $0xc] sm:$0xf]
        %v1599 = vunpack.c.l.b16 %v1591
        %v1600 = vunpack.c.l.b16 %v1592
        %v1601 = vunpack.c.l.b16 %v1593
        %v1602 = vunpack.c.l.b16 %v1594
        %v1603 = vpack.c.b16 %v1600, %v1599
        %v1604 = vpack.c.b16 %v1602, %v1601
        %v1608 = vsel %vm1326, %v1589, 0
        %1610 = vmatprep.subr.bf16.mxu0 0
        %1611 = vmatpush1.bf16.msra.mxu0 0
        %1612 = vmatprep.subr.bf16.mxu0 0
        %1613 = vmatpush1.bf16.msra.mxu0 0
        %1614 = vmatprep.subr.bf16.mxu0 0
        %1615 = vmatpush1.bf16.msra.mxu0 0
        %1616 = vmatprep.subr.bf16.mxu0 0
        %1617 = vmatpush1.bf16.msra.mxu0 0
        %1618 = vmatprep.subr.bf16.mxu0 0
        %1619 = vmatpush1.bf16.msra.mxu0 0
        %1620 = vmatprep.subr.bf16.mxu0 0
        %1621 = vmatpush1.bf16.msra.mxu0 0
        %1622 = vmatprep.subr.bf16.mxu0 0
        %1623 = vmatpush1.bf16.msra.mxu0 %v1604
        %1624 = vmatprep.subr.bf16.mxu0 0
        %1625 = vmatpush1.bf16.msra.mxu0 %v1603
        %1626 = vmatprep.subr.bf16.mxu0 0
        %1627 = vmatpush2.bf16.msra.mxu0 0
        %1628 = vmatprep.subr.bf16.mxu0 0
        %1629 = vmatpush2.bf16.msra.mxu0 0
        %1630 = vmatprep.subr.bf16.mxu0 0
        %1631 = vmatpush2.bf16.msra.mxu0 0
        %1632 = vmatprep.subr.bf16.mxu0 0
        %1633 = vmatpush2.bf16.msra.mxu0 0
        %1634 = vmatprep.subr.bf16.mxu0 0
        %1635 = vmatpush2.bf16.msra.mxu0 0
        %1636 = vmatprep.subr.bf16.mxu0 0
        %1637 = vmatpush2.bf16.msra.mxu0 0
        %1638 = vmatprep.subr.bf16.mxu0 0
        %1639 = vmatpush2.bf16.msra.mxu0 0
        %1640 = vmatprep.subr.bf16.mxu0 0
        %1641 = vmatpush2.bf16.msra.mxu0 0
        %1642 = vmatprep.mubr.bf16.mxu0 0
        %1643 = vmatmul.mubr.bf16.gmra.mxu0 %v1608
        %v1644 = vpop.f32.mrf.mxu0
        %v1645 = vadd.f32 0.0, %v1644
        %v1646 = vpop.f32.mrf.mxu0
        %v1647 = vpop.f32.mrf.mxu0
        %v1648 = vadd.f32 0.0, %v1647
        %v1649 = vpop.f32.mrf.mxu0
        %1650 = vdwg.mxu0
        %v1651 = vmul.f32 %v1645, %v1570
        %v1652 = vmul.f32 %v1648, %v1572
        %v1653 = vpack.c.bf16 %v1652, %v1651
        %s1654 = scalar_lea.vmem [#allocation2], 32
        %v1655 = vld [vmem:[%s1654] sm:$0xf]
        %v1656 = vld [vmem:[%s1654 + $0x4] sm:$0xf]
        %v1657 = vld [vmem:[%s1654 + $0x8] sm:$0xf]
        %v1658 = vld [vmem:[%s1654 + $0xc] sm:$0xf]
        %1659 = vrot.lane.b32.xlu0 %v1311, 64
        %v1660 = vpop.permute.xlu0 %1659
        %v1665 = vunpack.c.l.b16 %v1655
        %v1666 = vunpack.c.l.b16 %v1656
        %v1667 = vunpack.c.l.b16 %v1657
        %v1668 = vunpack.c.l.b16 %v1658
        %v1669 = vpack.c.b16 %v1666, %v1665
        %v1670 = vpack.c.b16 %v1668, %v1667
        %v1672 = vsel %vm1326, %v1660, 0
        %v1675 = vsel %vm1326, %v1669, 0
        %v1678 = vsel %vm1326, %v1670, 0
        %1680 = vmatprep.subr.bf16.mxu0 0
        %1681 = vmatpush1.bf16.xpose.msra.mxu0 0
        %1682 = vmatprep.subr.bf16.mxu0 0
        %1683 = vmatpush1.bf16.xpose.msra.mxu0 0
        %1684 = vmatprep.subr.bf16.mxu0 0
        %1685 = vmatpush1.bf16.xpose.msra.mxu0 0
        %1686 = vmatprep.subr.bf16.mxu0 0
        %1687 = vmatpush1.bf16.xpose.msra.mxu0 0
        %1688 = vmatprep.subr.bf16.mxu0 0
        %1689 = vmatpush1.bf16.xpose.msra.mxu0 0
        %1690 = vmatprep.subr.bf16.mxu0 0
        %1691 = vmatpush1.bf16.xpose.msra.mxu0 0
        %1692 = vmatprep.subr.bf16.mxu0 0
        %1693 = vmatpush1.bf16.xpose.msra.mxu0 %v1678
        %1694 = vmatprep.subr.bf16.mxu0 0
        %1695 = vmatpush1.bf16.xpose.msra.mxu0 %v1675
        %1696 = vmatprep.subr.bf16.mxu0 0
        %1697 = vmatpush2.bf16.xpose.msra.mxu0 0
        %1698 = vmatprep.subr.bf16.mxu0 0
        %1699 = vmatpush2.bf16.xpose.msra.mxu0 0
        %1700 = vmatprep.subr.bf16.mxu0 0
        %1701 = vmatpush2.bf16.xpose.msra.mxu0 0
        %1702 = vmatprep.subr.bf16.mxu0 0
        %1703 = vmatpush2.bf16.xpose.msra.mxu0 0
        %1704 = vmatprep.subr.bf16.mxu0 0
        %1705 = vmatpush2.bf16.xpose.msra.mxu0 0
        %1706 = vmatprep.subr.bf16.mxu0 0
        %1707 = vmatpush2.bf16.xpose.msra.mxu0 0
        %1708 = vmatprep.subr.bf16.mxu0 0
        %1709 = vmatpush2.bf16.xpose.msra.mxu0 0
        %1710 = vmatprep.subr.bf16.mxu0 0
        %1711 = vmatpush2.bf16.xpose.msra.mxu0 0
        %1712 = vmatprep.mubr.bf16.mxu0 0
        %1713 = vmatmul.mubr.bf16.gmra.mxu0 %v1672
        %v1714 = vpop.f32.mrf.mxu0
        %v1715 = vadd.f32 0.0, %v1714
        %v1716 = vpop.f32.mrf.mxu0
        %v1717 = vpop.f32.mrf.mxu0
        %v1718 = vadd.f32 0.0, %v1717
        %v1719 = vpop.f32.mrf.mxu0
        %1720 = vdwg.mxu0
        %v1721 = vmul.f32 %v1715, 0.17677669
        %v1722 = vmul.f32 %v1718, 0.17677669
        %v1723 = vsel %vm1326, %v1721, -inf
        %1724 = vmax.xlane.f32.xlu0 %v1723
        %v1725 = vpop.xlane.xlu0 %1724
        %v1726 = vsel %vm1326, %v1722, -inf
        %1727 = vmax.xlane.f32.xlu0 %v1726
        %v1728 = vpop.xlane.xlu0 %1727
        %v1729 = vsub.f32 %v1721, %v1725
        %v1730 = vsub.f32 %v1722, %v1728
        %v1731 = vmul.f32 %v1729, 1.442695
        %v1732 = vpow.pop %v1731
        %v1733 = vmul.f32 %v1730, 1.442695
        %v1734 = vpow.pop %v1733
        %v1735 = vsel %vm1326, %v1732, 0.0
        %1736 = vadd.xlane.f32.xlu0 %v1735
        %v1737 = vpop.xlane.xlu0 %1736
        %v1738 = vsel %vm1326, %v1734, 0.0
        %1739 = vadd.xlane.f32.xlu0 %v1738
        %v1740 = vpop.xlane.xlu0 %1739
        %v1741 = vrcp.pop %v1737
        %v1742 = vmul.f32 1.0, %v1741
        %v1743 = vrcp.pop %v1740
        %v1744 = vmul.f32 1.0, %v1743
        %v1745 = vlog2.pop %v1737
        %v1746 = vmul.f32 %v1745, 0.6931472
        %v1747 = vlog2.pop %v1740
        %v1748 = vmul.f32 %v1747, 0.6931472
        %v1749 = vmul.f32 %v1732, %v1729
        %v1750 = vmul.f32 %v1734, %v1730
        %v1751 = vsel %vm1326, %v1749, 0.0
        %1752 = vadd.xlane.f32.xlu0 %v1751
        %v1753 = vpop.xlane.xlu0 %1752
        %v1754 = vsel %vm1326, %v1750, 0.0
        %1755 = vadd.xlane.f32.xlu0 %v1754
        %v1756 = vpop.xlane.xlu0 %1755
        %v1757 = vmul.f32 %v1753, %v1742
        %v1758 = vmul.f32 %v1756, %v1744
        %v1759 = vsub.f32 %v1746, %v1757
        %v1760 = vsub.f32 %v1748, %v1758
        %v1761 = vpack.c.bf16 %v1734, %v1732
        %s1762 = scalar_lea.vmem [#allocation3], 32
        %v1763 = vld [vmem:[%s1762] sm:$0xf]
        %v1764 = vld [vmem:[%s1762 + $0x4] sm:$0xf]
        %v1765 = vld [vmem:[%s1762 + $0x8] sm:$0xf]
        %v1766 = vld [vmem:[%s1762 + $0xc] sm:$0xf]
        %v1771 = vunpack.c.l.b16 %v1763
        %v1772 = vunpack.c.l.b16 %v1764
        %v1773 = vunpack.c.l.b16 %v1765
        %v1774 = vunpack.c.l.b16 %v1766
        %v1775 = vpack.c.b16 %v1772, %v1771
        %v1776 = vpack.c.b16 %v1774, %v1773
        %v1780 = vsel %vm1326, %v1761, 0
        %1782 = vmatprep.subr.bf16.mxu0 0
        %1783 = vmatpush1.bf16.msra.mxu0 0
        %1784 = vmatprep.subr.bf16.mxu0 0
        %1785 = vmatpush1.bf16.msra.mxu0 0
        %1786 = vmatprep.subr.bf16.mxu0 0
        %1787 = vmatpush1.bf16.msra.mxu0 0
        %1788 = vmatprep.subr.bf16.mxu0 0
        %1789 = vmatpush1.bf16.msra.mxu0 0
        %1790 = vmatprep.subr.bf16.mxu0 0
        %1791 = vmatpush1.bf16.msra.mxu0 0
        %1792 = vmatprep.subr.bf16.mxu0 0
        %1793 = vmatpush1.bf16.msra.mxu0 0
        %1794 = vmatprep.subr.bf16.mxu0 0
        %1795 = vmatpush1.bf16.msra.mxu0 %v1776
        %1796 = vmatprep.subr.bf16.mxu0 0
        %1797 = vmatpush1.bf16.msra.mxu0 %v1775
        %1798 = vmatprep.subr.bf16.mxu0 0
        %1799 = vmatpush2.bf16.msra.mxu0 0
        %1800 = vmatprep.subr.bf16.mxu0 0
        %1801 = vmatpush2.bf16.msra.mxu0 0
        %1802 = vmatprep.subr.bf16.mxu0 0
        %1803 = vmatpush2.bf16.msra.mxu0 0
        %1804 = vmatprep.subr.bf16.mxu0 0
        %1805 = vmatpush2.bf16.msra.mxu0 0
        %1806 = vmatprep.subr.bf16.mxu0 0
        %1807 = vmatpush2.bf16.msra.mxu0 0
        %1808 = vmatprep.subr.bf16.mxu0 0
        %1809 = vmatpush2.bf16.msra.mxu0 0
        %1810 = vmatprep.subr.bf16.mxu0 0
        %1811 = vmatpush2.bf16.msra.mxu0 0
        %1812 = vmatprep.subr.bf16.mxu0 0
        %1813 = vmatpush2.bf16.msra.mxu0 0
        %1814 = vmatprep.mubr.bf16.mxu0 0
        %1815 = vmatmul.mubr.bf16.gmra.mxu0 %v1780
        %v1816 = vpop.f32.mrf.mxu0
        %v1817 = vadd.f32 0.0, %v1816
        %v1818 = vpop.f32.mrf.mxu0
        %v1819 = vpop.f32.mrf.mxu0
        %v1820 = vadd.f32 0.0, %v1819
        %v1821 = vpop.f32.mrf.mxu0
        %1822 = vdwg.mxu0
        %v1823 = vmul.f32 %v1817, %v1742
        %v1824 = vmul.f32 %v1820, %v1744
        %v1825 = vpack.c.bf16 %v1824, %v1823
        %s1826 = scalar_lea.vmem [#allocation2], 48
        %v1827 = vld [vmem:[%s1826] sm:$0xf]
        %v1828 = vld [vmem:[%s1826 + $0x4] sm:$0xf]
        %v1829 = vld [vmem:[%s1826 + $0x8] sm:$0xf]
        %v1830 = vld [vmem:[%s1826 + $0xc] sm:$0xf]
        %1831 = vrot.lane.b32.xlu0 %v1311, 32
        %v1832 = vpop.permute.xlu0 %1831
        %v1837 = vunpack.c.l.b16 %v1827
        %v1838 = vunpack.c.l.b16 %v1828
        %v1839 = vunpack.c.l.b16 %v1829
        %v1840 = vunpack.c.l.b16 %v1830
        %v1841 = vpack.c.b16 %v1838, %v1837
        %v1842 = vpack.c.b16 %v1840, %v1839
        %v1844 = vsel %vm1326, %v1832, 0
        %v1847 = vsel %vm1326, %v1841, 0
        %v1850 = vsel %vm1326, %v1842, 0
        %1852 = vmatprep.subr.bf16.mxu0 0
        %1853 = vmatpush1.bf16.xpose.msra.mxu0 0
        %1854 = vmatprep.subr.bf16.mxu0 0
        %1855 = vmatpush1.bf16.xpose.msra.mxu0 0
        %1856 = vmatprep.subr.bf16.mxu0 0
        %1857 = vmatpush1.bf16.xpose.msra.mxu0 0
        %1858 = vmatprep.subr.bf16.mxu0 0
        %1859 = vmatpush1.bf16.xpose.msra.mxu0 0
        %1860 = vmatprep.subr.bf16.mxu0 0
        %1861 = vmatpush1.bf16.xpose.msra.mxu0 0
        %1862 = vmatprep.subr.bf16.mxu0 0
        %1863 = vmatpush1.bf16.xpose.msra.mxu0 0
        %1864 = vmatprep.subr.bf16.mxu0 0
        %1865 = vmatpush1.bf16.xpose.msra.mxu0 %v1850
        %1866 = vmatprep.subr.bf16.mxu0 0
        %1867 = vmatpush1.bf16.xpose.msra.mxu0 %v1847
        %1868 = vmatprep.subr.bf16.mxu0 0
        %1869 = vmatpush2.bf16.xpose.msra.mxu0 0
        %1870 = vmatprep.subr.bf16.mxu0 0
        %1871 = vmatpush2.bf16.xpose.msra.mxu0 0
        %1872 = vmatprep.subr.bf16.mxu0 0
        %1873 = vmatpush2.bf16.xpose.msra.mxu0 0
        %1874 = vmatprep.subr.bf16.mxu0 0
        %1875 = vmatpush2.bf16.xpose.msra.mxu0 0
        %1876 = vmatprep.subr.bf16.mxu0 0
        %1877 = vmatpush2.bf16.xpose.msra.mxu0 0
        %1878 = vmatprep.subr.bf16.mxu0 0
        %1879 = vmatpush2.bf16.xpose.msra.mxu0 0
        %1880 = vmatprep.subr.bf16.mxu0 0
        %1881 = vmatpush2.bf16.xpose.msra.mxu0 0
        %1882 = vmatprep.subr.bf16.mxu0 0
        %1883 = vmatpush2.bf16.xpose.msra.mxu0 0
        %1884 = vmatprep.mubr.bf16.mxu0 0
        %1885 = vmatmul.mubr.bf16.gmra.mxu0 %v1844
        %v1886 = vpop.f32.mrf.mxu0
        %v1887 = vadd.f32 0.0, %v1886
        %v1888 = vpop.f32.mrf.mxu0
        %v1889 = vpop.f32.mrf.mxu0
        %v1890 = vadd.f32 0.0, %v1889
        %v1891 = vpop.f32.mrf.mxu0
        %1892 = vdwg.mxu0
        %v1893 = vmul.f32 %v1887, 0.17677669
        %v1894 = vmul.f32 %v1890, 0.17677669
        %v1895 = vsel %vm1326, %v1893, -inf
        %1896 = vmax.xlane.f32.xlu0 %v1895
        %v1897 = vpop.xlane.xlu0 %1896
        %v1898 = vsel %vm1326, %v1894, -inf
        %1899 = vmax.xlane.f32.xlu0 %v1898
        %v1900 = vpop.xlane.xlu0 %1899
        %v1901 = vsub.f32 %v1893, %v1897
        %v1902 = vsub.f32 %v1894, %v1900
        %v1903 = vmul.f32 %v1901, 1.442695
        %v1904 = vpow.pop %v1903
        %v1905 = vmul.f32 %v1902, 1.442695
        %v1906 = vpow.pop %v1905
        %v1907 = vsel %vm1326, %v1904, 0.0
        %1908 = vadd.xlane.f32.xlu0 %v1907
        %v1909 = vpop.xlane.xlu0 %1908
        %v1910 = vsel %vm1326, %v1906, 0.0
        %1911 = vadd.xlane.f32.xlu0 %v1910
        %v1912 = vpop.xlane.xlu0 %1911
        %v1913 = vrcp.pop %v1909
        %v1914 = vmul.f32 1.0, %v1913
        %v1915 = vrcp.pop %v1912
        %v1916 = vmul.f32 1.0, %v1915
        %v1917 = vlog2.pop %v1909
        %v1918 = vmul.f32 %v1917, 0.6931472
        %v1919 = vlog2.pop %v1912
        %v1920 = vmul.f32 %v1919, 0.6931472
        %v1921 = vmul.f32 %v1904, %v1901
        %v1922 = vmul.f32 %v1906, %v1902
        %v1923 = vsel %vm1326, %v1921, 0.0
        %1924 = vadd.xlane.f32.xlu0 %v1923
        %v1925 = vpop.xlane.xlu0 %1924
        %v1926 = vsel %vm1326, %v1922, 0.0
        %1927 = vadd.xlane.f32.xlu0 %v1926
        %v1928 = vpop.xlane.xlu0 %1927
        %v1929 = vmul.f32 %v1925, %v1914
        %v1930 = vmul.f32 %v1928, %v1916
        %v1931 = vsub.f32 %v1918, %v1929
        %v1932 = vsub.f32 %v1920, %v1930
        %v1933 = vpack.c.bf16 %v1906, %v1904
        %s1934 = scalar_lea.vmem [#allocation3], 48
        %v1935 = vld [vmem:[%s1934] sm:$0xf]
        %v1936 = vld [vmem:[%s1934 + $0x4] sm:$0xf]
        %v1937 = vld [vmem:[%s1934 + $0x8] sm:$0xf]
        %v1938 = vld [vmem:[%s1934 + $0xc] sm:$0xf]
        %v1943 = vunpack.c.l.b16 %v1935
        %v1944 = vunpack.c.l.b16 %v1936
        %v1945 = vunpack.c.l.b16 %v1937
        %v1946 = vunpack.c.l.b16 %v1938
        %v1947 = vpack.c.b16 %v1944, %v1943
        %v1948 = vpack.c.b16 %v1946, %v1945
        %v1952 = vsel %vm1326, %v1933, 0
        %1954 = vmatprep.subr.bf16.mxu0 0
        %1955 = vmatpush1.bf16.msra.mxu0 0
        %1956 = vmatprep.subr.bf16.mxu0 0
        %1957 = vmatpush1.bf16.msra.mxu0 0
        %1958 = vmatprep.subr.bf16.mxu0 0
        %1959 = vmatpush1.bf16.msra.mxu0 0
        %1960 = vmatprep.subr.bf16.mxu0 0
        %1961 = vmatpush1.bf16.msra.mxu0 0
        %1962 = vmatprep.subr.bf16.mxu0 0
        %1963 = vmatpush1.bf16.msra.mxu0 0
        %1964 = vmatprep.subr.bf16.mxu0 0
        %1965 = vmatpush1.bf16.msra.mxu0 0
        %1966 = vmatprep.subr.bf16.mxu0 0
        %1967 = vmatpush1.bf16.msra.mxu0 %v1948
        %1968 = vmatprep.subr.bf16.mxu0 0
        %1969 = vmatpush1.bf16.msra.mxu0 %v1947
        %1970 = vmatprep.subr.bf16.mxu0 0
        %1971 = vmatpush2.bf16.msra.mxu0 0
        %1972 = vmatprep.subr.bf16.mxu0 0
        %1973 = vmatpush2.bf16.msra.mxu0 0
        %1974 = vmatprep.subr.bf16.mxu0 0
        %1975 = vmatpush2.bf16.msra.mxu0 0
        %1976 = vmatprep.subr.bf16.mxu0 0
        %1977 = vmatpush2.bf16.msra.mxu0 0
        %1978 = vmatprep.subr.bf16.mxu0 0
        %1979 = vmatpush2.bf16.msra.mxu0 0
        %1980 = vmatprep.subr.bf16.mxu0 0
        %1981 = vmatpush2.bf16.msra.mxu0 0
        %1982 = vmatprep.subr.bf16.mxu0 0
        %1983 = vmatpush2.bf16.msra.mxu0 0
        %1984 = vmatprep.subr.bf16.mxu0 0
        %1985 = vmatpush2.bf16.msra.mxu0 0
        %1986 = vmatprep.mubr.bf16.mxu0 0
        %1987 = vmatmul.mubr.bf16.gmra.mxu0 %v1952
        %v1988 = vpop.f32.mrf.mxu0
        %v1989 = vadd.f32 0.0, %v1988
        %v1990 = vpop.f32.mrf.mxu0
        %v1991 = vpop.f32.mrf.mxu0
        %v1992 = vadd.f32 0.0, %v1991
        %v1993 = vpop.f32.mrf.mxu0
        %1994 = vdwg.mxu0
        %v1995 = vmul.f32 %v1989, %v1914
        %v1996 = vmul.f32 %v1992, %v1916
        %v1997 = vpack.c.bf16 %v1996, %v1995
        %vm1998 = vcmask 7168
        %v1999 = vsel %vm1998, %v1415, %v1587
        %v2000 = vsel %vm1998, %v1416, %v1588
        %vm2001 = vcmask 15360
        %v2002 = vsel %vm2001, %v1999, %v1759
        %v2003 = vsel %vm2001, %v2000, %v1760
        %vm2004 = vcmask 23552
        %v2005 = vsel %vm2004, %v2002, %v1931
        %v2006 = vsel %vm2004, %v2003, %v1932
        %vm2007 = vcmask 31744
        %2008 = vst.msk [vmem:[%s790] sm:$0xff] %vm2007, %v2005
        %2009 = vst.msk [vmem:[%s790 + $0x8] sm:$0xff] %vm2007, %v2006
        %2011 = vrot.lane.b32.xlu0 %v1653, 32
        %v2012 = vpop.permute.xlu0 %2011
        %2014 = vrot.lane.b32.xlu0 %v1825, 64
        %v2015 = vpop.permute.xlu0 %2014
        %2017 = vrot.lane.b32.xlu0 %v1997, 96
        %v2018 = vpop.permute.xlu0 %2017
        %v2021 = vsel %vm1326, %v1480, %v2012
        %vm2022 = vcmask 523264
        %v2024 = vsel %vm2022, %v2021, %v2015
        %vm2025 = vcmask 785408
        %v2027 = vsel %vm2025, %v2024, %v2018
        %v2029 = vld [vmem:[#allocation13] sm:$0xf]
        %v2030 = vld [vmem:[#allocation13 + $0x4] sm:$0xf]
        %v2031 = vld [vmem:[#allocation13 + $0x8] sm:$0xf]
        %v2032 = vld [vmem:[#allocation13 + $0xc] sm:$0xf]
        %v2033 = vld [vmem:[#allocation13 + $0x10] sm:$0xf]
        %v2034 = vld [vmem:[#allocation13 + $0x14] sm:$0xf]
        %v2035 = vld [vmem:[#allocation13 + $0x18] sm:$0xf]
        %v2036 = vld [vmem:[#allocation13 + $0x1c] sm:$0xf]
        %v2037 = vld [vmem:[#allocation13 + $0x20] sm:$0xf]
        %v2038 = vld [vmem:[#allocation13 + $0x24] sm:$0xf]
        %v2039 = vld [vmem:[#allocation13 + $0x28] sm:$0xf]
        %v2040 = vld [vmem:[#allocation13 + $0x2c] sm:$0xf]
        %v2041 = vld [vmem:[#allocation13 + $0x30] sm:$0xf]
        %v2042 = vld [vmem:[#allocation13 + $0x34] sm:$0xf]
        %v2043 = vld [vmem:[#allocation13 + $0x38] sm:$0xf]
        %v2044 = vld [vmem:[#allocation13 + $0x3c] sm:$0xf]
        %v2045 = vld [vmem:[%s9] sm:$0x1]
        %v2047 = vlaneseq
        %v2048 = vshrl.u32 %v2047, 7
        %v2049 = vsub.s32 0, %v2048
        %v2050 = vrot.slane %v2045, %v2049
        %v2068 = vunpack.c.l.b16 %v2029
        %v2069 = vunpack.c.l.b16 %v2030
        %v2070 = vunpack.c.l.b16 %v2031
        %v2071 = vunpack.c.l.b16 %v2032
        %v2072 = vunpack.c.l.b16 %v2033
        %v2073 = vunpack.c.l.b16 %v2034
        %v2074 = vunpack.c.l.b16 %v2035
        %v2075 = vunpack.c.l.b16 %v2036
        %v2076 = vunpack.c.l.b16 %v2037
        %v2077 = vunpack.c.l.b16 %v2038
        %v2078 = vunpack.c.l.b16 %v2039
        %v2079 = vunpack.c.l.b16 %v2040
        %v2080 = vunpack.c.l.b16 %v2041
        %v2081 = vunpack.c.l.b16 %v2042
        %v2082 = vunpack.c.l.b16 %v2043
        %v2083 = vunpack.c.l.b16 %v2044
        %v2084 = vpack.c.b16 %v2069, %v2068
        %v2085 = vpack.c.b16 %v2071, %v2070
        %v2086 = vpack.c.b16 %v2073, %v2072
        %v2087 = vpack.c.b16 %v2075, %v2074
        %v2088 = vpack.c.b16 %v2077, %v2076
        %v2089 = vpack.c.b16 %v2079, %v2078
        %v2090 = vpack.c.b16 %v2081, %v2080
        %v2091 = vpack.c.b16 %v2083, %v2082
        %2100 = vmatprep.subr.bf16.mxu0 0
        %2101 = vmatpush1.bf16.msra.mxu0 %v2091
        %2102 = vmatprep.subr.bf16.mxu0 0
        %2103 = vmatpush1.bf16.msra.mxu0 %v2090
        %2104 = vmatprep.subr.bf16.mxu0 0
        %2105 = vmatpush1.bf16.msra.mxu0 %v2089
        %2106 = vmatprep.subr.bf16.mxu0 0
        %2107 = vmatpush1.bf16.msra.mxu0 %v2088
        %2108 = vmatprep.subr.bf16.mxu0 0
        %2109 = vmatpush1.bf16.msra.mxu0 %v2087
        %2110 = vmatprep.subr.bf16.mxu0 0
        %2111 = vmatpush1.bf16.msra.mxu0 %v2086
        %2112 = vmatprep.subr.bf16.mxu0 0
        %2113 = vmatpush1.bf16.msra.mxu0 %v2085
        %2114 = vmatprep.subr.bf16.mxu0 0
        %2115 = vmatpush1.bf16.msra.mxu0 %v2084
        %2116 = vmatprep.subr.bf16.mxu0 0
        %2117 = vmatpush2.bf16.msra.mxu0 0
        %2118 = vmatprep.subr.bf16.mxu0 0
        %2119 = vmatpush2.bf16.msra.mxu0 0
        %2120 = vmatprep.subr.bf16.mxu0 0
        %2121 = vmatpush2.bf16.msra.mxu0 0
        %2122 = vmatprep.subr.bf16.mxu0 0
        %2123 = vmatpush2.bf16.msra.mxu0 0
        %2124 = vmatprep.subr.bf16.mxu0 0
        %2125 = vmatpush2.bf16.msra.mxu0 0
        %2126 = vmatprep.subr.bf16.mxu0 0
        %2127 = vmatpush2.bf16.msra.mxu0 0
        %2128 = vmatprep.subr.bf16.mxu0 0
        %2129 = vmatpush2.bf16.msra.mxu0 0
        %2130 = vmatprep.subr.bf16.mxu0 0
        %2131 = vmatpush2.bf16.msra.mxu0 0
        %2132 = vmatprep.mubr.bf16.mxu0 0
        %2133 = vmatmul.mubr.bf16.gmra.mxu0 %v2027
        %v2134 = vpop.f32.mrf.mxu0
        %v2135 = vadd.f32 %v2050, %v2134
        %v2136 = vpop.f32.mrf.mxu0
        %v2137 = vpop.f32.mrf.mxu0
        %v2138 = vadd.f32 %v2050, %v2137
        %v2139 = vpop.f32.mrf.mxu0
        %2140 = vdwg.mxu0
        %v2141 = vadd.f32 %v1196, %v2135
        %v2142 = vadd.f32 %v1197, %v2138
        %v2143 = vld [vmem:[%s10] sm:$0x1]
        %v2144 = vld [vmem:[%s11] sm:$0x1]
        %2145 = vadd.xlane.f32.xlu0 %v2141
        %v2146 = vpop.xlane.xlu0 %2145
        %2147 = vadd.xlane.f32.xlu0 %v2142
        %v2148 = vpop.xlane.xlu0 %2147
        %v2149 = vrcp.pop 128.0
        %v2150 = vmul.f32 %v2146, %v2149
        %v2151 = vmul.f32 %v2148, %v2149
        %v2152 = vsub.f32 %v2141, %v2150
        %v2153 = vsub.f32 %v2142, %v2151
        %v2154 = vmul.f32 %v2152, %v2152
        %v2155 = vmul.f32 %v2153, %v2153
        %2156 = vadd.xlane.f32.xlu0 %v2154
        %v2157 = vpop.xlane.xlu0 %2156
        %2158 = vadd.xlane.f32.xlu0 %v2155
        %v2159 = vpop.xlane.xlu0 %2158
        %v2160 = vmul.f32 %v2157, %v2149
        %v2161 = vmul.f32 %v2159, %v2149
        %v2162 = vadd.f32 %v2160, 1e-05
        %v2163 = vadd.f32 %v2161, 1e-05
        %v2164 = vrsqrt.pop %v2162
        %v2165 = vrsqrt.pop %v2163
        %v2166 = vmul.f32 %v2152, %v2164
        %v2167 = vmul.f32 %v2153, %v2165
        %v2169 = vlaneseq
        %v2170 = vshrl.u32 %v2169, 7
        %v2171 = vsub.s32 0, %v2170
        %v2172 = vrot.slane %v2143, %v2171
        %v2174 = vmul.f32 %v2166, %v2172
        %v2175 = vmul.f32 %v2167, %v2172
        %v2177 = vlaneseq
        %v2178 = vshrl.u32 %v2177, 7
        %v2179 = vsub.s32 0, %v2178
        %v2180 = vrot.slane %v2144, %v2179
        %v2182 = vadd.f32 %v2174, %v2180
        %v2183 = vadd.f32 %v2175, %v2180
        %v2184 = vpack.c.bf16 %v2183, %v2182
        %v2185 = vld [vmem:[#allocation15] sm:$0xff]
        %v2186 = vld [vmem:[#allocation15 + $0x8] sm:$0xff]
        %v2187 = vld [vmem:[#allocation15 + $0x10] sm:$0xff]
        %v2188 = vld [vmem:[#allocation15 + $0x18] sm:$0xff]
        %v2189 = vld [vmem:[#allocation15 + $0x20] sm:$0xff]
        %v2190 = vld [vmem:[#allocation15 + $0x28] sm:$0xff]
        %v2191 = vld [vmem:[#allocation15 + $0x30] sm:$0xff]
        %v2192 = vld [vmem:[#allocation15 + $0x38] sm:$0xff]
        %v2193 = vld [vmem:[#allocation15 + $0x40] sm:$0xff]
        %v2194 = vld [vmem:[#allocation15 + $0x48] sm:$0xff]
        %v2195 = vld [vmem:[#allocation15 + $0x50] sm:$0xff]
        %v2196 = vld [vmem:[#allocation15 + $0x58] sm:$0xff]
        %v2197 = vld [vmem:[#allocation15 + $0x60] sm:$0xff]
        %v2198 = vld [vmem:[#allocation15 + $0x68] sm:$0xff]
        %v2199 = vld [vmem:[#allocation15 + $0x70] sm:$0xff]
        %v2200 = vld [vmem:[#allocation15 + $0x78] sm:$0xff]
        %v2201 = vld [vmem:[#allocation15 + $0x80] sm:$0xff]
        %v2202 = vld [vmem:[#allocation15 + $0x88] sm:$0xff]
        %v2203 = vld [vmem:[#allocation15 + $0x90] sm:$0xff]
        %v2204 = vld [vmem:[#allocation15 + $0x98] sm:$0xff]
        %v2205 = vld [vmem:[#allocation15 + $0xa0] sm:$0xff]
        %v2206 = vld [vmem:[#allocation15 + $0xa8] sm:$0xff]
        %v2207 = vld [vmem:[#allocation15 + $0xb0] sm:$0xff]
        %v2208 = vld [vmem:[#allocation15 + $0xb8] sm:$0xff]
        %v2209 = vld [vmem:[#allocation15 + $0xc0] sm:$0xff]
        %v2210 = vld [vmem:[#allocation15 + $0xc8] sm:$0xff]
        %v2211 = vld [vmem:[#allocation15 + $0xd0] sm:$0xff]
        %v2212 = vld [vmem:[#allocation15 + $0xd8] sm:$0xff]
        %v2213 = vld [vmem:[#allocation15 + $0xe0] sm:$0xff]
        %v2214 = vld [vmem:[#allocation15 + $0xe8] sm:$0xff]
        %v2215 = vld [vmem:[#allocation15 + $0xf0] sm:$0xff]
        %v2216 = vld [vmem:[#allocation15 + $0xf8] sm:$0xff]
        %v2217 = vld [vmem:[%s13] sm:$0xf]
        %v2219 = vlaneseq
        %v2220 = vshrl.u32 %v2219, 7
        %v2221 = vsub.s32 0, %v2220
        %v2222 = vrot.slane %v2217, %v2221
        %v2223 = vlaneseq
        %v2224 = vshrl.u32 %v2223, 7
        %v2225 = vsub.s32 1, %v2224
        %v2226 = vrot.slane %v2217, %v2225
        %v2227 = vlaneseq
        %v2228 = vshrl.u32 %v2227, 7
        %v2229 = vsub.s32 2, %v2228
        %v2230 = vrot.slane %v2217, %v2229
        %v2231 = vlaneseq
        %v2232 = vshrl.u32 %v2231, 7
        %v2233 = vsub.s32 3, %v2232
        %v2234 = vrot.slane %v2217, %v2233
        %v2271 = vunpack.c.l.b16 %v2185
        %v2272 = vunpack.c.h.b16 %v2185
        %v2273 = vunpack.c.l.b16 %v2186
        %v2274 = vunpack.c.h.b16 %v2186
        %v2275 = vunpack.c.l.b16 %v2187
        %v2276 = vunpack.c.h.b16 %v2187
        %v2277 = vunpack.c.l.b16 %v2188
        %v2278 = vunpack.c.h.b16 %v2188
        %v2279 = vunpack.c.l.b16 %v2189
        %v2280 = vunpack.c.h.b16 %v2189
        %v2281 = vunpack.c.l.b16 %v2190
        %v2282 = vunpack.c.h.b16 %v2190
        %v2283 = vunpack.c.l.b16 %v2191
        %v2284 = vunpack.c.h.b16 %v2191
        %v2285 = vunpack.c.l.b16 %v2192
        %v2286 = vunpack.c.h.b16 %v2192
        %v2287 = vunpack.c.l.b16 %v2193
        %v2288 = vunpack.c.h.b16 %v2193
        %v2289 = vunpack.c.l.b16 %v2194
        %v2290 = vunpack.c.h.b16 %v2194
        %v2291 = vunpack.c.l.b16 %v2195
        %v2292 = vunpack.c.h.b16 %v2195
        %v2293 = vunpack.c.l.b16 %v2196
        %v2294 = vunpack.c.h.b16 %v2196
        %v2295 = vunpack.c.l.b16 %v2197
        %v2296 = vunpack.c.h.b16 %v2197
        %v2297 = vunpack.c.l.b16 %v2198
        %v2298 = vunpack.c.h.b16 %v2198
        %v2299 = vunpack.c.l.b16 %v2199
        %v2300 = vunpack.c.h.b16 %v2199
        %v2301 = vunpack.c.l.b16 %v2200
        %v2302 = vunpack.c.h.b16 %v2200
        %v2303 = vunpack.c.l.b16 %v2201
        %v2304 = vunpack.c.h.b16 %v2201
        %v2305 = vunpack.c.l.b16 %v2202
        %v2306 = vunpack.c.h.b16 %v2202
        %v2307 = vunpack.c.l.b16 %v2203
        %v2308 = vunpack.c.h.b16 %v2203
        %v2309 = vunpack.c.l.b16 %v2204
        %v2310 = vunpack.c.h.b16 %v2204
        %v2311 = vunpack.c.l.b16 %v2205
        %v2312 = vunpack.c.h.b16 %v2205
        %v2313 = vunpack.c.l.b16 %v2206
        %v2314 = vunpack.c.h.b16 %v2206
        %v2315 = vunpack.c.l.b16 %v2207
        %v2316 = vunpack.c.h.b16 %v2207
        %v2317 = vunpack.c.l.b16 %v2208
        %v2318 = vunpack.c.h.b16 %v2208
        %v2319 = vunpack.c.l.b16 %v2209
        %v2320 = vunpack.c.h.b16 %v2209
        %v2321 = vunpack.c.l.b16 %v2210
        %v2322 = vunpack.c.h.b16 %v2210
        %v2323 = vunpack.c.l.b16 %v2211
        %v2324 = vunpack.c.h.b16 %v2211
        %v2325 = vunpack.c.l.b16 %v2212
        %v2326 = vunpack.c.h.b16 %v2212
        %v2327 = vunpack.c.l.b16 %v2213
        %v2328 = vunpack.c.h.b16 %v2213
        %v2329 = vunpack.c.l.b16 %v2214
        %v2330 = vunpack.c.h.b16 %v2214
        %v2331 = vunpack.c.l.b16 %v2215
        %v2332 = vunpack.c.h.b16 %v2215
        %v2333 = vunpack.c.l.b16 %v2216
        %v2334 = vunpack.c.h.b16 %v2216
        %v2335 = vpack.c.b16 %v2275, %v2271
        %v2336 = vpack.c.b16 %v2276, %v2272
        %v2337 = vpack.c.b16 %v2277, %v2273
        %v2338 = vpack.c.b16 %v2278, %v2274
        %v2339 = vpack.c.b16 %v2283, %v2279
        %v2340 = vpack.c.b16 %v2284, %v2280
        %v2341 = vpack.c.b16 %v2285, %v2281
        %v2342 = vpack.c.b16 %v2286, %v2282
        %v2343 = vpack.c.b16 %v2291, %v2287
        %v2344 = vpack.c.b16 %v2292, %v2288
        %v2345 = vpack.c.b16 %v2293, %v2289
        %v2346 = vpack.c.b16 %v2294, %v2290
        %v2347 = vpack.c.b16 %v2299, %v2295
        %v2348 = vpack.c.b16 %v2300, %v2296
        %v2349 = vpack.c.b16 %v2301, %v2297
        %v2350 = vpack.c.b16 %v2302, %v2298
        %v2351 = vpack.c.b16 %v2307, %v2303
        %v2352 = vpack.c.b16 %v2308, %v2304
        %v2353 = vpack.c.b16 %v2309, %v2305
        %v2354 = vpack.c.b16 %v2310, %v2306
        %v2355 = vpack.c.b16 %v2315, %v2311
        %v2356 = vpack.c.b16 %v2316, %v2312
        %v2357 = vpack.c.b16 %v2317, %v2313
        %v2358 = vpack.c.b16 %v2318, %v2314
        %v2359 = vpack.c.b16 %v2323, %v2319
        %v2360 = vpack.c.b16 %v2324, %v2320
        %v2361 = vpack.c.b16 %v2325, %v2321
        %v2362 = vpack.c.b16 %v2326, %v2322
        %v2363 = vpack.c.b16 %v2331, %v2327
        %v2364 = vpack.c.b16 %v2332, %v2328
        %v2365 = vpack.c.b16 %v2333, %v2329
        %v2366 = vpack.c.b16 %v2334, %v2330
        %2399 = vmatprep.subr.bf16.mxu0 %v2364
        %2400 = vmatpush1.bf16.msra.mxu0 %v2363
        %2401 = vmatprep.subr.bf16.mxu0 %v2360
        %2402 = vmatpush1.bf16.msra.mxu0 %v2359
        %2403 = vmatprep.subr.bf16.mxu0 %v2356
        %2404 = vmatpush1.bf16.msra.mxu0 %v2355
        %2405 = vmatprep.subr.bf16.mxu0 %v2352
        %2406 = vmatpush1.bf16.msra.mxu0 %v2351
        %2407 = vmatprep.subr.bf16.mxu0 %v2348
        %2408 = vmatpush1.bf16.msra.mxu0 %v2347
        %2409 = vmatprep.subr.bf16.mxu0 %v2344
        %2410 = vmatpush1.bf16.msra.mxu0 %v2343
        %2411 = vmatprep.subr.bf16.mxu0 %v2340
        %2412 = vmatpush1.bf16.msra.mxu0 %v2339
        %2413 = vmatprep.subr.bf16.mxu0 %v2336
        %2414 = vmatpush1.bf16.msra.mxu0 %v2335
        %2415 = vmatprep.subr.bf16.mxu0 0
        %2416 = vmatpush2.bf16.msra.mxu0 0
        %2417 = vmatprep.subr.bf16.mxu0 0
        %2418 = vmatpush2.bf16.msra.mxu0 0
        %2419 = vmatprep.subr.bf16.mxu0 0
        %2420 = vmatpush2.bf16.msra.mxu0 0
        %2421 = vmatprep.subr.bf16.mxu0 0
        %2422 = vmatpush2.bf16.msra.mxu0 0
        %2423 = vmatprep.subr.bf16.mxu0 0
        %2424 = vmatpush2.bf16.msra.mxu0 0
        %2425 = vmatprep.subr.bf16.mxu0 0
        %2426 = vmatpush2.bf16.msra.mxu0 0
        %2427 = vmatprep.subr.bf16.mxu0 0
        %2428 = vmatpush2.bf16.msra.mxu0 0
        %2429 = vmatprep.subr.bf16.mxu0 0
        %2430 = vmatpush2.bf16.msra.mxu0 0
        %2431 = vmatprep.mubr.bf16.mxu0 0
        %2432 = vmatmul.mubr.bf16.gmra.mxu0 %v2184
        %v2433 = vpop.f32.mrf.mxu0
        %v2434 = vadd.f32 %v2222, %v2433
        %v2435 = vpop.f32.mrf.mxu0
        %v2436 = vadd.f32 %v2226, %v2435
        %v2437 = vpop.f32.mrf.mxu0
        %v2438 = vadd.f32 %v2222, %v2437
        %v2439 = vpop.f32.mrf.mxu0
        %v2440 = vadd.f32 %v2226, %v2439
        %2441 = vdwg.mxu0
        %2442 = vmatprep.subr.bf16.mxu0 %v2366
        %2443 = vmatpush1.bf16.msra.mxu0 %v2365
        %2444 = vmatprep.subr.bf16.mxu0 %v2362
        %2445 = vmatpush1.bf16.msra.mxu0 %v2361
        %2446 = vmatprep.subr.bf16.mxu0 %v2358
        %2447 = vmatpush1.bf16.msra.mxu0 %v2357
        %2448 = vmatprep.subr.bf16.mxu0 %v2354
        %2449 = vmatpush1.bf16.msra.mxu0 %v2353
        %2450 = vmatprep.subr.bf16.mxu0 %v2350
        %2451 = vmatpush1.bf16.msra.mxu0 %v2349
        %2452 = vmatprep.subr.bf16.mxu0 %v2346
        %2453 = vmatpush1.bf16.msra.mxu0 %v2345
        %2454 = vmatprep.subr.bf16.mxu0 %v2342
        %2455 = vmatpush1.bf16.msra.mxu0 %v2341
        %2456 = vmatprep.subr.bf16.mxu0 %v2338
        %2457 = vmatpush1.bf16.msra.mxu0 %v2337
        %2458 = vmatprep.subr.bf16.mxu0 0
        %2459 = vmatpush2.bf16.msra.mxu0 0
        %2460 = vmatprep.subr.bf16.mxu0 0
        %2461 = vmatpush2.bf16.msra.mxu0 0
        %2462 = vmatprep.subr.bf16.mxu0 0
        %2463 = vmatpush2.bf16.msra.mxu0 0
        %2464 = vmatprep.subr.bf16.mxu0 0
        %2465 = vmatpush2.bf16.msra.mxu0 0
        %2466 = vmatprep.subr.bf16.mxu0 0
        %2467 = vmatpush2.bf16.msra.mxu0 0
        %2468 = vmatprep.subr.bf16.mxu0 0
        %2469 = vmatpush2.bf16.msra.mxu0 0
        %2470 = vmatprep.subr.bf16.mxu0 0
        %2471 = vmatpush2.bf16.msra.mxu0 0
        %2472 = vmatprep.subr.bf16.mxu0 0
        %2473 = vmatpush2.bf16.msra.mxu0 0
        %2474 = vmatprep.mubr.bf16.mxu0 0
        %2475 = vmatmul.mubr.bf16.gmra.mxu0 %v2184
        %v2476 = vpop.f32.mrf.mxu0
        %v2477 = vadd.f32 %v2230, %v2476
        %v2478 = vpop.f32.mrf.mxu0
        %v2479 = vadd.f32 %v2234, %v2478
        %v2480 = vpop.f32.mrf.mxu0
        %v2481 = vadd.f32 %v2230, %v2480
        %v2482 = vpop.f32.mrf.mxu0
        %v2483 = vadd.f32 %v2234, %v2482
        %2484 = vdwg.mxu0
        %v2485 = vmax.f32 %v2434, 0.0
        %v2486 = vmax.f32 %v2436, 0.0
        %v2487 = vmax.f32 %v2477, 0.0
        %v2488 = vmax.f32 %v2479, 0.0
        %v2489 = vmax.f32 %v2438, 0.0
        %v2490 = vmax.f32 %v2440, 0.0
        %v2491 = vmax.f32 %v2481, 0.0
        %v2492 = vmax.f32 %v2483, 0.0
        %v2493 = vpack.c.bf16 %v2489, %v2485
        %v2494 = vpack.c.bf16 %v2490, %v2486
        %v2495 = vpack.c.bf16 %v2491, %v2487
        %v2496 = vpack.c.bf16 %v2492, %v2488
        %v2497 = vld [vmem:[#allocation16] sm:$0xf]
        %v2498 = vld [vmem:[#allocation16 + $0x4] sm:$0xf]
        %v2499 = vld [vmem:[#allocation16 + $0x8] sm:$0xf]
        %v2500 = vld [vmem:[#allocation16 + $0xc] sm:$0xf]
        %v2501 = vld [vmem:[#allocation16 + $0x10] sm:$0xf]
        %v2502 = vld [vmem:[#allocation16 + $0x14] sm:$0xf]
        %v2503 = vld [vmem:[#allocation16 + $0x18] sm:$0xf]
        %v2504 = vld [vmem:[#allocation16 + $0x1c] sm:$0xf]
        %v2505 = vld [vmem:[#allocation16 + $0x20] sm:$0xf]
        %v2506 = vld [vmem:[#allocation16 + $0x24] sm:$0xf]
        %v2507 = vld [vmem:[#allocation16 + $0x28] sm:$0xf]
        %v2508 = vld [vmem:[#allocation16 + $0x2c] sm:$0xf]
        %v2509 = vld [vmem:[#allocation16 + $0x30] sm:$0xf]
        %v2510 = vld [vmem:[#allocation16 + $0x34] sm:$0xf]
        %v2511 = vld [vmem:[#allocation16 + $0x38] sm:$0xf]
        %v2512 = vld [vmem:[#allocation16 + $0x3c] sm:$0xf]
        %v2513 = vld [vmem:[#allocation16 + $0x40] sm:$0xf]
        %v2514 = vld [vmem:[#allocation16 + $0x44] sm:$0xf]
        %v2515 = vld [vmem:[#allocation16 + $0x48] sm:$0xf]
        %v2516 = vld [vmem:[#allocation16 + $0x4c] sm:$0xf]
        %v2517 = vld [vmem:[#allocation16 + $0x50] sm:$0xf]
        %v2518 = vld [vmem:[#allocation16 + $0x54] sm:$0xf]
        %v2519 = vld [vmem:[#allocation16 + $0x58] sm:$0xf]
        %v2520 = vld [vmem:[#allocation16 + $0x5c] sm:$0xf]
        %v2521 = vld [vmem:[#allocation16 + $0x60] sm:$0xf]
        %v2522 = vld [vmem:[#allocation16 + $0x64] sm:$0xf]
        %v2523 = vld [vmem:[#allocation16 + $0x68] sm:$0xf]
        %v2524 = vld [vmem:[#allocation16 + $0x6c] sm:$0xf]
        %v2525 = vld [vmem:[#allocation16 + $0x70] sm:$0xf]
        %v2526 = vld [vmem:[#allocation16 + $0x74] sm:$0xf]
        %v2527 = vld [vmem:[#allocation16 + $0x78] sm:$0xf]
        %v2528 = vld [vmem:[#allocation16 + $0x7c] sm:$0xf]
        %v2529 = vld [vmem:[#allocation16 + $0x80] sm:$0xf]
        %v2530 = vld [vmem:[#allocation16 + $0x84] sm:$0xf]
        %v2531 = vld [vmem:[#allocation16 + $0x88] sm:$0xf]
        %v2532 = vld [vmem:[#allocation16 + $0x8c] sm:$0xf]
        %v2533 = vld [vmem:[#allocation16 + $0x90] sm:$0xf]
        %v2534 = vld [vmem:[#allocation16 + $0x94] sm:$0xf]
        %v2535 = vld [vmem:[#allocation16 + $0x98] sm:$0xf]
        %v2536 = vld [vmem:[#allocation16 + $0x9c] sm:$0xf]
        %v2537 = vld [vmem:[#allocation16 + $0xa0] sm:$0xf]
        %v2538 = vld [vmem:[#allocation16 + $0xa4] sm:$0xf]
        %v2539 = vld [vmem:[#allocation16 + $0xa8] sm:$0xf]
        %v2540 = vld [vmem:[#allocation16 + $0xac] sm:$0xf]
        %v2541 = vld [vmem:[#allocation16 + $0xb0] sm:$0xf]
        %v2542 = vld [vmem:[#allocation16 + $0xb4] sm:$0xf]
        %v2543 = vld [vmem:[#allocation16 + $0xb8] sm:$0xf]
        %v2544 = vld [vmem:[#allocation16 + $0xbc] sm:$0xf]
        %v2545 = vld [vmem:[#allocation16 + $0xc0] sm:$0xf]
        %v2546 = vld [vmem:[#allocation16 + $0xc4] sm:$0xf]
        %v2547 = vld [vmem:[#allocation16 + $0xc8] sm:$0xf]
        %v2548 = vld [vmem:[#allocation16 + $0xcc] sm:$0xf]
        %v2549 = vld [vmem:[#allocation16 + $0xd0] sm:$0xf]
        %v2550 = vld [vmem:[#allocation16 + $0xd4] sm:$0xf]
        %v2551 = vld [vmem:[#allocation16 + $0xd8] sm:$0xf]
        %v2552 = vld [vmem:[#allocation16 + $0xdc] sm:$0xf]
        %v2553 = vld [vmem:[#allocation16 + $0xe0] sm:$0xf]
        %v2554 = vld [vmem:[#allocation16 + $0xe4] sm:$0xf]
        %v2555 = vld [vmem:[#allocation16 + $0xe8] sm:$0xf]
        %v2556 = vld [vmem:[#allocation16 + $0xec] sm:$0xf]
        %v2557 = vld [vmem:[#allocation16 + $0xf0] sm:$0xf]
        %v2558 = vld [vmem:[#allocation16 + $0xf4] sm:$0xf]
        %v2559 = vld [vmem:[#allocation16 + $0xf8] sm:$0xf]
        %v2560 = vld [vmem:[#allocation16 + $0xfc] sm:$0xf]
        %v2561 = vld [vmem:[%s15] sm:$0x1]
        %v2563 = vlaneseq
        %v2564 = vshrl.u32 %v2563, 7
        %v2565 = vsub.s32 0, %v2564
        %v2566 = vrot.slane %v2561, %v2565
        %v2632 = vunpack.c.l.b16 %v2497
        %v2633 = vunpack.c.l.b16 %v2498
        %v2634 = vunpack.c.l.b16 %v2499
        %v2635 = vunpack.c.l.b16 %v2500
        %v2636 = vunpack.c.l.b16 %v2501
        %v2637 = vunpack.c.l.b16 %v2502
        %v2638 = vunpack.c.l.b16 %v2503
        %v2639 = vunpack.c.l.b16 %v2504
        %v2640 = vunpack.c.l.b16 %v2505
        %v2641 = vunpack.c.l.b16 %v2506
        %v2642 = vunpack.c.l.b16 %v2507
        %v2643 = vunpack.c.l.b16 %v2508
        %v2644 = vunpack.c.l.b16 %v2509
        %v2645 = vunpack.c.l.b16 %v2510
        %v2646 = vunpack.c.l.b16 %v2511
        %v2647 = vunpack.c.l.b16 %v2512
        %v2648 = vunpack.c.l.b16 %v2513
        %v2649 = vunpack.c.l.b16 %v2514
        %v2650 = vunpack.c.l.b16 %v2515
        %v2651 = vunpack.c.l.b16 %v2516
        %v2652 = vunpack.c.l.b16 %v2517
        %v2653 = vunpack.c.l.b16 %v2518
        %v2654 = vunpack.c.l.b16 %v2519
        %v2655 = vunpack.c.l.b16 %v2520
        %v2656 = vunpack.c.l.b16 %v2521
        %v2657 = vunpack.c.l.b16 %v2522
        %v2658 = vunpack.c.l.b16 %v2523
        %v2659 = vunpack.c.l.b16 %v2524
        %v2660 = vunpack.c.l.b16 %v2525
        %v2661 = vunpack.c.l.b16 %v2526
        %v2662 = vunpack.c.l.b16 %v2527
        %v2663 = vunpack.c.l.b16 %v2528
        %v2664 = vunpack.c.l.b16 %v2529
        %v2665 = vunpack.c.l.b16 %v2530
        %v2666 = vunpack.c.l.b16 %v2531
        %v2667 = vunpack.c.l.b16 %v2532
        %v2668 = vunpack.c.l.b16 %v2533
        %v2669 = vunpack.c.l.b16 %v2534
        %v2670 = vunpack.c.l.b16 %v2535
        %v2671 = vunpack.c.l.b16 %v2536
        %v2672 = vunpack.c.l.b16 %v2537
        %v2673 = vunpack.c.l.b16 %v2538
        %v2674 = vunpack.c.l.b16 %v2539
        %v2675 = vunpack.c.l.b16 %v2540
        %v2676 = vunpack.c.l.b16 %v2541
        %v2677 = vunpack.c.l.b16 %v2542
        %v2678 = vunpack.c.l.b16 %v2543
        %v2679 = vunpack.c.l.b16 %v2544
        %v2680 = vunpack.c.l.b16 %v2545
        %v2681 = vunpack.c.l.b16 %v2546
        %v2682 = vunpack.c.l.b16 %v2547
        %v2683 = vunpack.c.l.b16 %v2548
        %v2684 = vunpack.c.l.b16 %v2549
        %v2685 = vunpack.c.l.b16 %v2550
        %v2686 = vunpack.c.l.b16 %v2551
        %v2687 = vunpack.c.l.b16 %v2552
        %v2688 = vunpack.c.l.b16 %v2553
        %v2689 = vunpack.c.l.b16 %v2554
        %v2690 = vunpack.c.l.b16 %v2555
        %v2691 = vunpack.c.l.b16 %v2556
        %v2692 = vunpack.c.l.b16 %v2557
        %v2693 = vunpack.c.l.b16 %v2558
        %v2694 = vunpack.c.l.b16 %v2559
        %v2695 = vunpack.c.l.b16 %v2560
        %v2696 = vpack.c.b16 %v2633, %v2632
        %v2697 = vpack.c.b16 %v2635, %v2634
        %v2698 = vpack.c.b16 %v2637, %v2636
        %v2699 = vpack.c.b16 %v2639, %v2638
        %v2700 = vpack.c.b16 %v2641, %v2640
        %v2701 = vpack.c.b16 %v2643, %v2642
        %v2702 = vpack.c.b16 %v2645, %v2644
        %v2703 = vpack.c.b16 %v2647, %v2646
        %v2704 = vpack.c.b16 %v2649, %v2648
        %v2705 = vpack.c.b16 %v2651, %v2650
        %v2706 = vpack.c.b16 %v2653, %v2652
        %v2707 = vpack.c.b16 %v2655, %v2654
        %v2708 = vpack.c.b16 %v2657, %v2656
        %v2709 = vpack.c.b16 %v2659, %v2658
        %v2710 = vpack.c.b16 %v2661, %v2660
        %v2711 = vpack.c.b16 %v2663, %v2662
        %v2712 = vpack.c.b16 %v2665, %v2664
        %v2713 = vpack.c.b16 %v2667, %v2666
        %v2714 = vpack.c.b16 %v2669, %v2668
        %v2715 = vpack.c.b16 %v2671, %v2670
        %v2716 = vpack.c.b16 %v2673, %v2672
        %v2717 = vpack.c.b16 %v2675, %v2674
        %v2718 = vpack.c.b16 %v2677, %v2676
        %v2719 = vpack.c.b16 %v2679, %v2678
        %v2720 = vpack.c.b16 %v2681, %v2680
        %v2721 = vpack.c.b16 %v2683, %v2682
        %v2722 = vpack.c.b16 %v2685, %v2684
        %v2723 = vpack.c.b16 %v2687, %v2686
        %v2724 = vpack.c.b16 %v2689, %v2688
        %v2725 = vpack.c.b16 %v2691, %v2690
        %v2726 = vpack.c.b16 %v2693, %v2692
        %v2727 = vpack.c.b16 %v2695, %v2694
        %2760 = vmatprep.subr.bf16.mxu0 0
        %2761 = vmatpush1.bf16.msra.mxu0 %v2703
        %2762 = vmatprep.subr.bf16.mxu0 0
        %2763 = vmatpush1.bf16.msra.mxu0 %v2702
        %2764 = vmatprep.subr.bf16.mxu0 0
        %2765 = vmatpush1.bf16.msra.mxu0 %v2701
        %2766 = vmatprep.subr.bf16.mxu0 0
        %2767 = vmatpush1.bf16.msra.mxu0 %v2700
        %2768 = vmatprep.subr.bf16.mxu0 0
        %2769 = vmatpush1.bf16.msra.mxu0 %v2699
        %2770 = vmatprep.subr.bf16.mxu0 0
        %2771 = vmatpush1.bf16.msra.mxu0 %v2698
        %2772 = vmatprep.subr.bf16.mxu0 0
        %2773 = vmatpush1.bf16.msra.mxu0 %v2697
        %2774 = vmatprep.subr.bf16.mxu0 0
        %2775 = vmatpush1.bf16.msra.mxu0 %v2696
        %2776 = vmatprep.subr.bf16.mxu0 0
        %2777 = vmatpush2.bf16.msra.mxu0 %v2711
        %2778 = vmatprep.subr.bf16.mxu0 0
        %2779 = vmatpush2.bf16.msra.mxu0 %v2710
        %2780 = vmatprep.subr.bf16.mxu0 0
        %2781 = vmatpush2.bf16.msra.mxu0 %v2709
        %2782 = vmatprep.subr.bf16.mxu0 0
        %2783 = vmatpush2.bf16.msra.mxu0 %v2708
        %2784 = vmatprep.subr.bf16.mxu0 0
        %2785 = vmatpush2.bf16.msra.mxu0 %v2707
        %2786 = vmatprep.subr.bf16.mxu0 0
        %2787 = vmatpush2.bf16.msra.mxu0 %v2706
        %2788 = vmatprep.subr.bf16.mxu0 0
        %2789 = vmatpush2.bf16.msra.mxu0 %v2705
        %2790 = vmatprep.subr.bf16.mxu0 0
        %2791 = vmatpush2.bf16.msra.mxu0 %v2704
        %2792 = vmatprep.mubr.bf16.mxu0 %v2494
        %2793 = vmatmul.mubr.bf16.gmra.mxu0 %v2493
        %v2794 = vpop.f32.mrf.mxu0
        %v2795 = vadd.f32 %v2566, %v2794
        %v2796 = vpop.f32.mrf.mxu0
        %v2797 = vpop.f32.mrf.mxu0
        %v2798 = vadd.f32 %v2566, %v2797
        %v2799 = vpop.f32.mrf.mxu0
        %2800 = vdwg.mxu0
        %2801 = vmatprep.subr.bf16.mxu0 0
        %2802 = vmatpush1.bf16.msra.mxu0 %v2719
        %2803 = vmatprep.subr.bf16.mxu0 0
        %2804 = vmatpush1.bf16.msra.mxu0 %v2718
        %2805 = vmatprep.subr.bf16.mxu0 0
        %2806 = vmatpush1.bf16.msra.mxu0 %v2717
        %2807 = vmatprep.subr.bf16.mxu0 0
        %2808 = vmatpush1.bf16.msra.mxu0 %v2716
        %2809 = vmatprep.subr.bf16.mxu0 0
        %2810 = vmatpush1.bf16.msra.mxu0 %v2715
        %2811 = vmatprep.subr.bf16.mxu0 0
        %2812 = vmatpush1.bf16.msra.mxu0 %v2714
        %2813 = vmatprep.subr.bf16.mxu0 0
        %2814 = vmatpush1.bf16.msra.mxu0 %v2713
        %2815 = vmatprep.subr.bf16.mxu0 0
        %2816 = vmatpush1.bf16.msra.mxu0 %v2712
        %2817 = vmatprep.subr.bf16.mxu0 0
        %2818 = vmatpush2.bf16.msra.mxu0 %v2727
        %2819 = vmatprep.subr.bf16.mxu0 0
        %2820 = vmatpush2.bf16.msra.mxu0 %v2726
        %2821 = vmatprep.subr.bf16.mxu0 0
        %2822 = vmatpush2.bf16.msra.mxu0 %v2725
        %2823 = vmatprep.subr.bf16.mxu0 0
        %2824 = vmatpush2.bf16.msra.mxu0 %v2724
        %2825 = vmatprep.subr.bf16.mxu0 0
        %2826 = vmatpush2.bf16.msra.mxu0 %v2723
        %2827 = vmatprep.subr.bf16.mxu0 0
        %2828 = vmatpush2.bf16.msra.mxu0 %v2722
        %2829 = vmatprep.subr.bf16.mxu0 0
        %2830 = vmatpush2.bf16.msra.mxu0 %v2721
        %2831 = vmatprep.subr.bf16.mxu0 0
        %2832 = vmatpush2.bf16.msra.mxu0 %v2720
        %2833 = vmatprep.mubr.bf16.mxu0 %v2496
        %2834 = vmatmul.mubr.bf16.gmra.mxu0 %v2495
        %v2835 = vpop.f32.mrf.mxu0
        %v2836 = vadd.f32 %v2795, %v2835
        %v2837 = vpop.f32.mrf.mxu0
        %v2838 = vpop.f32.mrf.mxu0
        %v2839 = vadd.f32 %v2798, %v2838
        %v2840 = vpop.f32.mrf.mxu0
        %2841 = vdwg.mxu0
        %v2842 = vadd.f32 %v2182, %v2836
        %v2843 = vadd.f32 %v2183, %v2839
        %v2844 = vld [vmem:[%s16] sm:$0x1]
        %v2845 = vld [vmem:[%s17] sm:$0x1]
        %2846 = vadd.xlane.f32.xlu0 %v2842
        %v2847 = vpop.xlane.xlu0 %2846
        %2848 = vadd.xlane.f32.xlu0 %v2843
        %v2849 = vpop.xlane.xlu0 %2848
        %v2850 = vmul.f32 %v2847, %v2149
        %v2851 = vmul.f32 %v2849, %v2149
        %v2852 = vsub.f32 %v2842, %v2850
        %v2853 = vsub.f32 %v2843, %v2851
        %v2854 = vmul.f32 %v2852, %v2852
        %v2855 = vmul.f32 %v2853, %v2853
        %2856 = vadd.xlane.f32.xlu0 %v2854
        %v2857 = vpop.xlane.xlu0 %2856
        %2858 = vadd.xlane.f32.xlu0 %v2855
        %v2859 = vpop.xlane.xlu0 %2858
        %v2860 = vmul.f32 %v2857, %v2149
        %v2861 = vmul.f32 %v2859, %v2149
        %v2862 = vadd.f32 %v2860, 1e-05
        %v2863 = vadd.f32 %v2861, 1e-05
        %v2864 = vrsqrt.pop %v2862
        %v2865 = vrsqrt.pop %v2863
        %v2866 = vmul.f32 %v2852, %v2864
        %v2867 = vmul.f32 %v2853, %v2865
        %v2869 = vlaneseq
        %v2870 = vshrl.u32 %v2869, 7
        %v2871 = vsub.s32 0, %v2870
        %v2872 = vrot.slane %v2844, %v2871
        %v2874 = vmul.f32 %v2866, %v2872
        %v2875 = vmul.f32 %v2867, %v2872
        %v2877 = vlaneseq
        %v2878 = vshrl.u32 %v2877, 7
        %v2879 = vsub.s32 0, %v2878
        %v2880 = vrot.slane %v2845, %v2879
        %v2882 = vadd.f32 %v2874, %v2880
        %v2883 = vadd.f32 %v2875, %v2880
        %v2884 = vpack.c.bf16 %v2883, %v2882
        %v2886 = vunpack.c.l.b16 %v2884
        %v2887 = vunpack.c.h.b16 %v2884
        %v2888 = vpack.c.b16 %v2886, %v2886
        %v2889 = vpack.c.b16 %v2887, %v2887
        %2892 = vst [vmem:[%s768] sm:$0xf] %v2888
        %2893 = vst [vmem:[%s768 + $0x4] sm:$0xf] %v2889
        %s2894 = sand.u32 %s455, 1
        %s2895 = scalar_lea.sflag [#allocation6], %s2894
        %s2896 = sand.u32 %s455, 1
        %s2897 = smul.addr %s2896, 8
        %s2898 = scalar_lea.vmem [#allocation18], %s2897
        %s2899 = smul.u32 2, %s48
        %p2900 = scmp.lt.s32.totalorder %s47, 1
        %s2901 = scalar_select %p2900, %s47, 1
        %p2902 = scmp.lt.s32.totalorder %s2899, 1
        %s2903 = scalar_select %p2902, %s2899, 1
        %s2904 = smul.addr %s2901, 2
        %s2905 = sadd.s32 %s2903, %s2904
        %s2906 = smul.addr %s2905, 8
        %s2907 = scalar_lea.vmem %s19, %s2906
        // Predicated region
        $region129: #{tpu_custom_call.1} parent=91 // pred_check
          %p2908 = pneg %p465
        $region130: #{tpu_custom_call.1} parent=91 // pred_check_branch
          %2910 = sbr.rel (%p2908) target = $region132
        $region131: #{tpu_custom_call.1} parent=91 // pred_region
          %s2911 = smul.u32 2, %s48
          %s2913 = ssub.s32 128, 128
          %2914 = vsyncadd %s2895, %s2913
          %s2915 = smul.addr %s47, 2
          %s2916 = sadd.s32 %s2911, %s2915
          %s2917 = smul.addr %s2916, 64
          %s2918 = scalar_lea.hbm %s18, %s2917
          %s2919 = sshll.u32 %s2898, 4
          %s2920 = int_to_ptr.vmem [resolvable:$true] %s2919
          %2925 = dma.vmem_to_hbm [thread:$0]  %s2920, 128, %s2918, %s2895, 64, 64, 4
        $region132: #{tpu_custom_call.1} parent=91 // pred_fallthru
          _
        // Predicated region
        $region133: #{tpu_custom_call.1} parent=91 // pred_check
          %p2926 = pneg %p493
        $region134: #{tpu_custom_call.1} parent=91 // pred_check_branch
          %2928 = sbr.rel (%p2926) target = $region136
        $region135: #{tpu_custom_call.1} parent=91 // pred_region
          %s2929 = smul.u32 2, %s48
        $region136: #{tpu_custom_call.1} parent=91 // pred_fallthru
          _
      $region92: #{tpu_custom_call.1} parent=5 // pred_fallthru
        _
      %p2930 = scmp.le.s32.totalorder 2, %s38
      // Predicated region
      $region137: #{tpu_custom_call.1} parent=5 // pred_check
        %p2931 = pneg %p2930
      $region138: #{tpu_custom_call.1} parent=5 // pred_check_branch
        %2933 = sbr.rel (%p2931) target = $region140
      $region139: #{tpu_custom_call.1} parent=5 // pred_region
        %s2934 = ssub.s32 %s38, 2
        // Predicated region
        $region141: #{tpu_custom_call.1} parent=139 // pred_check
          %p2935 = pneg %p471
        $region142: #{tpu_custom_call.1} parent=139 // pred_check_branch
          %2937 = sbr.rel (%p2935) target = $region144
        $region143: #{tpu_custom_call.1} parent=139 // pred_region
          %s2938 = sand.u32 %s456, 1
          %s2939 = scalar_lea.sflag [#allocation6], %s2938
          %s2940 = sand.u32 %s456, 1
          %s2941 = smul.addr %s2940, 8
          %s2942 = scalar_lea.vmem [#allocation18], %s2941
          %2943 = dma.done %s2939, 128
        $region144: #{tpu_custom_call.1} parent=139 // pred_fallthru
          _
        // Predicated region
        $region145: #{tpu_custom_call.1} parent=139 // pred_check
          %p2944 = pneg %p499
        $region146: #{tpu_custom_call.1} parent=139 // pred_check_branch
          %2946 = sbr.rel (%p2944) target = $region148
        $region147: #{tpu_custom_call.1} parent=139 // pred_region
          %s2947 = smul.u32 2, %s50
          %p2948 = scmp.lt.s32.totalorder %s49, 1
          %s2949 = scalar_select %p2948, %s49, 1
          %p2950 = scmp.lt.s32.totalorder %s2947, 1
          %s2951 = scalar_select %p2950, %s2947, 1
          %s2952 = smul.addr %s2949, 2
          %s2953 = sadd.s32 %s2951, %s2952
          %s2954 = smul.addr %s2953, 8
          %s2955 = scalar_lea.vmem %s19, %s2954
        $region148: #{tpu_custom_call.1} parent=139 // pred_fallthru
          _
      $region140: #{tpu_custom_call.1} parent=5 // pred_fallthru
        _
    $region6: #{tpu_custom_call.1} parent=1 // loop_footer
      %s42 = sadd.s32 1, %s38
    $region7: #{tpu_custom_call.1} parent=1 // loop_footer_branch
      %37 = sbr.rel target = $region3
    $region8: #{tpu_custom_call.1} parent=1 // loop_exit
      _
    %2956 = vsyncpa [#allocation5], 1
    %s2957 = scalar_lea.sflag [#allocation5], 1
    %2958 = vsyncpa %s2957, 1
    %2959 = vsyncpa [#allocation8], 1
    %s2960 = scalar_lea.sflag [#allocation8], 1
    %2961 = vsyncpa %s2960, 1
    %2962 = vsyncpa [#allocation11], 1
    %2963 = vsyncpa [#allocation14], 1
    %2964 = vsyncpa [#allocation17], 1
    %2965 = vsyncpa [#allocation6], 1
    %s2966 = scalar_lea.sflag [#allocation6], 1
    %2967 = vsyncpa %s2966, 1

</llo_original>
